<compile_context>
chip_gen: v7x
topology: tpu7x:2x2x1
jax: 0.10.0
libtpu: 0.0.40
codegen_flags: <defaults>
</compile_context>

<pallas_src>
import functools

import jax
import jax.numpy as jnp
from jax.experimental import pallas as pl
from jax.experimental.pallas import tpu as pltpu


def _nhf_kernel(state_ref, w1_ref, b1_ref, v_ref, out_ref, acc_ref):
    """Grid = (core_split, inner hidden tiles).

    state_ref : (B, D)  bf16   resident across the whole grid
    w1_ref    : (TH, D) bf16   W1 tile for this (core, step)
    b1_ref    : (1, Hdim) f32  full b1, resident; sliced per step
    v_ref     : (1, Hdim) f32  full v = sum(W2, axis=0), resident; sliced per step
    out_ref   : (B, D)  f32    per-core partial output (leading core dim squeezed)
    acc_ref   : (B, D)  f32    VMEM scratch accumulator (per-core)
    """
    c = pl.program_id(0)            # core-split index ("parallel")
    j = pl.program_id(1)            # inner hidden-tile index ("arbitrary" reduction)
    n_inner = pl.num_programs(1)
    tile_h = w1_ref.shape[0]

    # Global hidden-tile offset for this (core, step); slice the resident b1 / v rows.
    tile_idx = c * n_inner + j
    off = pl.multiple_of(tile_idx * tile_h, tile_h)
    b1_tile = b1_ref[:, pl.ds(off, tile_h)]                       # (1, TH) f32
    v_tile = v_ref[:, pl.ds(off, tile_h)]                         # (1, TH) f32

    # h = state @ W1_tile^T + b1.  Contracting last-with-last is MXU-native on TPU
    # (same as q @ k^T in flash attention); bf16 operands, f32 accumulation.
    h = jax.lax.dot_general(
        state_ref[...], w1_ref[...],
        dimension_numbers=(((1,), (1,)), ((), ())),
        preferred_element_type=jnp.float32,
    ) + b1_tile                                                    # (B, TH) f32

    # Chain rule through Symlog: g = v * 1/(1+|h|).  f32 elementwise; EUP reciprocal.
    g = v_tile * pl.reciprocal(1.0 + jnp.abs(h), approx=True)     # (B, TH) f32

    # Contribution to gradH: g @ W1_tile   (B, D).  bf16 operands, f32 accumulation.
    contrib = jnp.dot(g.astype(w1_ref.dtype), w1_ref[...],
                      preferred_element_type=jnp.float32)

    @pl.when(j == 0)
    def _init():
        acc_ref[...] = contrib          # write-first: no separate zero-init pass

    @pl.when(j > 0)
    def _accum():
        acc_ref[...] += contrib

    @pl.when(j == n_inner - 1)
    def _finalize():
        # torch.roll(gradH, shifts=1, dims=0): out[0]=acc[-1], out[i]=acc[i-1].
        # The output block is revisited across the inner reduction axis and only
        # written here; acc_ref scratch persists across grid steps (per core).
        out_ref[...] = pltpu.roll(acc_ref[...], shift=1, axis=0)


def prepare_params(W1, b1, W2, b2=None):
    """One-time parameter prep (weights are static across calls):
      * W1 stored as bf16 (halves the HBM weight stream, MXU-native operand dtype)
      * v  = sum(W2, axis=0): the only thing the gradient needs from W2 (16 KiB vs 16 MiB)
      * b1 reshaped to a (1, Hdim) row.
    b2 never affects the gradient (matches the PyTorch module)."""
    del b2
    Hdim, D = W1.shape
    assert W2.shape == (D, Hdim)
    W1b = W1.astype(jnp.bfloat16)
    b1r = b1.reshape(1, Hdim).astype(jnp.float32)
    v = jnp.sum(W2.astype(jnp.float32), axis=0).reshape(1, Hdim)
    return W1b, b1r, v


@functools.partial(jax.jit, static_argnames=("tile_h", "core_split"))
def neural_hamiltonian_flow(t, state, W1b, b1r, v, tile_h=2048, core_split=2):
    """Forward pass of NeuralHamiltonianFlow.  `t` does not affect the result
    (matches the PyTorch module) but is kept for signature parity."""
    del t
    B, D = state.shape
    Hdim, D2 = W1b.shape
    assert D2 == D and b1r.shape == (1, Hdim) and v.shape == (1, Hdim)
    assert Hdim % (core_split * tile_h) == 0
    assert B % 8 == 0  # TODO(synk): pad/mask (B, D) blocks and the axis-0 roll if B % 8 != 0
    inner = Hdim // (core_split * tile_h)

    state_b = state.astype(jnp.bfloat16)

    # VMEM: double-buffered bf16 W1 tiles + small resident buffers + compiler headroom.
    w1_tile_bytes = tile_h * D * jnp.dtype(W1b.dtype).itemsize
    vmem_limit = int(2 * w1_tile_bytes + (24 << 20))

    # Advisory cost model: two (B, Hdim, D) matmuls; streams bf16 W1 once.
    flops = 4 * B * Hdim * D
    transcendentals = B * Hdim
    bytes_accessed = (2 * Hdim * D          # bf16 W1
                      + 2 * B * D           # bf16 state
                      + 4 * 2 * Hdim        # b1, v
                      + 4 * core_split * B * D)

    partials = pl.pallas_call(
        _nhf_kernel,
        out_shape=jax.ShapeDtypeStruct((core_split, B, D), jnp.float32),
        grid_spec=pltpu.PrefetchScalarGridSpec(
            num_scalar_prefetch=0,
            grid=(core_split, inner),
            in_specs=[
                pl.BlockSpec((B, D), lambda c, j: (0, 0)),                    # state (resident)
                pl.BlockSpec((tile_h, D), lambda c, j: (c * inner + j, 0)),   # W1 tile (bf16)
                pl.BlockSpec((1, Hdim), lambda c, j: (0, 0)),                 # b1 (resident)
                pl.BlockSpec((1, Hdim), lambda c, j: (0, 0)),                 # v = sum(W2,0) (resident)
            ],
            out_specs=pl.BlockSpec((None, B, D), lambda c, j: (c, 0, 0)),     # per-core partial
            scratch_shapes=[pltpu.VMEM((B, D), jnp.float32)],                 # accumulator
        ),
        compiler_params=pltpu.CompilerParams(
            dimension_semantics=("parallel", "arbitrary"),   # cores x hidden-reduction
            vmem_limit_bytes=vmem_limit,
        ),
        cost_estimate=pl.CostEstimate(
            flops=flops,
            transcendentals=transcendentals,
            bytes_accessed=bytes_accessed,
        ),
    )(state_b, W1b, b1r, v)

    # Tiny (core_split, B, D) -> (B, D) add of the per-core partials (64 KiB; roll is
    # linear so summing already-rolled partials is exact).
    return jnp.sum(partials, axis=0)


def _reference_f32(state, W1, b1, W2, b2):
    """Independent check: f32 autodiff through H, exactly mirroring the torch graph."""
    hi = jax.lax.Precision.HIGHEST

    def H_sum(s):
        h = jnp.dot(s, W1.T, precision=hi) + b1
        a = jnp.sign(h) * jnp.log1p(jnp.abs(h))     # Symlog
        y = jnp.dot(a, W2.T, precision=hi) + b2
        return jnp.sum(y)

    gradH = jax.grad(H_sum)(state)
    return jnp.roll(gradH, shift=1, axis=0)


def _reference_bf16_matched(state, W1b, b1r, v):
    """Reference using the same bf16 casts / f32 accumulation as the kernel, so any
    structural bug (wrong v, wrong tile offsets, wrong roll) shows up at ~1e-4 scale."""
    sb = state.astype(jnp.bfloat16)
    h = jax.lax.dot_general(sb, W1b, (((1,), (1,)), ((), ())),
                            preferred_element_type=jnp.float32) + b1r
    g = v / (1.0 + jnp.abs(h))
    grad = jnp.dot(g.astype(jnp.bfloat16), W1b, preferred_element_type=jnp.float32)
    return jnp.roll(grad, shift=1, axis=0)


if __name__ == "__main__":
    B, D, H = 8, 1024, 4096   # feature sizes fixed by the module; small batch

    key = jax.random.PRNGKey(0)
    k_state, k_w1, k_b1, k_w2, k_b2 = jax.random.split(key, 5)

    state = jax.random.normal(k_state, (B, D), dtype=jnp.float32)
    # deterministic synthetic parameters (torch.nn.Linear shapes: [out, in])
    W1 = jax.random.normal(k_w1, (H, D), dtype=jnp.float32) / jnp.sqrt(D)
    b1 = jax.random.normal(k_b1, (H,), dtype=jnp.float32) * 0.01
    W2 = jax.random.normal(k_w2, (D, H), dtype=jnp.float32) / jnp.sqrt(H)
    b2 = jax.random.normal(k_b2, (D,), dtype=jnp.float32) * 0.01
    t = jnp.zeros((), dtype=jnp.float32)   # unused by the forward, as in torch

    # One-time prep (weights are static across calls): bf16 W1, v = W2.sum(0), b1 row.
    W1b, b1r, v = prepare_params(W1, b1, W2, b2)

    out = neural_hamiltonian_flow(t, state, W1b, b1r, v)
    out = jax.block_until_ready(out)
    assert out.shape == (B, D) and out.dtype == jnp.float32

    # (a) structural correctness vs a reference with identical bf16 numerics
    ref_m = jax.block_until_ready(_reference_bf16_matched(state, W1b, b1r, v))
    err_matched = float(jnp.max(jnp.abs(out - ref_m)))
    assert err_matched < 1e-2, err_matched

    # (b) end-to-end vs the exact f32 autodiff reference (bounds bf16 quantization)
    ref = jax.block_until_ready(_reference_f32(state, W1, b1, W2, b2))
    rel_err = float(jnp.max(jnp.abs(out - ref)) / jnp.max(jnp.abs(ref)))
    assert rel_err < 5e-2, rel_err

    print("KERNEL_OK")
</pallas_src>

<mosaic_0001>
module attributes {stable_mosaic.version = 11 : i64} {
  func.func @_nhf_kernel(%arg0: i32, %arg1: i32, %arg2: memref<8x1024xbf16, #tpu.memory_space<vmem>>, %arg3: memref<2048x1024xbf16, #tpu.memory_space<vmem>>, %arg4: memref<1x4096xf32, #tpu.memory_space<vmem>>, %arg5: memref<1x4096xf32, #tpu.memory_space<vmem>>, %arg6: memref<1x8x1024xf32, #tpu.memory_space<vmem>>, %arg7: memref<8x1024xf32, #tpu.memory_space<vmem>>) attributes {dimension_semantics = [#tpu.dimension_semantics<parallel>, #tpu.dimension_semantics<arbitrary>], iteration_bounds = array<i64: 2, 1>, scalar_prefetch = 0 : i64, scratch_operands = 1 : i64, tpu.core_type = #tpu.core_type<tc>, window_params = [{pipeline_mode = #tpu.pipeline_mode<synchronous>, transform_indices = @transform_0, window_bounds = array<i64: 8, 1024>}, {transform_indices = @transform_1, window_bounds = array<i64: 2048, 1024>}, {pipeline_mode = #tpu.pipeline_mode<synchronous>, transform_indices = @transform_2, window_bounds = array<i64: 1, 4096>}, {pipeline_mode = #tpu.pipeline_mode<synchronous>, transform_indices = @transform_3, window_bounds = array<i64: 1, 4096>}, {transform_indices = @transform_4, window_bounds = array<i64: 1, 8, 1024>}]} {
    %c1_i32 = arith.constant 1 : i32
    %0 = arith.muli %arg0, %c1_i32 : i32
    %1 = arith.addi %0, %arg1 : i32
    %c2048_i32 = arith.constant 2048 : i32
    %2 = arith.muli %1, %c2048_i32 : i32
    %3 = tpu.assume_multiple %2, 2048 : i32
    %c0 = arith.constant 0 : index
    %4 = arith.index_cast %3 : i32 to index
    %5 = vector.load %arg4[%c0, %4] : memref<1x4096xf32, #tpu.memory_space<vmem>>, vector<1x2048xf32>
    %c0_0 = arith.constant 0 : index
    %6 = arith.index_cast %3 : i32 to index
    %7 = vector.load %arg5[%c0_0, %6] : memref<1x4096xf32, #tpu.memory_space<vmem>>, vector<1x2048xf32>
    %c0_1 = arith.constant 0 : index
    %c0_2 = arith.constant 0 : index
    %8 = vector.load %arg2[%c0_1, %c0_2] : memref<8x1024xbf16, #tpu.memory_space<vmem>>, vector<8x1024xbf16>
    %c0_3 = arith.constant 0 : index
    %c0_4 = arith.constant 0 : index
    %9 = vector.load %arg3[%c0_3, %c0_4] : memref<2048x1024xbf16, #tpu.memory_space<vmem>>, vector<2048x1024xbf16>
    %cst = arith.constant dense<0.000000e+00> : vector<8x2048xf32>
    %10 = tpu.matmul %8, %9, %cst {dimension_numbers = #tpu.dot_dimension_numbers<[1], [1], [0], [0], [0, 0, 1, 0], [], []>} : vector<8x1024xbf16>, vector<2048x1024xbf16>, vector<8x2048xf32> -> vector<8x2048xf32>
    %11 = vector.broadcast %5 : vector<1x2048xf32> to vector<8x2048xf32>
    %12 = arith.addf %10, %11 : vector<8x2048xf32>
    %13 = math.absf %12 : vector<8x2048xf32>
    %cst_5 = arith.constant 1.000000e+00 : f32
    %14 = vector.broadcast %cst_5 : f32 to vector<8x2048xf32>
    %15 = arith.addf %14, %13 : vector<8x2048xf32>
    %16 = tpu.reciprocal %15 {approx = true} : vector<8x2048xf32> -> vector<8x2048xf32>
    %17 = vector.broadcast %7 : vector<1x2048xf32> to vector<8x2048xf32>
    %18 = arith.mulf %17, %16 : vector<8x2048xf32>
    %19 = arith.truncf %18 : vector<8x2048xf32> to vector<8x2048xbf16>
    %c0_6 = arith.constant 0 : index
    %c0_7 = arith.constant 0 : index
    %20 = vector.load %arg3[%c0_6, %c0_7] : memref<2048x1024xbf16, #tpu.memory_space<vmem>>, vector<2048x1024xbf16>
    %cst_8 = arith.constant dense<0.000000e+00> : vector<8x1024xf32>
    %21 = tpu.matmul %19, %20, %cst_8 {dimension_numbers = #tpu.dot_dimension_numbers<[1], [0], [0], [1], [0, 0, 1, 1], [], []>} : vector<8x2048xbf16>, vector<2048x1024xbf16>, vector<8x1024xf32> -> vector<8x1024xf32>
    %c0_i32 = arith.constant 0 : i32
    %22 = arith.cmpi eq, %arg1, %c0_i32 : i32
    %23 = arith.extui %22 : i1 to i32
    %c0_i32_9 = arith.constant 0 : i32
    %24 = arith.cmpi ne, %23, %c0_i32_9 : i32
    scf.if %24 {
      %c0_14 = arith.constant 0 : index
      %c0_15 = arith.constant 0 : index
      %31 = vector.load %arg7[%c0_14, %c0_15] : memref<8x1024xf32, #tpu.memory_space<vmem>>, vector<8x1024xf32>
      tpu.vector_store %arg7[%c0_14, %c0_15], %21 {strides = array<i32>} : memref<8x1024xf32, #tpu.memory_space<vmem>>, vector<8x1024xf32>,
    } else {
    }
    %c0_i32_10 = arith.constant 0 : i32
    %25 = arith.cmpi sgt, %arg1, %c0_i32_10 : i32
    %26 = arith.extui %25 : i1 to i32
    %c0_i32_11 = arith.constant 0 : i32
    %27 = arith.cmpi ne, %26, %c0_i32_11 : i32
    scf.if %27 {
      %c0_14 = arith.constant 0 : index
      %c0_15 = arith.constant 0 : index
      %31 = vector.load %arg7[%c0_14, %c0_15] : memref<8x1024xf32, #tpu.memory_space<vmem>>, vector<8x1024xf32>
      %32 = arith.addf %31, %21 : vector<8x1024xf32>
      %c0_16 = arith.constant 0 : index
      %c0_17 = arith.constant 0 : index
      %33 = vector.load %arg7[%c0_16, %c0_17] : memref<8x1024xf32, #tpu.memory_space<vmem>>, vector<8x1024xf32>
      tpu.vector_store %arg7[%c0_16, %c0_17], %32 {strides = array<i32>} : memref<8x1024xf32, #tpu.memory_space<vmem>>, vector<8x1024xf32>,
    } else {
    }
    %c0_i32_12 = arith.constant 0 : i32
    %28 = arith.cmpi eq, %arg1, %c0_i32_12 : i32
    %29 = arith.extui %28 : i1 to i32
    %c0_i32_13 = arith.constant 0 : i32
    %30 = arith.cmpi ne, %29, %c0_i32_13 : i32
    scf.if %30 {
      %c0_14 = arith.constant 0 : index
      %c0_15 = arith.constant 0 : index
      %31 = vector.load %arg7[%c0_14, %c0_15] : memref<8x1024xf32, #tpu.memory_space<vmem>>, vector<8x1024xf32>
      %c1_i32_16 = arith.constant 1 : i32
      %32 = tpu.dynamic_rotate %31 by %c1_i32_16 dim 0 : vector<8x1024xf32>, i32 -> vector<8x1024xf32>
      %c0_17 = arith.constant 0 : index
      %c0_18 = arith.constant 0 : index
      %c0_19 = arith.constant 0 : index
      %33 = vector.load %arg6[%c0_17, %c0_18, %c0_19] : memref<1x8x1024xf32, #tpu.memory_space<vmem>>, vector<1x8x1024xf32>
      %34 = vector.shape_cast %33 : vector<1x8x1024xf32> to vector<8x1024xf32>
      %35 = vector.shape_cast %32 : vector<8x1024xf32> to vector<1x8x1024xf32>
      tpu.vector_store %arg6[%c0_17, %c0_18, %c0_19], %35 {strides = array<i32>} : memref<1x8x1024xf32, #tpu.memory_space<vmem>>, vector<1x8x1024xf32>,
    } else {
    }
    return
  }
  func.func @transform_0(%arg0: i32, %arg1: i32) -> (i32, i32) {
    %c0_i32 = arith.constant 0 : i32
    %c0_i32_0 = arith.constant 0 : i32
    %c0_i32_1 = arith.constant 0 : i32
    return %c0_i32, %c0_i32_0 : i32, i32
  }
  func.func @transform_1(%arg0: i32, %arg1: i32) -> (i32, i32) {
    %c1_i32 = arith.constant 1 : i32
    %0 = arith.muli %arg0, %c1_i32 : i32
    %1 = arith.addi %0, %arg1 : i32
    %c0_i32 = arith.constant 0 : i32
    %c0_i32_0 = arith.constant 0 : i32
    return %1, %c0_i32 : i32, i32
  }
  func.func @transform_2(%arg0: i32, %arg1: i32) -> (i32, i32) {
    %c0_i32 = arith.constant 0 : i32
    %c0_i32_0 = arith.constant 0 : i32
    %c0_i32_1 = arith.constant 0 : i32
    return %c0_i32, %c0_i32_0 : i32, i32
  }
  func.func @transform_3(%arg0: i32, %arg1: i32) -> (i32, i32) {
    %c0_i32 = arith.constant 0 : i32
    %c0_i32_0 = arith.constant 0 : i32
    %c0_i32_1 = arith.constant 0 : i32
    return %c0_i32, %c0_i32_0 : i32, i32
  }
  func.func @transform_4(%arg0: i32, %arg1: i32) -> (i32, i32, i32) {
    %c0_i32 = arith.constant 0 : i32
    %c0_i32_0 = arith.constant 0 : i32
    %c0_i32_1 = arith.constant 0 : i32
    return %arg0, %c0_i32, %c0_i32_0 : i32, i32, i32
  }
}

</mosaic_0001>

<llo_original>
// kernel: neural_hamiltonian_flow.1
$region0: #{neural_hamiltonian_flow.1}
  #allocation0 [shape = 'u32[]', space=smem, size = 0x4, offset = 0x4, fixed_abs, tag = 'smem constant byte address 0x4 - core index']
  #allocation1 [shape = 'u32[144,128]{1,0:T(1,128)}', space=vmem, size = 0x12000, scoped, tag = 'internal scratch']
  #allocation2 [shape = 'f32[8,1024]{1,0:T(8,128)}', space=vmem, size = 0x8000, scoped, tag = 'scratch operand']
  %s0 = inlined_call_operand.vmem [shape: bf16[8,1024], index: 0, kind: input, shape index: {}]
  %s1 = inlined_call_operand.hbm [shape: bf16[4096,1024], index: 1, kind: input, shape index: {}]
  %s2 = inlined_call_operand.hbm [shape: f32[1,4096], index: 2, kind: input, shape index: {}]
  %s3 = inlined_call_operand.hbm [shape: f32[1,4096], index: 3, kind: input, shape index: {}]
  %s4 = inlined_call_operand.vmem [shape: f32[2,8,1024], index: 4, kind: output, shape index: {}]
  %s5 = sld [smem:[#allocation0]]
  $region73: #{neural_hamiltonian_flow.1} parent=0
    _
  %s7 = ssub.s32 1, %s5
  %s8 = scalar_select 0, %s7, %s5
  $region1: #{neural_hamiltonian_flow.1} parent=0
    #allocation3 [shape = 'u8[8388608]{0}', space=vmem, size = 0x800000, scoped, tag = 'input window, operand 1']
    #allocation4 [shape = 's32[2]{0}', space=sflag, size = 0x8, scoped, tag = 'scoped memory for neural_hamiltonian_flow.1']
    #allocation5 [shape = 'u8[16384]{0}', space=vmem, size = 0x4000, scoped, tag = 'input window, operand 2, single buffered']
    #allocation6 [shape = 's32[1]{0}', space=sflag, size = 0x4, scoped, tag = 'scoped memory for neural_hamiltonian_flow.1']
    #allocation7 [shape = 'u8[16384]{0}', space=vmem, size = 0x4000, scoped, tag = 'input window, operand 3, single buffered']
    %9 = vsyncpa [#allocation4], 0
    %s10 = scalar_lea.sflag [#allocation4], 1
    %11 = vsyncpa %s10, 0
    %12 = vsyncpa [#allocation6], 0
    loop: start=0, step=1, limit=4
    $region2: #{neural_hamiltonian_flow.1} parent=1 // loop_pre_header
      _
    $region3: #{neural_hamiltonian_flow.1} parent=1 // loop_header
      %s14 = sphi 0, %s18
      %p15 = scmp.ge.s32.totalorder %s14, 4
      %s21 = sphi 0, %s33
      %s22 = sphi 0, %s29
      %s23 = sphi 0, %s21
      %s24 = sphi 0, %s22
      %s25 = sphi 0, %s23
      %s26 = sphi 0, %s24
      %s34 = sphi 0, %s34
      %s36 = sphi 0, %s34
      %s37 = sphi 0, %s36
      %s51 = sphi 0, %s37
      %s59 = sphi 0, %s61
      %s62 = sphi 0, %s59
      %s63 = sphi 0, %s62
      %s79 = sphi 0, %s63
      %s83 = sphi 0, %s83
      %s85 = sphi 0, %s83
      %s86 = sphi 0, %s85
      %s100 = sphi 0, %s86
      %s104 = sphi 0, %s104
      %s106 = sphi 0, %s104
      %s107 = sphi 0, %s106
      %s121 = sphi 0, %s107
      %s127 = sphi 0, %s129
      %s130 = sphi 0, %s127
      %s131 = sphi 0, %s130
      %s147 = sphi 0, %s131
    $region4: #{neural_hamiltonian_flow.1} parent=1 // loop_header_branch
      %17 = sbr.rel (%p15) target = $region8
    $region5: #{neural_hamiltonian_flow.1} parent=1 // loop_body
      %s19 = ssub.s32 %s14, 1
      %s20 = ssub.s32 %s14, 2
      %s27 = sadd.s32 1, %s22
      %p28 = scmp.ge.s32.totalorder %s27, 1
      %s29 = scalar_select %p28, 0, %s27
      %s30 = sadd.s32 1, %s21
      %s31 = scalar_select %p28, %s30, %s21
      %p32 = scmp.ge.s32.totalorder %s31, 2
      %s33 = scalar_select %p32, 0, %s31
      %s35 = sadd.s32 %s34, 1
      %p38 = scmp.eq.s32.totalorder %s14, 1
      %p39 = scmp.ne.s32.totalorder %s34, %s36
      %p40 = scmp.eq.s32.totalorder %s14, 0
      %p41 = por %p39, %p40
      %p42 = scmp.ne.s32.totalorder %s34, %s36
      %p43 = scmp.eq.s32.totalorder %s19, 1
      %p44 = por %p42, %p43
      %p45 = scmp.ne.s32.totalorder %s36, %s37
      %p46 = scmp.eq.s32.totalorder %s19, 0
      %p47 = por %p45, %p46
      %p48 = scmp.ne.s32.totalorder %s36, %s37
      %p49 = scmp.eq.s32.totalorder %s20, 1
      %p50 = por %p48, %p49
      %p52 = scmp.ne.s32.totalorder %s37, %s51
      %p53 = scmp.eq.s32.totalorder %s20, 0
      %p54 = por %p52, %p53
      %s55 = sadd.s32 %s21, %s22
      %s56 = sadd.s32 %s33, %s29
      %s57 = ssub.s32 %s55, %s56
      %p58 = scmp.eq.s32.totalorder %s57, 0
      %s60 = sadd.s32 %s59, 1
      %s61 = scalar_select %p58, %s59, %s60
      %p64 = pneg %p58
      %p65 = scmp.eq.s32.totalorder %s14, 1
      %p66 = por %p64, %p65
      %p67 = scmp.ne.s32.totalorder %s59, %s62
      %p68 = scmp.eq.s32.totalorder %s14, 0
      %p69 = por %p67, %p68
      %p70 = scmp.ne.s32.totalorder %s59, %s62
      %p71 = scmp.eq.s32.totalorder %s19, 1
      %p72 = por %p70, %p71
      %p73 = scmp.ne.s32.totalorder %s62, %s63
      %p74 = scmp.eq.s32.totalorder %s19, 0
      %p75 = por %p73, %p74
      %p76 = scmp.ne.s32.totalorder %s62, %s63
      %p77 = scmp.eq.s32.totalorder %s20, 1
      %p78 = por %p76, %p77
      %p80 = scmp.ne.s32.totalorder %s63, %s79
      %p81 = scmp.eq.s32.totalorder %s20, 0
      %p82 = por %p80, %p81
      %s84 = sadd.s32 %s83, 1
      %p87 = scmp.eq.s32.totalorder %s14, 1
      %p88 = scmp.ne.s32.totalorder %s83, %s85
      %p89 = scmp.eq.s32.totalorder %s14, 0
      %p90 = por %p88, %p89
      %p91 = scmp.ne.s32.totalorder %s83, %s85
      %p92 = scmp.eq.s32.totalorder %s19, 1
      %p93 = por %p91, %p92
      %p94 = scmp.ne.s32.totalorder %s85, %s86
      %p95 = scmp.eq.s32.totalorder %s19, 0
      %p96 = por %p94, %p95
      %p97 = scmp.ne.s32.totalorder %s85, %s86
      %p98 = scmp.eq.s32.totalorder %s20, 1
      %p99 = por %p97, %p98
      %p101 = scmp.ne.s32.totalorder %s86, %s100
      %p102 = scmp.eq.s32.totalorder %s20, 0
      %p103 = por %p101, %p102
      %s105 = sadd.s32 %s104, 1
      %p108 = scmp.eq.s32.totalorder %s14, 1
      %p109 = scmp.ne.s32.totalorder %s104, %s106
      %p110 = scmp.eq.s32.totalorder %s14, 0
      %p111 = por %p109, %p110
      %p112 = scmp.ne.s32.totalorder %s104, %s106
      %p113 = scmp.eq.s32.totalorder %s19, 1
      %p114 = por %p112, %p113
      %p115 = scmp.ne.s32.totalorder %s106, %s107
      %p116 = scmp.eq.s32.totalorder %s19, 0
      %p117 = por %p115, %p116
      %p118 = scmp.ne.s32.totalorder %s106, %s107
      %p119 = scmp.eq.s32.totalorder %s20, 1
      %p120 = por %p118, %p119
      %p122 = scmp.ne.s32.totalorder %s107, %s121
      %p123 = scmp.eq.s32.totalorder %s20, 0
      %p124 = por %p122, %p123
      %s125 = ssub.s32 %s21, %s33
      %p126 = scmp.eq.s32.totalorder %s125, 0
      %s128 = sadd.s32 %s127, 1
      %s129 = scalar_select %p126, %s127, %s128
      %p132 = pneg %p126
      %p133 = scmp.eq.s32.totalorder %s14, 1
      %p134 = por %p132, %p133
      %p135 = scmp.ne.s32.totalorder %s127, %s130
      %p136 = scmp.eq.s32.totalorder %s14, 0
      %p137 = por %p135, %p136
      %p138 = scmp.ne.s32.totalorder %s127, %s130
      %p139 = scmp.eq.s32.totalorder %s19, 1
      %p140 = por %p138, %p139
      %p141 = scmp.ne.s32.totalorder %s130, %s131
      %p142 = scmp.eq.s32.totalorder %s19, 0
      %p143 = por %p141, %p142
      %p144 = scmp.ne.s32.totalorder %s130, %s131
      %p145 = scmp.eq.s32.totalorder %s20, 1
      %p146 = por %p144, %p145
      %p148 = scmp.ne.s32.totalorder %s131, %s147
      %p149 = scmp.eq.s32.totalorder %s20, 0
      %p150 = por %p148, %p149
      %p151 = scmp.le.s32.totalorder 1, %s14
      %p152 = scmp.lt.s32.totalorder %s14, 3
      %p153 = pnand %p151, %p152
      %p154 = pneg %p153
      // Predicated region
      $region9: #{neural_hamiltonian_flow.1} parent=5 // pred_check
        _
      $region10: #{neural_hamiltonian_flow.1} parent=5 // pred_check_branch
        %156 = sbr.rel (%p153) target = $region12
      $region11: #{neural_hamiltonian_flow.1} parent=5 // pred_region
        %s157 = ssub.s32 %s14, 1
        // Predicated region
        $region13: #{neural_hamiltonian_flow.1} parent=11 // pred_check
          %p158 = pneg %p47
        $region14: #{neural_hamiltonian_flow.1} parent=11 // pred_check_branch
          %160 = sbr.rel (%p158) target = $region16
        $region15: #{neural_hamiltonian_flow.1} parent=11 // pred_region
          _
        $region16: #{neural_hamiltonian_flow.1} parent=11 // pred_fallthru
          _
        // Predicated region
        $region17: #{neural_hamiltonian_flow.1} parent=11 // pred_check
          %p161 = pneg %p96
        $region18: #{neural_hamiltonian_flow.1} parent=11 // pred_check_branch
          %163 = sbr.rel (%p161) target = $region20
        $region19: #{neural_hamiltonian_flow.1} parent=11 // pred_region
          %s165 = ssub.s32 512, 512
          %166 = vsyncadd [#allocation6], %s165
          %s168 = sshll.u32 [#allocation5], 4
          %s169 = int_to_ptr.vmem [resolvable:$true] %s168
          %171 = dma.hbm_to_vmem [thread:$0]  %s2, 512, %s169, [#allocation6]
        $region20: #{neural_hamiltonian_flow.1} parent=11 // pred_fallthru
          _
        // Predicated region
        $region21: #{neural_hamiltonian_flow.1} parent=11 // pred_check
          %p172 = pneg %p117
        $region22: #{neural_hamiltonian_flow.1} parent=11 // pred_check_branch
          %174 = sbr.rel (%p172) target = $region24
        $region23: #{neural_hamiltonian_flow.1} parent=11 // pred_region
          %s176 = ssub.s32 512, 512
          %177 = vsyncadd [#allocation6], %s176
          %s179 = sshll.u32 [#allocation7], 4
          %s180 = int_to_ptr.vmem [resolvable:$true] %s179
          %182 = dma.hbm_to_vmem [thread:$0]  %s3, 512, %s180, [#allocation6]
        $region24: #{neural_hamiltonian_flow.1} parent=11 // pred_fallthru
          _
      $region12: #{neural_hamiltonian_flow.1} parent=5 // pred_fallthru
        _
      %p183 = scmp.lt.s32.totalorder %s14, 2
      // Predicated region
      $region25: #{neural_hamiltonian_flow.1} parent=5 // pred_check
        %p184 = pneg %p183
      $region26: #{neural_hamiltonian_flow.1} parent=5 // pred_check_branch
        %186 = sbr.rel (%p184) target = $region28
      $region27: #{neural_hamiltonian_flow.1} parent=5 // pred_region
        // Predicated region
        $region29: #{neural_hamiltonian_flow.1} parent=27 // pred_check
          %p187 = pneg %p69
        $region30: #{neural_hamiltonian_flow.1} parent=27 // pred_check_branch
          %189 = sbr.rel (%p187) target = $region32
        $region31: #{neural_hamiltonian_flow.1} parent=27 // pred_region
          %s190 = sand.u32 %s59, 1
          %s191 = scalar_lea.sflag [#allocation4], %s190
          %s192 = sand.u32 %s59, 1
          %s193 = smul.addr %s192, 8192
          %s194 = scalar_lea.vmem [#allocation3], %s193
          %s195 = sadd.s32 %s21, %s22
          %s196 = smul.u32 256, %s195
          %s198 = ssub.s32 131072, 131072
          %199 = vsyncadd %s191, %s198
          %s200 = smul.addr %s196, 8
          %s201 = smul.addr %s200, 64
          %s202 = scalar_lea.hbm %s1, %s201
          %s203 = sshll.u32 %s194, 4
          %s204 = int_to_ptr.vmem [resolvable:$true] %s203
          %209 = dma.hbm_to_vmem [thread:$0]  %s202, 131072, %s204, %s191, 512, 512, 32
        $region32: #{neural_hamiltonian_flow.1} parent=27 // pred_fallthru
          _
      $region28: #{neural_hamiltonian_flow.1} parent=5 // pred_fallthru
        _
      %p210 = scmp.le.s32.totalorder 1, %s14
      %p211 = scmp.lt.s32.totalorder %s14, 3
      %p212 = pnand %p210, %p211
      %p213 = pneg %p212
      // Predicated region
      $region33: #{neural_hamiltonian_flow.1} parent=5 // pred_check
        _
      $region34: #{neural_hamiltonian_flow.1} parent=5 // pred_check_branch
        %215 = sbr.rel (%p212) target = $region36
      $region35: #{neural_hamiltonian_flow.1} parent=5 // pred_region
        %s216 = ssub.s32 %s14, 1
        %s217 = sand.u32 %s62, 1
        %s218 = scalar_lea.sflag [#allocation4], %s217
        %s219 = sand.u32 %s62, 1
        %s220 = smul.addr %s219, 8192
        %s221 = scalar_lea.vmem [#allocation3], %s220
        // Predicated region
        $region37: #{neural_hamiltonian_flow.1} parent=35 // pred_check
          %p222 = pneg %p75
        $region38: #{neural_hamiltonian_flow.1} parent=35 // pred_check_branch
          %224 = sbr.rel (%p222) target = $region40
        $region39: #{neural_hamiltonian_flow.1} parent=35 // pred_region
          %225 = dma.done %s218, 131072
        $region40: #{neural_hamiltonian_flow.1} parent=35 // pred_fallthru
          _
        // Predicated region
        $region41: #{neural_hamiltonian_flow.1} parent=35 // pred_check
          %p226 = pneg %p96
        $region42: #{neural_hamiltonian_flow.1} parent=35 // pred_check_branch
          %228 = sbr.rel (%p226) target = $region44
        $region43: #{neural_hamiltonian_flow.1} parent=35 // pred_region
          %229 = dma.done [#allocation6], 512
        $region44: #{neural_hamiltonian_flow.1} parent=35 // pred_fallthru
          _
        // Predicated region
        $region45: #{neural_hamiltonian_flow.1} parent=35 // pred_check
          %p230 = pneg %p117
        $region46: #{neural_hamiltonian_flow.1} parent=35 // pred_check_branch
          %232 = sbr.rel (%p230) target = $region48
        $region47: #{neural_hamiltonian_flow.1} parent=35 // pred_region
          %233 = dma.done [#allocation6], 512
        $region48: #{neural_hamiltonian_flow.1} parent=35 // pred_fallthru
          _
        %p234 = pneg %p47
        %p235 = pneg %p44
        %s236 = sand.u32 %s62, 1
        %s237 = scalar_lea.sflag [#allocation4], %s236
        %s238 = sand.u32 %s62, 1
        %s239 = smul.addr %s238, 8192
        %s240 = scalar_lea.vmem [#allocation3], %s239
        %p241 = pneg %p75
        %p242 = pneg %p72
        %p243 = pneg %p96
        %p244 = pneg %p93
        %p245 = pneg %p117
        %p246 = pneg %p114
        %p247 = pneg %p143
        %p248 = pneg %p140
        %p249 = scmp.lt.s32.totalorder %s23, 1
        %s250 = scalar_select %p249, %s23, 1
        %s251 = smul.addr %s250, 8
        %s252 = smul.addr %s251, 8
        %s253 = scalar_lea.vmem %s4, %s252
        %s254 = sadd.s32 %s23, %s24
        %s255 = smul.u32 256, %s254
        %p256 = scmp.lt.s32.totalorder %s23, 1
        %s257 = scalar_select %p256, %s23, 1
        %s258 = smul.addr %s257, 8
        %s259 = smul.addr %s258, 8
        %s260 = scalar_lea.vmem %s4, %s259
        %s261 = sadd.s32 %s23, %s24
        %s262 = smul.u32 %s261, 2048
        %s263 = sshra.s32 %s262, 7
        %s264 = sand.u32 %s262, 127
        %s265 = scalar_lea.vmem [#allocation5], %s263
        %v266 = vld [vmem:[%s265] sm:$0xff]
        %v267 = vld [vmem:[%s265 + $0x8] sm:$0xff]
        %s268 = scalar_lea.vmem [#allocation7], %s263
        %v269 = vld [vmem:[%s268] sm:$0xff]
        %v270 = vld [vmem:[%s268 + $0x8] sm:$0xff]
        %v271 = vld [vmem:[%s0] sm:$0xff]
        %v272 = vld [vmem:[%s0 + $0x8] sm:$0xff]
        %v273 = vld [vmem:[%s0 + $0x10] sm:$0xff]
        %v274 = vld [vmem:[%s0 + $0x18] sm:$0xff]
        %v275 = vld [vmem:[%s221] sm:$0xff]
        %v276 = vld [vmem:[%s221 + $0x8] sm:$0xff]
        %v277 = vld [vmem:[%s221 + $0x10] sm:$0xff]
        %v278 = vld [vmem:[%s221 + $0x18] sm:$0xff]
        %v279 = vld [vmem:[%s221 + $0x20] sm:$0xff]
        %v280 = vld [vmem:[%s221 + $0x28] sm:$0xff]
        %v281 = vld [vmem:[%s221 + $0x30] sm:$0xff]
        %v282 = vld [vmem:[%s221 + $0x38] sm:$0xff]
        %v283 = vld [vmem:[%s221 + $0x40] sm:$0xff]
        %v284 = vld [vmem:[%s221 + $0x48] sm:$0xff]
        %v285 = vld [vmem:[%s221 + $0x50] sm:$0xff]
        %v286 = vld [vmem:[%s221 + $0x58] sm:$0xff]
        %v287 = vld [vmem:[%s221 + $0x60] sm:$0xff]
        %v288 = vld [vmem:[%s221 + $0x68] sm:$0xff]
        %v289 = vld [vmem:[%s221 + $0x70] sm:$0xff]
        %v290 = vld [vmem:[%s221 + $0x78] sm:$0xff]
        %v291 = vld [vmem:[%s221 + $0x80] sm:$0xff]
        %v292 = vld [vmem:[%s221 + $0x88] sm:$0xff]
        %v293 = vld [vmem:[%s221 + $0x90] sm:$0xff]
        %v294 = vld [vmem:[%s221 + $0x98] sm:$0xff]
        %v295 = vld [vmem:[%s221 + $0xa0] sm:$0xff]
        %v296 = vld [vmem:[%s221 + $0xa8] sm:$0xff]
        %v297 = vld [vmem:[%s221 + $0xb0] sm:$0xff]
        %v298 = vld [vmem:[%s221 + $0xb8] sm:$0xff]
        %v299 = vld [vmem:[%s221 + $0xc0] sm:$0xff]
        %v300 = vld [vmem:[%s221 + $0xc8] sm:$0xff]
        %v301 = vld [vmem:[%s221 + $0xd0] sm:$0xff]
        %v302 = vld [vmem:[%s221 + $0xd8] sm:$0xff]
        %v303 = vld [vmem:[%s221 + $0xe0] sm:$0xff]
        %v304 = vld [vmem:[%s221 + $0xe8] sm:$0xff]
        %v305 = vld [vmem:[%s221 + $0xf0] sm:$0xff]
        %v306 = vld [vmem:[%s221 + $0xf8] sm:$0xff]
        %v307 = vld [vmem:[%s221 + $0x100] sm:$0xff]
        %v308 = vld [vmem:[%s221 + $0x108] sm:$0xff]
        %v309 = vld [vmem:[%s221 + $0x110] sm:$0xff]
        %v310 = vld [vmem:[%s221 + $0x118] sm:$0xff]
        %v311 = vld [vmem:[%s221 + $0x120] sm:$0xff]
        %v312 = vld [vmem:[%s221 + $0x128] sm:$0xff]
        %v313 = vld [vmem:[%s221 + $0x130] sm:$0xff]
        %v314 = vld [vmem:[%s221 + $0x138] sm:$0xff]
        %v315 = vld [vmem:[%s221 + $0x140] sm:$0xff]
        %v316 = vld [vmem:[%s221 + $0x148] sm:$0xff]
        %v317 = vld [vmem:[%s221 + $0x150] sm:$0xff]
        %v318 = vld [vmem:[%s221 + $0x158] sm:$0xff]
        %v319 = vld [vmem:[%s221 + $0x160] sm:$0xff]
        %v320 = vld [vmem:[%s221 + $0x168] sm:$0xff]
        %v321 = vld [vmem:[%s221 + $0x170] sm:$0xff]
        %v322 = vld [vmem:[%s221 + $0x178] sm:$0xff]
        %v323 = vld [vmem:[%s221 + $0x180] sm:$0xff]
        %v324 = vld [vmem:[%s221 + $0x188] sm:$0xff]
        %v325 = vld [vmem:[%s221 + $0x190] sm:$0xff]
        %v326 = vld [vmem:[%s221 + $0x198] sm:$0xff]
        %v327 = vld [vmem:[%s221 + $0x1a0] sm:$0xff]
        %v328 = vld [vmem:[%s221 + $0x1a8] sm:$0xff]
        %v329 = vld [vmem:[%s221 + $0x1b0] sm:$0xff]
        %v330 = vld [vmem:[%s221 + $0x1b8] sm:$0xff]
        %v331 = vld [vmem:[%s221 + $0x1c0] sm:$0xff]
        %v332 = vld [vmem:[%s221 + $0x1c8] sm:$0xff]
        %v333 = vld [vmem:[%s221 + $0x1d0] sm:$0xff]
        %v334 = vld [vmem:[%s221 + $0x1d8] sm:$0xff]
        %v335 = vld [vmem:[%s221 + $0x1e0] sm:$0xff]
        %v336 = vld [vmem:[%s221 + $0x1e8] sm:$0xff]
        %v337 = vld [vmem:[%s221 + $0x1f0] sm:$0xff]
        %v338 = vld [vmem:[%s221 + $0x1f8] sm:$0xff]
        %v339 = vld [vmem:[%s221 + $0x200] sm:$0xff]
        %v340 = vld [vmem:[%s221 + $0x208] sm:$0xff]
        %v341 = vld [vmem:[%s221 + $0x210] sm:$0xff]
        %v342 = vld [vmem:[%s221 + $0x218] sm:$0xff]
        %v343 = vld [vmem:[%s221 + $0x220] sm:$0xff]
        %v344 = vld [vmem:[%s221 + $0x228] sm:$0xff]
        %v345 = vld [vmem:[%s221 + $0x230] sm:$0xff]
        %v346 = vld [vmem:[%s221 + $0x238] sm:$0xff]
        %v347 = vld [vmem:[%s221 + $0x240] sm:$0xff]
        %v348 = vld [vmem:[%s221 + $0x248] sm:$0xff]
        %v349 = vld [vmem:[%s221 + $0x250] sm:$0xff]
        %v350 = vld [vmem:[%s221 + $0x258] sm:$0xff]
        %v351 = vld [vmem:[%s221 + $0x260] sm:$0xff]
        %v352 = vld [vmem:[%s221 + $0x268] sm:$0xff]
        %v353 = vld [vmem:[%s221 + $0x270] sm:$0xff]
        %v354 = vld [vmem:[%s221 + $0x278] sm:$0xff]
        %v355 = vld [vmem:[%s221 + $0x280] sm:$0xff]
        %v356 = vld [vmem:[%s221 + $0x288] sm:$0xff]
        %v357 = vld [vmem:[%s221 + $0x290] sm:$0xff]
        %v358 = vld [vmem:[%s221 + $0x298] sm:$0xff]
        %v359 = vld [vmem:[%s221 + $0x2a0] sm:$0xff]
        %v360 = vld [vmem:[%s221 + $0x2a8] sm:$0xff]
        %v361 = vld [vmem:[%s221 + $0x2b0] sm:$0xff]
        %v362 = vld [vmem:[%s221 + $0x2b8] sm:$0xff]
        %v363 = vld [vmem:[%s221 + $0x2c0] sm:$0xff]
        %v364 = vld [vmem:[%s221 + $0x2c8] sm:$0xff]
        %v365 = vld [vmem:[%s221 + $0x2d0] sm:$0xff]
        %v366 = vld [vmem:[%s221 + $0x2d8] sm:$0xff]
        %v367 = vld [vmem:[%s221 + $0x2e0] sm:$0xff]
        %v368 = vld [vmem:[%s221 + $0x2e8] sm:$0xff]
        %v369 = vld [vmem:[%s221 + $0x2f0] sm:$0xff]
        %v370 = vld [vmem:[%s221 + $0x2f8] sm:$0xff]
        %v371 = vld [vmem:[%s221 + $0x300] sm:$0xff]
        %v372 = vld [vmem:[%s221 + $0x308] sm:$0xff]
        %v373 = vld [vmem:[%s221 + $0x310] sm:$0xff]
        %v374 = vld [vmem:[%s221 + $0x318] sm:$0xff]
        %v375 = vld [vmem:[%s221 + $0x320] sm:$0xff]
        %v376 = vld [vmem:[%s221 + $0x328] sm:$0xff]
        %v377 = vld [vmem:[%s221 + $0x330] sm:$0xff]
        %v378 = vld [vmem:[%s221 + $0x338] sm:$0xff]
        %v379 = vld [vmem:[%s221 + $0x340] sm:$0xff]
        %v380 = vld [vmem:[%s221 + $0x348] sm:$0xff]
        %v381 = vld [vmem:[%s221 + $0x350] sm:$0xff]
        %v382 = vld [vmem:[%s221 + $0x358] sm:$0xff]
        %v383 = vld [vmem:[%s221 + $0x360] sm:$0xff]
        %v384 = vld [vmem:[%s221 + $0x368] sm:$0xff]
        %v385 = vld [vmem:[%s221 + $0x370] sm:$0xff]
        %v386 = vld [vmem:[%s221 + $0x378] sm:$0xff]
        %v387 = vld [vmem:[%s221 + $0x380] sm:$0xff]
        %v388 = vld [vmem:[%s221 + $0x388] sm:$0xff]
        %v389 = vld [vmem:[%s221 + $0x390] sm:$0xff]
        %v390 = vld [vmem:[%s221 + $0x398] sm:$0xff]
        %v391 = vld [vmem:[%s221 + $0x3a0] sm:$0xff]
        %v392 = vld [vmem:[%s221 + $0x3a8] sm:$0xff]
        %v393 = vld [vmem:[%s221 + $0x3b0] sm:$0xff]
        %v394 = vld [vmem:[%s221 + $0x3b8] sm:$0xff]
        %v395 = vld [vmem:[%s221 + $0x3c0] sm:$0xff]
        %v396 = vld [vmem:[%s221 + $0x3c8] sm:$0xff]
        %v397 = vld [vmem:[%s221 + $0x3d0] sm:$0xff]
        %v398 = vld [vmem:[%s221 + $0x3d8] sm:$0xff]
        %v399 = vld [vmem:[%s221 + $0x3e0] sm:$0xff]
        %v400 = vld [vmem:[%s221 + $0x3e8] sm:$0xff]
        %v401 = vld [vmem:[%s221 + $0x3f0] sm:$0xff]
        %v402 = vld [vmem:[%s221 + $0x3f8] sm:$0xff]
        %v403 = vld [vmem:[%s221 + $0x400] sm:$0xff]
        %v404 = vld [vmem:[%s221 + $0x408] sm:$0xff]
        %v405 = vld [vmem:[%s221 + $0x410] sm:$0xff]
        %v406 = vld [vmem:[%s221 + $0x418] sm:$0xff]
        %v407 = vld [vmem:[%s221 + $0x420] sm:$0xff]
        %v408 = vld [vmem:[%s221 + $0x428] sm:$0xff]
        %v409 = vld [vmem:[%s221 + $0x430] sm:$0xff]
        %v410 = vld [vmem:[%s221 + $0x438] sm:$0xff]
        %v411 = vld [vmem:[%s221 + $0x440] sm:$0xff]
        %v412 = vld [vmem:[%s221 + $0x448] sm:$0xff]
        %v413 = vld [vmem:[%s221 + $0x450] sm:$0xff]
        %v414 = vld [vmem:[%s221 + $0x458] sm:$0xff]
        %v415 = vld [vmem:[%s221 + $0x460] sm:$0xff]
        %v416 = vld [vmem:[%s221 + $0x468] sm:$0xff]
        %v417 = vld [vmem:[%s221 + $0x470] sm:$0xff]
        %v418 = vld [vmem:[%s221 + $0x478] sm:$0xff]
        %v419 = vld [vmem:[%s221 + $0x480] sm:$0xff]
        %v420 = vld [vmem:[%s221 + $0x488] sm:$0xff]
        %v421 = vld [vmem:[%s221 + $0x490] sm:$0xff]
        %v422 = vld [vmem:[%s221 + $0x498] sm:$0xff]
        %v423 = vld [vmem:[%s221 + $0x4a0] sm:$0xff]
        %v424 = vld [vmem:[%s221 + $0x4a8] sm:$0xff]
        %v425 = vld [vmem:[%s221 + $0x4b0] sm:$0xff]
        %v426 = vld [vmem:[%s221 + $0x4b8] sm:$0xff]
        %v427 = vld [vmem:[%s221 + $0x4c0] sm:$0xff]
        %v428 = vld [vmem:[%s221 + $0x4c8] sm:$0xff]
        %v429 = vld [vmem:[%s221 + $0x4d0] sm:$0xff]
        %v430 = vld [vmem:[%s221 + $0x4d8] sm:$0xff]
        %v431 = vld [vmem:[%s221 + $0x4e0] sm:$0xff]
        %v432 = vld [vmem:[%s221 + $0x4e8] sm:$0xff]
        %v433 = vld [vmem:[%s221 + $0x4f0] sm:$0xff]
        %v434 = vld [vmem:[%s221 + $0x4f8] sm:$0xff]
        %v435 = vld [vmem:[%s221 + $0x500] sm:$0xff]
        %v436 = vld [vmem:[%s221 + $0x508] sm:$0xff]
        %v437 = vld [vmem:[%s221 + $0x510] sm:$0xff]
        %v438 = vld [vmem:[%s221 + $0x518] sm:$0xff]
        %v439 = vld [vmem:[%s221 + $0x520] sm:$0xff]
        %v440 = vld [vmem:[%s221 + $0x528] sm:$0xff]
        %v441 = vld [vmem:[%s221 + $0x530] sm:$0xff]
        %v442 = vld [vmem:[%s221 + $0x538] sm:$0xff]
        %v443 = vld [vmem:[%s221 + $0x540] sm:$0xff]
        %v444 = vld [vmem:[%s221 + $0x548] sm:$0xff]
        %v445 = vld [vmem:[%s221 + $0x550] sm:$0xff]
        %v446 = vld [vmem:[%s221 + $0x558] sm:$0xff]
        %v447 = vld [vmem:[%s221 + $0x560] sm:$0xff]
        %v448 = vld [vmem:[%s221 + $0x568] sm:$0xff]
        %v449 = vld [vmem:[%s221 + $0x570] sm:$0xff]
        %v450 = vld [vmem:[%s221 + $0x578] sm:$0xff]
        %v451 = vld [vmem:[%s221 + $0x580] sm:$0xff]
        %v452 = vld [vmem:[%s221 + $0x588] sm:$0xff]
        %v453 = vld [vmem:[%s221 + $0x590] sm:$0xff]
        %v454 = vld [vmem:[%s221 + $0x598] sm:$0xff]
        %v455 = vld [vmem:[%s221 + $0x5a0] sm:$0xff]
        %v456 = vld [vmem:[%s221 + $0x5a8] sm:$0xff]
        %v457 = vld [vmem:[%s221 + $0x5b0] sm:$0xff]
        %v458 = vld [vmem:[%s221 + $0x5b8] sm:$0xff]
        %v459 = vld [vmem:[%s221 + $0x5c0] sm:$0xff]
        %v460 = vld [vmem:[%s221 + $0x5c8] sm:$0xff]
        %v461 = vld [vmem:[%s221 + $0x5d0] sm:$0xff]
        %v462 = vld [vmem:[%s221 + $0x5d8] sm:$0xff]
        %v463 = vld [vmem:[%s221 + $0x5e0] sm:$0xff]
        %v464 = vld [vmem:[%s221 + $0x5e8] sm:$0xff]
        %v465 = vld [vmem:[%s221 + $0x5f0] sm:$0xff]
        %v466 = vld [vmem:[%s221 + $0x5f8] sm:$0xff]
        %v467 = vld [vmem:[%s221 + $0x600] sm:$0xff]
        %v468 = vld [vmem:[%s221 + $0x608] sm:$0xff]
        %v469 = vld [vmem:[%s221 + $0x610] sm:$0xff]
        %v470 = vld [vmem:[%s221 + $0x618] sm:$0xff]
        %v471 = vld [vmem:[%s221 + $0x620] sm:$0xff]
        %v472 = vld [vmem:[%s221 + $0x628] sm:$0xff]
        %v473 = vld [vmem:[%s221 + $0x630] sm:$0xff]
        %v474 = vld [vmem:[%s221 + $0x638] sm:$0xff]
        %v475 = vld [vmem:[%s221 + $0x640] sm:$0xff]
        %v476 = vld [vmem:[%s221 + $0x648] sm:$0xff]
        %v477 = vld [vmem:[%s221 + $0x650] sm:$0xff]
        %v478 = vld [vmem:[%s221 + $0x658] sm:$0xff]
        %v479 = vld [vmem:[%s221 + $0x660] sm:$0xff]
        %v480 = vld [vmem:[%s221 + $0x668] sm:$0xff]
        %v481 = vld [vmem:[%s221 + $0x670] sm:$0xff]
        %v482 = vld [vmem:[%s221 + $0x678] sm:$0xff]
        %v483 = vld [vmem:[%s221 + $0x680] sm:$0xff]
        %v484 = vld [vmem:[%s221 + $0x688] sm:$0xff]
        %v485 = vld [vmem:[%s221 + $0x690] sm:$0xff]
        %v486 = vld [vmem:[%s221 + $0x698] sm:$0xff]
        %v487 = vld [vmem:[%s221 + $0x6a0] sm:$0xff]
        %v488 = vld [vmem:[%s221 + $0x6a8] sm:$0xff]
        %v489 = vld [vmem:[%s221 + $0x6b0] sm:$0xff]
        %v490 = vld [vmem:[%s221 + $0x6b8] sm:$0xff]
        %v491 = vld [vmem:[%s221 + $0x6c0] sm:$0xff]
        %v492 = vld [vmem:[%s221 + $0x6c8] sm:$0xff]
        %v493 = vld [vmem:[%s221 + $0x6d0] sm:$0xff]
        %v494 = vld [vmem:[%s221 + $0x6d8] sm:$0xff]
        %v495 = vld [vmem:[%s221 + $0x6e0] sm:$0xff]
        %v496 = vld [vmem:[%s221 + $0x6e8] sm:$0xff]
        %v497 = vld [vmem:[%s221 + $0x6f0] sm:$0xff]
        %v498 = vld [vmem:[%s221 + $0x6f8] sm:$0xff]
        %v499 = vld [vmem:[%s221 + $0x700] sm:$0xff]
        %v500 = vld [vmem:[%s221 + $0x708] sm:$0xff]
        %v501 = vld [vmem:[%s221 + $0x710] sm:$0xff]
        %v502 = vld [vmem:[%s221 + $0x718] sm:$0xff]
        %v503 = vld [vmem:[%s221 + $0x720] sm:$0xff]
        %v504 = vld [vmem:[%s221 + $0x728] sm:$0xff]
        %v505 = vld [vmem:[%s221 + $0x730] sm:$0xff]
        %v506 = vld [vmem:[%s221 + $0x738] sm:$0xff]
        %v507 = vld [vmem:[%s221 + $0x740] sm:$0xff]
        %v508 = vld [vmem:[%s221 + $0x748] sm:$0xff]
        %v509 = vld [vmem:[%s221 + $0x750] sm:$0xff]
        %v510 = vld [vmem:[%s221 + $0x758] sm:$0xff]
        %v511 = vld [vmem:[%s221 + $0x760] sm:$0xff]
        %v512 = vld [vmem:[%s221 + $0x768] sm:$0xff]
        %v513 = vld [vmem:[%s221 + $0x770] sm:$0xff]
        %v514 = vld [vmem:[%s221 + $0x778] sm:$0xff]
        %v515 = vld [vmem:[%s221 + $0x780] sm:$0xff]
        %v516 = vld [vmem:[%s221 + $0x788] sm:$0xff]
        %v517 = vld [vmem:[%s221 + $0x790] sm:$0xff]
        %v518 = vld [vmem:[%s221 + $0x798] sm:$0xff]
        %v519 = vld [vmem:[%s221 + $0x7a0] sm:$0xff]
        %v520 = vld [vmem:[%s221 + $0x7a8] sm:$0xff]
        %v521 = vld [vmem:[%s221 + $0x7b0] sm:$0xff]
        %v522 = vld [vmem:[%s221 + $0x7b8] sm:$0xff]
        %v523 = vld [vmem:[%s221 + $0x7c0] sm:$0xff]
        %v524 = vld [vmem:[%s221 + $0x7c8] sm:$0xff]
        %v525 = vld [vmem:[%s221 + $0x7d0] sm:$0xff]
        %v526 = vld [vmem:[%s221 + $0x7d8] sm:$0xff]
        %v527 = vld [vmem:[%s221 + $0x7e0] sm:$0xff]
        %v528 = vld [vmem:[%s221 + $0x7e8] sm:$0xff]
        %v529 = vld [vmem:[%s221 + $0x7f0] sm:$0xff]
        %v530 = vld [vmem:[%s221 + $0x7f8] sm:$0xff]
        %v531 = vld [vmem:[%s221 + $0x800] sm:$0xff]
        %v532 = vld [vmem:[%s221 + $0x808] sm:$0xff]
        %v533 = vld [vmem:[%s221 + $0x810] sm:$0xff]
        %v534 = vld [vmem:[%s221 + $0x818] sm:$0xff]
        %v535 = vld [vmem:[%s221 + $0x820] sm:$0xff]
        %v536 = vld [vmem:[%s221 + $0x828] sm:$0xff]
        %v537 = vld [vmem:[%s221 + $0x830] sm:$0xff]
        %v538 = vld [vmem:[%s221 + $0x838] sm:$0xff]
        %v539 = vld [vmem:[%s221 + $0x840] sm:$0xff]
        %v540 = vld [vmem:[%s221 + $0x848] sm:$0xff]
        %v541 = vld [vmem:[%s221 + $0x850] sm:$0xff]
        %v542 = vld [vmem:[%s221 + $0x858] sm:$0xff]
        %v543 = vld [vmem:[%s221 + $0x860] sm:$0xff]
        %v544 = vld [vmem:[%s221 + $0x868] sm:$0xff]
        %v545 = vld [vmem:[%s221 + $0x870] sm:$0xff]
        %v546 = vld [vmem:[%s221 + $0x878] sm:$0xff]
        %v547 = vld [vmem:[%s221 + $0x880] sm:$0xff]
        %v548 = vld [vmem:[%s221 + $0x888] sm:$0xff]
        %v549 = vld [vmem:[%s221 + $0x890] sm:$0xff]
        %v550 = vld [vmem:[%s221 + $0x898] sm:$0xff]
        %v551 = vld [vmem:[%s221 + $0x8a0] sm:$0xff]
        %v552 = vld [vmem:[%s221 + $0x8a8] sm:$0xff]
        %v553 = vld [vmem:[%s221 + $0x8b0] sm:$0xff]
        %v554 = vld [vmem:[%s221 + $0x8b8] sm:$0xff]
        %v555 = vld [vmem:[%s221 + $0x8c0] sm:$0xff]
        %v556 = vld [vmem:[%s221 + $0x8c8] sm:$0xff]
        %v557 = vld [vmem:[%s221 + $0x8d0] sm:$0xff]
        %v558 = vld [vmem:[%s221 + $0x8d8] sm:$0xff]
        %v559 = vld [vmem:[%s221 + $0x8e0] sm:$0xff]
        %v560 = vld [vmem:[%s221 + $0x8e8] sm:$0xff]
        %v561 = vld [vmem:[%s221 + $0x8f0] sm:$0xff]
        %v562 = vld [vmem:[%s221 + $0x8f8] sm:$0xff]
        %v563 = vld [vmem:[%s221 + $0x900] sm:$0xff]
        %v564 = vld [vmem:[%s221 + $0x908] sm:$0xff]
        %v565 = vld [vmem:[%s221 + $0x910] sm:$0xff]
        %v566 = vld [vmem:[%s221 + $0x918] sm:$0xff]
        %v567 = vld [vmem:[%s221 + $0x920] sm:$0xff]
        %v568 = vld [vmem:[%s221 + $0x928] sm:$0xff]
        %v569 = vld [vmem:[%s221 + $0x930] sm:$0xff]
        %v570 = vld [vmem:[%s221 + $0x938] sm:$0xff]
        %v571 = vld [vmem:[%s221 + $0x940] sm:$0xff]
        %v572 = vld [vmem:[%s221 + $0x948] sm:$0xff]
        %v573 = vld [vmem:[%s221 + $0x950] sm:$0xff]
        %v574 = vld [vmem:[%s221 + $0x958] sm:$0xff]
        %v575 = vld [vmem:[%s221 + $0x960] sm:$0xff]
        %v576 = vld [vmem:[%s221 + $0x968] sm:$0xff]
        %v577 = vld [vmem:[%s221 + $0x970] sm:$0xff]
        %v578 = vld [vmem:[%s221 + $0x978] sm:$0xff]
        %v579 = vld [vmem:[%s221 + $0x980] sm:$0xff]
        %v580 = vld [vmem:[%s221 + $0x988] sm:$0xff]
        %v581 = vld [vmem:[%s221 + $0x990] sm:$0xff]
        %v582 = vld [vmem:[%s221 + $0x998] sm:$0xff]
        %v583 = vld [vmem:[%s221 + $0x9a0] sm:$0xff]
        %v584 = vld [vmem:[%s221 + $0x9a8] sm:$0xff]
        %v585 = vld [vmem:[%s221 + $0x9b0] sm:$0xff]
        %v586 = vld [vmem:[%s221 + $0x9b8] sm:$0xff]
        %v587 = vld [vmem:[%s221 + $0x9c0] sm:$0xff]
        %v588 = vld [vmem:[%s221 + $0x9c8] sm:$0xff]
        %v589 = vld [vmem:[%s221 + $0x9d0] sm:$0xff]
        %v590 = vld [vmem:[%s221 + $0x9d8] sm:$0xff]
        %v591 = vld [vmem:[%s221 + $0x9e0] sm:$0xff]
        %v592 = vld [vmem:[%s221 + $0x9e8] sm:$0xff]
        %v593 = vld [vmem:[%s221 + $0x9f0] sm:$0xff]
        %v594 = vld [vmem:[%s221 + $0x9f8] sm:$0xff]
        %v595 = vld [vmem:[%s221 + $0xa00] sm:$0xff]
        %v596 = vld [vmem:[%s221 + $0xa08] sm:$0xff]
        %v597 = vld [vmem:[%s221 + $0xa10] sm:$0xff]
        %v598 = vld [vmem:[%s221 + $0xa18] sm:$0xff]
        %v599 = vld [vmem:[%s221 + $0xa20] sm:$0xff]
        %v600 = vld [vmem:[%s221 + $0xa28] sm:$0xff]
        %v601 = vld [vmem:[%s221 + $0xa30] sm:$0xff]
        %v602 = vld [vmem:[%s221 + $0xa38] sm:$0xff]
        %v603 = vld [vmem:[%s221 + $0xa40] sm:$0xff]
        %v604 = vld [vmem:[%s221 + $0xa48] sm:$0xff]
        %v605 = vld [vmem:[%s221 + $0xa50] sm:$0xff]
        %v606 = vld [vmem:[%s221 + $0xa58] sm:$0xff]
        %v607 = vld [vmem:[%s221 + $0xa60] sm:$0xff]
        %v608 = vld [vmem:[%s221 + $0xa68] sm:$0xff]
        %v609 = vld [vmem:[%s221 + $0xa70] sm:$0xff]
        %v610 = vld [vmem:[%s221 + $0xa78] sm:$0xff]
        %v611 = vld [vmem:[%s221 + $0xa80] sm:$0xff]
        %v612 = vld [vmem:[%s221 + $0xa88] sm:$0xff]
        %v613 = vld [vmem:[%s221 + $0xa90] sm:$0xff]
        %v614 = vld [vmem:[%s221 + $0xa98] sm:$0xff]
        %v615 = vld [vmem:[%s221 + $0xaa0] sm:$0xff]
        %v616 = vld [vmem:[%s221 + $0xaa8] sm:$0xff]
        %v617 = vld [vmem:[%s221 + $0xab0] sm:$0xff]
        %v618 = vld [vmem:[%s221 + $0xab8] sm:$0xff]
        %v619 = vld [vmem:[%s221 + $0xac0] sm:$0xff]
        %v620 = vld [vmem:[%s221 + $0xac8] sm:$0xff]
        %v621 = vld [vmem:[%s221 + $0xad0] sm:$0xff]
        %v622 = vld [vmem:[%s221 + $0xad8] sm:$0xff]
        %v623 = vld [vmem:[%s221 + $0xae0] sm:$0xff]
        %v624 = vld [vmem:[%s221 + $0xae8] sm:$0xff]
        %v625 = vld [vmem:[%s221 + $0xaf0] sm:$0xff]
        %v626 = vld [vmem:[%s221 + $0xaf8] sm:$0xff]
        %v627 = vld [vmem:[%s221 + $0xb00] sm:$0xff]
        %v628 = vld [vmem:[%s221 + $0xb08] sm:$0xff]
        %v629 = vld [vmem:[%s221 + $0xb10] sm:$0xff]
        %v630 = vld [vmem:[%s221 + $0xb18] sm:$0xff]
        %v631 = vld [vmem:[%s221 + $0xb20] sm:$0xff]
        %v632 = vld [vmem:[%s221 + $0xb28] sm:$0xff]
        %v633 = vld [vmem:[%s221 + $0xb30] sm:$0xff]
        %v634 = vld [vmem:[%s221 + $0xb38] sm:$0xff]
        %v635 = vld [vmem:[%s221 + $0xb40] sm:$0xff]
        %v636 = vld [vmem:[%s221 + $0xb48] sm:$0xff]
        %v637 = vld [vmem:[%s221 + $0xb50] sm:$0xff]
        %v638 = vld [vmem:[%s221 + $0xb58] sm:$0xff]
        %v639 = vld [vmem:[%s221 + $0xb60] sm:$0xff]
        %v640 = vld [vmem:[%s221 + $0xb68] sm:$0xff]
        %v641 = vld [vmem:[%s221 + $0xb70] sm:$0xff]
        %v642 = vld [vmem:[%s221 + $0xb78] sm:$0xff]
        %v643 = vld [vmem:[%s221 + $0xb80] sm:$0xff]
        %v644 = vld [vmem:[%s221 + $0xb88] sm:$0xff]
        %v645 = vld [vmem:[%s221 + $0xb90] sm:$0xff]
        %v646 = vld [vmem:[%s221 + $0xb98] sm:$0xff]
        %v647 = vld [vmem:[%s221 + $0xba0] sm:$0xff]
        %v648 = vld [vmem:[%s221 + $0xba8] sm:$0xff]
        %v649 = vld [vmem:[%s221 + $0xbb0] sm:$0xff]
        %v650 = vld [vmem:[%s221 + $0xbb8] sm:$0xff]
        %v651 = vld [vmem:[%s221 + $0xbc0] sm:$0xff]
        %v652 = vld [vmem:[%s221 + $0xbc8] sm:$0xff]
        %v653 = vld [vmem:[%s221 + $0xbd0] sm:$0xff]
        %v654 = vld [vmem:[%s221 + $0xbd8] sm:$0xff]
        %v655 = vld [vmem:[%s221 + $0xbe0] sm:$0xff]
        %v656 = vld [vmem:[%s221 + $0xbe8] sm:$0xff]
        %v657 = vld [vmem:[%s221 + $0xbf0] sm:$0xff]
        %v658 = vld [vmem:[%s221 + $0xbf8] sm:$0xff]
        %v659 = vld [vmem:[%s221 + $0xc00] sm:$0xff]
        %v660 = vld [vmem:[%s221 + $0xc08] sm:$0xff]
        %v661 = vld [vmem:[%s221 + $0xc10] sm:$0xff]
        %v662 = vld [vmem:[%s221 + $0xc18] sm:$0xff]
        %v663 = vld [vmem:[%s221 + $0xc20] sm:$0xff]
        %v664 = vld [vmem:[%s221 + $0xc28] sm:$0xff]
        %v665 = vld [vmem:[%s221 + $0xc30] sm:$0xff]
        %v666 = vld [vmem:[%s221 + $0xc38] sm:$0xff]
        %v667 = vld [vmem:[%s221 + $0xc40] sm:$0xff]
        %v668 = vld [vmem:[%s221 + $0xc48] sm:$0xff]
        %v669 = vld [vmem:[%s221 + $0xc50] sm:$0xff]
        %v670 = vld [vmem:[%s221 + $0xc58] sm:$0xff]
        %v671 = vld [vmem:[%s221 + $0xc60] sm:$0xff]
        %v672 = vld [vmem:[%s221 + $0xc68] sm:$0xff]
        %v673 = vld [vmem:[%s221 + $0xc70] sm:$0xff]
        %v674 = vld [vmem:[%s221 + $0xc78] sm:$0xff]
        %v675 = vld [vmem:[%s221 + $0xc80] sm:$0xff]
        %v676 = vld [vmem:[%s221 + $0xc88] sm:$0xff]
        %v677 = vld [vmem:[%s221 + $0xc90] sm:$0xff]
        %v678 = vld [vmem:[%s221 + $0xc98] sm:$0xff]
        %v679 = vld [vmem:[%s221 + $0xca0] sm:$0xff]
        %v680 = vld [vmem:[%s221 + $0xca8] sm:$0xff]
        %v681 = vld [vmem:[%s221 + $0xcb0] sm:$0xff]
        %v682 = vld [vmem:[%s221 + $0xcb8] sm:$0xff]
        %v683 = vld [vmem:[%s221 + $0xcc0] sm:$0xff]
        %v684 = vld [vmem:[%s221 + $0xcc8] sm:$0xff]
        %v685 = vld [vmem:[%s221 + $0xcd0] sm:$0xff]
        %v686 = vld [vmem:[%s221 + $0xcd8] sm:$0xff]
        %v687 = vld [vmem:[%s221 + $0xce0] sm:$0xff]
        %v688 = vld [vmem:[%s221 + $0xce8] sm:$0xff]
        %v689 = vld [vmem:[%s221 + $0xcf0] sm:$0xff]
        %v690 = vld [vmem:[%s221 + $0xcf8] sm:$0xff]
        %v691 = vld [vmem:[%s221 + $0xd00] sm:$0xff]
        %v692 = vld [vmem:[%s221 + $0xd08] sm:$0xff]
        %v693 = vld [vmem:[%s221 + $0xd10] sm:$0xff]
        %v694 = vld [vmem:[%s221 + $0xd18] sm:$0xff]
        %v695 = vld [vmem:[%s221 + $0xd20] sm:$0xff]
        %v696 = vld [vmem:[%s221 + $0xd28] sm:$0xff]
        %v697 = vld [vmem:[%s221 + $0xd30] sm:$0xff]
        %v698 = vld [vmem:[%s221 + $0xd38] sm:$0xff]
        %v699 = vld [vmem:[%s221 + $0xd40] sm:$0xff]
        %v700 = vld [vmem:[%s221 + $0xd48] sm:$0xff]
        %v701 = vld [vmem:[%s221 + $0xd50] sm:$0xff]
        %v702 = vld [vmem:[%s221 + $0xd58] sm:$0xff]
        %v703 = vld [vmem:[%s221 + $0xd60] sm:$0xff]
        %v704 = vld [vmem:[%s221 + $0xd68] sm:$0xff]
        %v705 = vld [vmem:[%s221 + $0xd70] sm:$0xff]
        %v706 = vld [vmem:[%s221 + $0xd78] sm:$0xff]
        %v707 = vld [vmem:[%s221 + $0xd80] sm:$0xff]
        %v708 = vld [vmem:[%s221 + $0xd88] sm:$0xff]
        %v709 = vld [vmem:[%s221 + $0xd90] sm:$0xff]
        %v710 = vld [vmem:[%s221 + $0xd98] sm:$0xff]
        %v711 = vld [vmem:[%s221 + $0xda0] sm:$0xff]
        %v712 = vld [vmem:[%s221 + $0xda8] sm:$0xff]
        %v713 = vld [vmem:[%s221 + $0xdb0] sm:$0xff]
        %v714 = vld [vmem:[%s221 + $0xdb8] sm:$0xff]
        %v715 = vld [vmem:[%s221 + $0xdc0] sm:$0xff]
        %v716 = vld [vmem:[%s221 + $0xdc8] sm:$0xff]
        %v717 = vld [vmem:[%s221 + $0xdd0] sm:$0xff]
        %v718 = vld [vmem:[%s221 + $0xdd8] sm:$0xff]
        %v719 = vld [vmem:[%s221 + $0xde0] sm:$0xff]
        %v720 = vld [vmem:[%s221 + $0xde8] sm:$0xff]
        %v721 = vld [vmem:[%s221 + $0xdf0] sm:$0xff]
        %v722 = vld [vmem:[%s221 + $0xdf8] sm:$0xff]
        %v723 = vld [vmem:[%s221 + $0xe00] sm:$0xff]
        %v724 = vld [vmem:[%s221 + $0xe08] sm:$0xff]
        %v725 = vld [vmem:[%s221 + $0xe10] sm:$0xff]
        %v726 = vld [vmem:[%s221 + $0xe18] sm:$0xff]
        %v727 = vld [vmem:[%s221 + $0xe20] sm:$0xff]
        %v728 = vld [vmem:[%s221 + $0xe28] sm:$0xff]
        %v729 = vld [vmem:[%s221 + $0xe30] sm:$0xff]
        %v730 = vld [vmem:[%s221 + $0xe38] sm:$0xff]
        %v731 = vld [vmem:[%s221 + $0xe40] sm:$0xff]
        %v732 = vld [vmem:[%s221 + $0xe48] sm:$0xff]
        %v733 = vld [vmem:[%s221 + $0xe50] sm:$0xff]
        %v734 = vld [vmem:[%s221 + $0xe58] sm:$0xff]
        %v735 = vld [vmem:[%s221 + $0xe60] sm:$0xff]
        %v736 = vld [vmem:[%s221 + $0xe68] sm:$0xff]
        %v737 = vld [vmem:[%s221 + $0xe70] sm:$0xff]
        %v738 = vld [vmem:[%s221 + $0xe78] sm:$0xff]
        %v739 = vld [vmem:[%s221 + $0xe80] sm:$0xff]
        %v740 = vld [vmem:[%s221 + $0xe88] sm:$0xff]
        %v741 = vld [vmem:[%s221 + $0xe90] sm:$0xff]
        %v742 = vld [vmem:[%s221 + $0xe98] sm:$0xff]
        %v743 = vld [vmem:[%s221 + $0xea0] sm:$0xff]
        %v744 = vld [vmem:[%s221 + $0xea8] sm:$0xff]
        %v745 = vld [vmem:[%s221 + $0xeb0] sm:$0xff]
        %v746 = vld [vmem:[%s221 + $0xeb8] sm:$0xff]
        %v747 = vld [vmem:[%s221 + $0xec0] sm:$0xff]
        %v748 = vld [vmem:[%s221 + $0xec8] sm:$0xff]
        %v749 = vld [vmem:[%s221 + $0xed0] sm:$0xff]
        %v750 = vld [vmem:[%s221 + $0xed8] sm:$0xff]
        %v751 = vld [vmem:[%s221 + $0xee0] sm:$0xff]
        %v752 = vld [vmem:[%s221 + $0xee8] sm:$0xff]
        %v753 = vld [vmem:[%s221 + $0xef0] sm:$0xff]
        %v754 = vld [vmem:[%s221 + $0xef8] sm:$0xff]
        %v755 = vld [vmem:[%s221 + $0xf00] sm:$0xff]
        %v756 = vld [vmem:[%s221 + $0xf08] sm:$0xff]
        %v757 = vld [vmem:[%s221 + $0xf10] sm:$0xff]
        %v758 = vld [vmem:[%s221 + $0xf18] sm:$0xff]
        %v759 = vld [vmem:[%s221 + $0xf20] sm:$0xff]
        %v760 = vld [vmem:[%s221 + $0xf28] sm:$0xff]
        %v761 = vld [vmem:[%s221 + $0xf30] sm:$0xff]
        %v762 = vld [vmem:[%s221 + $0xf38] sm:$0xff]
        %v763 = vld [vmem:[%s221 + $0xf40] sm:$0xff]
        %v764 = vld [vmem:[%s221 + $0xf48] sm:$0xff]
        %v765 = vld [vmem:[%s221 + $0xf50] sm:$0xff]
        %v766 = vld [vmem:[%s221 + $0xf58] sm:$0xff]
        %v767 = vld [vmem:[%s221 + $0xf60] sm:$0xff]
        %v768 = vld [vmem:[%s221 + $0xf68] sm:$0xff]
        %v769 = vld [vmem:[%s221 + $0xf70] sm:$0xff]
        %v770 = vld [vmem:[%s221 + $0xf78] sm:$0xff]
        %v771 = vld [vmem:[%s221 + $0xf80] sm:$0xff]
        %v772 = vld [vmem:[%s221 + $0xf88] sm:$0xff]
        %v773 = vld [vmem:[%s221 + $0xf90] sm:$0xff]
        %v774 = vld [vmem:[%s221 + $0xf98] sm:$0xff]
        %v775 = vld [vmem:[%s221 + $0xfa0] sm:$0xff]
        %v776 = vld [vmem:[%s221 + $0xfa8] sm:$0xff]
        %v777 = vld [vmem:[%s221 + $0xfb0] sm:$0xff]
        %v778 = vld [vmem:[%s221 + $0xfb8] sm:$0xff]
        %v779 = vld [vmem:[%s221 + $0xfc0] sm:$0xff]
        %v780 = vld [vmem:[%s221 + $0xfc8] sm:$0xff]
        %v781 = vld [vmem:[%s221 + $0xfd0] sm:$0xff]
        %v782 = vld [vmem:[%s221 + $0xfd8] sm:$0xff]
        %v783 = vld [vmem:[%s221 + $0xfe0] sm:$0xff]
        %v784 = vld [vmem:[%s221 + $0xfe8] sm:$0xff]
        %v785 = vld [vmem:[%s221 + $0xff0] sm:$0xff]
        %v786 = vld [vmem:[%s221 + $0xff8] sm:$0xff]
        %v787 = vld [vmem:[%s221 + $0x1000] sm:$0xff]
        %v788 = vld [vmem:[%s221 + $0x1008] sm:$0xff]
        %v789 = vld [vmem:[%s221 + $0x1010] sm:$0xff]
        %v790 = vld [vmem:[%s221 + $0x1018] sm:$0xff]
        %v791 = vld [vmem:[%s221 + $0x1020] sm:$0xff]
        %v792 = vld [vmem:[%s221 + $0x1028] sm:$0xff]
        %v793 = vld [vmem:[%s221 + $0x1030] sm:$0xff]
        %v794 = vld [vmem:[%s221 + $0x1038] sm:$0xff]
        %v795 = vld [vmem:[%s221 + $0x1040] sm:$0xff]
        %v796 = vld [vmem:[%s221 + $0x1048] sm:$0xff]
        %v797 = vld [vmem:[%s221 + $0x1050] sm:$0xff]
        %v798 = vld [vmem:[%s221 + $0x1058] sm:$0xff]
        %v799 = vld [vmem:[%s221 + $0x1060] sm:$0xff]
        %v800 = vld [vmem:[%s221 + $0x1068] sm:$0xff]
        %v801 = vld [vmem:[%s221 + $0x1070] sm:$0xff]
        %v802 = vld [vmem:[%s221 + $0x1078] sm:$0xff]
        %v803 = vld [vmem:[%s221 + $0x1080] sm:$0xff]
        %v804 = vld [vmem:[%s221 + $0x1088] sm:$0xff]
        %v805 = vld [vmem:[%s221 + $0x1090] sm:$0xff]
        %v806 = vld [vmem:[%s221 + $0x1098] sm:$0xff]
        %v807 = vld [vmem:[%s221 + $0x10a0] sm:$0xff]
        %v808 = vld [vmem:[%s221 + $0x10a8] sm:$0xff]
        %v809 = vld [vmem:[%s221 + $0x10b0] sm:$0xff]
        %v810 = vld [vmem:[%s221 + $0x10b8] sm:$0xff]
        %v811 = vld [vmem:[%s221 + $0x10c0] sm:$0xff]
        %v812 = vld [vmem:[%s221 + $0x10c8] sm:$0xff]
        %v813 = vld [vmem:[%s221 + $0x10d0] sm:$0xff]
        %v814 = vld [vmem:[%s221 + $0x10d8] sm:$0xff]
        %v815 = vld [vmem:[%s221 + $0x10e0] sm:$0xff]
        %v816 = vld [vmem:[%s221 + $0x10e8] sm:$0xff]
        %v817 = vld [vmem:[%s221 + $0x10f0] sm:$0xff]
        %v818 = vld [vmem:[%s221 + $0x10f8] sm:$0xff]
        %v819 = vld [vmem:[%s221 + $0x1100] sm:$0xff]
        %v820 = vld [vmem:[%s221 + $0x1108] sm:$0xff]
        %v821 = vld [vmem:[%s221 + $0x1110] sm:$0xff]
        %v822 = vld [vmem:[%s221 + $0x1118] sm:$0xff]
        %v823 = vld [vmem:[%s221 + $0x1120] sm:$0xff]
        %v824 = vld [vmem:[%s221 + $0x1128] sm:$0xff]
        %v825 = vld [vmem:[%s221 + $0x1130] sm:$0xff]
        %v826 = vld [vmem:[%s221 + $0x1138] sm:$0xff]
        %v827 = vld [vmem:[%s221 + $0x1140] sm:$0xff]
        %v828 = vld [vmem:[%s221 + $0x1148] sm:$0xff]
        %v829 = vld [vmem:[%s221 + $0x1150] sm:$0xff]
        %v830 = vld [vmem:[%s221 + $0x1158] sm:$0xff]
        %v831 = vld [vmem:[%s221 + $0x1160] sm:$0xff]
        %v832 = vld [vmem:[%s221 + $0x1168] sm:$0xff]
        %v833 = vld [vmem:[%s221 + $0x1170] sm:$0xff]
        %v834 = vld [vmem:[%s221 + $0x1178] sm:$0xff]
        %v835 = vld [vmem:[%s221 + $0x1180] sm:$0xff]
        %v836 = vld [vmem:[%s221 + $0x1188] sm:$0xff]
        %v837 = vld [vmem:[%s221 + $0x1190] sm:$0xff]
        %v838 = vld [vmem:[%s221 + $0x1198] sm:$0xff]
        %v839 = vld [vmem:[%s221 + $0x11a0] sm:$0xff]
        %v840 = vld [vmem:[%s221 + $0x11a8] sm:$0xff]
        %v841 = vld [vmem:[%s221 + $0x11b0] sm:$0xff]
        %v842 = vld [vmem:[%s221 + $0x11b8] sm:$0xff]
        %v843 = vld [vmem:[%s221 + $0x11c0] sm:$0xff]
        %v844 = vld [vmem:[%s221 + $0x11c8] sm:$0xff]
        %v845 = vld [vmem:[%s221 + $0x11d0] sm:$0xff]
        %v846 = vld [vmem:[%s221 + $0x11d8] sm:$0xff]
        %v847 = vld [vmem:[%s221 + $0x11e0] sm:$0xff]
        %v848 = vld [vmem:[%s221 + $0x11e8] sm:$0xff]
        %v849 = vld [vmem:[%s221 + $0x11f0] sm:$0xff]
        %v850 = vld [vmem:[%s221 + $0x11f8] sm:$0xff]
        %v851 = vld [vmem:[%s221 + $0x1200] sm:$0xff]
        %v852 = vld [vmem:[%s221 + $0x1208] sm:$0xff]
        %v853 = vld [vmem:[%s221 + $0x1210] sm:$0xff]
        %v854 = vld [vmem:[%s221 + $0x1218] sm:$0xff]
        %v855 = vld [vmem:[%s221 + $0x1220] sm:$0xff]
        %v856 = vld [vmem:[%s221 + $0x1228] sm:$0xff]
        %v857 = vld [vmem:[%s221 + $0x1230] sm:$0xff]
        %v858 = vld [vmem:[%s221 + $0x1238] sm:$0xff]
        %v859 = vld [vmem:[%s221 + $0x1240] sm:$0xff]
        %v860 = vld [vmem:[%s221 + $0x1248] sm:$0xff]
        %v861 = vld [vmem:[%s221 + $0x1250] sm:$0xff]
        %v862 = vld [vmem:[%s221 + $0x1258] sm:$0xff]
        %v863 = vld [vmem:[%s221 + $0x1260] sm:$0xff]
        %v864 = vld [vmem:[%s221 + $0x1268] sm:$0xff]
        %v865 = vld [vmem:[%s221 + $0x1270] sm:$0xff]
        %v866 = vld [vmem:[%s221 + $0x1278] sm:$0xff]
        %v867 = vld [vmem:[%s221 + $0x1280] sm:$0xff]
        %v868 = vld [vmem:[%s221 + $0x1288] sm:$0xff]
        %v869 = vld [vmem:[%s221 + $0x1290] sm:$0xff]
        %v870 = vld [vmem:[%s221 + $0x1298] sm:$0xff]
        %v871 = vld [vmem:[%s221 + $0x12a0] sm:$0xff]
        %v872 = vld [vmem:[%s221 + $0x12a8] sm:$0xff]
        %v873 = vld [vmem:[%s221 + $0x12b0] sm:$0xff]
        %v874 = vld [vmem:[%s221 + $0x12b8] sm:$0xff]
        %v875 = vld [vmem:[%s221 + $0x12c0] sm:$0xff]
        %v876 = vld [vmem:[%s221 + $0x12c8] sm:$0xff]
        %v877 = vld [vmem:[%s221 + $0x12d0] sm:$0xff]
        %v878 = vld [vmem:[%s221 + $0x12d8] sm:$0xff]
        %v879 = vld [vmem:[%s221 + $0x12e0] sm:$0xff]
        %v880 = vld [vmem:[%s221 + $0x12e8] sm:$0xff]
        %v881 = vld [vmem:[%s221 + $0x12f0] sm:$0xff]
        %v882 = vld [vmem:[%s221 + $0x12f8] sm:$0xff]
        %v883 = vld [vmem:[%s221 + $0x1300] sm:$0xff]
        %v884 = vld [vmem:[%s221 + $0x1308] sm:$0xff]
        %v885 = vld [vmem:[%s221 + $0x1310] sm:$0xff]
        %v886 = vld [vmem:[%s221 + $0x1318] sm:$0xff]
        %v887 = vld [vmem:[%s221 + $0x1320] sm:$0xff]
        %v888 = vld [vmem:[%s221 + $0x1328] sm:$0xff]
        %v889 = vld [vmem:[%s221 + $0x1330] sm:$0xff]
        %v890 = vld [vmem:[%s221 + $0x1338] sm:$0xff]
        %v891 = vld [vmem:[%s221 + $0x1340] sm:$0xff]
        %v892 = vld [vmem:[%s221 + $0x1348] sm:$0xff]
        %v893 = vld [vmem:[%s221 + $0x1350] sm:$0xff]
        %v894 = vld [vmem:[%s221 + $0x1358] sm:$0xff]
        %v895 = vld [vmem:[%s221 + $0x1360] sm:$0xff]
        %v896 = vld [vmem:[%s221 + $0x1368] sm:$0xff]
        %v897 = vld [vmem:[%s221 + $0x1370] sm:$0xff]
        %v898 = vld [vmem:[%s221 + $0x1378] sm:$0xff]
        %v899 = vld [vmem:[%s221 + $0x1380] sm:$0xff]
        %v900 = vld [vmem:[%s221 + $0x1388] sm:$0xff]
        %v901 = vld [vmem:[%s221 + $0x1390] sm:$0xff]
        %v902 = vld [vmem:[%s221 + $0x1398] sm:$0xff]
        %v903 = vld [vmem:[%s221 + $0x13a0] sm:$0xff]
        %v904 = vld [vmem:[%s221 + $0x13a8] sm:$0xff]
        %v905 = vld [vmem:[%s221 + $0x13b0] sm:$0xff]
        %v906 = vld [vmem:[%s221 + $0x13b8] sm:$0xff]
        %v907 = vld [vmem:[%s221 + $0x13c0] sm:$0xff]
        %v908 = vld [vmem:[%s221 + $0x13c8] sm:$0xff]
        %v909 = vld [vmem:[%s221 + $0x13d0] sm:$0xff]
        %v910 = vld [vmem:[%s221 + $0x13d8] sm:$0xff]
        %v911 = vld [vmem:[%s221 + $0x13e0] sm:$0xff]
        %v912 = vld [vmem:[%s221 + $0x13e8] sm:$0xff]
        %v913 = vld [vmem:[%s221 + $0x13f0] sm:$0xff]
        %v914 = vld [vmem:[%s221 + $0x13f8] sm:$0xff]
        %v915 = vld [vmem:[%s221 + $0x1400] sm:$0xff]
        %v916 = vld [vmem:[%s221 + $0x1408] sm:$0xff]
        %v917 = vld [vmem:[%s221 + $0x1410] sm:$0xff]
        %v918 = vld [vmem:[%s221 + $0x1418] sm:$0xff]
        %v919 = vld [vmem:[%s221 + $0x1420] sm:$0xff]
        %v920 = vld [vmem:[%s221 + $0x1428] sm:$0xff]
        %v921 = vld [vmem:[%s221 + $0x1430] sm:$0xff]
        %v922 = vld [vmem:[%s221 + $0x1438] sm:$0xff]
        %v923 = vld [vmem:[%s221 + $0x1440] sm:$0xff]
        %v924 = vld [vmem:[%s221 + $0x1448] sm:$0xff]
        %v925 = vld [vmem:[%s221 + $0x1450] sm:$0xff]
        %v926 = vld [vmem:[%s221 + $0x1458] sm:$0xff]
        %v927 = vld [vmem:[%s221 + $0x1460] sm:$0xff]
        %v928 = vld [vmem:[%s221 + $0x1468] sm:$0xff]
        %v929 = vld [vmem:[%s221 + $0x1470] sm:$0xff]
        %v930 = vld [vmem:[%s221 + $0x1478] sm:$0xff]
        %v931 = vld [vmem:[%s221 + $0x1480] sm:$0xff]
        %v932 = vld [vmem:[%s221 + $0x1488] sm:$0xff]
        %v933 = vld [vmem:[%s221 + $0x1490] sm:$0xff]
        %v934 = vld [vmem:[%s221 + $0x1498] sm:$0xff]
        %v935 = vld [vmem:[%s221 + $0x14a0] sm:$0xff]
        %v936 = vld [vmem:[%s221 + $0x14a8] sm:$0xff]
        %v937 = vld [vmem:[%s221 + $0x14b0] sm:$0xff]
        %v938 = vld [vmem:[%s221 + $0x14b8] sm:$0xff]
        %v939 = vld [vmem:[%s221 + $0x14c0] sm:$0xff]
        %v940 = vld [vmem:[%s221 + $0x14c8] sm:$0xff]
        %v941 = vld [vmem:[%s221 + $0x14d0] sm:$0xff]
        %v942 = vld [vmem:[%s221 + $0x14d8] sm:$0xff]
        %v943 = vld [vmem:[%s221 + $0x14e0] sm:$0xff]
        %v944 = vld [vmem:[%s221 + $0x14e8] sm:$0xff]
        %v945 = vld [vmem:[%s221 + $0x14f0] sm:$0xff]
        %v946 = vld [vmem:[%s221 + $0x14f8] sm:$0xff]
        %v947 = vld [vmem:[%s221 + $0x1500] sm:$0xff]
        %v948 = vld [vmem:[%s221 + $0x1508] sm:$0xff]
        %v949 = vld [vmem:[%s221 + $0x1510] sm:$0xff]
        %v950 = vld [vmem:[%s221 + $0x1518] sm:$0xff]
        %v951 = vld [vmem:[%s221 + $0x1520] sm:$0xff]
        %v952 = vld [vmem:[%s221 + $0x1528] sm:$0xff]
        %v953 = vld [vmem:[%s221 + $0x1530] sm:$0xff]
        %v954 = vld [vmem:[%s221 + $0x1538] sm:$0xff]
        %v955 = vld [vmem:[%s221 + $0x1540] sm:$0xff]
        %v956 = vld [vmem:[%s221 + $0x1548] sm:$0xff]
        %v957 = vld [vmem:[%s221 + $0x1550] sm:$0xff]
        %v958 = vld [vmem:[%s221 + $0x1558] sm:$0xff]
        %v959 = vld [vmem:[%s221 + $0x1560] sm:$0xff]
        %v960 = vld [vmem:[%s221 + $0x1568] sm:$0xff]
        %v961 = vld [vmem:[%s221 + $0x1570] sm:$0xff]
        %v962 = vld [vmem:[%s221 + $0x1578] sm:$0xff]
        %v963 = vld [vmem:[%s221 + $0x1580] sm:$0xff]
        %v964 = vld [vmem:[%s221 + $0x1588] sm:$0xff]
        %v965 = vld [vmem:[%s221 + $0x1590] sm:$0xff]
        %v966 = vld [vmem:[%s221 + $0x1598] sm:$0xff]
        %v967 = vld [vmem:[%s221 + $0x15a0] sm:$0xff]
        %v968 = vld [vmem:[%s221 + $0x15a8] sm:$0xff]
        %v969 = vld [vmem:[%s221 + $0x15b0] sm:$0xff]
        %v970 = vld [vmem:[%s221 + $0x15b8] sm:$0xff]
        %v971 = vld [vmem:[%s221 + $0x15c0] sm:$0xff]
        %v972 = vld [vmem:[%s221 + $0x15c8] sm:$0xff]
        %v973 = vld [vmem:[%s221 + $0x15d0] sm:$0xff]
        %v974 = vld [vmem:[%s221 + $0x15d8] sm:$0xff]
        %v975 = vld [vmem:[%s221 + $0x15e0] sm:$0xff]
        %v976 = vld [vmem:[%s221 + $0x15e8] sm:$0xff]
        %v977 = vld [vmem:[%s221 + $0x15f0] sm:$0xff]
        %v978 = vld [vmem:[%s221 + $0x15f8] sm:$0xff]
        %v979 = vld [vmem:[%s221 + $0x1600] sm:$0xff]
        %v980 = vld [vmem:[%s221 + $0x1608] sm:$0xff]
        %v981 = vld [vmem:[%s221 + $0x1610] sm:$0xff]
        %v982 = vld [vmem:[%s221 + $0x1618] sm:$0xff]
        %v983 = vld [vmem:[%s221 + $0x1620] sm:$0xff]
        %v984 = vld [vmem:[%s221 + $0x1628] sm:$0xff]
        %v985 = vld [vmem:[%s221 + $0x1630] sm:$0xff]
        %v986 = vld [vmem:[%s221 + $0x1638] sm:$0xff]
        %v987 = vld [vmem:[%s221 + $0x1640] sm:$0xff]
        %v988 = vld [vmem:[%s221 + $0x1648] sm:$0xff]
        %v989 = vld [vmem:[%s221 + $0x1650] sm:$0xff]
        %v990 = vld [vmem:[%s221 + $0x1658] sm:$0xff]
        %v991 = vld [vmem:[%s221 + $0x1660] sm:$0xff]
        %v992 = vld [vmem:[%s221 + $0x1668] sm:$0xff]
        %v993 = vld [vmem:[%s221 + $0x1670] sm:$0xff]
        %v994 = vld [vmem:[%s221 + $0x1678] sm:$0xff]
        %v995 = vld [vmem:[%s221 + $0x1680] sm:$0xff]
        %v996 = vld [vmem:[%s221 + $0x1688] sm:$0xff]
        %v997 = vld [vmem:[%s221 + $0x1690] sm:$0xff]
        %v998 = vld [vmem:[%s221 + $0x1698] sm:$0xff]
        %v999 = vld [vmem:[%s221 + $0x16a0] sm:$0xff]
        %v1000 = vld [vmem:[%s221 + $0x16a8] sm:$0xff]
        %v1001 = vld [vmem:[%s221 + $0x16b0] sm:$0xff]
        %v1002 = vld [vmem:[%s221 + $0x16b8] sm:$0xff]
        %v1003 = vld [vmem:[%s221 + $0x16c0] sm:$0xff]
        %v1004 = vld [vmem:[%s221 + $0x16c8] sm:$0xff]
        %v1005 = vld [vmem:[%s221 + $0x16d0] sm:$0xff]
        %v1006 = vld [vmem:[%s221 + $0x16d8] sm:$0xff]
        %v1007 = vld [vmem:[%s221 + $0x16e0] sm:$0xff]
        %v1008 = vld [vmem:[%s221 + $0x16e8] sm:$0xff]
        %v1009 = vld [vmem:[%s221 + $0x16f0] sm:$0xff]
        %v1010 = vld [vmem:[%s221 + $0x16f8] sm:$0xff]
        %v1011 = vld [vmem:[%s221 + $0x1700] sm:$0xff]
        %v1012 = vld [vmem:[%s221 + $0x1708] sm:$0xff]
        %v1013 = vld [vmem:[%s221 + $0x1710] sm:$0xff]
        %v1014 = vld [vmem:[%s221 + $0x1718] sm:$0xff]
        %v1015 = vld [vmem:[%s221 + $0x1720] sm:$0xff]
        %v1016 = vld [vmem:[%s221 + $0x1728] sm:$0xff]
        %v1017 = vld [vmem:[%s221 + $0x1730] sm:$0xff]
        %v1018 = vld [vmem:[%s221 + $0x1738] sm:$0xff]
        %v1019 = vld [vmem:[%s221 + $0x1740] sm:$0xff]
        %v1020 = vld [vmem:[%s221 + $0x1748] sm:$0xff]
        %v1021 = vld [vmem:[%s221 + $0x1750] sm:$0xff]
        %v1022 = vld [vmem:[%s221 + $0x1758] sm:$0xff]
        %v1023 = vld [vmem:[%s221 + $0x1760] sm:$0xff]
        %v1024 = vld [vmem:[%s221 + $0x1768] sm:$0xff]
        %v1025 = vld [vmem:[%s221 + $0x1770] sm:$0xff]
        %v1026 = vld [vmem:[%s221 + $0x1778] sm:$0xff]
        %v1027 = vld [vmem:[%s221 + $0x1780] sm:$0xff]
        %v1028 = vld [vmem:[%s221 + $0x1788] sm:$0xff]
        %v1029 = vld [vmem:[%s221 + $0x1790] sm:$0xff]
        %v1030 = vld [vmem:[%s221 + $0x1798] sm:$0xff]
        %v1031 = vld [vmem:[%s221 + $0x17a0] sm:$0xff]
        %v1032 = vld [vmem:[%s221 + $0x17a8] sm:$0xff]
        %v1033 = vld [vmem:[%s221 + $0x17b0] sm:$0xff]
        %v1034 = vld [vmem:[%s221 + $0x17b8] sm:$0xff]
        %v1035 = vld [vmem:[%s221 + $0x17c0] sm:$0xff]
        %v1036 = vld [vmem:[%s221 + $0x17c8] sm:$0xff]
        %v1037 = vld [vmem:[%s221 + $0x17d0] sm:$0xff]
        %v1038 = vld [vmem:[%s221 + $0x17d8] sm:$0xff]
        %v1039 = vld [vmem:[%s221 + $0x17e0] sm:$0xff]
        %v1040 = vld [vmem:[%s221 + $0x17e8] sm:$0xff]
        %v1041 = vld [vmem:[%s221 + $0x17f0] sm:$0xff]
        %v1042 = vld [vmem:[%s221 + $0x17f8] sm:$0xff]
        %v1043 = vld [vmem:[%s221 + $0x1800] sm:$0xff]
        %v1044 = vld [vmem:[%s221 + $0x1808] sm:$0xff]
        %v1045 = vld [vmem:[%s221 + $0x1810] sm:$0xff]
        %v1046 = vld [vmem:[%s221 + $0x1818] sm:$0xff]
        %v1047 = vld [vmem:[%s221 + $0x1820] sm:$0xff]
        %v1048 = vld [vmem:[%s221 + $0x1828] sm:$0xff]
        %v1049 = vld [vmem:[%s221 + $0x1830] sm:$0xff]
        %v1050 = vld [vmem:[%s221 + $0x1838] sm:$0xff]
        %v1051 = vld [vmem:[%s221 + $0x1840] sm:$0xff]
        %v1052 = vld [vmem:[%s221 + $0x1848] sm:$0xff]
        %v1053 = vld [vmem:[%s221 + $0x1850] sm:$0xff]
        %v1054 = vld [vmem:[%s221 + $0x1858] sm:$0xff]
        %v1055 = vld [vmem:[%s221 + $0x1860] sm:$0xff]
        %v1056 = vld [vmem:[%s221 + $0x1868] sm:$0xff]
        %v1057 = vld [vmem:[%s221 + $0x1870] sm:$0xff]
        %v1058 = vld [vmem:[%s221 + $0x1878] sm:$0xff]
        %v1059 = vld [vmem:[%s221 + $0x1880] sm:$0xff]
        %v1060 = vld [vmem:[%s221 + $0x1888] sm:$0xff]
        %v1061 = vld [vmem:[%s221 + $0x1890] sm:$0xff]
        %v1062 = vld [vmem:[%s221 + $0x1898] sm:$0xff]
        %v1063 = vld [vmem:[%s221 + $0x18a0] sm:$0xff]
        %v1064 = vld [vmem:[%s221 + $0x18a8] sm:$0xff]
        %v1065 = vld [vmem:[%s221 + $0x18b0] sm:$0xff]
        %v1066 = vld [vmem:[%s221 + $0x18b8] sm:$0xff]
        %v1067 = vld [vmem:[%s221 + $0x18c0] sm:$0xff]
        %v1068 = vld [vmem:[%s221 + $0x18c8] sm:$0xff]
        %v1069 = vld [vmem:[%s221 + $0x18d0] sm:$0xff]
        %v1070 = vld [vmem:[%s221 + $0x18d8] sm:$0xff]
        %v1071 = vld [vmem:[%s221 + $0x18e0] sm:$0xff]
        %v1072 = vld [vmem:[%s221 + $0x18e8] sm:$0xff]
        %v1073 = vld [vmem:[%s221 + $0x18f0] sm:$0xff]
        %v1074 = vld [vmem:[%s221 + $0x18f8] sm:$0xff]
        %v1075 = vld [vmem:[%s221 + $0x1900] sm:$0xff]
        %v1076 = vld [vmem:[%s221 + $0x1908] sm:$0xff]
        %v1077 = vld [vmem:[%s221 + $0x1910] sm:$0xff]
        %v1078 = vld [vmem:[%s221 + $0x1918] sm:$0xff]
        %v1079 = vld [vmem:[%s221 + $0x1920] sm:$0xff]
        %v1080 = vld [vmem:[%s221 + $0x1928] sm:$0xff]
        %v1081 = vld [vmem:[%s221 + $0x1930] sm:$0xff]
        %v1082 = vld [vmem:[%s221 + $0x1938] sm:$0xff]
        %v1083 = vld [vmem:[%s221 + $0x1940] sm:$0xff]
        %v1084 = vld [vmem:[%s221 + $0x1948] sm:$0xff]
        %v1085 = vld [vmem:[%s221 + $0x1950] sm:$0xff]
        %v1086 = vld [vmem:[%s221 + $0x1958] sm:$0xff]
        %v1087 = vld [vmem:[%s221 + $0x1960] sm:$0xff]
        %v1088 = vld [vmem:[%s221 + $0x1968] sm:$0xff]
        %v1089 = vld [vmem:[%s221 + $0x1970] sm:$0xff]
        %v1090 = vld [vmem:[%s221 + $0x1978] sm:$0xff]
        %v1091 = vld [vmem:[%s221 + $0x1980] sm:$0xff]
        %v1092 = vld [vmem:[%s221 + $0x1988] sm:$0xff]
        %v1093 = vld [vmem:[%s221 + $0x1990] sm:$0xff]
        %v1094 = vld [vmem:[%s221 + $0x1998] sm:$0xff]
        %v1095 = vld [vmem:[%s221 + $0x19a0] sm:$0xff]
        %v1096 = vld [vmem:[%s221 + $0x19a8] sm:$0xff]
        %v1097 = vld [vmem:[%s221 + $0x19b0] sm:$0xff]
        %v1098 = vld [vmem:[%s221 + $0x19b8] sm:$0xff]
        %v1099 = vld [vmem:[%s221 + $0x19c0] sm:$0xff]
        %v1100 = vld [vmem:[%s221 + $0x19c8] sm:$0xff]
        %v1101 = vld [vmem:[%s221 + $0x19d0] sm:$0xff]
        %v1102 = vld [vmem:[%s221 + $0x19d8] sm:$0xff]
        %v1103 = vld [vmem:[%s221 + $0x19e0] sm:$0xff]
        %v1104 = vld [vmem:[%s221 + $0x19e8] sm:$0xff]
        %v1105 = vld [vmem:[%s221 + $0x19f0] sm:$0xff]
        %v1106 = vld [vmem:[%s221 + $0x19f8] sm:$0xff]
        %v1107 = vld [vmem:[%s221 + $0x1a00] sm:$0xff]
        %v1108 = vld [vmem:[%s221 + $0x1a08] sm:$0xff]
        %v1109 = vld [vmem:[%s221 + $0x1a10] sm:$0xff]
        %v1110 = vld [vmem:[%s221 + $0x1a18] sm:$0xff]
        %v1111 = vld [vmem:[%s221 + $0x1a20] sm:$0xff]
        %v1112 = vld [vmem:[%s221 + $0x1a28] sm:$0xff]
        %v1113 = vld [vmem:[%s221 + $0x1a30] sm:$0xff]
        %v1114 = vld [vmem:[%s221 + $0x1a38] sm:$0xff]
        %v1115 = vld [vmem:[%s221 + $0x1a40] sm:$0xff]
        %v1116 = vld [vmem:[%s221 + $0x1a48] sm:$0xff]
        %v1117 = vld [vmem:[%s221 + $0x1a50] sm:$0xff]
        %v1118 = vld [vmem:[%s221 + $0x1a58] sm:$0xff]
        %v1119 = vld [vmem:[%s221 + $0x1a60] sm:$0xff]
        %v1120 = vld [vmem:[%s221 + $0x1a68] sm:$0xff]
        %v1121 = vld [vmem:[%s221 + $0x1a70] sm:$0xff]
        %v1122 = vld [vmem:[%s221 + $0x1a78] sm:$0xff]
        %v1123 = vld [vmem:[%s221 + $0x1a80] sm:$0xff]
        %v1124 = vld [vmem:[%s221 + $0x1a88] sm:$0xff]
        %v1125 = vld [vmem:[%s221 + $0x1a90] sm:$0xff]
        %v1126 = vld [vmem:[%s221 + $0x1a98] sm:$0xff]
        %v1127 = vld [vmem:[%s221 + $0x1aa0] sm:$0xff]
        %v1128 = vld [vmem:[%s221 + $0x1aa8] sm:$0xff]
        %v1129 = vld [vmem:[%s221 + $0x1ab0] sm:$0xff]
        %v1130 = vld [vmem:[%s221 + $0x1ab8] sm:$0xff]
        %v1131 = vld [vmem:[%s221 + $0x1ac0] sm:$0xff]
        %v1132 = vld [vmem:[%s221 + $0x1ac8] sm:$0xff]
        %v1133 = vld [vmem:[%s221 + $0x1ad0] sm:$0xff]
        %v1134 = vld [vmem:[%s221 + $0x1ad8] sm:$0xff]
        %v1135 = vld [vmem:[%s221 + $0x1ae0] sm:$0xff]
        %v1136 = vld [vmem:[%s221 + $0x1ae8] sm:$0xff]
        %v1137 = vld [vmem:[%s221 + $0x1af0] sm:$0xff]
        %v1138 = vld [vmem:[%s221 + $0x1af8] sm:$0xff]
        %v1139 = vld [vmem:[%s221 + $0x1b00] sm:$0xff]
        %v1140 = vld [vmem:[%s221 + $0x1b08] sm:$0xff]
        %v1141 = vld [vmem:[%s221 + $0x1b10] sm:$0xff]
        %v1142 = vld [vmem:[%s221 + $0x1b18] sm:$0xff]
        %v1143 = vld [vmem:[%s221 + $0x1b20] sm:$0xff]
        %v1144 = vld [vmem:[%s221 + $0x1b28] sm:$0xff]
        %v1145 = vld [vmem:[%s221 + $0x1b30] sm:$0xff]
        %v1146 = vld [vmem:[%s221 + $0x1b38] sm:$0xff]
        %v1147 = vld [vmem:[%s221 + $0x1b40] sm:$0xff]
        %v1148 = vld [vmem:[%s221 + $0x1b48] sm:$0xff]
        %v1149 = vld [vmem:[%s221 + $0x1b50] sm:$0xff]
        %v1150 = vld [vmem:[%s221 + $0x1b58] sm:$0xff]
        %v1151 = vld [vmem:[%s221 + $0x1b60] sm:$0xff]
        %v1152 = vld [vmem:[%s221 + $0x1b68] sm:$0xff]
        %v1153 = vld [vmem:[%s221 + $0x1b70] sm:$0xff]
        %v1154 = vld [vmem:[%s221 + $0x1b78] sm:$0xff]
        %v1155 = vld [vmem:[%s221 + $0x1b80] sm:$0xff]
        %v1156 = vld [vmem:[%s221 + $0x1b88] sm:$0xff]
        %v1157 = vld [vmem:[%s221 + $0x1b90] sm:$0xff]
        %v1158 = vld [vmem:[%s221 + $0x1b98] sm:$0xff]
        %v1159 = vld [vmem:[%s221 + $0x1ba0] sm:$0xff]
        %v1160 = vld [vmem:[%s221 + $0x1ba8] sm:$0xff]
        %v1161 = vld [vmem:[%s221 + $0x1bb0] sm:$0xff]
        %v1162 = vld [vmem:[%s221 + $0x1bb8] sm:$0xff]
        %v1163 = vld [vmem:[%s221 + $0x1bc0] sm:$0xff]
        %v1164 = vld [vmem:[%s221 + $0x1bc8] sm:$0xff]
        %v1165 = vld [vmem:[%s221 + $0x1bd0] sm:$0xff]
        %v1166 = vld [vmem:[%s221 + $0x1bd8] sm:$0xff]
        %v1167 = vld [vmem:[%s221 + $0x1be0] sm:$0xff]
        %v1168 = vld [vmem:[%s221 + $0x1be8] sm:$0xff]
        %v1169 = vld [vmem:[%s221 + $0x1bf0] sm:$0xff]
        %v1170 = vld [vmem:[%s221 + $0x1bf8] sm:$0xff]
        %v1171 = vld [vmem:[%s221 + $0x1c00] sm:$0xff]
        %v1172 = vld [vmem:[%s221 + $0x1c08] sm:$0xff]
        %v1173 = vld [vmem:[%s221 + $0x1c10] sm:$0xff]
        %v1174 = vld [vmem:[%s221 + $0x1c18] sm:$0xff]
        %v1175 = vld [vmem:[%s221 + $0x1c20] sm:$0xff]
        %v1176 = vld [vmem:[%s221 + $0x1c28] sm:$0xff]
        %v1177 = vld [vmem:[%s221 + $0x1c30] sm:$0xff]
        %v1178 = vld [vmem:[%s221 + $0x1c38] sm:$0xff]
        %v1179 = vld [vmem:[%s221 + $0x1c40] sm:$0xff]
        %v1180 = vld [vmem:[%s221 + $0x1c48] sm:$0xff]
        %v1181 = vld [vmem:[%s221 + $0x1c50] sm:$0xff]
        %v1182 = vld [vmem:[%s221 + $0x1c58] sm:$0xff]
        %v1183 = vld [vmem:[%s221 + $0x1c60] sm:$0xff]
        %v1184 = vld [vmem:[%s221 + $0x1c68] sm:$0xff]
        %v1185 = vld [vmem:[%s221 + $0x1c70] sm:$0xff]
        %v1186 = vld [vmem:[%s221 + $0x1c78] sm:$0xff]
        %v1187 = vld [vmem:[%s221 + $0x1c80] sm:$0xff]
        %v1188 = vld [vmem:[%s221 + $0x1c88] sm:$0xff]
        %v1189 = vld [vmem:[%s221 + $0x1c90] sm:$0xff]
        %v1190 = vld [vmem:[%s221 + $0x1c98] sm:$0xff]
        %v1191 = vld [vmem:[%s221 + $0x1ca0] sm:$0xff]
        %v1192 = vld [vmem:[%s221 + $0x1ca8] sm:$0xff]
        %v1193 = vld [vmem:[%s221 + $0x1cb0] sm:$0xff]
        %v1194 = vld [vmem:[%s221 + $0x1cb8] sm:$0xff]
        %v1195 = vld [vmem:[%s221 + $0x1cc0] sm:$0xff]
        %v1196 = vld [vmem:[%s221 + $0x1cc8] sm:$0xff]
        %v1197 = vld [vmem:[%s221 + $0x1cd0] sm:$0xff]
        %v1198 = vld [vmem:[%s221 + $0x1cd8] sm:$0xff]
        %v1199 = vld [vmem:[%s221 + $0x1ce0] sm:$0xff]
        %v1200 = vld [vmem:[%s221 + $0x1ce8] sm:$0xff]
        %v1201 = vld [vmem:[%s221 + $0x1cf0] sm:$0xff]
        %v1202 = vld [vmem:[%s221 + $0x1cf8] sm:$0xff]
        %v1203 = vld [vmem:[%s221 + $0x1d00] sm:$0xff]
        %v1204 = vld [vmem:[%s221 + $0x1d08] sm:$0xff]
        %v1205 = vld [vmem:[%s221 + $0x1d10] sm:$0xff]
        %v1206 = vld [vmem:[%s221 + $0x1d18] sm:$0xff]
        %v1207 = vld [vmem:[%s221 + $0x1d20] sm:$0xff]
        %v1208 = vld [vmem:[%s221 + $0x1d28] sm:$0xff]
        %v1209 = vld [vmem:[%s221 + $0x1d30] sm:$0xff]
        %v1210 = vld [vmem:[%s221 + $0x1d38] sm:$0xff]
        %v1211 = vld [vmem:[%s221 + $0x1d40] sm:$0xff]
        %v1212 = vld [vmem:[%s221 + $0x1d48] sm:$0xff]
        %v1213 = vld [vmem:[%s221 + $0x1d50] sm:$0xff]
        %v1214 = vld [vmem:[%s221 + $0x1d58] sm:$0xff]
        %v1215 = vld [vmem:[%s221 + $0x1d60] sm:$0xff]
        %v1216 = vld [vmem:[%s221 + $0x1d68] sm:$0xff]
        %v1217 = vld [vmem:[%s221 + $0x1d70] sm:$0xff]
        %v1218 = vld [vmem:[%s221 + $0x1d78] sm:$0xff]
        %v1219 = vld [vmem:[%s221 + $0x1d80] sm:$0xff]
        %v1220 = vld [vmem:[%s221 + $0x1d88] sm:$0xff]
        %v1221 = vld [vmem:[%s221 + $0x1d90] sm:$0xff]
        %v1222 = vld [vmem:[%s221 + $0x1d98] sm:$0xff]
        %v1223 = vld [vmem:[%s221 + $0x1da0] sm:$0xff]
        %v1224 = vld [vmem:[%s221 + $0x1da8] sm:$0xff]
        %v1225 = vld [vmem:[%s221 + $0x1db0] sm:$0xff]
        %v1226 = vld [vmem:[%s221 + $0x1db8] sm:$0xff]
        %v1227 = vld [vmem:[%s221 + $0x1dc0] sm:$0xff]
        %v1228 = vld [vmem:[%s221 + $0x1dc8] sm:$0xff]
        %v1229 = vld [vmem:[%s221 + $0x1dd0] sm:$0xff]
        %v1230 = vld [vmem:[%s221 + $0x1dd8] sm:$0xff]
        %v1231 = vld [vmem:[%s221 + $0x1de0] sm:$0xff]
        %v1232 = vld [vmem:[%s221 + $0x1de8] sm:$0xff]
        %v1233 = vld [vmem:[%s221 + $0x1df0] sm:$0xff]
        %v1234 = vld [vmem:[%s221 + $0x1df8] sm:$0xff]
        %v1235 = vld [vmem:[%s221 + $0x1e00] sm:$0xff]
        %v1236 = vld [vmem:[%s221 + $0x1e08] sm:$0xff]
        %v1237 = vld [vmem:[%s221 + $0x1e10] sm:$0xff]
        %v1238 = vld [vmem:[%s221 + $0x1e18] sm:$0xff]
        %v1239 = vld [vmem:[%s221 + $0x1e20] sm:$0xff]
        %v1240 = vld [vmem:[%s221 + $0x1e28] sm:$0xff]
        %v1241 = vld [vmem:[%s221 + $0x1e30] sm:$0xff]
        %v1242 = vld [vmem:[%s221 + $0x1e38] sm:$0xff]
        %v1243 = vld [vmem:[%s221 + $0x1e40] sm:$0xff]
        %v1244 = vld [vmem:[%s221 + $0x1e48] sm:$0xff]
        %v1245 = vld [vmem:[%s221 + $0x1e50] sm:$0xff]
        %v1246 = vld [vmem:[%s221 + $0x1e58] sm:$0xff]
        %v1247 = vld [vmem:[%s221 + $0x1e60] sm:$0xff]
        %v1248 = vld [vmem:[%s221 + $0x1e68] sm:$0xff]
        %v1249 = vld [vmem:[%s221 + $0x1e70] sm:$0xff]
        %v1250 = vld [vmem:[%s221 + $0x1e78] sm:$0xff]
        %v1251 = vld [vmem:[%s221 + $0x1e80] sm:$0xff]
        %v1252 = vld [vmem:[%s221 + $0x1e88] sm:$0xff]
        %v1253 = vld [vmem:[%s221 + $0x1e90] sm:$0xff]
        %v1254 = vld [vmem:[%s221 + $0x1e98] sm:$0xff]
        %v1255 = vld [vmem:[%s221 + $0x1ea0] sm:$0xff]
        %v1256 = vld [vmem:[%s221 + $0x1ea8] sm:$0xff]
        %v1257 = vld [vmem:[%s221 + $0x1eb0] sm:$0xff]
        %v1258 = vld [vmem:[%s221 + $0x1eb8] sm:$0xff]
        %v1259 = vld [vmem:[%s221 + $0x1ec0] sm:$0xff]
        %v1260 = vld [vmem:[%s221 + $0x1ec8] sm:$0xff]
        %v1261 = vld [vmem:[%s221 + $0x1ed0] sm:$0xff]
        %v1262 = vld [vmem:[%s221 + $0x1ed8] sm:$0xff]
        %v1263 = vld [vmem:[%s221 + $0x1ee0] sm:$0xff]
        %v1264 = vld [vmem:[%s221 + $0x1ee8] sm:$0xff]
        %v1265 = vld [vmem:[%s221 + $0x1ef0] sm:$0xff]
        %v1266 = vld [vmem:[%s221 + $0x1ef8] sm:$0xff]
        %v1267 = vld [vmem:[%s221 + $0x1f00] sm:$0xff]
        %v1268 = vld [vmem:[%s221 + $0x1f08] sm:$0xff]
        %v1269 = vld [vmem:[%s221 + $0x1f10] sm:$0xff]
        %v1270 = vld [vmem:[%s221 + $0x1f18] sm:$0xff]
        %v1271 = vld [vmem:[%s221 + $0x1f20] sm:$0xff]
        %v1272 = vld [vmem:[%s221 + $0x1f28] sm:$0xff]
        %v1273 = vld [vmem:[%s221 + $0x1f30] sm:$0xff]
        %v1274 = vld [vmem:[%s221 + $0x1f38] sm:$0xff]
        %v1275 = vld [vmem:[%s221 + $0x1f40] sm:$0xff]
        %v1276 = vld [vmem:[%s221 + $0x1f48] sm:$0xff]
        %v1277 = vld [vmem:[%s221 + $0x1f50] sm:$0xff]
        %v1278 = vld [vmem:[%s221 + $0x1f58] sm:$0xff]
        %v1279 = vld [vmem:[%s221 + $0x1f60] sm:$0xff]
        %v1280 = vld [vmem:[%s221 + $0x1f68] sm:$0xff]
        %v1281 = vld [vmem:[%s221 + $0x1f70] sm:$0xff]
        %v1282 = vld [vmem:[%s221 + $0x1f78] sm:$0xff]
        %v1283 = vld [vmem:[%s221 + $0x1f80] sm:$0xff]
        %v1284 = vld [vmem:[%s221 + $0x1f88] sm:$0xff]
        %v1285 = vld [vmem:[%s221 + $0x1f90] sm:$0xff]
        %v1286 = vld [vmem:[%s221 + $0x1f98] sm:$0xff]
        %v1287 = vld [vmem:[%s221 + $0x1fa0] sm:$0xff]
        %v1288 = vld [vmem:[%s221 + $0x1fa8] sm:$0xff]
        %v1289 = vld [vmem:[%s221 + $0x1fb0] sm:$0xff]
        %v1290 = vld [vmem:[%s221 + $0x1fb8] sm:$0xff]
        %v1291 = vld [vmem:[%s221 + $0x1fc0] sm:$0xff]
        %v1292 = vld [vmem:[%s221 + $0x1fc8] sm:$0xff]
        %v1293 = vld [vmem:[%s221 + $0x1fd0] sm:$0xff]
        %v1294 = vld [vmem:[%s221 + $0x1fd8] sm:$0xff]
        %v1295 = vld [vmem:[%s221 + $0x1fe0] sm:$0xff]
        %v1296 = vld [vmem:[%s221 + $0x1fe8] sm:$0xff]
        %v1297 = vld [vmem:[%s221 + $0x1ff0] sm:$0xff]
        %v1298 = vld [vmem:[%s221 + $0x1ff8] sm:$0xff]
        %v1301 = vlaneseq
        %v1302 = vshrl.u32 %v1301, 7
        %v1303 = vsub.s32 0, %v1302
        %v1304 = vrot.slane %v266, %v1303
        %v1305 = vlaneseq
        %v1306 = vshrl.u32 %v1305, 7
        %v1307 = vsub.s32 1, %v1306
        %v1308 = vrot.slane %v266, %v1307
        %v1309 = vlaneseq
        %v1310 = vshrl.u32 %v1309, 7
        %v1311 = vsub.s32 2, %v1310
        %v1312 = vrot.slane %v266, %v1311
        %v1313 = vlaneseq
        %v1314 = vshrl.u32 %v1313, 7
        %v1315 = vsub.s32 3, %v1314
        %v1316 = vrot.slane %v266, %v1315
        %v1317 = vlaneseq
        %v1318 = vshrl.u32 %v1317, 7
        %v1319 = vsub.s32 4, %v1318
        %v1320 = vrot.slane %v266, %v1319
        %v1321 = vlaneseq
        %v1322 = vshrl.u32 %v1321, 7
        %v1323 = vsub.s32 5, %v1322
        %v1324 = vrot.slane %v266, %v1323
        %v1325 = vlaneseq
        %v1326 = vshrl.u32 %v1325, 7
        %v1327 = vsub.s32 6, %v1326
        %v1328 = vrot.slane %v266, %v1327
        %v1329 = vlaneseq
        %v1330 = vshrl.u32 %v1329, 7
        %v1331 = vsub.s32 7, %v1330
        %v1332 = vrot.slane %v266, %v1331
        %v1333 = vlaneseq
        %v1334 = vshrl.u32 %v1333, 7
        %v1335 = vsub.s32 0, %v1334
        %v1336 = vrot.slane %v267, %v1335
        %v1337 = vlaneseq
        %v1338 = vshrl.u32 %v1337, 7
        %v1339 = vsub.s32 1, %v1338
        %v1340 = vrot.slane %v267, %v1339
        %v1341 = vlaneseq
        %v1342 = vshrl.u32 %v1341, 7
        %v1343 = vsub.s32 2, %v1342
        %v1344 = vrot.slane %v267, %v1343
        %v1345 = vlaneseq
        %v1346 = vshrl.u32 %v1345, 7
        %v1347 = vsub.s32 3, %v1346
        %v1348 = vrot.slane %v267, %v1347
        %v1349 = vlaneseq
        %v1350 = vshrl.u32 %v1349, 7
        %v1351 = vsub.s32 4, %v1350
        %v1352 = vrot.slane %v267, %v1351
        %v1353 = vlaneseq
        %v1354 = vshrl.u32 %v1353, 7
        %v1355 = vsub.s32 5, %v1354
        %v1356 = vrot.slane %v267, %v1355
        %v1357 = vlaneseq
        %v1358 = vshrl.u32 %v1357, 7
        %v1359 = vsub.s32 6, %v1358
        %v1360 = vrot.slane %v267, %v1359
        %v1361 = vlaneseq
        %v1362 = vshrl.u32 %v1361, 7
        %v1363 = vsub.s32 7, %v1362
        %v1364 = vrot.slane %v267, %v1363
        %v1385 = vunpack.c.l.b16 %v271
        %v1386 = vunpack.c.h.b16 %v271
        %v1387 = vunpack.c.l.b16 %v272
        %v1388 = vunpack.c.h.b16 %v272
        %v1389 = vunpack.c.l.b16 %v273
        %v1390 = vunpack.c.h.b16 %v273
        %v1391 = vunpack.c.l.b16 %v274
        %v1392 = vunpack.c.h.b16 %v274
        %v1393 = vpack.c.b16 %v1385, %v1385
        %v1394 = vpack.c.b16 %v1386, %v1386
        %v1395 = vpack.c.b16 %v1387, %v1387
        %v1396 = vpack.c.b16 %v1388, %v1388
        %v1397 = vpack.c.b16 %v1389, %v1389
        %v1398 = vpack.c.b16 %v1390, %v1390
        %v1399 = vpack.c.b16 %v1391, %v1391
        %v1400 = vpack.c.b16 %v1392, %v1392
        %v2433 = vunpack.c.l.b16 %v275
        %v2434 = vunpack.c.h.b16 %v275
        %v2435 = vunpack.c.l.b16 %v276
        %v2436 = vunpack.c.h.b16 %v276
        %v2437 = vunpack.c.l.b16 %v277
        %v2438 = vunpack.c.h.b16 %v277
        %v2439 = vunpack.c.l.b16 %v278
        %v2440 = vunpack.c.h.b16 %v278
        %v2441 = vunpack.c.l.b16 %v279
        %v2442 = vunpack.c.h.b16 %v279
        %v2443 = vunpack.c.l.b16 %v280
        %v2444 = vunpack.c.h.b16 %v280
        %v2445 = vunpack.c.l.b16 %v281
        %v2446 = vunpack.c.h.b16 %v281
        %v2447 = vunpack.c.l.b16 %v282
        %v2448 = vunpack.c.h.b16 %v282
        %v2449 = vunpack.c.l.b16 %v283
        %v2450 = vunpack.c.h.b16 %v283
        %v2451 = vunpack.c.l.b16 %v284
        %v2452 = vunpack.c.h.b16 %v284
        %v2453 = vunpack.c.l.b16 %v285
        %v2454 = vunpack.c.h.b16 %v285
        %v2455 = vunpack.c.l.b16 %v286
        %v2456 = vunpack.c.h.b16 %v286
        %v2457 = vunpack.c.l.b16 %v287
        %v2458 = vunpack.c.h.b16 %v287
        %v2459 = vunpack.c.l.b16 %v288
        %v2460 = vunpack.c.h.b16 %v288
        %v2461 = vunpack.c.l.b16 %v289
        %v2462 = vunpack.c.h.b16 %v289
        %v2463 = vunpack.c.l.b16 %v290
        %v2464 = vunpack.c.h.b16 %v290
        %v2465 = vunpack.c.l.b16 %v291
        %v2466 = vunpack.c.h.b16 %v291
        %v2467 = vunpack.c.l.b16 %v292
        %v2468 = vunpack.c.h.b16 %v292
        %v2469 = vunpack.c.l.b16 %v293
        %v2470 = vunpack.c.h.b16 %v293
        %v2471 = vunpack.c.l.b16 %v294
        %v2472 = vunpack.c.h.b16 %v294
        %v2473 = vunpack.c.l.b16 %v295
        %v2474 = vunpack.c.h.b16 %v295
        %v2475 = vunpack.c.l.b16 %v296
        %v2476 = vunpack.c.h.b16 %v296
        %v2477 = vunpack.c.l.b16 %v297
        %v2478 = vunpack.c.h.b16 %v297
        %v2479 = vunpack.c.l.b16 %v298
        %v2480 = vunpack.c.h.b16 %v298
        %v2481 = vunpack.c.l.b16 %v299
        %v2482 = vunpack.c.h.b16 %v299
        %v2483 = vunpack.c.l.b16 %v300
        %v2484 = vunpack.c.h.b16 %v300
        %v2485 = vunpack.c.l.b16 %v301
        %v2486 = vunpack.c.h.b16 %v301
        %v2487 = vunpack.c.l.b16 %v302
        %v2488 = vunpack.c.h.b16 %v302
        %v2489 = vunpack.c.l.b16 %v303
        %v2490 = vunpack.c.h.b16 %v303
        %v2491 = vunpack.c.l.b16 %v304
        %v2492 = vunpack.c.h.b16 %v304
        %v2493 = vunpack.c.l.b16 %v305
        %v2494 = vunpack.c.h.b16 %v305
        %v2495 = vunpack.c.l.b16 %v306
        %v2496 = vunpack.c.h.b16 %v306
        %v2497 = vunpack.c.l.b16 %v307
        %v2498 = vunpack.c.h.b16 %v307
        %v2499 = vunpack.c.l.b16 %v308
        %v2500 = vunpack.c.h.b16 %v308
        %v2501 = vunpack.c.l.b16 %v309
        %v2502 = vunpack.c.h.b16 %v309
        %v2503 = vunpack.c.l.b16 %v310
        %v2504 = vunpack.c.h.b16 %v310
        %v2505 = vunpack.c.l.b16 %v311
        %v2506 = vunpack.c.h.b16 %v311
        %v2507 = vunpack.c.l.b16 %v312
        %v2508 = vunpack.c.h.b16 %v312
        %v2509 = vunpack.c.l.b16 %v313
        %v2510 = vunpack.c.h.b16 %v313
        %v2511 = vunpack.c.l.b16 %v314
        %v2512 = vunpack.c.h.b16 %v314
        %v2513 = vunpack.c.l.b16 %v315
        %v2514 = vunpack.c.h.b16 %v315
        %v2515 = vunpack.c.l.b16 %v316
        %v2516 = vunpack.c.h.b16 %v316
        %v2517 = vunpack.c.l.b16 %v317
        %v2518 = vunpack.c.h.b16 %v317
        %v2519 = vunpack.c.l.b16 %v318
        %v2520 = vunpack.c.h.b16 %v318
        %v2521 = vunpack.c.l.b16 %v319
        %v2522 = vunpack.c.h.b16 %v319
        %v2523 = vunpack.c.l.b16 %v320
        %v2524 = vunpack.c.h.b16 %v320
        %v2525 = vunpack.c.l.b16 %v321
        %v2526 = vunpack.c.h.b16 %v321
        %v2527 = vunpack.c.l.b16 %v322
        %v2528 = vunpack.c.h.b16 %v322
        %v2529 = vunpack.c.l.b16 %v323
        %v2530 = vunpack.c.h.b16 %v323
        %v2531 = vunpack.c.l.b16 %v324
        %v2532 = vunpack.c.h.b16 %v324
        %v2533 = vunpack.c.l.b16 %v325
        %v2534 = vunpack.c.h.b16 %v325
        %v2535 = vunpack.c.l.b16 %v326
        %v2536 = vunpack.c.h.b16 %v326
        %v2537 = vunpack.c.l.b16 %v327
        %v2538 = vunpack.c.h.b16 %v327
        %v2539 = vunpack.c.l.b16 %v328
        %v2540 = vunpack.c.h.b16 %v328
        %v2541 = vunpack.c.l.b16 %v329
        %v2542 = vunpack.c.h.b16 %v329
        %v2543 = vunpack.c.l.b16 %v330
        %v2544 = vunpack.c.h.b16 %v330
        %v2545 = vunpack.c.l.b16 %v331
        %v2546 = vunpack.c.h.b16 %v331
        %v2547 = vunpack.c.l.b16 %v332
        %v2548 = vunpack.c.h.b16 %v332
        %v2549 = vunpack.c.l.b16 %v333
        %v2550 = vunpack.c.h.b16 %v333
        %v2551 = vunpack.c.l.b16 %v334
        %v2552 = vunpack.c.h.b16 %v334
        %v2553 = vunpack.c.l.b16 %v335
        %v2554 = vunpack.c.h.b16 %v335
        %v2555 = vunpack.c.l.b16 %v336
        %v2556 = vunpack.c.h.b16 %v336
        %v2557 = vunpack.c.l.b16 %v337
        %v2558 = vunpack.c.h.b16 %v337
        %v2559 = vunpack.c.l.b16 %v338
        %v2560 = vunpack.c.h.b16 %v338
        %v2561 = vunpack.c.l.b16 %v339
        %v2562 = vunpack.c.h.b16 %v339
        %v2563 = vunpack.c.l.b16 %v340
        %v2564 = vunpack.c.h.b16 %v340
        %v2565 = vunpack.c.l.b16 %v341
        %v2566 = vunpack.c.h.b16 %v341
        %v2567 = vunpack.c.l.b16 %v342
        %v2568 = vunpack.c.h.b16 %v342
        %v2569 = vunpack.c.l.b16 %v343
        %v2570 = vunpack.c.h.b16 %v343
        %v2571 = vunpack.c.l.b16 %v344
        %v2572 = vunpack.c.h.b16 %v344
        %v2573 = vunpack.c.l.b16 %v345
        %v2574 = vunpack.c.h.b16 %v345
        %v2575 = vunpack.c.l.b16 %v346
        %v2576 = vunpack.c.h.b16 %v346
        %v2577 = vunpack.c.l.b16 %v347
        %v2578 = vunpack.c.h.b16 %v347
        %v2579 = vunpack.c.l.b16 %v348
        %v2580 = vunpack.c.h.b16 %v348
        %v2581 = vunpack.c.l.b16 %v349
        %v2582 = vunpack.c.h.b16 %v349
        %v2583 = vunpack.c.l.b16 %v350
        %v2584 = vunpack.c.h.b16 %v350
        %v2585 = vunpack.c.l.b16 %v351
        %v2586 = vunpack.c.h.b16 %v351
        %v2587 = vunpack.c.l.b16 %v352
        %v2588 = vunpack.c.h.b16 %v352
        %v2589 = vunpack.c.l.b16 %v353
        %v2590 = vunpack.c.h.b16 %v353
        %v2591 = vunpack.c.l.b16 %v354
        %v2592 = vunpack.c.h.b16 %v354
        %v2593 = vunpack.c.l.b16 %v355
        %v2594 = vunpack.c.h.b16 %v355
        %v2595 = vunpack.c.l.b16 %v356
        %v2596 = vunpack.c.h.b16 %v356
        %v2597 = vunpack.c.l.b16 %v357
        %v2598 = vunpack.c.h.b16 %v357
        %v2599 = vunpack.c.l.b16 %v358
        %v2600 = vunpack.c.h.b16 %v358
        %v2601 = vunpack.c.l.b16 %v359
        %v2602 = vunpack.c.h.b16 %v359
        %v2603 = vunpack.c.l.b16 %v360
        %v2604 = vunpack.c.h.b16 %v360
        %v2605 = vunpack.c.l.b16 %v361
        %v2606 = vunpack.c.h.b16 %v361
        %v2607 = vunpack.c.l.b16 %v362
        %v2608 = vunpack.c.h.b16 %v362
        %v2609 = vunpack.c.l.b16 %v363
        %v2610 = vunpack.c.h.b16 %v363
        %v2611 = vunpack.c.l.b16 %v364
        %v2612 = vunpack.c.h.b16 %v364
        %v2613 = vunpack.c.l.b16 %v365
        %v2614 = vunpack.c.h.b16 %v365
        %v2615 = vunpack.c.l.b16 %v366
        %v2616 = vunpack.c.h.b16 %v366
        %v2617 = vunpack.c.l.b16 %v367
        %v2618 = vunpack.c.h.b16 %v367
        %v2619 = vunpack.c.l.b16 %v368
        %v2620 = vunpack.c.h.b16 %v368
        %v2621 = vunpack.c.l.b16 %v369
        %v2622 = vunpack.c.h.b16 %v369
        %v2623 = vunpack.c.l.b16 %v370
        %v2624 = vunpack.c.h.b16 %v370
        %v2625 = vunpack.c.l.b16 %v371
        %v2626 = vunpack.c.h.b16 %v371
        %v2627 = vunpack.c.l.b16 %v372
        %v2628 = vunpack.c.h.b16 %v372
        %v2629 = vunpack.c.l.b16 %v373
        %v2630 = vunpack.c.h.b16 %v373
        %v2631 = vunpack.c.l.b16 %v374
        %v2632 = vunpack.c.h.b16 %v374
        %v2633 = vunpack.c.l.b16 %v375
        %v2634 = vunpack.c.h.b16 %v375
        %v2635 = vunpack.c.l.b16 %v376
        %v2636 = vunpack.c.h.b16 %v376
        %v2637 = vunpack.c.l.b16 %v377
        %v2638 = vunpack.c.h.b16 %v377
        %v2639 = vunpack.c.l.b16 %v378
        %v2640 = vunpack.c.h.b16 %v378
        %v2641 = vunpack.c.l.b16 %v379
        %v2642 = vunpack.c.h.b16 %v379
        %v2643 = vunpack.c.l.b16 %v380
        %v2644 = vunpack.c.h.b16 %v380
        %v2645 = vunpack.c.l.b16 %v381
        %v2646 = vunpack.c.h.b16 %v381
        %v2647 = vunpack.c.l.b16 %v382
        %v2648 = vunpack.c.h.b16 %v382
        %v2649 = vunpack.c.l.b16 %v383
        %v2650 = vunpack.c.h.b16 %v383
        %v2651 = vunpack.c.l.b16 %v384
        %v2652 = vunpack.c.h.b16 %v384
        %v2653 = vunpack.c.l.b16 %v385
        %v2654 = vunpack.c.h.b16 %v385
        %v2655 = vunpack.c.l.b16 %v386
        %v2656 = vunpack.c.h.b16 %v386
        %v2657 = vunpack.c.l.b16 %v387
        %v2658 = vunpack.c.h.b16 %v387
        %v2659 = vunpack.c.l.b16 %v388
        %v2660 = vunpack.c.h.b16 %v388
        %v2661 = vunpack.c.l.b16 %v389
        %v2662 = vunpack.c.h.b16 %v389
        %v2663 = vunpack.c.l.b16 %v390
        %v2664 = vunpack.c.h.b16 %v390
        %v2665 = vunpack.c.l.b16 %v391
        %v2666 = vunpack.c.h.b16 %v391
        %v2667 = vunpack.c.l.b16 %v392
        %v2668 = vunpack.c.h.b16 %v392
        %v2669 = vunpack.c.l.b16 %v393
        %v2670 = vunpack.c.h.b16 %v393
        %v2671 = vunpack.c.l.b16 %v394
        %v2672 = vunpack.c.h.b16 %v394
        %v2673 = vunpack.c.l.b16 %v395
        %v2674 = vunpack.c.h.b16 %v395
        %v2675 = vunpack.c.l.b16 %v396
        %v2676 = vunpack.c.h.b16 %v396
        %v2677 = vunpack.c.l.b16 %v397
        %v2678 = vunpack.c.h.b16 %v397
        %v2679 = vunpack.c.l.b16 %v398
        %v2680 = vunpack.c.h.b16 %v398
        %v2681 = vunpack.c.l.b16 %v399
        %v2682 = vunpack.c.h.b16 %v399
        %v2683 = vunpack.c.l.b16 %v400
        %v2684 = vunpack.c.h.b16 %v400
        %v2685 = vunpack.c.l.b16 %v401
        %v2686 = vunpack.c.h.b16 %v401
        %v2687 = vunpack.c.l.b16 %v402
        %v2688 = vunpack.c.h.b16 %v402
        %v2689 = vunpack.c.l.b16 %v403
        %v2690 = vunpack.c.h.b16 %v403
        %v2691 = vunpack.c.l.b16 %v404
        %v2692 = vunpack.c.h.b16 %v404
        %v2693 = vunpack.c.l.b16 %v405
        %v2694 = vunpack.c.h.b16 %v405
        %v2695 = vunpack.c.l.b16 %v406
        %v2696 = vunpack.c.h.b16 %v406
        %v2697 = vunpack.c.l.b16 %v407
        %v2698 = vunpack.c.h.b16 %v407
        %v2699 = vunpack.c.l.b16 %v408
        %v2700 = vunpack.c.h.b16 %v408
        %v2701 = vunpack.c.l.b16 %v409
        %v2702 = vunpack.c.h.b16 %v409
        %v2703 = vunpack.c.l.b16 %v410
        %v2704 = vunpack.c.h.b16 %v410
        %v2705 = vunpack.c.l.b16 %v411
        %v2706 = vunpack.c.h.b16 %v411
        %v2707 = vunpack.c.l.b16 %v412
        %v2708 = vunpack.c.h.b16 %v412
        %v2709 = vunpack.c.l.b16 %v413
        %v2710 = vunpack.c.h.b16 %v413
        %v2711 = vunpack.c.l.b16 %v414
        %v2712 = vunpack.c.h.b16 %v414
        %v2713 = vunpack.c.l.b16 %v415
        %v2714 = vunpack.c.h.b16 %v415
        %v2715 = vunpack.c.l.b16 %v416
        %v2716 = vunpack.c.h.b16 %v416
        %v2717 = vunpack.c.l.b16 %v417
        %v2718 = vunpack.c.h.b16 %v417
        %v2719 = vunpack.c.l.b16 %v418
        %v2720 = vunpack.c.h.b16 %v418
        %v2721 = vunpack.c.l.b16 %v419
        %v2722 = vunpack.c.h.b16 %v419
        %v2723 = vunpack.c.l.b16 %v420
        %v2724 = vunpack.c.h.b16 %v420
        %v2725 = vunpack.c.l.b16 %v421
        %v2726 = vunpack.c.h.b16 %v421
        %v2727 = vunpack.c.l.b16 %v422
        %v2728 = vunpack.c.h.b16 %v422
        %v2729 = vunpack.c.l.b16 %v423
        %v2730 = vunpack.c.h.b16 %v423
        %v2731 = vunpack.c.l.b16 %v424
        %v2732 = vunpack.c.h.b16 %v424
        %v2733 = vunpack.c.l.b16 %v425
        %v2734 = vunpack.c.h.b16 %v425
        %v2735 = vunpack.c.l.b16 %v426
        %v2736 = vunpack.c.h.b16 %v426
        %v2737 = vunpack.c.l.b16 %v427
        %v2738 = vunpack.c.h.b16 %v427
        %v2739 = vunpack.c.l.b16 %v428
        %v2740 = vunpack.c.h.b16 %v428
        %v2741 = vunpack.c.l.b16 %v429
        %v2742 = vunpack.c.h.b16 %v429
        %v2743 = vunpack.c.l.b16 %v430
        %v2744 = vunpack.c.h.b16 %v430
        %v2745 = vunpack.c.l.b16 %v431
        %v2746 = vunpack.c.h.b16 %v431
        %v2747 = vunpack.c.l.b16 %v432
        %v2748 = vunpack.c.h.b16 %v432
        %v2749 = vunpack.c.l.b16 %v433
        %v2750 = vunpack.c.h.b16 %v433
        %v2751 = vunpack.c.l.b16 %v434
        %v2752 = vunpack.c.h.b16 %v434
        %v2753 = vunpack.c.l.b16 %v435
        %v2754 = vunpack.c.h.b16 %v435
        %v2755 = vunpack.c.l.b16 %v436
        %v2756 = vunpack.c.h.b16 %v436
        %v2757 = vunpack.c.l.b16 %v437
        %v2758 = vunpack.c.h.b16 %v437
        %v2759 = vunpack.c.l.b16 %v438
        %v2760 = vunpack.c.h.b16 %v438
        %v2761 = vunpack.c.l.b16 %v439
        %v2762 = vunpack.c.h.b16 %v439
        %v2763 = vunpack.c.l.b16 %v440
        %v2764 = vunpack.c.h.b16 %v440
        %v2765 = vunpack.c.l.b16 %v441
        %v2766 = vunpack.c.h.b16 %v441
        %v2767 = vunpack.c.l.b16 %v442
        %v2768 = vunpack.c.h.b16 %v442
        %v2769 = vunpack.c.l.b16 %v443
        %v2770 = vunpack.c.h.b16 %v443
        %v2771 = vunpack.c.l.b16 %v444
        %v2772 = vunpack.c.h.b16 %v444
        %v2773 = vunpack.c.l.b16 %v445
        %v2774 = vunpack.c.h.b16 %v445
        %v2775 = vunpack.c.l.b16 %v446
        %v2776 = vunpack.c.h.b16 %v446
        %v2777 = vunpack.c.l.b16 %v447
        %v2778 = vunpack.c.h.b16 %v447
        %v2779 = vunpack.c.l.b16 %v448
        %v2780 = vunpack.c.h.b16 %v448
        %v2781 = vunpack.c.l.b16 %v449
        %v2782 = vunpack.c.h.b16 %v449
        %v2783 = vunpack.c.l.b16 %v450
        %v2784 = vunpack.c.h.b16 %v450
        %v2785 = vunpack.c.l.b16 %v451
        %v2786 = vunpack.c.h.b16 %v451
        %v2787 = vunpack.c.l.b16 %v452
        %v2788 = vunpack.c.h.b16 %v452
        %v2789 = vunpack.c.l.b16 %v453
        %v2790 = vunpack.c.h.b16 %v453
        %v2791 = vunpack.c.l.b16 %v454
        %v2792 = vunpack.c.h.b16 %v454
        %v2793 = vunpack.c.l.b16 %v455
        %v2794 = vunpack.c.h.b16 %v455
        %v2795 = vunpack.c.l.b16 %v456
        %v2796 = vunpack.c.h.b16 %v456
        %v2797 = vunpack.c.l.b16 %v457
        %v2798 = vunpack.c.h.b16 %v457
        %v2799 = vunpack.c.l.b16 %v458
        %v2800 = vunpack.c.h.b16 %v458
        %v2801 = vunpack.c.l.b16 %v459
        %v2802 = vunpack.c.h.b16 %v459
        %v2803 = vunpack.c.l.b16 %v460
        %v2804 = vunpack.c.h.b16 %v460
        %v2805 = vunpack.c.l.b16 %v461
        %v2806 = vunpack.c.h.b16 %v461
        %v2807 = vunpack.c.l.b16 %v462
        %v2808 = vunpack.c.h.b16 %v462
        %v2809 = vunpack.c.l.b16 %v463
        %v2810 = vunpack.c.h.b16 %v463
        %v2811 = vunpack.c.l.b16 %v464
        %v2812 = vunpack.c.h.b16 %v464
        %v2813 = vunpack.c.l.b16 %v465
        %v2814 = vunpack.c.h.b16 %v465
        %v2815 = vunpack.c.l.b16 %v466
        %v2816 = vunpack.c.h.b16 %v466
        %v2817 = vunpack.c.l.b16 %v467
        %v2818 = vunpack.c.h.b16 %v467
        %v2819 = vunpack.c.l.b16 %v468
        %v2820 = vunpack.c.h.b16 %v468
        %v2821 = vunpack.c.l.b16 %v469
        %v2822 = vunpack.c.h.b16 %v469
        %v2823 = vunpack.c.l.b16 %v470
        %v2824 = vunpack.c.h.b16 %v470
        %v2825 = vunpack.c.l.b16 %v471
        %v2826 = vunpack.c.h.b16 %v471
        %v2827 = vunpack.c.l.b16 %v472
        %v2828 = vunpack.c.h.b16 %v472
        %v2829 = vunpack.c.l.b16 %v473
        %v2830 = vunpack.c.h.b16 %v473
        %v2831 = vunpack.c.l.b16 %v474
        %v2832 = vunpack.c.h.b16 %v474
        %v2833 = vunpack.c.l.b16 %v475
        %v2834 = vunpack.c.h.b16 %v475
        %v2835 = vunpack.c.l.b16 %v476
        %v2836 = vunpack.c.h.b16 %v476
        %v2837 = vunpack.c.l.b16 %v477
        %v2838 = vunpack.c.h.b16 %v477
        %v2839 = vunpack.c.l.b16 %v478
        %v2840 = vunpack.c.h.b16 %v478
        %v2841 = vunpack.c.l.b16 %v479
        %v2842 = vunpack.c.h.b16 %v479
        %v2843 = vunpack.c.l.b16 %v480
        %v2844 = vunpack.c.h.b16 %v480
        %v2845 = vunpack.c.l.b16 %v481
        %v2846 = vunpack.c.h.b16 %v481
        %v2847 = vunpack.c.l.b16 %v482
        %v2848 = vunpack.c.h.b16 %v482
        %v2849 = vunpack.c.l.b16 %v483
        %v2850 = vunpack.c.h.b16 %v483
        %v2851 = vunpack.c.l.b16 %v484
        %v2852 = vunpack.c.h.b16 %v484
        %v2853 = vunpack.c.l.b16 %v485
        %v2854 = vunpack.c.h.b16 %v485
        %v2855 = vunpack.c.l.b16 %v486
        %v2856 = vunpack.c.h.b16 %v486
        %v2857 = vunpack.c.l.b16 %v487
        %v2858 = vunpack.c.h.b16 %v487
        %v2859 = vunpack.c.l.b16 %v488
        %v2860 = vunpack.c.h.b16 %v488
        %v2861 = vunpack.c.l.b16 %v489
        %v2862 = vunpack.c.h.b16 %v489
        %v2863 = vunpack.c.l.b16 %v490
        %v2864 = vunpack.c.h.b16 %v490
        %v2865 = vunpack.c.l.b16 %v491
        %v2866 = vunpack.c.h.b16 %v491
        %v2867 = vunpack.c.l.b16 %v492
        %v2868 = vunpack.c.h.b16 %v492
        %v2869 = vunpack.c.l.b16 %v493
        %v2870 = vunpack.c.h.b16 %v493
        %v2871 = vunpack.c.l.b16 %v494
        %v2872 = vunpack.c.h.b16 %v494
        %v2873 = vunpack.c.l.b16 %v495
        %v2874 = vunpack.c.h.b16 %v495
        %v2875 = vunpack.c.l.b16 %v496
        %v2876 = vunpack.c.h.b16 %v496
        %v2877 = vunpack.c.l.b16 %v497
        %v2878 = vunpack.c.h.b16 %v497
        %v2879 = vunpack.c.l.b16 %v498
        %v2880 = vunpack.c.h.b16 %v498
        %v2881 = vunpack.c.l.b16 %v499
        %v2882 = vunpack.c.h.b16 %v499
        %v2883 = vunpack.c.l.b16 %v500
        %v2884 = vunpack.c.h.b16 %v500
        %v2885 = vunpack.c.l.b16 %v501
        %v2886 = vunpack.c.h.b16 %v501
        %v2887 = vunpack.c.l.b16 %v502
        %v2888 = vunpack.c.h.b16 %v502
        %v2889 = vunpack.c.l.b16 %v503
        %v2890 = vunpack.c.h.b16 %v503
        %v2891 = vunpack.c.l.b16 %v504
        %v2892 = vunpack.c.h.b16 %v504
        %v2893 = vunpack.c.l.b16 %v505
        %v2894 = vunpack.c.h.b16 %v505
        %v2895 = vunpack.c.l.b16 %v506
        %v2896 = vunpack.c.h.b16 %v506
        %v2897 = vunpack.c.l.b16 %v507
        %v2898 = vunpack.c.h.b16 %v507
        %v2899 = vunpack.c.l.b16 %v508
        %v2900 = vunpack.c.h.b16 %v508
        %v2901 = vunpack.c.l.b16 %v509
        %v2902 = vunpack.c.h.b16 %v509
        %v2903 = vunpack.c.l.b16 %v510
        %v2904 = vunpack.c.h.b16 %v510
        %v2905 = vunpack.c.l.b16 %v511
        %v2906 = vunpack.c.h.b16 %v511
        %v2907 = vunpack.c.l.b16 %v512
        %v2908 = vunpack.c.h.b16 %v512
        %v2909 = vunpack.c.l.b16 %v513
        %v2910 = vunpack.c.h.b16 %v513
        %v2911 = vunpack.c.l.b16 %v514
        %v2912 = vunpack.c.h.b16 %v514
        %v2913 = vunpack.c.l.b16 %v515
        %v2914 = vunpack.c.h.b16 %v515
        %v2915 = vunpack.c.l.b16 %v516
        %v2916 = vunpack.c.h.b16 %v516
        %v2917 = vunpack.c.l.b16 %v517
        %v2918 = vunpack.c.h.b16 %v517
        %v2919 = vunpack.c.l.b16 %v518
        %v2920 = vunpack.c.h.b16 %v518
        %v2921 = vunpack.c.l.b16 %v519
        %v2922 = vunpack.c.h.b16 %v519
        %v2923 = vunpack.c.l.b16 %v520
        %v2924 = vunpack.c.h.b16 %v520
        %v2925 = vunpack.c.l.b16 %v521
        %v2926 = vunpack.c.h.b16 %v521
        %v2927 = vunpack.c.l.b16 %v522
        %v2928 = vunpack.c.h.b16 %v522
        %v2929 = vunpack.c.l.b16 %v523
        %v2930 = vunpack.c.h.b16 %v523
        %v2931 = vunpack.c.l.b16 %v524
        %v2932 = vunpack.c.h.b16 %v524
        %v2933 = vunpack.c.l.b16 %v525
        %v2934 = vunpack.c.h.b16 %v525
        %v2935 = vunpack.c.l.b16 %v526
        %v2936 = vunpack.c.h.b16 %v526
        %v2937 = vunpack.c.l.b16 %v527
        %v2938 = vunpack.c.h.b16 %v527
        %v2939 = vunpack.c.l.b16 %v528
        %v2940 = vunpack.c.h.b16 %v528
        %v2941 = vunpack.c.l.b16 %v529
        %v2942 = vunpack.c.h.b16 %v529
        %v2943 = vunpack.c.l.b16 %v530
        %v2944 = vunpack.c.h.b16 %v530
        %v2945 = vunpack.c.l.b16 %v531
        %v2946 = vunpack.c.h.b16 %v531
        %v2947 = vunpack.c.l.b16 %v532
        %v2948 = vunpack.c.h.b16 %v532
        %v2949 = vunpack.c.l.b16 %v533
        %v2950 = vunpack.c.h.b16 %v533
        %v2951 = vunpack.c.l.b16 %v534
        %v2952 = vunpack.c.h.b16 %v534
        %v2953 = vunpack.c.l.b16 %v535
        %v2954 = vunpack.c.h.b16 %v535
        %v2955 = vunpack.c.l.b16 %v536
        %v2956 = vunpack.c.h.b16 %v536
        %v2957 = vunpack.c.l.b16 %v537
        %v2958 = vunpack.c.h.b16 %v537
        %v2959 = vunpack.c.l.b16 %v538
        %v2960 = vunpack.c.h.b16 %v538
        %v2961 = vunpack.c.l.b16 %v539
        %v2962 = vunpack.c.h.b16 %v539
        %v2963 = vunpack.c.l.b16 %v540
        %v2964 = vunpack.c.h.b16 %v540
        %v2965 = vunpack.c.l.b16 %v541
        %v2966 = vunpack.c.h.b16 %v541
        %v2967 = vunpack.c.l.b16 %v542
        %v2968 = vunpack.c.h.b16 %v542
        %v2969 = vunpack.c.l.b16 %v543
        %v2970 = vunpack.c.h.b16 %v543
        %v2971 = vunpack.c.l.b16 %v544
        %v2972 = vunpack.c.h.b16 %v544
        %v2973 = vunpack.c.l.b16 %v545
        %v2974 = vunpack.c.h.b16 %v545
        %v2975 = vunpack.c.l.b16 %v546
        %v2976 = vunpack.c.h.b16 %v546
        %v2977 = vunpack.c.l.b16 %v547
        %v2978 = vunpack.c.h.b16 %v547
        %v2979 = vunpack.c.l.b16 %v548
        %v2980 = vunpack.c.h.b16 %v548
        %v2981 = vunpack.c.l.b16 %v549
        %v2982 = vunpack.c.h.b16 %v549
        %v2983 = vunpack.c.l.b16 %v550
        %v2984 = vunpack.c.h.b16 %v550
        %v2985 = vunpack.c.l.b16 %v551
        %v2986 = vunpack.c.h.b16 %v551
        %v2987 = vunpack.c.l.b16 %v552
        %v2988 = vunpack.c.h.b16 %v552
        %v2989 = vunpack.c.l.b16 %v553
        %v2990 = vunpack.c.h.b16 %v553
        %v2991 = vunpack.c.l.b16 %v554
        %v2992 = vunpack.c.h.b16 %v554
        %v2993 = vunpack.c.l.b16 %v555
        %v2994 = vunpack.c.h.b16 %v555
        %v2995 = vunpack.c.l.b16 %v556
        %v2996 = vunpack.c.h.b16 %v556
        %v2997 = vunpack.c.l.b16 %v557
        %v2998 = vunpack.c.h.b16 %v557
        %v2999 = vunpack.c.l.b16 %v558
        %v3000 = vunpack.c.h.b16 %v558
        %v3001 = vunpack.c.l.b16 %v559
        %v3002 = vunpack.c.h.b16 %v559
        %v3003 = vunpack.c.l.b16 %v560
        %v3004 = vunpack.c.h.b16 %v560
        %v3005 = vunpack.c.l.b16 %v561
        %v3006 = vunpack.c.h.b16 %v561
        %v3007 = vunpack.c.l.b16 %v562
        %v3008 = vunpack.c.h.b16 %v562
        %v3009 = vunpack.c.l.b16 %v563
        %v3010 = vunpack.c.h.b16 %v563
        %v3011 = vunpack.c.l.b16 %v564
        %v3012 = vunpack.c.h.b16 %v564
        %v3013 = vunpack.c.l.b16 %v565
        %v3014 = vunpack.c.h.b16 %v565
        %v3015 = vunpack.c.l.b16 %v566
        %v3016 = vunpack.c.h.b16 %v566
        %v3017 = vunpack.c.l.b16 %v567
        %v3018 = vunpack.c.h.b16 %v567
        %v3019 = vunpack.c.l.b16 %v568
        %v3020 = vunpack.c.h.b16 %v568
        %v3021 = vunpack.c.l.b16 %v569
        %v3022 = vunpack.c.h.b16 %v569
        %v3023 = vunpack.c.l.b16 %v570
        %v3024 = vunpack.c.h.b16 %v570
        %v3025 = vunpack.c.l.b16 %v571
        %v3026 = vunpack.c.h.b16 %v571
        %v3027 = vunpack.c.l.b16 %v572
        %v3028 = vunpack.c.h.b16 %v572
        %v3029 = vunpack.c.l.b16 %v573
        %v3030 = vunpack.c.h.b16 %v573
        %v3031 = vunpack.c.l.b16 %v574
        %v3032 = vunpack.c.h.b16 %v574
        %v3033 = vunpack.c.l.b16 %v575
        %v3034 = vunpack.c.h.b16 %v575
        %v3035 = vunpack.c.l.b16 %v576
        %v3036 = vunpack.c.h.b16 %v576
        %v3037 = vunpack.c.l.b16 %v577
        %v3038 = vunpack.c.h.b16 %v577
        %v3039 = vunpack.c.l.b16 %v578
        %v3040 = vunpack.c.h.b16 %v578
        %v3041 = vunpack.c.l.b16 %v579
        %v3042 = vunpack.c.h.b16 %v579
        %v3043 = vunpack.c.l.b16 %v580
        %v3044 = vunpack.c.h.b16 %v580
        %v3045 = vunpack.c.l.b16 %v581
        %v3046 = vunpack.c.h.b16 %v581
        %v3047 = vunpack.c.l.b16 %v582
        %v3048 = vunpack.c.h.b16 %v582
        %v3049 = vunpack.c.l.b16 %v583
        %v3050 = vunpack.c.h.b16 %v583
        %v3051 = vunpack.c.l.b16 %v584
        %v3052 = vunpack.c.h.b16 %v584
        %v3053 = vunpack.c.l.b16 %v585
        %v3054 = vunpack.c.h.b16 %v585
        %v3055 = vunpack.c.l.b16 %v586
        %v3056 = vunpack.c.h.b16 %v586
        %v3057 = vunpack.c.l.b16 %v587
        %v3058 = vunpack.c.h.b16 %v587
        %v3059 = vunpack.c.l.b16 %v588
        %v3060 = vunpack.c.h.b16 %v588
        %v3061 = vunpack.c.l.b16 %v589
        %v3062 = vunpack.c.h.b16 %v589
        %v3063 = vunpack.c.l.b16 %v590
        %v3064 = vunpack.c.h.b16 %v590
        %v3065 = vunpack.c.l.b16 %v591
        %v3066 = vunpack.c.h.b16 %v591
        %v3067 = vunpack.c.l.b16 %v592
        %v3068 = vunpack.c.h.b16 %v592
        %v3069 = vunpack.c.l.b16 %v593
        %v3070 = vunpack.c.h.b16 %v593
        %v3071 = vunpack.c.l.b16 %v594
        %v3072 = vunpack.c.h.b16 %v594
        %v3073 = vunpack.c.l.b16 %v595
        %v3074 = vunpack.c.h.b16 %v595
        %v3075 = vunpack.c.l.b16 %v596
        %v3076 = vunpack.c.h.b16 %v596
        %v3077 = vunpack.c.l.b16 %v597
        %v3078 = vunpack.c.h.b16 %v597
        %v3079 = vunpack.c.l.b16 %v598
        %v3080 = vunpack.c.h.b16 %v598
        %v3081 = vunpack.c.l.b16 %v599
        %v3082 = vunpack.c.h.b16 %v599
        %v3083 = vunpack.c.l.b16 %v600
        %v3084 = vunpack.c.h.b16 %v600
        %v3085 = vunpack.c.l.b16 %v601
        %v3086 = vunpack.c.h.b16 %v601
        %v3087 = vunpack.c.l.b16 %v602
        %v3088 = vunpack.c.h.b16 %v602
        %v3089 = vunpack.c.l.b16 %v603
        %v3090 = vunpack.c.h.b16 %v603
        %v3091 = vunpack.c.l.b16 %v604
        %v3092 = vunpack.c.h.b16 %v604
        %v3093 = vunpack.c.l.b16 %v605
        %v3094 = vunpack.c.h.b16 %v605
        %v3095 = vunpack.c.l.b16 %v606
        %v3096 = vunpack.c.h.b16 %v606
        %v3097 = vunpack.c.l.b16 %v607
        %v3098 = vunpack.c.h.b16 %v607
        %v3099 = vunpack.c.l.b16 %v608
        %v3100 = vunpack.c.h.b16 %v608
        %v3101 = vunpack.c.l.b16 %v609
        %v3102 = vunpack.c.h.b16 %v609
        %v3103 = vunpack.c.l.b16 %v610
        %v3104 = vunpack.c.h.b16 %v610
        %v3105 = vunpack.c.l.b16 %v611
        %v3106 = vunpack.c.h.b16 %v611
        %v3107 = vunpack.c.l.b16 %v612
        %v3108 = vunpack.c.h.b16 %v612
        %v3109 = vunpack.c.l.b16 %v613
        %v3110 = vunpack.c.h.b16 %v613
        %v3111 = vunpack.c.l.b16 %v614
        %v3112 = vunpack.c.h.b16 %v614
        %v3113 = vunpack.c.l.b16 %v615
        %v3114 = vunpack.c.h.b16 %v615
        %v3115 = vunpack.c.l.b16 %v616
        %v3116 = vunpack.c.h.b16 %v616
        %v3117 = vunpack.c.l.b16 %v617
        %v3118 = vunpack.c.h.b16 %v617
        %v3119 = vunpack.c.l.b16 %v618
        %v3120 = vunpack.c.h.b16 %v618
        %v3121 = vunpack.c.l.b16 %v619
        %v3122 = vunpack.c.h.b16 %v619
        %v3123 = vunpack.c.l.b16 %v620
        %v3124 = vunpack.c.h.b16 %v620
        %v3125 = vunpack.c.l.b16 %v621
        %v3126 = vunpack.c.h.b16 %v621
        %v3127 = vunpack.c.l.b16 %v622
        %v3128 = vunpack.c.h.b16 %v622
        %v3129 = vunpack.c.l.b16 %v623
        %v3130 = vunpack.c.h.b16 %v623
        %v3131 = vunpack.c.l.b16 %v624
        %v3132 = vunpack.c.h.b16 %v624
        %v3133 = vunpack.c.l.b16 %v625
        %v3134 = vunpack.c.h.b16 %v625
        %v3135 = vunpack.c.l.b16 %v626
        %v3136 = vunpack.c.h.b16 %v626
        %v3137 = vunpack.c.l.b16 %v627
        %v3138 = vunpack.c.h.b16 %v627
        %v3139 = vunpack.c.l.b16 %v628
        %v3140 = vunpack.c.h.b16 %v628
        %v3141 = vunpack.c.l.b16 %v629
        %v3142 = vunpack.c.h.b16 %v629
        %v3143 = vunpack.c.l.b16 %v630
        %v3144 = vunpack.c.h.b16 %v630
        %v3145 = vunpack.c.l.b16 %v631
        %v3146 = vunpack.c.h.b16 %v631
        %v3147 = vunpack.c.l.b16 %v632
        %v3148 = vunpack.c.h.b16 %v632
        %v3149 = vunpack.c.l.b16 %v633
        %v3150 = vunpack.c.h.b16 %v633
        %v3151 = vunpack.c.l.b16 %v634
        %v3152 = vunpack.c.h.b16 %v634
        %v3153 = vunpack.c.l.b16 %v635
        %v3154 = vunpack.c.h.b16 %v635
        %v3155 = vunpack.c.l.b16 %v636
        %v3156 = vunpack.c.h.b16 %v636
        %v3157 = vunpack.c.l.b16 %v637
        %v3158 = vunpack.c.h.b16 %v637
        %v3159 = vunpack.c.l.b16 %v638
        %v3160 = vunpack.c.h.b16 %v638
        %v3161 = vunpack.c.l.b16 %v639
        %v3162 = vunpack.c.h.b16 %v639
        %v3163 = vunpack.c.l.b16 %v640
        %v3164 = vunpack.c.h.b16 %v640
        %v3165 = vunpack.c.l.b16 %v641
        %v3166 = vunpack.c.h.b16 %v641
        %v3167 = vunpack.c.l.b16 %v642
        %v3168 = vunpack.c.h.b16 %v642
        %v3169 = vunpack.c.l.b16 %v643
        %v3170 = vunpack.c.h.b16 %v643
        %v3171 = vunpack.c.l.b16 %v644
        %v3172 = vunpack.c.h.b16 %v644
        %v3173 = vunpack.c.l.b16 %v645
        %v3174 = vunpack.c.h.b16 %v645
        %v3175 = vunpack.c.l.b16 %v646
        %v3176 = vunpack.c.h.b16 %v646
        %v3177 = vunpack.c.l.b16 %v647
        %v3178 = vunpack.c.h.b16 %v647
        %v3179 = vunpack.c.l.b16 %v648
        %v3180 = vunpack.c.h.b16 %v648
        %v3181 = vunpack.c.l.b16 %v649
        %v3182 = vunpack.c.h.b16 %v649
        %v3183 = vunpack.c.l.b16 %v650
        %v3184 = vunpack.c.h.b16 %v650
        %v3185 = vunpack.c.l.b16 %v651
        %v3186 = vunpack.c.h.b16 %v651
        %v3187 = vunpack.c.l.b16 %v652
        %v3188 = vunpack.c.h.b16 %v652
        %v3189 = vunpack.c.l.b16 %v653
        %v3190 = vunpack.c.h.b16 %v653
        %v3191 = vunpack.c.l.b16 %v654
        %v3192 = vunpack.c.h.b16 %v654
        %v3193 = vunpack.c.l.b16 %v655
        %v3194 = vunpack.c.h.b16 %v655
        %v3195 = vunpack.c.l.b16 %v656
        %v3196 = vunpack.c.h.b16 %v656
        %v3197 = vunpack.c.l.b16 %v657
        %v3198 = vunpack.c.h.b16 %v657
        %v3199 = vunpack.c.l.b16 %v658
        %v3200 = vunpack.c.h.b16 %v658
        %v3201 = vunpack.c.l.b16 %v659
        %v3202 = vunpack.c.h.b16 %v659
        %v3203 = vunpack.c.l.b16 %v660
        %v3204 = vunpack.c.h.b16 %v660
        %v3205 = vunpack.c.l.b16 %v661
        %v3206 = vunpack.c.h.b16 %v661
        %v3207 = vunpack.c.l.b16 %v662
        %v3208 = vunpack.c.h.b16 %v662
        %v3209 = vunpack.c.l.b16 %v663
        %v3210 = vunpack.c.h.b16 %v663
        %v3211 = vunpack.c.l.b16 %v664
        %v3212 = vunpack.c.h.b16 %v664
        %v3213 = vunpack.c.l.b16 %v665
        %v3214 = vunpack.c.h.b16 %v665
        %v3215 = vunpack.c.l.b16 %v666
        %v3216 = vunpack.c.h.b16 %v666
        %v3217 = vunpack.c.l.b16 %v667
        %v3218 = vunpack.c.h.b16 %v667
        %v3219 = vunpack.c.l.b16 %v668
        %v3220 = vunpack.c.h.b16 %v668
        %v3221 = vunpack.c.l.b16 %v669
        %v3222 = vunpack.c.h.b16 %v669
        %v3223 = vunpack.c.l.b16 %v670
        %v3224 = vunpack.c.h.b16 %v670
        %v3225 = vunpack.c.l.b16 %v671
        %v3226 = vunpack.c.h.b16 %v671
        %v3227 = vunpack.c.l.b16 %v672
        %v3228 = vunpack.c.h.b16 %v672
        %v3229 = vunpack.c.l.b16 %v673
        %v3230 = vunpack.c.h.b16 %v673
        %v3231 = vunpack.c.l.b16 %v674
        %v3232 = vunpack.c.h.b16 %v674
        %v3233 = vunpack.c.l.b16 %v675
        %v3234 = vunpack.c.h.b16 %v675
        %v3235 = vunpack.c.l.b16 %v676
        %v3236 = vunpack.c.h.b16 %v676
        %v3237 = vunpack.c.l.b16 %v677
        %v3238 = vunpack.c.h.b16 %v677
        %v3239 = vunpack.c.l.b16 %v678
        %v3240 = vunpack.c.h.b16 %v678
        %v3241 = vunpack.c.l.b16 %v679
        %v3242 = vunpack.c.h.b16 %v679
        %v3243 = vunpack.c.l.b16 %v680
        %v3244 = vunpack.c.h.b16 %v680
        %v3245 = vunpack.c.l.b16 %v681
        %v3246 = vunpack.c.h.b16 %v681
        %v3247 = vunpack.c.l.b16 %v682
        %v3248 = vunpack.c.h.b16 %v682
        %v3249 = vunpack.c.l.b16 %v683
        %v3250 = vunpack.c.h.b16 %v683
        %v3251 = vunpack.c.l.b16 %v684
        %v3252 = vunpack.c.h.b16 %v684
        %v3253 = vunpack.c.l.b16 %v685
        %v3254 = vunpack.c.h.b16 %v685
        %v3255 = vunpack.c.l.b16 %v686
        %v3256 = vunpack.c.h.b16 %v686
        %v3257 = vunpack.c.l.b16 %v687
        %v3258 = vunpack.c.h.b16 %v687
        %v3259 = vunpack.c.l.b16 %v688
        %v3260 = vunpack.c.h.b16 %v688
        %v3261 = vunpack.c.l.b16 %v689
        %v3262 = vunpack.c.h.b16 %v689
        %v3263 = vunpack.c.l.b16 %v690
        %v3264 = vunpack.c.h.b16 %v690
        %v3265 = vunpack.c.l.b16 %v691
        %v3266 = vunpack.c.h.b16 %v691
        %v3267 = vunpack.c.l.b16 %v692
        %v3268 = vunpack.c.h.b16 %v692
        %v3269 = vunpack.c.l.b16 %v693
        %v3270 = vunpack.c.h.b16 %v693
        %v3271 = vunpack.c.l.b16 %v694
        %v3272 = vunpack.c.h.b16 %v694
        %v3273 = vunpack.c.l.b16 %v695
        %v3274 = vunpack.c.h.b16 %v695
        %v3275 = vunpack.c.l.b16 %v696
        %v3276 = vunpack.c.h.b16 %v696
        %v3277 = vunpack.c.l.b16 %v697
        %v3278 = vunpack.c.h.b16 %v697
        %v3279 = vunpack.c.l.b16 %v698
        %v3280 = vunpack.c.h.b16 %v698
        %v3281 = vunpack.c.l.b16 %v699
        %v3282 = vunpack.c.h.b16 %v699
        %v3283 = vunpack.c.l.b16 %v700
        %v3284 = vunpack.c.h.b16 %v700
        %v3285 = vunpack.c.l.b16 %v701
        %v3286 = vunpack.c.h.b16 %v701
        %v3287 = vunpack.c.l.b16 %v702
        %v3288 = vunpack.c.h.b16 %v702
        %v3289 = vunpack.c.l.b16 %v703
        %v3290 = vunpack.c.h.b16 %v703
        %v3291 = vunpack.c.l.b16 %v704
        %v3292 = vunpack.c.h.b16 %v704
        %v3293 = vunpack.c.l.b16 %v705
        %v3294 = vunpack.c.h.b16 %v705
        %v3295 = vunpack.c.l.b16 %v706
        %v3296 = vunpack.c.h.b16 %v706
        %v3297 = vunpack.c.l.b16 %v707
        %v3298 = vunpack.c.h.b16 %v707
        %v3299 = vunpack.c.l.b16 %v708
        %v3300 = vunpack.c.h.b16 %v708
        %v3301 = vunpack.c.l.b16 %v709
        %v3302 = vunpack.c.h.b16 %v709
        %v3303 = vunpack.c.l.b16 %v710
        %v3304 = vunpack.c.h.b16 %v710
        %v3305 = vunpack.c.l.b16 %v711
        %v3306 = vunpack.c.h.b16 %v711
        %v3307 = vunpack.c.l.b16 %v712
        %v3308 = vunpack.c.h.b16 %v712
        %v3309 = vunpack.c.l.b16 %v713
        %v3310 = vunpack.c.h.b16 %v713
        %v3311 = vunpack.c.l.b16 %v714
        %v3312 = vunpack.c.h.b16 %v714
        %v3313 = vunpack.c.l.b16 %v715
        %v3314 = vunpack.c.h.b16 %v715
        %v3315 = vunpack.c.l.b16 %v716
        %v3316 = vunpack.c.h.b16 %v716
        %v3317 = vunpack.c.l.b16 %v717
        %v3318 = vunpack.c.h.b16 %v717
        %v3319 = vunpack.c.l.b16 %v718
        %v3320 = vunpack.c.h.b16 %v718
        %v3321 = vunpack.c.l.b16 %v719
        %v3322 = vunpack.c.h.b16 %v719
        %v3323 = vunpack.c.l.b16 %v720
        %v3324 = vunpack.c.h.b16 %v720
        %v3325 = vunpack.c.l.b16 %v721
        %v3326 = vunpack.c.h.b16 %v721
        %v3327 = vunpack.c.l.b16 %v722
        %v3328 = vunpack.c.h.b16 %v722
        %v3329 = vunpack.c.l.b16 %v723
        %v3330 = vunpack.c.h.b16 %v723
        %v3331 = vunpack.c.l.b16 %v724
        %v3332 = vunpack.c.h.b16 %v724
        %v3333 = vunpack.c.l.b16 %v725
        %v3334 = vunpack.c.h.b16 %v725
        %v3335 = vunpack.c.l.b16 %v726
        %v3336 = vunpack.c.h.b16 %v726
        %v3337 = vunpack.c.l.b16 %v727
        %v3338 = vunpack.c.h.b16 %v727
        %v3339 = vunpack.c.l.b16 %v728
        %v3340 = vunpack.c.h.b16 %v728
        %v3341 = vunpack.c.l.b16 %v729
        %v3342 = vunpack.c.h.b16 %v729
        %v3343 = vunpack.c.l.b16 %v730
        %v3344 = vunpack.c.h.b16 %v730
        %v3345 = vunpack.c.l.b16 %v731
        %v3346 = vunpack.c.h.b16 %v731
        %v3347 = vunpack.c.l.b16 %v732
        %v3348 = vunpack.c.h.b16 %v732
        %v3349 = vunpack.c.l.b16 %v733
        %v3350 = vunpack.c.h.b16 %v733
        %v3351 = vunpack.c.l.b16 %v734
        %v3352 = vunpack.c.h.b16 %v734
        %v3353 = vunpack.c.l.b16 %v735
        %v3354 = vunpack.c.h.b16 %v735
        %v3355 = vunpack.c.l.b16 %v736
        %v3356 = vunpack.c.h.b16 %v736
        %v3357 = vunpack.c.l.b16 %v737
        %v3358 = vunpack.c.h.b16 %v737
        %v3359 = vunpack.c.l.b16 %v738
        %v3360 = vunpack.c.h.b16 %v738
        %v3361 = vunpack.c.l.b16 %v739
        %v3362 = vunpack.c.h.b16 %v739
        %v3363 = vunpack.c.l.b16 %v740
        %v3364 = vunpack.c.h.b16 %v740
        %v3365 = vunpack.c.l.b16 %v741
        %v3366 = vunpack.c.h.b16 %v741
        %v3367 = vunpack.c.l.b16 %v742
        %v3368 = vunpack.c.h.b16 %v742
        %v3369 = vunpack.c.l.b16 %v743
        %v3370 = vunpack.c.h.b16 %v743
        %v3371 = vunpack.c.l.b16 %v744
        %v3372 = vunpack.c.h.b16 %v744
        %v3373 = vunpack.c.l.b16 %v745
        %v3374 = vunpack.c.h.b16 %v745
        %v3375 = vunpack.c.l.b16 %v746
        %v3376 = vunpack.c.h.b16 %v746
        %v3377 = vunpack.c.l.b16 %v747
        %v3378 = vunpack.c.h.b16 %v747
        %v3379 = vunpack.c.l.b16 %v748
        %v3380 = vunpack.c.h.b16 %v748
        %v3381 = vunpack.c.l.b16 %v749
        %v3382 = vunpack.c.h.b16 %v749
        %v3383 = vunpack.c.l.b16 %v750
        %v3384 = vunpack.c.h.b16 %v750
        %v3385 = vunpack.c.l.b16 %v751
        %v3386 = vunpack.c.h.b16 %v751
        %v3387 = vunpack.c.l.b16 %v752
        %v3388 = vunpack.c.h.b16 %v752
        %v3389 = vunpack.c.l.b16 %v753
        %v3390 = vunpack.c.h.b16 %v753
        %v3391 = vunpack.c.l.b16 %v754
        %v3392 = vunpack.c.h.b16 %v754
        %v3393 = vunpack.c.l.b16 %v755
        %v3394 = vunpack.c.h.b16 %v755
        %v3395 = vunpack.c.l.b16 %v756
        %v3396 = vunpack.c.h.b16 %v756
        %v3397 = vunpack.c.l.b16 %v757
        %v3398 = vunpack.c.h.b16 %v757
        %v3399 = vunpack.c.l.b16 %v758
        %v3400 = vunpack.c.h.b16 %v758
        %v3401 = vunpack.c.l.b16 %v759
        %v3402 = vunpack.c.h.b16 %v759
        %v3403 = vunpack.c.l.b16 %v760
        %v3404 = vunpack.c.h.b16 %v760
        %v3405 = vunpack.c.l.b16 %v761
        %v3406 = vunpack.c.h.b16 %v761
        %v3407 = vunpack.c.l.b16 %v762
        %v3408 = vunpack.c.h.b16 %v762
        %v3409 = vunpack.c.l.b16 %v763
        %v3410 = vunpack.c.h.b16 %v763
        %v3411 = vunpack.c.l.b16 %v764
        %v3412 = vunpack.c.h.b16 %v764
        %v3413 = vunpack.c.l.b16 %v765
        %v3414 = vunpack.c.h.b16 %v765
        %v3415 = vunpack.c.l.b16 %v766
        %v3416 = vunpack.c.h.b16 %v766
        %v3417 = vunpack.c.l.b16 %v767
        %v3418 = vunpack.c.h.b16 %v767
        %v3419 = vunpack.c.l.b16 %v768
        %v3420 = vunpack.c.h.b16 %v768
        %v3421 = vunpack.c.l.b16 %v769
        %v3422 = vunpack.c.h.b16 %v769
        %v3423 = vunpack.c.l.b16 %v770
        %v3424 = vunpack.c.h.b16 %v770
        %v3425 = vunpack.c.l.b16 %v771
        %v3426 = vunpack.c.h.b16 %v771
        %v3427 = vunpack.c.l.b16 %v772
        %v3428 = vunpack.c.h.b16 %v772
        %v3429 = vunpack.c.l.b16 %v773
        %v3430 = vunpack.c.h.b16 %v773
        %v3431 = vunpack.c.l.b16 %v774
        %v3432 = vunpack.c.h.b16 %v774
        %v3433 = vunpack.c.l.b16 %v775
        %v3434 = vunpack.c.h.b16 %v775
        %v3435 = vunpack.c.l.b16 %v776
        %v3436 = vunpack.c.h.b16 %v776
        %v3437 = vunpack.c.l.b16 %v777
        %v3438 = vunpack.c.h.b16 %v777
        %v3439 = vunpack.c.l.b16 %v778
        %v3440 = vunpack.c.h.b16 %v778
        %v3441 = vunpack.c.l.b16 %v779
        %v3442 = vunpack.c.h.b16 %v779
        %v3443 = vunpack.c.l.b16 %v780
        %v3444 = vunpack.c.h.b16 %v780
        %v3445 = vunpack.c.l.b16 %v781
        %v3446 = vunpack.c.h.b16 %v781
        %v3447 = vunpack.c.l.b16 %v782
        %v3448 = vunpack.c.h.b16 %v782
        %v3449 = vunpack.c.l.b16 %v783
        %v3450 = vunpack.c.h.b16 %v783
        %v3451 = vunpack.c.l.b16 %v784
        %v3452 = vunpack.c.h.b16 %v784
        %v3453 = vunpack.c.l.b16 %v785
        %v3454 = vunpack.c.h.b16 %v785
        %v3455 = vunpack.c.l.b16 %v786
        %v3456 = vunpack.c.h.b16 %v786
        %v3457 = vunpack.c.l.b16 %v787
        %v3458 = vunpack.c.h.b16 %v787
        %v3459 = vunpack.c.l.b16 %v788
        %v3460 = vunpack.c.h.b16 %v788
        %v3461 = vunpack.c.l.b16 %v789
        %v3462 = vunpack.c.h.b16 %v789
        %v3463 = vunpack.c.l.b16 %v790
        %v3464 = vunpack.c.h.b16 %v790
        %v3465 = vunpack.c.l.b16 %v791
        %v3466 = vunpack.c.h.b16 %v791
        %v3467 = vunpack.c.l.b16 %v792
        %v3468 = vunpack.c.h.b16 %v792
        %v3469 = vunpack.c.l.b16 %v793
        %v3470 = vunpack.c.h.b16 %v793
        %v3471 = vunpack.c.l.b16 %v794
        %v3472 = vunpack.c.h.b16 %v794
        %v3473 = vunpack.c.l.b16 %v795
        %v3474 = vunpack.c.h.b16 %v795
        %v3475 = vunpack.c.l.b16 %v796
        %v3476 = vunpack.c.h.b16 %v796
        %v3477 = vunpack.c.l.b16 %v797
        %v3478 = vunpack.c.h.b16 %v797
        %v3479 = vunpack.c.l.b16 %v798
        %v3480 = vunpack.c.h.b16 %v798
        %v3481 = vunpack.c.l.b16 %v799
        %v3482 = vunpack.c.h.b16 %v799
        %v3483 = vunpack.c.l.b16 %v800
        %v3484 = vunpack.c.h.b16 %v800
        %v3485 = vunpack.c.l.b16 %v801
        %v3486 = vunpack.c.h.b16 %v801
        %v3487 = vunpack.c.l.b16 %v802
        %v3488 = vunpack.c.h.b16 %v802
        %v3489 = vunpack.c.l.b16 %v803
        %v3490 = vunpack.c.h.b16 %v803
        %v3491 = vunpack.c.l.b16 %v804
        %v3492 = vunpack.c.h.b16 %v804
        %v3493 = vunpack.c.l.b16 %v805
        %v3494 = vunpack.c.h.b16 %v805
        %v3495 = vunpack.c.l.b16 %v806
        %v3496 = vunpack.c.h.b16 %v806
        %v3497 = vunpack.c.l.b16 %v807
        %v3498 = vunpack.c.h.b16 %v807
        %v3499 = vunpack.c.l.b16 %v808
        %v3500 = vunpack.c.h.b16 %v808
        %v3501 = vunpack.c.l.b16 %v809
        %v3502 = vunpack.c.h.b16 %v809
        %v3503 = vunpack.c.l.b16 %v810
        %v3504 = vunpack.c.h.b16 %v810
        %v3505 = vunpack.c.l.b16 %v811
        %v3506 = vunpack.c.h.b16 %v811
        %v3507 = vunpack.c.l.b16 %v812
        %v3508 = vunpack.c.h.b16 %v812
        %v3509 = vunpack.c.l.b16 %v813
        %v3510 = vunpack.c.h.b16 %v813
        %v3511 = vunpack.c.l.b16 %v814
        %v3512 = vunpack.c.h.b16 %v814
        %v3513 = vunpack.c.l.b16 %v815
        %v3514 = vunpack.c.h.b16 %v815
        %v3515 = vunpack.c.l.b16 %v816
        %v3516 = vunpack.c.h.b16 %v816
        %v3517 = vunpack.c.l.b16 %v817
        %v3518 = vunpack.c.h.b16 %v817
        %v3519 = vunpack.c.l.b16 %v818
        %v3520 = vunpack.c.h.b16 %v818
        %v3521 = vunpack.c.l.b16 %v819
        %v3522 = vunpack.c.h.b16 %v819
        %v3523 = vunpack.c.l.b16 %v820
        %v3524 = vunpack.c.h.b16 %v820
        %v3525 = vunpack.c.l.b16 %v821
        %v3526 = vunpack.c.h.b16 %v821
        %v3527 = vunpack.c.l.b16 %v822
        %v3528 = vunpack.c.h.b16 %v822
        %v3529 = vunpack.c.l.b16 %v823
        %v3530 = vunpack.c.h.b16 %v823
        %v3531 = vunpack.c.l.b16 %v824
        %v3532 = vunpack.c.h.b16 %v824
        %v3533 = vunpack.c.l.b16 %v825
        %v3534 = vunpack.c.h.b16 %v825
        %v3535 = vunpack.c.l.b16 %v826
        %v3536 = vunpack.c.h.b16 %v826
        %v3537 = vunpack.c.l.b16 %v827
        %v3538 = vunpack.c.h.b16 %v827
        %v3539 = vunpack.c.l.b16 %v828
        %v3540 = vunpack.c.h.b16 %v828
        %v3541 = vunpack.c.l.b16 %v829
        %v3542 = vunpack.c.h.b16 %v829
        %v3543 = vunpack.c.l.b16 %v830
        %v3544 = vunpack.c.h.b16 %v830
        %v3545 = vunpack.c.l.b16 %v831
        %v3546 = vunpack.c.h.b16 %v831
        %v3547 = vunpack.c.l.b16 %v832
        %v3548 = vunpack.c.h.b16 %v832
        %v3549 = vunpack.c.l.b16 %v833
        %v3550 = vunpack.c.h.b16 %v833
        %v3551 = vunpack.c.l.b16 %v834
        %v3552 = vunpack.c.h.b16 %v834
        %v3553 = vunpack.c.l.b16 %v835
        %v3554 = vunpack.c.h.b16 %v835
        %v3555 = vunpack.c.l.b16 %v836
        %v3556 = vunpack.c.h.b16 %v836
        %v3557 = vunpack.c.l.b16 %v837
        %v3558 = vunpack.c.h.b16 %v837
        %v3559 = vunpack.c.l.b16 %v838
        %v3560 = vunpack.c.h.b16 %v838
        %v3561 = vunpack.c.l.b16 %v839
        %v3562 = vunpack.c.h.b16 %v839
        %v3563 = vunpack.c.l.b16 %v840
        %v3564 = vunpack.c.h.b16 %v840
        %v3565 = vunpack.c.l.b16 %v841
        %v3566 = vunpack.c.h.b16 %v841
        %v3567 = vunpack.c.l.b16 %v842
        %v3568 = vunpack.c.h.b16 %v842
        %v3569 = vunpack.c.l.b16 %v843
        %v3570 = vunpack.c.h.b16 %v843
        %v3571 = vunpack.c.l.b16 %v844
        %v3572 = vunpack.c.h.b16 %v844
        %v3573 = vunpack.c.l.b16 %v845
        %v3574 = vunpack.c.h.b16 %v845
        %v3575 = vunpack.c.l.b16 %v846
        %v3576 = vunpack.c.h.b16 %v846
        %v3577 = vunpack.c.l.b16 %v847
        %v3578 = vunpack.c.h.b16 %v847
        %v3579 = vunpack.c.l.b16 %v848
        %v3580 = vunpack.c.h.b16 %v848
        %v3581 = vunpack.c.l.b16 %v849
        %v3582 = vunpack.c.h.b16 %v849
        %v3583 = vunpack.c.l.b16 %v850
        %v3584 = vunpack.c.h.b16 %v850
        %v3585 = vunpack.c.l.b16 %v851
        %v3586 = vunpack.c.h.b16 %v851
        %v3587 = vunpack.c.l.b16 %v852
        %v3588 = vunpack.c.h.b16 %v852
        %v3589 = vunpack.c.l.b16 %v853
        %v3590 = vunpack.c.h.b16 %v853
        %v3591 = vunpack.c.l.b16 %v854
        %v3592 = vunpack.c.h.b16 %v854
        %v3593 = vunpack.c.l.b16 %v855
        %v3594 = vunpack.c.h.b16 %v855
        %v3595 = vunpack.c.l.b16 %v856
        %v3596 = vunpack.c.h.b16 %v856
        %v3597 = vunpack.c.l.b16 %v857
        %v3598 = vunpack.c.h.b16 %v857
        %v3599 = vunpack.c.l.b16 %v858
        %v3600 = vunpack.c.h.b16 %v858
        %v3601 = vunpack.c.l.b16 %v859
        %v3602 = vunpack.c.h.b16 %v859
        %v3603 = vunpack.c.l.b16 %v860
        %v3604 = vunpack.c.h.b16 %v860
        %v3605 = vunpack.c.l.b16 %v861
        %v3606 = vunpack.c.h.b16 %v861
        %v3607 = vunpack.c.l.b16 %v862
        %v3608 = vunpack.c.h.b16 %v862
        %v3609 = vunpack.c.l.b16 %v863
        %v3610 = vunpack.c.h.b16 %v863
        %v3611 = vunpack.c.l.b16 %v864
        %v3612 = vunpack.c.h.b16 %v864
        %v3613 = vunpack.c.l.b16 %v865
        %v3614 = vunpack.c.h.b16 %v865
        %v3615 = vunpack.c.l.b16 %v866
        %v3616 = vunpack.c.h.b16 %v866
        %v3617 = vunpack.c.l.b16 %v867
        %v3618 = vunpack.c.h.b16 %v867
        %v3619 = vunpack.c.l.b16 %v868
        %v3620 = vunpack.c.h.b16 %v868
        %v3621 = vunpack.c.l.b16 %v869
        %v3622 = vunpack.c.h.b16 %v869
        %v3623 = vunpack.c.l.b16 %v870
        %v3624 = vunpack.c.h.b16 %v870
        %v3625 = vunpack.c.l.b16 %v871
        %v3626 = vunpack.c.h.b16 %v871
        %v3627 = vunpack.c.l.b16 %v872
        %v3628 = vunpack.c.h.b16 %v872
        %v3629 = vunpack.c.l.b16 %v873
        %v3630 = vunpack.c.h.b16 %v873
        %v3631 = vunpack.c.l.b16 %v874
        %v3632 = vunpack.c.h.b16 %v874
        %v3633 = vunpack.c.l.b16 %v875
        %v3634 = vunpack.c.h.b16 %v875
        %v3635 = vunpack.c.l.b16 %v876
        %v3636 = vunpack.c.h.b16 %v876
        %v3637 = vunpack.c.l.b16 %v877
        %v3638 = vunpack.c.h.b16 %v877
        %v3639 = vunpack.c.l.b16 %v878
        %v3640 = vunpack.c.h.b16 %v878
        %v3641 = vunpack.c.l.b16 %v879
        %v3642 = vunpack.c.h.b16 %v879
        %v3643 = vunpack.c.l.b16 %v880
        %v3644 = vunpack.c.h.b16 %v880
        %v3645 = vunpack.c.l.b16 %v881
        %v3646 = vunpack.c.h.b16 %v881
        %v3647 = vunpack.c.l.b16 %v882
        %v3648 = vunpack.c.h.b16 %v882
        %v3649 = vunpack.c.l.b16 %v883
        %v3650 = vunpack.c.h.b16 %v883
        %v3651 = vunpack.c.l.b16 %v884
        %v3652 = vunpack.c.h.b16 %v884
        %v3653 = vunpack.c.l.b16 %v885
        %v3654 = vunpack.c.h.b16 %v885
        %v3655 = vunpack.c.l.b16 %v886
        %v3656 = vunpack.c.h.b16 %v886
        %v3657 = vunpack.c.l.b16 %v887
        %v3658 = vunpack.c.h.b16 %v887
        %v3659 = vunpack.c.l.b16 %v888
        %v3660 = vunpack.c.h.b16 %v888
        %v3661 = vunpack.c.l.b16 %v889
        %v3662 = vunpack.c.h.b16 %v889
        %v3663 = vunpack.c.l.b16 %v890
        %v3664 = vunpack.c.h.b16 %v890
        %v3665 = vunpack.c.l.b16 %v891
        %v3666 = vunpack.c.h.b16 %v891
        %v3667 = vunpack.c.l.b16 %v892
        %v3668 = vunpack.c.h.b16 %v892
        %v3669 = vunpack.c.l.b16 %v893
        %v3670 = vunpack.c.h.b16 %v893
        %v3671 = vunpack.c.l.b16 %v894
        %v3672 = vunpack.c.h.b16 %v894
        %v3673 = vunpack.c.l.b16 %v895
        %v3674 = vunpack.c.h.b16 %v895
        %v3675 = vunpack.c.l.b16 %v896
        %v3676 = vunpack.c.h.b16 %v896
        %v3677 = vunpack.c.l.b16 %v897
        %v3678 = vunpack.c.h.b16 %v897
        %v3679 = vunpack.c.l.b16 %v898
        %v3680 = vunpack.c.h.b16 %v898
        %v3681 = vunpack.c.l.b16 %v899
        %v3682 = vunpack.c.h.b16 %v899
        %v3683 = vunpack.c.l.b16 %v900
        %v3684 = vunpack.c.h.b16 %v900
        %v3685 = vunpack.c.l.b16 %v901
        %v3686 = vunpack.c.h.b16 %v901
        %v3687 = vunpack.c.l.b16 %v902
        %v3688 = vunpack.c.h.b16 %v902
        %v3689 = vunpack.c.l.b16 %v903
        %v3690 = vunpack.c.h.b16 %v903
        %v3691 = vunpack.c.l.b16 %v904
        %v3692 = vunpack.c.h.b16 %v904
        %v3693 = vunpack.c.l.b16 %v905
        %v3694 = vunpack.c.h.b16 %v905
        %v3695 = vunpack.c.l.b16 %v906
        %v3696 = vunpack.c.h.b16 %v906
        %v3697 = vunpack.c.l.b16 %v907
        %v3698 = vunpack.c.h.b16 %v907
        %v3699 = vunpack.c.l.b16 %v908
        %v3700 = vunpack.c.h.b16 %v908
        %v3701 = vunpack.c.l.b16 %v909
        %v3702 = vunpack.c.h.b16 %v909
        %v3703 = vunpack.c.l.b16 %v910
        %v3704 = vunpack.c.h.b16 %v910
        %v3705 = vunpack.c.l.b16 %v911
        %v3706 = vunpack.c.h.b16 %v911
        %v3707 = vunpack.c.l.b16 %v912
        %v3708 = vunpack.c.h.b16 %v912
        %v3709 = vunpack.c.l.b16 %v913
        %v3710 = vunpack.c.h.b16 %v913
        %v3711 = vunpack.c.l.b16 %v914
        %v3712 = vunpack.c.h.b16 %v914
        %v3713 = vunpack.c.l.b16 %v915
        %v3714 = vunpack.c.h.b16 %v915
        %v3715 = vunpack.c.l.b16 %v916
        %v3716 = vunpack.c.h.b16 %v916
        %v3717 = vunpack.c.l.b16 %v917
        %v3718 = vunpack.c.h.b16 %v917
        %v3719 = vunpack.c.l.b16 %v918
        %v3720 = vunpack.c.h.b16 %v918
        %v3721 = vunpack.c.l.b16 %v919
        %v3722 = vunpack.c.h.b16 %v919
        %v3723 = vunpack.c.l.b16 %v920
        %v3724 = vunpack.c.h.b16 %v920
        %v3725 = vunpack.c.l.b16 %v921
        %v3726 = vunpack.c.h.b16 %v921
        %v3727 = vunpack.c.l.b16 %v922
        %v3728 = vunpack.c.h.b16 %v922
        %v3729 = vunpack.c.l.b16 %v923
        %v3730 = vunpack.c.h.b16 %v923
        %v3731 = vunpack.c.l.b16 %v924
        %v3732 = vunpack.c.h.b16 %v924
        %v3733 = vunpack.c.l.b16 %v925
        %v3734 = vunpack.c.h.b16 %v925
        %v3735 = vunpack.c.l.b16 %v926
        %v3736 = vunpack.c.h.b16 %v926
        %v3737 = vunpack.c.l.b16 %v927
        %v3738 = vunpack.c.h.b16 %v927
        %v3739 = vunpack.c.l.b16 %v928
        %v3740 = vunpack.c.h.b16 %v928
        %v3741 = vunpack.c.l.b16 %v929
        %v3742 = vunpack.c.h.b16 %v929
        %v3743 = vunpack.c.l.b16 %v930
        %v3744 = vunpack.c.h.b16 %v930
        %v3745 = vunpack.c.l.b16 %v931
        %v3746 = vunpack.c.h.b16 %v931
        %v3747 = vunpack.c.l.b16 %v932
        %v3748 = vunpack.c.h.b16 %v932
        %v3749 = vunpack.c.l.b16 %v933
        %v3750 = vunpack.c.h.b16 %v933
        %v3751 = vunpack.c.l.b16 %v934
        %v3752 = vunpack.c.h.b16 %v934
        %v3753 = vunpack.c.l.b16 %v935
        %v3754 = vunpack.c.h.b16 %v935
        %v3755 = vunpack.c.l.b16 %v936
        %v3756 = vunpack.c.h.b16 %v936
        %v3757 = vunpack.c.l.b16 %v937
        %v3758 = vunpack.c.h.b16 %v937
        %v3759 = vunpack.c.l.b16 %v938
        %v3760 = vunpack.c.h.b16 %v938
        %v3761 = vunpack.c.l.b16 %v939
        %v3762 = vunpack.c.h.b16 %v939
        %v3763 = vunpack.c.l.b16 %v940
        %v3764 = vunpack.c.h.b16 %v940
        %v3765 = vunpack.c.l.b16 %v941
        %v3766 = vunpack.c.h.b16 %v941
        %v3767 = vunpack.c.l.b16 %v942
        %v3768 = vunpack.c.h.b16 %v942
        %v3769 = vunpack.c.l.b16 %v943
        %v3770 = vunpack.c.h.b16 %v943
        %v3771 = vunpack.c.l.b16 %v944
        %v3772 = vunpack.c.h.b16 %v944
        %v3773 = vunpack.c.l.b16 %v945
        %v3774 = vunpack.c.h.b16 %v945
        %v3775 = vunpack.c.l.b16 %v946
        %v3776 = vunpack.c.h.b16 %v946
        %v3777 = vunpack.c.l.b16 %v947
        %v3778 = vunpack.c.h.b16 %v947
        %v3779 = vunpack.c.l.b16 %v948
        %v3780 = vunpack.c.h.b16 %v948
        %v3781 = vunpack.c.l.b16 %v949
        %v3782 = vunpack.c.h.b16 %v949
        %v3783 = vunpack.c.l.b16 %v950
        %v3784 = vunpack.c.h.b16 %v950
        %v3785 = vunpack.c.l.b16 %v951
        %v3786 = vunpack.c.h.b16 %v951
        %v3787 = vunpack.c.l.b16 %v952
        %v3788 = vunpack.c.h.b16 %v952
        %v3789 = vunpack.c.l.b16 %v953
        %v3790 = vunpack.c.h.b16 %v953
        %v3791 = vunpack.c.l.b16 %v954
        %v3792 = vunpack.c.h.b16 %v954
        %v3793 = vunpack.c.l.b16 %v955
        %v3794 = vunpack.c.h.b16 %v955
        %v3795 = vunpack.c.l.b16 %v956
        %v3796 = vunpack.c.h.b16 %v956
        %v3797 = vunpack.c.l.b16 %v957
        %v3798 = vunpack.c.h.b16 %v957
        %v3799 = vunpack.c.l.b16 %v958
        %v3800 = vunpack.c.h.b16 %v958
        %v3801 = vunpack.c.l.b16 %v959
        %v3802 = vunpack.c.h.b16 %v959
        %v3803 = vunpack.c.l.b16 %v960
        %v3804 = vunpack.c.h.b16 %v960
        %v3805 = vunpack.c.l.b16 %v961
        %v3806 = vunpack.c.h.b16 %v961
        %v3807 = vunpack.c.l.b16 %v962
        %v3808 = vunpack.c.h.b16 %v962
        %v3809 = vunpack.c.l.b16 %v963
        %v3810 = vunpack.c.h.b16 %v963
        %v3811 = vunpack.c.l.b16 %v964
        %v3812 = vunpack.c.h.b16 %v964
        %v3813 = vunpack.c.l.b16 %v965
        %v3814 = vunpack.c.h.b16 %v965
        %v3815 = vunpack.c.l.b16 %v966
        %v3816 = vunpack.c.h.b16 %v966
        %v3817 = vunpack.c.l.b16 %v967
        %v3818 = vunpack.c.h.b16 %v967
        %v3819 = vunpack.c.l.b16 %v968
        %v3820 = vunpack.c.h.b16 %v968
        %v3821 = vunpack.c.l.b16 %v969
        %v3822 = vunpack.c.h.b16 %v969
        %v3823 = vunpack.c.l.b16 %v970
        %v3824 = vunpack.c.h.b16 %v970
        %v3825 = vunpack.c.l.b16 %v971
        %v3826 = vunpack.c.h.b16 %v971
        %v3827 = vunpack.c.l.b16 %v972
        %v3828 = vunpack.c.h.b16 %v972
        %v3829 = vunpack.c.l.b16 %v973
        %v3830 = vunpack.c.h.b16 %v973
        %v3831 = vunpack.c.l.b16 %v974
        %v3832 = vunpack.c.h.b16 %v974
        %v3833 = vunpack.c.l.b16 %v975
        %v3834 = vunpack.c.h.b16 %v975
        %v3835 = vunpack.c.l.b16 %v976
        %v3836 = vunpack.c.h.b16 %v976
        %v3837 = vunpack.c.l.b16 %v977
        %v3838 = vunpack.c.h.b16 %v977
        %v3839 = vunpack.c.l.b16 %v978
        %v3840 = vunpack.c.h.b16 %v978
        %v3841 = vunpack.c.l.b16 %v979
        %v3842 = vunpack.c.h.b16 %v979
        %v3843 = vunpack.c.l.b16 %v980
        %v3844 = vunpack.c.h.b16 %v980
        %v3845 = vunpack.c.l.b16 %v981
        %v3846 = vunpack.c.h.b16 %v981
        %v3847 = vunpack.c.l.b16 %v982
        %v3848 = vunpack.c.h.b16 %v982
        %v3849 = vunpack.c.l.b16 %v983
        %v3850 = vunpack.c.h.b16 %v983
        %v3851 = vunpack.c.l.b16 %v984
        %v3852 = vunpack.c.h.b16 %v984
        %v3853 = vunpack.c.l.b16 %v985
        %v3854 = vunpack.c.h.b16 %v985
        %v3855 = vunpack.c.l.b16 %v986
        %v3856 = vunpack.c.h.b16 %v986
        %v3857 = vunpack.c.l.b16 %v987
        %v3858 = vunpack.c.h.b16 %v987
        %v3859 = vunpack.c.l.b16 %v988
        %v3860 = vunpack.c.h.b16 %v988
        %v3861 = vunpack.c.l.b16 %v989
        %v3862 = vunpack.c.h.b16 %v989
        %v3863 = vunpack.c.l.b16 %v990
        %v3864 = vunpack.c.h.b16 %v990
        %v3865 = vunpack.c.l.b16 %v991
        %v3866 = vunpack.c.h.b16 %v991
        %v3867 = vunpack.c.l.b16 %v992
        %v3868 = vunpack.c.h.b16 %v992
        %v3869 = vunpack.c.l.b16 %v993
        %v3870 = vunpack.c.h.b16 %v993
        %v3871 = vunpack.c.l.b16 %v994
        %v3872 = vunpack.c.h.b16 %v994
        %v3873 = vunpack.c.l.b16 %v995
        %v3874 = vunpack.c.h.b16 %v995
        %v3875 = vunpack.c.l.b16 %v996
        %v3876 = vunpack.c.h.b16 %v996
        %v3877 = vunpack.c.l.b16 %v997
        %v3878 = vunpack.c.h.b16 %v997
        %v3879 = vunpack.c.l.b16 %v998
        %v3880 = vunpack.c.h.b16 %v998
        %v3881 = vunpack.c.l.b16 %v999
        %v3882 = vunpack.c.h.b16 %v999
        %v3883 = vunpack.c.l.b16 %v1000
        %v3884 = vunpack.c.h.b16 %v1000
        %v3885 = vunpack.c.l.b16 %v1001
        %v3886 = vunpack.c.h.b16 %v1001
        %v3887 = vunpack.c.l.b16 %v1002
        %v3888 = vunpack.c.h.b16 %v1002
        %v3889 = vunpack.c.l.b16 %v1003
        %v3890 = vunpack.c.h.b16 %v1003
        %v3891 = vunpack.c.l.b16 %v1004
        %v3892 = vunpack.c.h.b16 %v1004
        %v3893 = vunpack.c.l.b16 %v1005
        %v3894 = vunpack.c.h.b16 %v1005
        %v3895 = vunpack.c.l.b16 %v1006
        %v3896 = vunpack.c.h.b16 %v1006
        %v3897 = vunpack.c.l.b16 %v1007
        %v3898 = vunpack.c.h.b16 %v1007
        %v3899 = vunpack.c.l.b16 %v1008
        %v3900 = vunpack.c.h.b16 %v1008
        %v3901 = vunpack.c.l.b16 %v1009
        %v3902 = vunpack.c.h.b16 %v1009
        %v3903 = vunpack.c.l.b16 %v1010
        %v3904 = vunpack.c.h.b16 %v1010
        %v3905 = vunpack.c.l.b16 %v1011
        %v3906 = vunpack.c.h.b16 %v1011
        %v3907 = vunpack.c.l.b16 %v1012
        %v3908 = vunpack.c.h.b16 %v1012
        %v3909 = vunpack.c.l.b16 %v1013
        %v3910 = vunpack.c.h.b16 %v1013
        %v3911 = vunpack.c.l.b16 %v1014
        %v3912 = vunpack.c.h.b16 %v1014
        %v3913 = vunpack.c.l.b16 %v1015
        %v3914 = vunpack.c.h.b16 %v1015
        %v3915 = vunpack.c.l.b16 %v1016
        %v3916 = vunpack.c.h.b16 %v1016
        %v3917 = vunpack.c.l.b16 %v1017
        %v3918 = vunpack.c.h.b16 %v1017
        %v3919 = vunpack.c.l.b16 %v1018
        %v3920 = vunpack.c.h.b16 %v1018
        %v3921 = vunpack.c.l.b16 %v1019
        %v3922 = vunpack.c.h.b16 %v1019
        %v3923 = vunpack.c.l.b16 %v1020
        %v3924 = vunpack.c.h.b16 %v1020
        %v3925 = vunpack.c.l.b16 %v1021
        %v3926 = vunpack.c.h.b16 %v1021
        %v3927 = vunpack.c.l.b16 %v1022
        %v3928 = vunpack.c.h.b16 %v1022
        %v3929 = vunpack.c.l.b16 %v1023
        %v3930 = vunpack.c.h.b16 %v1023
        %v3931 = vunpack.c.l.b16 %v1024
        %v3932 = vunpack.c.h.b16 %v1024
        %v3933 = vunpack.c.l.b16 %v1025
        %v3934 = vunpack.c.h.b16 %v1025
        %v3935 = vunpack.c.l.b16 %v1026
        %v3936 = vunpack.c.h.b16 %v1026
        %v3937 = vunpack.c.l.b16 %v1027
        %v3938 = vunpack.c.h.b16 %v1027
        %v3939 = vunpack.c.l.b16 %v1028
        %v3940 = vunpack.c.h.b16 %v1028
        %v3941 = vunpack.c.l.b16 %v1029
        %v3942 = vunpack.c.h.b16 %v1029
        %v3943 = vunpack.c.l.b16 %v1030
        %v3944 = vunpack.c.h.b16 %v1030
        %v3945 = vunpack.c.l.b16 %v1031
        %v3946 = vunpack.c.h.b16 %v1031
        %v3947 = vunpack.c.l.b16 %v1032
        %v3948 = vunpack.c.h.b16 %v1032
        %v3949 = vunpack.c.l.b16 %v1033
        %v3950 = vunpack.c.h.b16 %v1033
        %v3951 = vunpack.c.l.b16 %v1034
        %v3952 = vunpack.c.h.b16 %v1034
        %v3953 = vunpack.c.l.b16 %v1035
        %v3954 = vunpack.c.h.b16 %v1035
        %v3955 = vunpack.c.l.b16 %v1036
        %v3956 = vunpack.c.h.b16 %v1036
        %v3957 = vunpack.c.l.b16 %v1037
        %v3958 = vunpack.c.h.b16 %v1037
        %v3959 = vunpack.c.l.b16 %v1038
        %v3960 = vunpack.c.h.b16 %v1038
        %v3961 = vunpack.c.l.b16 %v1039
        %v3962 = vunpack.c.h.b16 %v1039
        %v3963 = vunpack.c.l.b16 %v1040
        %v3964 = vunpack.c.h.b16 %v1040
        %v3965 = vunpack.c.l.b16 %v1041
        %v3966 = vunpack.c.h.b16 %v1041
        %v3967 = vunpack.c.l.b16 %v1042
        %v3968 = vunpack.c.h.b16 %v1042
        %v3969 = vunpack.c.l.b16 %v1043
        %v3970 = vunpack.c.h.b16 %v1043
        %v3971 = vunpack.c.l.b16 %v1044
        %v3972 = vunpack.c.h.b16 %v1044
        %v3973 = vunpack.c.l.b16 %v1045
        %v3974 = vunpack.c.h.b16 %v1045
        %v3975 = vunpack.c.l.b16 %v1046
        %v3976 = vunpack.c.h.b16 %v1046
        %v3977 = vunpack.c.l.b16 %v1047
        %v3978 = vunpack.c.h.b16 %v1047
        %v3979 = vunpack.c.l.b16 %v1048
        %v3980 = vunpack.c.h.b16 %v1048
        %v3981 = vunpack.c.l.b16 %v1049
        %v3982 = vunpack.c.h.b16 %v1049
        %v3983 = vunpack.c.l.b16 %v1050
        %v3984 = vunpack.c.h.b16 %v1050
        %v3985 = vunpack.c.l.b16 %v1051
        %v3986 = vunpack.c.h.b16 %v1051
        %v3987 = vunpack.c.l.b16 %v1052
        %v3988 = vunpack.c.h.b16 %v1052
        %v3989 = vunpack.c.l.b16 %v1053
        %v3990 = vunpack.c.h.b16 %v1053
        %v3991 = vunpack.c.l.b16 %v1054
        %v3992 = vunpack.c.h.b16 %v1054
        %v3993 = vunpack.c.l.b16 %v1055
        %v3994 = vunpack.c.h.b16 %v1055
        %v3995 = vunpack.c.l.b16 %v1056
        %v3996 = vunpack.c.h.b16 %v1056
        %v3997 = vunpack.c.l.b16 %v1057
        %v3998 = vunpack.c.h.b16 %v1057
        %v3999 = vunpack.c.l.b16 %v1058
        %v4000 = vunpack.c.h.b16 %v1058
        %v4001 = vunpack.c.l.b16 %v1059
        %v4002 = vunpack.c.h.b16 %v1059
        %v4003 = vunpack.c.l.b16 %v1060
        %v4004 = vunpack.c.h.b16 %v1060
        %v4005 = vunpack.c.l.b16 %v1061
        %v4006 = vunpack.c.h.b16 %v1061
        %v4007 = vunpack.c.l.b16 %v1062
        %v4008 = vunpack.c.h.b16 %v1062
        %v4009 = vunpack.c.l.b16 %v1063
        %v4010 = vunpack.c.h.b16 %v1063
        %v4011 = vunpack.c.l.b16 %v1064
        %v4012 = vunpack.c.h.b16 %v1064
        %v4013 = vunpack.c.l.b16 %v1065
        %v4014 = vunpack.c.h.b16 %v1065
        %v4015 = vunpack.c.l.b16 %v1066
        %v4016 = vunpack.c.h.b16 %v1066
        %v4017 = vunpack.c.l.b16 %v1067
        %v4018 = vunpack.c.h.b16 %v1067
        %v4019 = vunpack.c.l.b16 %v1068
        %v4020 = vunpack.c.h.b16 %v1068
        %v4021 = vunpack.c.l.b16 %v1069
        %v4022 = vunpack.c.h.b16 %v1069
        %v4023 = vunpack.c.l.b16 %v1070
        %v4024 = vunpack.c.h.b16 %v1070
        %v4025 = vunpack.c.l.b16 %v1071
        %v4026 = vunpack.c.h.b16 %v1071
        %v4027 = vunpack.c.l.b16 %v1072
        %v4028 = vunpack.c.h.b16 %v1072
        %v4029 = vunpack.c.l.b16 %v1073
        %v4030 = vunpack.c.h.b16 %v1073
        %v4031 = vunpack.c.l.b16 %v1074
        %v4032 = vunpack.c.h.b16 %v1074
        %v4033 = vunpack.c.l.b16 %v1075
        %v4034 = vunpack.c.h.b16 %v1075
        %v4035 = vunpack.c.l.b16 %v1076
        %v4036 = vunpack.c.h.b16 %v1076
        %v4037 = vunpack.c.l.b16 %v1077
        %v4038 = vunpack.c.h.b16 %v1077
        %v4039 = vunpack.c.l.b16 %v1078
        %v4040 = vunpack.c.h.b16 %v1078
        %v4041 = vunpack.c.l.b16 %v1079
        %v4042 = vunpack.c.h.b16 %v1079
        %v4043 = vunpack.c.l.b16 %v1080
        %v4044 = vunpack.c.h.b16 %v1080
        %v4045 = vunpack.c.l.b16 %v1081
        %v4046 = vunpack.c.h.b16 %v1081
        %v4047 = vunpack.c.l.b16 %v1082
        %v4048 = vunpack.c.h.b16 %v1082
        %v4049 = vunpack.c.l.b16 %v1083
        %v4050 = vunpack.c.h.b16 %v1083
        %v4051 = vunpack.c.l.b16 %v1084
        %v4052 = vunpack.c.h.b16 %v1084
        %v4053 = vunpack.c.l.b16 %v1085
        %v4054 = vunpack.c.h.b16 %v1085
        %v4055 = vunpack.c.l.b16 %v1086
        %v4056 = vunpack.c.h.b16 %v1086
        %v4057 = vunpack.c.l.b16 %v1087
        %v4058 = vunpack.c.h.b16 %v1087
        %v4059 = vunpack.c.l.b16 %v1088
        %v4060 = vunpack.c.h.b16 %v1088
        %v4061 = vunpack.c.l.b16 %v1089
        %v4062 = vunpack.c.h.b16 %v1089
        %v4063 = vunpack.c.l.b16 %v1090
        %v4064 = vunpack.c.h.b16 %v1090
        %v4065 = vunpack.c.l.b16 %v1091
        %v4066 = vunpack.c.h.b16 %v1091
        %v4067 = vunpack.c.l.b16 %v1092
        %v4068 = vunpack.c.h.b16 %v1092
        %v4069 = vunpack.c.l.b16 %v1093
        %v4070 = vunpack.c.h.b16 %v1093
        %v4071 = vunpack.c.l.b16 %v1094
        %v4072 = vunpack.c.h.b16 %v1094
        %v4073 = vunpack.c.l.b16 %v1095
        %v4074 = vunpack.c.h.b16 %v1095
        %v4075 = vunpack.c.l.b16 %v1096
        %v4076 = vunpack.c.h.b16 %v1096
        %v4077 = vunpack.c.l.b16 %v1097
        %v4078 = vunpack.c.h.b16 %v1097
        %v4079 = vunpack.c.l.b16 %v1098
        %v4080 = vunpack.c.h.b16 %v1098
        %v4081 = vunpack.c.l.b16 %v1099
        %v4082 = vunpack.c.h.b16 %v1099
        %v4083 = vunpack.c.l.b16 %v1100
        %v4084 = vunpack.c.h.b16 %v1100
        %v4085 = vunpack.c.l.b16 %v1101
        %v4086 = vunpack.c.h.b16 %v1101
        %v4087 = vunpack.c.l.b16 %v1102
        %v4088 = vunpack.c.h.b16 %v1102
        %v4089 = vunpack.c.l.b16 %v1103
        %v4090 = vunpack.c.h.b16 %v1103
        %v4091 = vunpack.c.l.b16 %v1104
        %v4092 = vunpack.c.h.b16 %v1104
        %v4093 = vunpack.c.l.b16 %v1105
        %v4094 = vunpack.c.h.b16 %v1105
        %v4095 = vunpack.c.l.b16 %v1106
        %v4096 = vunpack.c.h.b16 %v1106
        %v4097 = vunpack.c.l.b16 %v1107
        %v4098 = vunpack.c.h.b16 %v1107
        %v4099 = vunpack.c.l.b16 %v1108
        %v4100 = vunpack.c.h.b16 %v1108
        %v4101 = vunpack.c.l.b16 %v1109
        %v4102 = vunpack.c.h.b16 %v1109
        %v4103 = vunpack.c.l.b16 %v1110
        %v4104 = vunpack.c.h.b16 %v1110
        %v4105 = vunpack.c.l.b16 %v1111
        %v4106 = vunpack.c.h.b16 %v1111
        %v4107 = vunpack.c.l.b16 %v1112
        %v4108 = vunpack.c.h.b16 %v1112
        %v4109 = vunpack.c.l.b16 %v1113
        %v4110 = vunpack.c.h.b16 %v1113
        %v4111 = vunpack.c.l.b16 %v1114
        %v4112 = vunpack.c.h.b16 %v1114
        %v4113 = vunpack.c.l.b16 %v1115
        %v4114 = vunpack.c.h.b16 %v1115
        %v4115 = vunpack.c.l.b16 %v1116
        %v4116 = vunpack.c.h.b16 %v1116
        %v4117 = vunpack.c.l.b16 %v1117
        %v4118 = vunpack.c.h.b16 %v1117
        %v4119 = vunpack.c.l.b16 %v1118
        %v4120 = vunpack.c.h.b16 %v1118
        %v4121 = vunpack.c.l.b16 %v1119
        %v4122 = vunpack.c.h.b16 %v1119
        %v4123 = vunpack.c.l.b16 %v1120
        %v4124 = vunpack.c.h.b16 %v1120
        %v4125 = vunpack.c.l.b16 %v1121
        %v4126 = vunpack.c.h.b16 %v1121
        %v4127 = vunpack.c.l.b16 %v1122
        %v4128 = vunpack.c.h.b16 %v1122
        %v4129 = vunpack.c.l.b16 %v1123
        %v4130 = vunpack.c.h.b16 %v1123
        %v4131 = vunpack.c.l.b16 %v1124
        %v4132 = vunpack.c.h.b16 %v1124
        %v4133 = vunpack.c.l.b16 %v1125
        %v4134 = vunpack.c.h.b16 %v1125
        %v4135 = vunpack.c.l.b16 %v1126
        %v4136 = vunpack.c.h.b16 %v1126
        %v4137 = vunpack.c.l.b16 %v1127
        %v4138 = vunpack.c.h.b16 %v1127
        %v4139 = vunpack.c.l.b16 %v1128
        %v4140 = vunpack.c.h.b16 %v1128
        %v4141 = vunpack.c.l.b16 %v1129
        %v4142 = vunpack.c.h.b16 %v1129
        %v4143 = vunpack.c.l.b16 %v1130
        %v4144 = vunpack.c.h.b16 %v1130
        %v4145 = vunpack.c.l.b16 %v1131
        %v4146 = vunpack.c.h.b16 %v1131
        %v4147 = vunpack.c.l.b16 %v1132
        %v4148 = vunpack.c.h.b16 %v1132
        %v4149 = vunpack.c.l.b16 %v1133
        %v4150 = vunpack.c.h.b16 %v1133
        %v4151 = vunpack.c.l.b16 %v1134
        %v4152 = vunpack.c.h.b16 %v1134
        %v4153 = vunpack.c.l.b16 %v1135
        %v4154 = vunpack.c.h.b16 %v1135
        %v4155 = vunpack.c.l.b16 %v1136
        %v4156 = vunpack.c.h.b16 %v1136
        %v4157 = vunpack.c.l.b16 %v1137
        %v4158 = vunpack.c.h.b16 %v1137
        %v4159 = vunpack.c.l.b16 %v1138
        %v4160 = vunpack.c.h.b16 %v1138
        %v4161 = vunpack.c.l.b16 %v1139
        %v4162 = vunpack.c.h.b16 %v1139
        %v4163 = vunpack.c.l.b16 %v1140
        %v4164 = vunpack.c.h.b16 %v1140
        %v4165 = vunpack.c.l.b16 %v1141
        %v4166 = vunpack.c.h.b16 %v1141
        %v4167 = vunpack.c.l.b16 %v1142
        %v4168 = vunpack.c.h.b16 %v1142
        %v4169 = vunpack.c.l.b16 %v1143
        %v4170 = vunpack.c.h.b16 %v1143
        %v4171 = vunpack.c.l.b16 %v1144
        %v4172 = vunpack.c.h.b16 %v1144
        %v4173 = vunpack.c.l.b16 %v1145
        %v4174 = vunpack.c.h.b16 %v1145
        %v4175 = vunpack.c.l.b16 %v1146
        %v4176 = vunpack.c.h.b16 %v1146
        %v4177 = vunpack.c.l.b16 %v1147
        %v4178 = vunpack.c.h.b16 %v1147
        %v4179 = vunpack.c.l.b16 %v1148
        %v4180 = vunpack.c.h.b16 %v1148
        %v4181 = vunpack.c.l.b16 %v1149
        %v4182 = vunpack.c.h.b16 %v1149
        %v4183 = vunpack.c.l.b16 %v1150
        %v4184 = vunpack.c.h.b16 %v1150
        %v4185 = vunpack.c.l.b16 %v1151
        %v4186 = vunpack.c.h.b16 %v1151
        %v4187 = vunpack.c.l.b16 %v1152
        %v4188 = vunpack.c.h.b16 %v1152
        %v4189 = vunpack.c.l.b16 %v1153
        %v4190 = vunpack.c.h.b16 %v1153
        %v4191 = vunpack.c.l.b16 %v1154
        %v4192 = vunpack.c.h.b16 %v1154
        %v4193 = vunpack.c.l.b16 %v1155
        %v4194 = vunpack.c.h.b16 %v1155
        %v4195 = vunpack.c.l.b16 %v1156
        %v4196 = vunpack.c.h.b16 %v1156
        %v4197 = vunpack.c.l.b16 %v1157
        %v4198 = vunpack.c.h.b16 %v1157
        %v4199 = vunpack.c.l.b16 %v1158
        %v4200 = vunpack.c.h.b16 %v1158
        %v4201 = vunpack.c.l.b16 %v1159
        %v4202 = vunpack.c.h.b16 %v1159
        %v4203 = vunpack.c.l.b16 %v1160
        %v4204 = vunpack.c.h.b16 %v1160
        %v4205 = vunpack.c.l.b16 %v1161
        %v4206 = vunpack.c.h.b16 %v1161
        %v4207 = vunpack.c.l.b16 %v1162
        %v4208 = vunpack.c.h.b16 %v1162
        %v4209 = vunpack.c.l.b16 %v1163
        %v4210 = vunpack.c.h.b16 %v1163
        %v4211 = vunpack.c.l.b16 %v1164
        %v4212 = vunpack.c.h.b16 %v1164
        %v4213 = vunpack.c.l.b16 %v1165
        %v4214 = vunpack.c.h.b16 %v1165
        %v4215 = vunpack.c.l.b16 %v1166
        %v4216 = vunpack.c.h.b16 %v1166
        %v4217 = vunpack.c.l.b16 %v1167
        %v4218 = vunpack.c.h.b16 %v1167
        %v4219 = vunpack.c.l.b16 %v1168
        %v4220 = vunpack.c.h.b16 %v1168
        %v4221 = vunpack.c.l.b16 %v1169
        %v4222 = vunpack.c.h.b16 %v1169
        %v4223 = vunpack.c.l.b16 %v1170
        %v4224 = vunpack.c.h.b16 %v1170
        %v4225 = vunpack.c.l.b16 %v1171
        %v4226 = vunpack.c.h.b16 %v1171
        %v4227 = vunpack.c.l.b16 %v1172
        %v4228 = vunpack.c.h.b16 %v1172
        %v4229 = vunpack.c.l.b16 %v1173
        %v4230 = vunpack.c.h.b16 %v1173
        %v4231 = vunpack.c.l.b16 %v1174
        %v4232 = vunpack.c.h.b16 %v1174
        %v4233 = vunpack.c.l.b16 %v1175
        %v4234 = vunpack.c.h.b16 %v1175
        %v4235 = vunpack.c.l.b16 %v1176
        %v4236 = vunpack.c.h.b16 %v1176
        %v4237 = vunpack.c.l.b16 %v1177
        %v4238 = vunpack.c.h.b16 %v1177
        %v4239 = vunpack.c.l.b16 %v1178
        %v4240 = vunpack.c.h.b16 %v1178
        %v4241 = vunpack.c.l.b16 %v1179
        %v4242 = vunpack.c.h.b16 %v1179
        %v4243 = vunpack.c.l.b16 %v1180
        %v4244 = vunpack.c.h.b16 %v1180
        %v4245 = vunpack.c.l.b16 %v1181
        %v4246 = vunpack.c.h.b16 %v1181
        %v4247 = vunpack.c.l.b16 %v1182
        %v4248 = vunpack.c.h.b16 %v1182
        %v4249 = vunpack.c.l.b16 %v1183
        %v4250 = vunpack.c.h.b16 %v1183
        %v4251 = vunpack.c.l.b16 %v1184
        %v4252 = vunpack.c.h.b16 %v1184
        %v4253 = vunpack.c.l.b16 %v1185
        %v4254 = vunpack.c.h.b16 %v1185
        %v4255 = vunpack.c.l.b16 %v1186
        %v4256 = vunpack.c.h.b16 %v1186
        %v4257 = vunpack.c.l.b16 %v1187
        %v4258 = vunpack.c.h.b16 %v1187
        %v4259 = vunpack.c.l.b16 %v1188
        %v4260 = vunpack.c.h.b16 %v1188
        %v4261 = vunpack.c.l.b16 %v1189
        %v4262 = vunpack.c.h.b16 %v1189
        %v4263 = vunpack.c.l.b16 %v1190
        %v4264 = vunpack.c.h.b16 %v1190
        %v4265 = vunpack.c.l.b16 %v1191
        %v4266 = vunpack.c.h.b16 %v1191
        %v4267 = vunpack.c.l.b16 %v1192
        %v4268 = vunpack.c.h.b16 %v1192
        %v4269 = vunpack.c.l.b16 %v1193
        %v4270 = vunpack.c.h.b16 %v1193
        %v4271 = vunpack.c.l.b16 %v1194
        %v4272 = vunpack.c.h.b16 %v1194
        %v4273 = vunpack.c.l.b16 %v1195
        %v4274 = vunpack.c.h.b16 %v1195
        %v4275 = vunpack.c.l.b16 %v1196
        %v4276 = vunpack.c.h.b16 %v1196
        %v4277 = vunpack.c.l.b16 %v1197
        %v4278 = vunpack.c.h.b16 %v1197
        %v4279 = vunpack.c.l.b16 %v1198
        %v4280 = vunpack.c.h.b16 %v1198
        %v4281 = vunpack.c.l.b16 %v1199
        %v4282 = vunpack.c.h.b16 %v1199
        %v4283 = vunpack.c.l.b16 %v1200
        %v4284 = vunpack.c.h.b16 %v1200
        %v4285 = vunpack.c.l.b16 %v1201
        %v4286 = vunpack.c.h.b16 %v1201
        %v4287 = vunpack.c.l.b16 %v1202
        %v4288 = vunpack.c.h.b16 %v1202
        %v4289 = vunpack.c.l.b16 %v1203
        %v4290 = vunpack.c.h.b16 %v1203
        %v4291 = vunpack.c.l.b16 %v1204
        %v4292 = vunpack.c.h.b16 %v1204
        %v4293 = vunpack.c.l.b16 %v1205
        %v4294 = vunpack.c.h.b16 %v1205
        %v4295 = vunpack.c.l.b16 %v1206
        %v4296 = vunpack.c.h.b16 %v1206
        %v4297 = vunpack.c.l.b16 %v1207
        %v4298 = vunpack.c.h.b16 %v1207
        %v4299 = vunpack.c.l.b16 %v1208
        %v4300 = vunpack.c.h.b16 %v1208
        %v4301 = vunpack.c.l.b16 %v1209
        %v4302 = vunpack.c.h.b16 %v1209
        %v4303 = vunpack.c.l.b16 %v1210
        %v4304 = vunpack.c.h.b16 %v1210
        %v4305 = vunpack.c.l.b16 %v1211
        %v4306 = vunpack.c.h.b16 %v1211
        %v4307 = vunpack.c.l.b16 %v1212
        %v4308 = vunpack.c.h.b16 %v1212
        %v4309 = vunpack.c.l.b16 %v1213
        %v4310 = vunpack.c.h.b16 %v1213
        %v4311 = vunpack.c.l.b16 %v1214
        %v4312 = vunpack.c.h.b16 %v1214
        %v4313 = vunpack.c.l.b16 %v1215
        %v4314 = vunpack.c.h.b16 %v1215
        %v4315 = vunpack.c.l.b16 %v1216
        %v4316 = vunpack.c.h.b16 %v1216
        %v4317 = vunpack.c.l.b16 %v1217
        %v4318 = vunpack.c.h.b16 %v1217
        %v4319 = vunpack.c.l.b16 %v1218
        %v4320 = vunpack.c.h.b16 %v1218
        %v4321 = vunpack.c.l.b16 %v1219
        %v4322 = vunpack.c.h.b16 %v1219
        %v4323 = vunpack.c.l.b16 %v1220
        %v4324 = vunpack.c.h.b16 %v1220
        %v4325 = vunpack.c.l.b16 %v1221
        %v4326 = vunpack.c.h.b16 %v1221
        %v4327 = vunpack.c.l.b16 %v1222
        %v4328 = vunpack.c.h.b16 %v1222
        %v4329 = vunpack.c.l.b16 %v1223
        %v4330 = vunpack.c.h.b16 %v1223
        %v4331 = vunpack.c.l.b16 %v1224
        %v4332 = vunpack.c.h.b16 %v1224
        %v4333 = vunpack.c.l.b16 %v1225
        %v4334 = vunpack.c.h.b16 %v1225
        %v4335 = vunpack.c.l.b16 %v1226
        %v4336 = vunpack.c.h.b16 %v1226
        %v4337 = vunpack.c.l.b16 %v1227
        %v4338 = vunpack.c.h.b16 %v1227
        %v4339 = vunpack.c.l.b16 %v1228
        %v4340 = vunpack.c.h.b16 %v1228
        %v4341 = vunpack.c.l.b16 %v1229
        %v4342 = vunpack.c.h.b16 %v1229
        %v4343 = vunpack.c.l.b16 %v1230
        %v4344 = vunpack.c.h.b16 %v1230
        %v4345 = vunpack.c.l.b16 %v1231
        %v4346 = vunpack.c.h.b16 %v1231
        %v4347 = vunpack.c.l.b16 %v1232
        %v4348 = vunpack.c.h.b16 %v1232
        %v4349 = vunpack.c.l.b16 %v1233
        %v4350 = vunpack.c.h.b16 %v1233
        %v4351 = vunpack.c.l.b16 %v1234
        %v4352 = vunpack.c.h.b16 %v1234
        %v4353 = vunpack.c.l.b16 %v1235
        %v4354 = vunpack.c.h.b16 %v1235
        %v4355 = vunpack.c.l.b16 %v1236
        %v4356 = vunpack.c.h.b16 %v1236
        %v4357 = vunpack.c.l.b16 %v1237
        %v4358 = vunpack.c.h.b16 %v1237
        %v4359 = vunpack.c.l.b16 %v1238
        %v4360 = vunpack.c.h.b16 %v1238
        %v4361 = vunpack.c.l.b16 %v1239
        %v4362 = vunpack.c.h.b16 %v1239
        %v4363 = vunpack.c.l.b16 %v1240
        %v4364 = vunpack.c.h.b16 %v1240
        %v4365 = vunpack.c.l.b16 %v1241
        %v4366 = vunpack.c.h.b16 %v1241
        %v4367 = vunpack.c.l.b16 %v1242
        %v4368 = vunpack.c.h.b16 %v1242
        %v4369 = vunpack.c.l.b16 %v1243
        %v4370 = vunpack.c.h.b16 %v1243
        %v4371 = vunpack.c.l.b16 %v1244
        %v4372 = vunpack.c.h.b16 %v1244
        %v4373 = vunpack.c.l.b16 %v1245
        %v4374 = vunpack.c.h.b16 %v1245
        %v4375 = vunpack.c.l.b16 %v1246
        %v4376 = vunpack.c.h.b16 %v1246
        %v4377 = vunpack.c.l.b16 %v1247
        %v4378 = vunpack.c.h.b16 %v1247
        %v4379 = vunpack.c.l.b16 %v1248
        %v4380 = vunpack.c.h.b16 %v1248
        %v4381 = vunpack.c.l.b16 %v1249
        %v4382 = vunpack.c.h.b16 %v1249
        %v4383 = vunpack.c.l.b16 %v1250
        %v4384 = vunpack.c.h.b16 %v1250
        %v4385 = vunpack.c.l.b16 %v1251
        %v4386 = vunpack.c.h.b16 %v1251
        %v4387 = vunpack.c.l.b16 %v1252
        %v4388 = vunpack.c.h.b16 %v1252
        %v4389 = vunpack.c.l.b16 %v1253
        %v4390 = vunpack.c.h.b16 %v1253
        %v4391 = vunpack.c.l.b16 %v1254
        %v4392 = vunpack.c.h.b16 %v1254
        %v4393 = vunpack.c.l.b16 %v1255
        %v4394 = vunpack.c.h.b16 %v1255
        %v4395 = vunpack.c.l.b16 %v1256
        %v4396 = vunpack.c.h.b16 %v1256
        %v4397 = vunpack.c.l.b16 %v1257
        %v4398 = vunpack.c.h.b16 %v1257
        %v4399 = vunpack.c.l.b16 %v1258
        %v4400 = vunpack.c.h.b16 %v1258
        %v4401 = vunpack.c.l.b16 %v1259
        %v4402 = vunpack.c.h.b16 %v1259
        %v4403 = vunpack.c.l.b16 %v1260
        %v4404 = vunpack.c.h.b16 %v1260
        %v4405 = vunpack.c.l.b16 %v1261
        %v4406 = vunpack.c.h.b16 %v1261
        %v4407 = vunpack.c.l.b16 %v1262
        %v4408 = vunpack.c.h.b16 %v1262
        %v4409 = vunpack.c.l.b16 %v1263
        %v4410 = vunpack.c.h.b16 %v1263
        %v4411 = vunpack.c.l.b16 %v1264
        %v4412 = vunpack.c.h.b16 %v1264
        %v4413 = vunpack.c.l.b16 %v1265
        %v4414 = vunpack.c.h.b16 %v1265
        %v4415 = vunpack.c.l.b16 %v1266
        %v4416 = vunpack.c.h.b16 %v1266
        %v4417 = vunpack.c.l.b16 %v1267
        %v4418 = vunpack.c.h.b16 %v1267
        %v4419 = vunpack.c.l.b16 %v1268
        %v4420 = vunpack.c.h.b16 %v1268
        %v4421 = vunpack.c.l.b16 %v1269
        %v4422 = vunpack.c.h.b16 %v1269
        %v4423 = vunpack.c.l.b16 %v1270
        %v4424 = vunpack.c.h.b16 %v1270
        %v4425 = vunpack.c.l.b16 %v1271
        %v4426 = vunpack.c.h.b16 %v1271
        %v4427 = vunpack.c.l.b16 %v1272
        %v4428 = vunpack.c.h.b16 %v1272
        %v4429 = vunpack.c.l.b16 %v1273
        %v4430 = vunpack.c.h.b16 %v1273
        %v4431 = vunpack.c.l.b16 %v1274
        %v4432 = vunpack.c.h.b16 %v1274
        %v4433 = vunpack.c.l.b16 %v1275
        %v4434 = vunpack.c.h.b16 %v1275
        %v4435 = vunpack.c.l.b16 %v1276
        %v4436 = vunpack.c.h.b16 %v1276
        %v4437 = vunpack.c.l.b16 %v1277
        %v4438 = vunpack.c.h.b16 %v1277
        %v4439 = vunpack.c.l.b16 %v1278
        %v4440 = vunpack.c.h.b16 %v1278
        %v4441 = vunpack.c.l.b16 %v1279
        %v4442 = vunpack.c.h.b16 %v1279
        %v4443 = vunpack.c.l.b16 %v1280
        %v4444 = vunpack.c.h.b16 %v1280
        %v4445 = vunpack.c.l.b16 %v1281
        %v4446 = vunpack.c.h.b16 %v1281
        %v4447 = vunpack.c.l.b16 %v1282
        %v4448 = vunpack.c.h.b16 %v1282
        %v4449 = vunpack.c.l.b16 %v1283
        %v4450 = vunpack.c.h.b16 %v1283
        %v4451 = vunpack.c.l.b16 %v1284
        %v4452 = vunpack.c.h.b16 %v1284
        %v4453 = vunpack.c.l.b16 %v1285
        %v4454 = vunpack.c.h.b16 %v1285
        %v4455 = vunpack.c.l.b16 %v1286
        %v4456 = vunpack.c.h.b16 %v1286
        %v4457 = vunpack.c.l.b16 %v1287
        %v4458 = vunpack.c.h.b16 %v1287
        %v4459 = vunpack.c.l.b16 %v1288
        %v4460 = vunpack.c.h.b16 %v1288
        %v4461 = vunpack.c.l.b16 %v1289
        %v4462 = vunpack.c.h.b16 %v1289
        %v4463 = vunpack.c.l.b16 %v1290
        %v4464 = vunpack.c.h.b16 %v1290
        %v4465 = vunpack.c.l.b16 %v1291
        %v4466 = vunpack.c.h.b16 %v1291
        %v4467 = vunpack.c.l.b16 %v1292
        %v4468 = vunpack.c.h.b16 %v1292
        %v4469 = vunpack.c.l.b16 %v1293
        %v4470 = vunpack.c.h.b16 %v1293
        %v4471 = vunpack.c.l.b16 %v1294
        %v4472 = vunpack.c.h.b16 %v1294
        %v4473 = vunpack.c.l.b16 %v1295
        %v4474 = vunpack.c.h.b16 %v1295
        %v4475 = vunpack.c.l.b16 %v1296
        %v4476 = vunpack.c.h.b16 %v1296
        %v4477 = vunpack.c.l.b16 %v1297
        %v4478 = vunpack.c.h.b16 %v1297
        %v4479 = vunpack.c.l.b16 %v1298
        %v4480 = vunpack.c.h.b16 %v1298
        %v4481 = vpack.c.b16 %v2441, %v2433
        %v4482 = vpack.c.b16 %v2442, %v2434
        %v4483 = vpack.c.b16 %v2443, %v2435
        %v4484 = vpack.c.b16 %v2444, %v2436
        %v4485 = vpack.c.b16 %v2445, %v2437
        %v4486 = vpack.c.b16 %v2446, %v2438
        %v4487 = vpack.c.b16 %v2447, %v2439
        %v4488 = vpack.c.b16 %v2448, %v2440
        %v4489 = vpack.c.b16 %v2457, %v2449
        %v4490 = vpack.c.b16 %v2458, %v2450
        %v4491 = vpack.c.b16 %v2459, %v2451
        %v4492 = vpack.c.b16 %v2460, %v2452
        %v4493 = vpack.c.b16 %v2461, %v2453
        %v4494 = vpack.c.b16 %v2462, %v2454
        %v4495 = vpack.c.b16 %v2463, %v2455
        %v4496 = vpack.c.b16 %v2464, %v2456
        %v4497 = vpack.c.b16 %v2473, %v2465
        %v4498 = vpack.c.b16 %v2474, %v2466
        %v4499 = vpack.c.b16 %v2475, %v2467
        %v4500 = vpack.c.b16 %v2476, %v2468
        %v4501 = vpack.c.b16 %v2477, %v2469
        %v4502 = vpack.c.b16 %v2478, %v2470
        %v4503 = vpack.c.b16 %v2479, %v2471
        %v4504 = vpack.c.b16 %v2480, %v2472
        %v4505 = vpack.c.b16 %v2489, %v2481
        %v4506 = vpack.c.b16 %v2490, %v2482
        %v4507 = vpack.c.b16 %v2491, %v2483
        %v4508 = vpack.c.b16 %v2492, %v2484
        %v4509 = vpack.c.b16 %v2493, %v2485
        %v4510 = vpack.c.b16 %v2494, %v2486
        %v4511 = vpack.c.b16 %v2495, %v2487
        %v4512 = vpack.c.b16 %v2496, %v2488
        %v4513 = vpack.c.b16 %v2505, %v2497
        %v4514 = vpack.c.b16 %v2506, %v2498
        %v4515 = vpack.c.b16 %v2507, %v2499
        %v4516 = vpack.c.b16 %v2508, %v2500
        %v4517 = vpack.c.b16 %v2509, %v2501
        %v4518 = vpack.c.b16 %v2510, %v2502
        %v4519 = vpack.c.b16 %v2511, %v2503
        %v4520 = vpack.c.b16 %v2512, %v2504
        %v4521 = vpack.c.b16 %v2521, %v2513
        %v4522 = vpack.c.b16 %v2522, %v2514
        %v4523 = vpack.c.b16 %v2523, %v2515
        %v4524 = vpack.c.b16 %v2524, %v2516
        %v4525 = vpack.c.b16 %v2525, %v2517
        %v4526 = vpack.c.b16 %v2526, %v2518
        %v4527 = vpack.c.b16 %v2527, %v2519
        %v4528 = vpack.c.b16 %v2528, %v2520
        %v4529 = vpack.c.b16 %v2537, %v2529
        %v4530 = vpack.c.b16 %v2538, %v2530
        %v4531 = vpack.c.b16 %v2539, %v2531
        %v4532 = vpack.c.b16 %v2540, %v2532
        %v4533 = vpack.c.b16 %v2541, %v2533
        %v4534 = vpack.c.b16 %v2542, %v2534
        %v4535 = vpack.c.b16 %v2543, %v2535
        %v4536 = vpack.c.b16 %v2544, %v2536
        %v4537 = vpack.c.b16 %v2553, %v2545
        %v4538 = vpack.c.b16 %v2554, %v2546
        %v4539 = vpack.c.b16 %v2555, %v2547
        %v4540 = vpack.c.b16 %v2556, %v2548
        %v4541 = vpack.c.b16 %v2557, %v2549
        %v4542 = vpack.c.b16 %v2558, %v2550
        %v4543 = vpack.c.b16 %v2559, %v2551
        %v4544 = vpack.c.b16 %v2560, %v2552
        %v4545 = vpack.c.b16 %v2569, %v2561
        %v4546 = vpack.c.b16 %v2570, %v2562
        %v4547 = vpack.c.b16 %v2571, %v2563
        %v4548 = vpack.c.b16 %v2572, %v2564
        %v4549 = vpack.c.b16 %v2573, %v2565
        %v4550 = vpack.c.b16 %v2574, %v2566
        %v4551 = vpack.c.b16 %v2575, %v2567
        %v4552 = vpack.c.b16 %v2576, %v2568
        %v4553 = vpack.c.b16 %v2585, %v2577
        %v4554 = vpack.c.b16 %v2586, %v2578
        %v4555 = vpack.c.b16 %v2587, %v2579
        %v4556 = vpack.c.b16 %v2588, %v2580
        %v4557 = vpack.c.b16 %v2589, %v2581
        %v4558 = vpack.c.b16 %v2590, %v2582
        %v4559 = vpack.c.b16 %v2591, %v2583
        %v4560 = vpack.c.b16 %v2592, %v2584
        %v4561 = vpack.c.b16 %v2601, %v2593
        %v4562 = vpack.c.b16 %v2602, %v2594
        %v4563 = vpack.c.b16 %v2603, %v2595
        %v4564 = vpack.c.b16 %v2604, %v2596
        %v4565 = vpack.c.b16 %v2605, %v2597
        %v4566 = vpack.c.b16 %v2606, %v2598
        %v4567 = vpack.c.b16 %v2607, %v2599
        %v4568 = vpack.c.b16 %v2608, %v2600
        %v4569 = vpack.c.b16 %v2617, %v2609
        %v4570 = vpack.c.b16 %v2618, %v2610
        %v4571 = vpack.c.b16 %v2619, %v2611
        %v4572 = vpack.c.b16 %v2620, %v2612
        %v4573 = vpack.c.b16 %v2621, %v2613
        %v4574 = vpack.c.b16 %v2622, %v2614
        %v4575 = vpack.c.b16 %v2623, %v2615
        %v4576 = vpack.c.b16 %v2624, %v2616
        %v4577 = vpack.c.b16 %v2633, %v2625
        %v4578 = vpack.c.b16 %v2634, %v2626
        %v4579 = vpack.c.b16 %v2635, %v2627
        %v4580 = vpack.c.b16 %v2636, %v2628
        %v4581 = vpack.c.b16 %v2637, %v2629
        %v4582 = vpack.c.b16 %v2638, %v2630
        %v4583 = vpack.c.b16 %v2639, %v2631
        %v4584 = vpack.c.b16 %v2640, %v2632
        %v4585 = vpack.c.b16 %v2649, %v2641
        %v4586 = vpack.c.b16 %v2650, %v2642
        %v4587 = vpack.c.b16 %v2651, %v2643
        %v4588 = vpack.c.b16 %v2652, %v2644
        %v4589 = vpack.c.b16 %v2653, %v2645
        %v4590 = vpack.c.b16 %v2654, %v2646
        %v4591 = vpack.c.b16 %v2655, %v2647
        %v4592 = vpack.c.b16 %v2656, %v2648
        %v4593 = vpack.c.b16 %v2665, %v2657
        %v4594 = vpack.c.b16 %v2666, %v2658
        %v4595 = vpack.c.b16 %v2667, %v2659
        %v4596 = vpack.c.b16 %v2668, %v2660
        %v4597 = vpack.c.b16 %v2669, %v2661
        %v4598 = vpack.c.b16 %v2670, %v2662
        %v4599 = vpack.c.b16 %v2671, %v2663
        %v4600 = vpack.c.b16 %v2672, %v2664
        %v4601 = vpack.c.b16 %v2681, %v2673
        %v4602 = vpack.c.b16 %v2682, %v2674
        %v4603 = vpack.c.b16 %v2683, %v2675
        %v4604 = vpack.c.b16 %v2684, %v2676
        %v4605 = vpack.c.b16 %v2685, %v2677
        %v4606 = vpack.c.b16 %v2686, %v2678
        %v4607 = vpack.c.b16 %v2687, %v2679
        %v4608 = vpack.c.b16 %v2688, %v2680
        %v4609 = vpack.c.b16 %v2697, %v2689
        %v4610 = vpack.c.b16 %v2698, %v2690
        %v4611 = vpack.c.b16 %v2699, %v2691
        %v4612 = vpack.c.b16 %v2700, %v2692
        %v4613 = vpack.c.b16 %v2701, %v2693
        %v4614 = vpack.c.b16 %v2702, %v2694
        %v4615 = vpack.c.b16 %v2703, %v2695
        %v4616 = vpack.c.b16 %v2704, %v2696
        %v4617 = vpack.c.b16 %v2713, %v2705
        %v4618 = vpack.c.b16 %v2714, %v2706
        %v4619 = vpack.c.b16 %v2715, %v2707
        %v4620 = vpack.c.b16 %v2716, %v2708
        %v4621 = vpack.c.b16 %v2717, %v2709
        %v4622 = vpack.c.b16 %v2718, %v2710
        %v4623 = vpack.c.b16 %v2719, %v2711
        %v4624 = vpack.c.b16 %v2720, %v2712
        %v4625 = vpack.c.b16 %v2729, %v2721
        %v4626 = vpack.c.b16 %v2730, %v2722
        %v4627 = vpack.c.b16 %v2731, %v2723
        %v4628 = vpack.c.b16 %v2732, %v2724
        %v4629 = vpack.c.b16 %v2733, %v2725
        %v4630 = vpack.c.b16 %v2734, %v2726
        %v4631 = vpack.c.b16 %v2735, %v2727
        %v4632 = vpack.c.b16 %v2736, %v2728
        %v4633 = vpack.c.b16 %v2745, %v2737
        %v4634 = vpack.c.b16 %v2746, %v2738
        %v4635 = vpack.c.b16 %v2747, %v2739
        %v4636 = vpack.c.b16 %v2748, %v2740
        %v4637 = vpack.c.b16 %v2749, %v2741
        %v4638 = vpack.c.b16 %v2750, %v2742
        %v4639 = vpack.c.b16 %v2751, %v2743
        %v4640 = vpack.c.b16 %v2752, %v2744
        %v4641 = vpack.c.b16 %v2761, %v2753
        %v4642 = vpack.c.b16 %v2762, %v2754
        %v4643 = vpack.c.b16 %v2763, %v2755
        %v4644 = vpack.c.b16 %v2764, %v2756
        %v4645 = vpack.c.b16 %v2765, %v2757
        %v4646 = vpack.c.b16 %v2766, %v2758
        %v4647 = vpack.c.b16 %v2767, %v2759
        %v4648 = vpack.c.b16 %v2768, %v2760
        %v4649 = vpack.c.b16 %v2777, %v2769
        %v4650 = vpack.c.b16 %v2778, %v2770
        %v4651 = vpack.c.b16 %v2779, %v2771
        %v4652 = vpack.c.b16 %v2780, %v2772
        %v4653 = vpack.c.b16 %v2781, %v2773
        %v4654 = vpack.c.b16 %v2782, %v2774
        %v4655 = vpack.c.b16 %v2783, %v2775
        %v4656 = vpack.c.b16 %v2784, %v2776
        %v4657 = vpack.c.b16 %v2793, %v2785
        %v4658 = vpack.c.b16 %v2794, %v2786
        %v4659 = vpack.c.b16 %v2795, %v2787
        %v4660 = vpack.c.b16 %v2796, %v2788
        %v4661 = vpack.c.b16 %v2797, %v2789
        %v4662 = vpack.c.b16 %v2798, %v2790
        %v4663 = vpack.c.b16 %v2799, %v2791
        %v4664 = vpack.c.b16 %v2800, %v2792
        %v4665 = vpack.c.b16 %v2809, %v2801
        %v4666 = vpack.c.b16 %v2810, %v2802
        %v4667 = vpack.c.b16 %v2811, %v2803
        %v4668 = vpack.c.b16 %v2812, %v2804
        %v4669 = vpack.c.b16 %v2813, %v2805
        %v4670 = vpack.c.b16 %v2814, %v2806
        %v4671 = vpack.c.b16 %v2815, %v2807
        %v4672 = vpack.c.b16 %v2816, %v2808
        %v4673 = vpack.c.b16 %v2825, %v2817
        %v4674 = vpack.c.b16 %v2826, %v2818
        %v4675 = vpack.c.b16 %v2827, %v2819
        %v4676 = vpack.c.b16 %v2828, %v2820
        %v4677 = vpack.c.b16 %v2829, %v2821
        %v4678 = vpack.c.b16 %v2830, %v2822
        %v4679 = vpack.c.b16 %v2831, %v2823
        %v4680 = vpack.c.b16 %v2832, %v2824
        %v4681 = vpack.c.b16 %v2841, %v2833
        %v4682 = vpack.c.b16 %v2842, %v2834
        %v4683 = vpack.c.b16 %v2843, %v2835
        %v4684 = vpack.c.b16 %v2844, %v2836
        %v4685 = vpack.c.b16 %v2845, %v2837
        %v4686 = vpack.c.b16 %v2846, %v2838
        %v4687 = vpack.c.b16 %v2847, %v2839
        %v4688 = vpack.c.b16 %v2848, %v2840
        %v4689 = vpack.c.b16 %v2857, %v2849
        %v4690 = vpack.c.b16 %v2858, %v2850
        %v4691 = vpack.c.b16 %v2859, %v2851
        %v4692 = vpack.c.b16 %v2860, %v2852
        %v4693 = vpack.c.b16 %v2861, %v2853
        %v4694 = vpack.c.b16 %v2862, %v2854
        %v4695 = vpack.c.b16 %v2863, %v2855
        %v4696 = vpack.c.b16 %v2864, %v2856
        %v4697 = vpack.c.b16 %v2873, %v2865
        %v4698 = vpack.c.b16 %v2874, %v2866
        %v4699 = vpack.c.b16 %v2875, %v2867
        %v4700 = vpack.c.b16 %v2876, %v2868
        %v4701 = vpack.c.b16 %v2877, %v2869
        %v4702 = vpack.c.b16 %v2878, %v2870
        %v4703 = vpack.c.b16 %v2879, %v2871
        %v4704 = vpack.c.b16 %v2880, %v2872
        %v4705 = vpack.c.b16 %v2889, %v2881
        %v4706 = vpack.c.b16 %v2890, %v2882
        %v4707 = vpack.c.b16 %v2891, %v2883
        %v4708 = vpack.c.b16 %v2892, %v2884
        %v4709 = vpack.c.b16 %v2893, %v2885
        %v4710 = vpack.c.b16 %v2894, %v2886
        %v4711 = vpack.c.b16 %v2895, %v2887
        %v4712 = vpack.c.b16 %v2896, %v2888
        %v4713 = vpack.c.b16 %v2905, %v2897
        %v4714 = vpack.c.b16 %v2906, %v2898
        %v4715 = vpack.c.b16 %v2907, %v2899
        %v4716 = vpack.c.b16 %v2908, %v2900
        %v4717 = vpack.c.b16 %v2909, %v2901
        %v4718 = vpack.c.b16 %v2910, %v2902
        %v4719 = vpack.c.b16 %v2911, %v2903
        %v4720 = vpack.c.b16 %v2912, %v2904
        %v4721 = vpack.c.b16 %v2921, %v2913
        %v4722 = vpack.c.b16 %v2922, %v2914
        %v4723 = vpack.c.b16 %v2923, %v2915
        %v4724 = vpack.c.b16 %v2924, %v2916
        %v4725 = vpack.c.b16 %v2925, %v2917
        %v4726 = vpack.c.b16 %v2926, %v2918
        %v4727 = vpack.c.b16 %v2927, %v2919
        %v4728 = vpack.c.b16 %v2928, %v2920
        %v4729 = vpack.c.b16 %v2937, %v2929
        %v4730 = vpack.c.b16 %v2938, %v2930
        %v4731 = vpack.c.b16 %v2939, %v2931
        %v4732 = vpack.c.b16 %v2940, %v2932
        %v4733 = vpack.c.b16 %v2941, %v2933
        %v4734 = vpack.c.b16 %v2942, %v2934
        %v4735 = vpack.c.b16 %v2943, %v2935
        %v4736 = vpack.c.b16 %v2944, %v2936
        %v4737 = vpack.c.b16 %v2953, %v2945
        %v4738 = vpack.c.b16 %v2954, %v2946
        %v4739 = vpack.c.b16 %v2955, %v2947
        %v4740 = vpack.c.b16 %v2956, %v2948
        %v4741 = vpack.c.b16 %v2957, %v2949
        %v4742 = vpack.c.b16 %v2958, %v2950
        %v4743 = vpack.c.b16 %v2959, %v2951
        %v4744 = vpack.c.b16 %v2960, %v2952
        %v4745 = vpack.c.b16 %v2969, %v2961
        %v4746 = vpack.c.b16 %v2970, %v2962
        %v4747 = vpack.c.b16 %v2971, %v2963
        %v4748 = vpack.c.b16 %v2972, %v2964
        %v4749 = vpack.c.b16 %v2973, %v2965
        %v4750 = vpack.c.b16 %v2974, %v2966
        %v4751 = vpack.c.b16 %v2975, %v2967
        %v4752 = vpack.c.b16 %v2976, %v2968
        %v4753 = vpack.c.b16 %v2985, %v2977
        %v4754 = vpack.c.b16 %v2986, %v2978
        %v4755 = vpack.c.b16 %v2987, %v2979
        %v4756 = vpack.c.b16 %v2988, %v2980
        %v4757 = vpack.c.b16 %v2989, %v2981
        %v4758 = vpack.c.b16 %v2990, %v2982
        %v4759 = vpack.c.b16 %v2991, %v2983
        %v4760 = vpack.c.b16 %v2992, %v2984
        %v4761 = vpack.c.b16 %v3001, %v2993
        %v4762 = vpack.c.b16 %v3002, %v2994
        %v4763 = vpack.c.b16 %v3003, %v2995
        %v4764 = vpack.c.b16 %v3004, %v2996
        %v4765 = vpack.c.b16 %v3005, %v2997
        %v4766 = vpack.c.b16 %v3006, %v2998
        %v4767 = vpack.c.b16 %v3007, %v2999
        %v4768 = vpack.c.b16 %v3008, %v3000
        %v4769 = vpack.c.b16 %v3017, %v3009
        %v4770 = vpack.c.b16 %v3018, %v3010
        %v4771 = vpack.c.b16 %v3019, %v3011
        %v4772 = vpack.c.b16 %v3020, %v3012
        %v4773 = vpack.c.b16 %v3021, %v3013
        %v4774 = vpack.c.b16 %v3022, %v3014
        %v4775 = vpack.c.b16 %v3023, %v3015
        %v4776 = vpack.c.b16 %v3024, %v3016
        %v4777 = vpack.c.b16 %v3033, %v3025
        %v4778 = vpack.c.b16 %v3034, %v3026
        %v4779 = vpack.c.b16 %v3035, %v3027
        %v4780 = vpack.c.b16 %v3036, %v3028
        %v4781 = vpack.c.b16 %v3037, %v3029
        %v4782 = vpack.c.b16 %v3038, %v3030
        %v4783 = vpack.c.b16 %v3039, %v3031
        %v4784 = vpack.c.b16 %v3040, %v3032
        %v4785 = vpack.c.b16 %v3049, %v3041
        %v4786 = vpack.c.b16 %v3050, %v3042
        %v4787 = vpack.c.b16 %v3051, %v3043
        %v4788 = vpack.c.b16 %v3052, %v3044
        %v4789 = vpack.c.b16 %v3053, %v3045
        %v4790 = vpack.c.b16 %v3054, %v3046
        %v4791 = vpack.c.b16 %v3055, %v3047
        %v4792 = vpack.c.b16 %v3056, %v3048
        %v4793 = vpack.c.b16 %v3065, %v3057
        %v4794 = vpack.c.b16 %v3066, %v3058
        %v4795 = vpack.c.b16 %v3067, %v3059
        %v4796 = vpack.c.b16 %v3068, %v3060
        %v4797 = vpack.c.b16 %v3069, %v3061
        %v4798 = vpack.c.b16 %v3070, %v3062
        %v4799 = vpack.c.b16 %v3071, %v3063
        %v4800 = vpack.c.b16 %v3072, %v3064
        %v4801 = vpack.c.b16 %v3081, %v3073
        %v4802 = vpack.c.b16 %v3082, %v3074
        %v4803 = vpack.c.b16 %v3083, %v3075
        %v4804 = vpack.c.b16 %v3084, %v3076
        %v4805 = vpack.c.b16 %v3085, %v3077
        %v4806 = vpack.c.b16 %v3086, %v3078
        %v4807 = vpack.c.b16 %v3087, %v3079
        %v4808 = vpack.c.b16 %v3088, %v3080
        %v4809 = vpack.c.b16 %v3097, %v3089
        %v4810 = vpack.c.b16 %v3098, %v3090
        %v4811 = vpack.c.b16 %v3099, %v3091
        %v4812 = vpack.c.b16 %v3100, %v3092
        %v4813 = vpack.c.b16 %v3101, %v3093
        %v4814 = vpack.c.b16 %v3102, %v3094
        %v4815 = vpack.c.b16 %v3103, %v3095
        %v4816 = vpack.c.b16 %v3104, %v3096
        %v4817 = vpack.c.b16 %v3113, %v3105
        %v4818 = vpack.c.b16 %v3114, %v3106
        %v4819 = vpack.c.b16 %v3115, %v3107
        %v4820 = vpack.c.b16 %v3116, %v3108
        %v4821 = vpack.c.b16 %v3117, %v3109
        %v4822 = vpack.c.b16 %v3118, %v3110
        %v4823 = vpack.c.b16 %v3119, %v3111
        %v4824 = vpack.c.b16 %v3120, %v3112
        %v4825 = vpack.c.b16 %v3129, %v3121
        %v4826 = vpack.c.b16 %v3130, %v3122
        %v4827 = vpack.c.b16 %v3131, %v3123
        %v4828 = vpack.c.b16 %v3132, %v3124
        %v4829 = vpack.c.b16 %v3133, %v3125
        %v4830 = vpack.c.b16 %v3134, %v3126
        %v4831 = vpack.c.b16 %v3135, %v3127
        %v4832 = vpack.c.b16 %v3136, %v3128
        %v4833 = vpack.c.b16 %v3145, %v3137
        %v4834 = vpack.c.b16 %v3146, %v3138
        %v4835 = vpack.c.b16 %v3147, %v3139
        %v4836 = vpack.c.b16 %v3148, %v3140
        %v4837 = vpack.c.b16 %v3149, %v3141
        %v4838 = vpack.c.b16 %v3150, %v3142
        %v4839 = vpack.c.b16 %v3151, %v3143
        %v4840 = vpack.c.b16 %v3152, %v3144
        %v4841 = vpack.c.b16 %v3161, %v3153
        %v4842 = vpack.c.b16 %v3162, %v3154
        %v4843 = vpack.c.b16 %v3163, %v3155
        %v4844 = vpack.c.b16 %v3164, %v3156
        %v4845 = vpack.c.b16 %v3165, %v3157
        %v4846 = vpack.c.b16 %v3166, %v3158
        %v4847 = vpack.c.b16 %v3167, %v3159
        %v4848 = vpack.c.b16 %v3168, %v3160
        %v4849 = vpack.c.b16 %v3177, %v3169
        %v4850 = vpack.c.b16 %v3178, %v3170
        %v4851 = vpack.c.b16 %v3179, %v3171
        %v4852 = vpack.c.b16 %v3180, %v3172
        %v4853 = vpack.c.b16 %v3181, %v3173
        %v4854 = vpack.c.b16 %v3182, %v3174
        %v4855 = vpack.c.b16 %v3183, %v3175
        %v4856 = vpack.c.b16 %v3184, %v3176
        %v4857 = vpack.c.b16 %v3193, %v3185
        %v4858 = vpack.c.b16 %v3194, %v3186
        %v4859 = vpack.c.b16 %v3195, %v3187
        %v4860 = vpack.c.b16 %v3196, %v3188
        %v4861 = vpack.c.b16 %v3197, %v3189
        %v4862 = vpack.c.b16 %v3198, %v3190
        %v4863 = vpack.c.b16 %v3199, %v3191
        %v4864 = vpack.c.b16 %v3200, %v3192
        %v4865 = vpack.c.b16 %v3209, %v3201
        %v4866 = vpack.c.b16 %v3210, %v3202
        %v4867 = vpack.c.b16 %v3211, %v3203
        %v4868 = vpack.c.b16 %v3212, %v3204
        %v4869 = vpack.c.b16 %v3213, %v3205
        %v4870 = vpack.c.b16 %v3214, %v3206
        %v4871 = vpack.c.b16 %v3215, %v3207
        %v4872 = vpack.c.b16 %v3216, %v3208
        %v4873 = vpack.c.b16 %v3225, %v3217
        %v4874 = vpack.c.b16 %v3226, %v3218
        %v4875 = vpack.c.b16 %v3227, %v3219
        %v4876 = vpack.c.b16 %v3228, %v3220
        %v4877 = vpack.c.b16 %v3229, %v3221
        %v4878 = vpack.c.b16 %v3230, %v3222
        %v4879 = vpack.c.b16 %v3231, %v3223
        %v4880 = vpack.c.b16 %v3232, %v3224
        %v4881 = vpack.c.b16 %v3241, %v3233
        %v4882 = vpack.c.b16 %v3242, %v3234
        %v4883 = vpack.c.b16 %v3243, %v3235
        %v4884 = vpack.c.b16 %v3244, %v3236
        %v4885 = vpack.c.b16 %v3245, %v3237
        %v4886 = vpack.c.b16 %v3246, %v3238
        %v4887 = vpack.c.b16 %v3247, %v3239
        %v4888 = vpack.c.b16 %v3248, %v3240
        %v4889 = vpack.c.b16 %v3257, %v3249
        %v4890 = vpack.c.b16 %v3258, %v3250
        %v4891 = vpack.c.b16 %v3259, %v3251
        %v4892 = vpack.c.b16 %v3260, %v3252
        %v4893 = vpack.c.b16 %v3261, %v3253
        %v4894 = vpack.c.b16 %v3262, %v3254
        %v4895 = vpack.c.b16 %v3263, %v3255
        %v4896 = vpack.c.b16 %v3264, %v3256
        %v4897 = vpack.c.b16 %v3273, %v3265
        %v4898 = vpack.c.b16 %v3274, %v3266
        %v4899 = vpack.c.b16 %v3275, %v3267
        %v4900 = vpack.c.b16 %v3276, %v3268
        %v4901 = vpack.c.b16 %v3277, %v3269
        %v4902 = vpack.c.b16 %v3278, %v3270
        %v4903 = vpack.c.b16 %v3279, %v3271
        %v4904 = vpack.c.b16 %v3280, %v3272
        %v4905 = vpack.c.b16 %v3289, %v3281
        %v4906 = vpack.c.b16 %v3290, %v3282
        %v4907 = vpack.c.b16 %v3291, %v3283
        %v4908 = vpack.c.b16 %v3292, %v3284
        %v4909 = vpack.c.b16 %v3293, %v3285
        %v4910 = vpack.c.b16 %v3294, %v3286
        %v4911 = vpack.c.b16 %v3295, %v3287
        %v4912 = vpack.c.b16 %v3296, %v3288
        %v4913 = vpack.c.b16 %v3305, %v3297
        %v4914 = vpack.c.b16 %v3306, %v3298
        %v4915 = vpack.c.b16 %v3307, %v3299
        %v4916 = vpack.c.b16 %v3308, %v3300
        %v4917 = vpack.c.b16 %v3309, %v3301
        %v4918 = vpack.c.b16 %v3310, %v3302
        %v4919 = vpack.c.b16 %v3311, %v3303
        %v4920 = vpack.c.b16 %v3312, %v3304
        %v4921 = vpack.c.b16 %v3321, %v3313
        %v4922 = vpack.c.b16 %v3322, %v3314
        %v4923 = vpack.c.b16 %v3323, %v3315
        %v4924 = vpack.c.b16 %v3324, %v3316
        %v4925 = vpack.c.b16 %v3325, %v3317
        %v4926 = vpack.c.b16 %v3326, %v3318
        %v4927 = vpack.c.b16 %v3327, %v3319
        %v4928 = vpack.c.b16 %v3328, %v3320
        %v4929 = vpack.c.b16 %v3337, %v3329
        %v4930 = vpack.c.b16 %v3338, %v3330
        %v4931 = vpack.c.b16 %v3339, %v3331
        %v4932 = vpack.c.b16 %v3340, %v3332
        %v4933 = vpack.c.b16 %v3341, %v3333
        %v4934 = vpack.c.b16 %v3342, %v3334
        %v4935 = vpack.c.b16 %v3343, %v3335
        %v4936 = vpack.c.b16 %v3344, %v3336
        %v4937 = vpack.c.b16 %v3353, %v3345
        %v4938 = vpack.c.b16 %v3354, %v3346
        %v4939 = vpack.c.b16 %v3355, %v3347
        %v4940 = vpack.c.b16 %v3356, %v3348
        %v4941 = vpack.c.b16 %v3357, %v3349
        %v4942 = vpack.c.b16 %v3358, %v3350
        %v4943 = vpack.c.b16 %v3359, %v3351
        %v4944 = vpack.c.b16 %v3360, %v3352
        %v4945 = vpack.c.b16 %v3369, %v3361
        %v4946 = vpack.c.b16 %v3370, %v3362
        %v4947 = vpack.c.b16 %v3371, %v3363
        %v4948 = vpack.c.b16 %v3372, %v3364
        %v4949 = vpack.c.b16 %v3373, %v3365
        %v4950 = vpack.c.b16 %v3374, %v3366
        %v4951 = vpack.c.b16 %v3375, %v3367
        %v4952 = vpack.c.b16 %v3376, %v3368
        %v4953 = vpack.c.b16 %v3385, %v3377
        %v4954 = vpack.c.b16 %v3386, %v3378
        %v4955 = vpack.c.b16 %v3387, %v3379
        %v4956 = vpack.c.b16 %v3388, %v3380
        %v4957 = vpack.c.b16 %v3389, %v3381
        %v4958 = vpack.c.b16 %v3390, %v3382
        %v4959 = vpack.c.b16 %v3391, %v3383
        %v4960 = vpack.c.b16 %v3392, %v3384
        %v4961 = vpack.c.b16 %v3401, %v3393
        %v4962 = vpack.c.b16 %v3402, %v3394
        %v4963 = vpack.c.b16 %v3403, %v3395
        %v4964 = vpack.c.b16 %v3404, %v3396
        %v4965 = vpack.c.b16 %v3405, %v3397
        %v4966 = vpack.c.b16 %v3406, %v3398
        %v4967 = vpack.c.b16 %v3407, %v3399
        %v4968 = vpack.c.b16 %v3408, %v3400
        %v4969 = vpack.c.b16 %v3417, %v3409
        %v4970 = vpack.c.b16 %v3418, %v3410
        %v4971 = vpack.c.b16 %v3419, %v3411
        %v4972 = vpack.c.b16 %v3420, %v3412
        %v4973 = vpack.c.b16 %v3421, %v3413
        %v4974 = vpack.c.b16 %v3422, %v3414
        %v4975 = vpack.c.b16 %v3423, %v3415
        %v4976 = vpack.c.b16 %v3424, %v3416
        %v4977 = vpack.c.b16 %v3433, %v3425
        %v4978 = vpack.c.b16 %v3434, %v3426
        %v4979 = vpack.c.b16 %v3435, %v3427
        %v4980 = vpack.c.b16 %v3436, %v3428
        %v4981 = vpack.c.b16 %v3437, %v3429
        %v4982 = vpack.c.b16 %v3438, %v3430
        %v4983 = vpack.c.b16 %v3439, %v3431
        %v4984 = vpack.c.b16 %v3440, %v3432
        %v4985 = vpack.c.b16 %v3449, %v3441
        %v4986 = vpack.c.b16 %v3450, %v3442
        %v4987 = vpack.c.b16 %v3451, %v3443
        %v4988 = vpack.c.b16 %v3452, %v3444
        %v4989 = vpack.c.b16 %v3453, %v3445
        %v4990 = vpack.c.b16 %v3454, %v3446
        %v4991 = vpack.c.b16 %v3455, %v3447
        %v4992 = vpack.c.b16 %v3456, %v3448
        %v4993 = vpack.c.b16 %v3465, %v3457
        %v4994 = vpack.c.b16 %v3466, %v3458
        %v4995 = vpack.c.b16 %v3467, %v3459
        %v4996 = vpack.c.b16 %v3468, %v3460
        %v4997 = vpack.c.b16 %v3469, %v3461
        %v4998 = vpack.c.b16 %v3470, %v3462
        %v4999 = vpack.c.b16 %v3471, %v3463
        %v5000 = vpack.c.b16 %v3472, %v3464
        %v5001 = vpack.c.b16 %v3481, %v3473
        %v5002 = vpack.c.b16 %v3482, %v3474
        %v5003 = vpack.c.b16 %v3483, %v3475
        %v5004 = vpack.c.b16 %v3484, %v3476
        %v5005 = vpack.c.b16 %v3485, %v3477
        %v5006 = vpack.c.b16 %v3486, %v3478
        %v5007 = vpack.c.b16 %v3487, %v3479
        %v5008 = vpack.c.b16 %v3488, %v3480
        %v5009 = vpack.c.b16 %v3497, %v3489
        %v5010 = vpack.c.b16 %v3498, %v3490
        %v5011 = vpack.c.b16 %v3499, %v3491
        %v5012 = vpack.c.b16 %v3500, %v3492
        %v5013 = vpack.c.b16 %v3501, %v3493
        %v5014 = vpack.c.b16 %v3502, %v3494
        %v5015 = vpack.c.b16 %v3503, %v3495
        %v5016 = vpack.c.b16 %v3504, %v3496
        %v5017 = vpack.c.b16 %v3513, %v3505
        %v5018 = vpack.c.b16 %v3514, %v3506
        %v5019 = vpack.c.b16 %v3515, %v3507
        %v5020 = vpack.c.b16 %v3516, %v3508
        %v5021 = vpack.c.b16 %v3517, %v3509
        %v5022 = vpack.c.b16 %v3518, %v3510
        %v5023 = vpack.c.b16 %v3519, %v3511
        %v5024 = vpack.c.b16 %v3520, %v3512
        %v5025 = vpack.c.b16 %v3529, %v3521
        %v5026 = vpack.c.b16 %v3530, %v3522
        %v5027 = vpack.c.b16 %v3531, %v3523
        %v5028 = vpack.c.b16 %v3532, %v3524
        %v5029 = vpack.c.b16 %v3533, %v3525
        %v5030 = vpack.c.b16 %v3534, %v3526
        %v5031 = vpack.c.b16 %v3535, %v3527
        %v5032 = vpack.c.b16 %v3536, %v3528
        %v5033 = vpack.c.b16 %v3545, %v3537
        %v5034 = vpack.c.b16 %v3546, %v3538
        %v5035 = vpack.c.b16 %v3547, %v3539
        %v5036 = vpack.c.b16 %v3548, %v3540
        %v5037 = vpack.c.b16 %v3549, %v3541
        %v5038 = vpack.c.b16 %v3550, %v3542
        %v5039 = vpack.c.b16 %v3551, %v3543
        %v5040 = vpack.c.b16 %v3552, %v3544
        %v5041 = vpack.c.b16 %v3561, %v3553
        %v5042 = vpack.c.b16 %v3562, %v3554
        %v5043 = vpack.c.b16 %v3563, %v3555
        %v5044 = vpack.c.b16 %v3564, %v3556
        %v5045 = vpack.c.b16 %v3565, %v3557
        %v5046 = vpack.c.b16 %v3566, %v3558
        %v5047 = vpack.c.b16 %v3567, %v3559
        %v5048 = vpack.c.b16 %v3568, %v3560
        %v5049 = vpack.c.b16 %v3577, %v3569
        %v5050 = vpack.c.b16 %v3578, %v3570
        %v5051 = vpack.c.b16 %v3579, %v3571
        %v5052 = vpack.c.b16 %v3580, %v3572
        %v5053 = vpack.c.b16 %v3581, %v3573
        %v5054 = vpack.c.b16 %v3582, %v3574
        %v5055 = vpack.c.b16 %v3583, %v3575
        %v5056 = vpack.c.b16 %v3584, %v3576
        %v5057 = vpack.c.b16 %v3593, %v3585
        %v5058 = vpack.c.b16 %v3594, %v3586
        %v5059 = vpack.c.b16 %v3595, %v3587
        %v5060 = vpack.c.b16 %v3596, %v3588
        %v5061 = vpack.c.b16 %v3597, %v3589
        %v5062 = vpack.c.b16 %v3598, %v3590
        %v5063 = vpack.c.b16 %v3599, %v3591
        %v5064 = vpack.c.b16 %v3600, %v3592
        %v5065 = vpack.c.b16 %v3609, %v3601
        %v5066 = vpack.c.b16 %v3610, %v3602
        %v5067 = vpack.c.b16 %v3611, %v3603
        %v5068 = vpack.c.b16 %v3612, %v3604
        %v5069 = vpack.c.b16 %v3613, %v3605
        %v5070 = vpack.c.b16 %v3614, %v3606
        %v5071 = vpack.c.b16 %v3615, %v3607
        %v5072 = vpack.c.b16 %v3616, %v3608
        %v5073 = vpack.c.b16 %v3625, %v3617
        %v5074 = vpack.c.b16 %v3626, %v3618
        %v5075 = vpack.c.b16 %v3627, %v3619
        %v5076 = vpack.c.b16 %v3628, %v3620
        %v5077 = vpack.c.b16 %v3629, %v3621
        %v5078 = vpack.c.b16 %v3630, %v3622
        %v5079 = vpack.c.b16 %v3631, %v3623
        %v5080 = vpack.c.b16 %v3632, %v3624
        %v5081 = vpack.c.b16 %v3641, %v3633
        %v5082 = vpack.c.b16 %v3642, %v3634
        %v5083 = vpack.c.b16 %v3643, %v3635
        %v5084 = vpack.c.b16 %v3644, %v3636
        %v5085 = vpack.c.b16 %v3645, %v3637
        %v5086 = vpack.c.b16 %v3646, %v3638
        %v5087 = vpack.c.b16 %v3647, %v3639
        %v5088 = vpack.c.b16 %v3648, %v3640
        %v5089 = vpack.c.b16 %v3657, %v3649
        %v5090 = vpack.c.b16 %v3658, %v3650
        %v5091 = vpack.c.b16 %v3659, %v3651
        %v5092 = vpack.c.b16 %v3660, %v3652
        %v5093 = vpack.c.b16 %v3661, %v3653
        %v5094 = vpack.c.b16 %v3662, %v3654
        %v5095 = vpack.c.b16 %v3663, %v3655
        %v5096 = vpack.c.b16 %v3664, %v3656
        %v5097 = vpack.c.b16 %v3673, %v3665
        %v5098 = vpack.c.b16 %v3674, %v3666
        %v5099 = vpack.c.b16 %v3675, %v3667
        %v5100 = vpack.c.b16 %v3676, %v3668
        %v5101 = vpack.c.b16 %v3677, %v3669
        %v5102 = vpack.c.b16 %v3678, %v3670
        %v5103 = vpack.c.b16 %v3679, %v3671
        %v5104 = vpack.c.b16 %v3680, %v3672
        %v5105 = vpack.c.b16 %v3689, %v3681
        %v5106 = vpack.c.b16 %v3690, %v3682
        %v5107 = vpack.c.b16 %v3691, %v3683
        %v5108 = vpack.c.b16 %v3692, %v3684
        %v5109 = vpack.c.b16 %v3693, %v3685
        %v5110 = vpack.c.b16 %v3694, %v3686
        %v5111 = vpack.c.b16 %v3695, %v3687
        %v5112 = vpack.c.b16 %v3696, %v3688
        %v5113 = vpack.c.b16 %v3705, %v3697
        %v5114 = vpack.c.b16 %v3706, %v3698
        %v5115 = vpack.c.b16 %v3707, %v3699
        %v5116 = vpack.c.b16 %v3708, %v3700
        %v5117 = vpack.c.b16 %v3709, %v3701
        %v5118 = vpack.c.b16 %v3710, %v3702
        %v5119 = vpack.c.b16 %v3711, %v3703
        %v5120 = vpack.c.b16 %v3712, %v3704
        %v5121 = vpack.c.b16 %v3721, %v3713
        %v5122 = vpack.c.b16 %v3722, %v3714
        %v5123 = vpack.c.b16 %v3723, %v3715
        %v5124 = vpack.c.b16 %v3724, %v3716
        %v5125 = vpack.c.b16 %v3725, %v3717
        %v5126 = vpack.c.b16 %v3726, %v3718
        %v5127 = vpack.c.b16 %v3727, %v3719
        %v5128 = vpack.c.b16 %v3728, %v3720
        %v5129 = vpack.c.b16 %v3737, %v3729
        %v5130 = vpack.c.b16 %v3738, %v3730
        %v5131 = vpack.c.b16 %v3739, %v3731
        %v5132 = vpack.c.b16 %v3740, %v3732
        %v5133 = vpack.c.b16 %v3741, %v3733
        %v5134 = vpack.c.b16 %v3742, %v3734
        %v5135 = vpack.c.b16 %v3743, %v3735
        %v5136 = vpack.c.b16 %v3744, %v3736
        %v5137 = vpack.c.b16 %v3753, %v3745
        %v5138 = vpack.c.b16 %v3754, %v3746
        %v5139 = vpack.c.b16 %v3755, %v3747
        %v5140 = vpack.c.b16 %v3756, %v3748
        %v5141 = vpack.c.b16 %v3757, %v3749
        %v5142 = vpack.c.b16 %v3758, %v3750
        %v5143 = vpack.c.b16 %v3759, %v3751
        %v5144 = vpack.c.b16 %v3760, %v3752
        %v5145 = vpack.c.b16 %v3769, %v3761
        %v5146 = vpack.c.b16 %v3770, %v3762
        %v5147 = vpack.c.b16 %v3771, %v3763
        %v5148 = vpack.c.b16 %v3772, %v3764
        %v5149 = vpack.c.b16 %v3773, %v3765
        %v5150 = vpack.c.b16 %v3774, %v3766
        %v5151 = vpack.c.b16 %v3775, %v3767
        %v5152 = vpack.c.b16 %v3776, %v3768
        %v5153 = vpack.c.b16 %v3785, %v3777
        %v5154 = vpack.c.b16 %v3786, %v3778
        %v5155 = vpack.c.b16 %v3787, %v3779
        %v5156 = vpack.c.b16 %v3788, %v3780
        %v5157 = vpack.c.b16 %v3789, %v3781
        %v5158 = vpack.c.b16 %v3790, %v3782
        %v5159 = vpack.c.b16 %v3791, %v3783
        %v5160 = vpack.c.b16 %v3792, %v3784
        %v5161 = vpack.c.b16 %v3801, %v3793
        %v5162 = vpack.c.b16 %v3802, %v3794
        %v5163 = vpack.c.b16 %v3803, %v3795
        %v5164 = vpack.c.b16 %v3804, %v3796
        %v5165 = vpack.c.b16 %v3805, %v3797
        %v5166 = vpack.c.b16 %v3806, %v3798
        %v5167 = vpack.c.b16 %v3807, %v3799
        %v5168 = vpack.c.b16 %v3808, %v3800
        %v5169 = vpack.c.b16 %v3817, %v3809
        %v5170 = vpack.c.b16 %v3818, %v3810
        %v5171 = vpack.c.b16 %v3819, %v3811
        %v5172 = vpack.c.b16 %v3820, %v3812
        %v5173 = vpack.c.b16 %v3821, %v3813
        %v5174 = vpack.c.b16 %v3822, %v3814
        %v5175 = vpack.c.b16 %v3823, %v3815
        %v5176 = vpack.c.b16 %v3824, %v3816
        %v5177 = vpack.c.b16 %v3833, %v3825
        %v5178 = vpack.c.b16 %v3834, %v3826
        %v5179 = vpack.c.b16 %v3835, %v3827
        %v5180 = vpack.c.b16 %v3836, %v3828
        %v5181 = vpack.c.b16 %v3837, %v3829
        %v5182 = vpack.c.b16 %v3838, %v3830
        %v5183 = vpack.c.b16 %v3839, %v3831
        %v5184 = vpack.c.b16 %v3840, %v3832
        %v5185 = vpack.c.b16 %v3849, %v3841
        %v5186 = vpack.c.b16 %v3850, %v3842
        %v5187 = vpack.c.b16 %v3851, %v3843
        %v5188 = vpack.c.b16 %v3852, %v3844
        %v5189 = vpack.c.b16 %v3853, %v3845
        %v5190 = vpack.c.b16 %v3854, %v3846
        %v5191 = vpack.c.b16 %v3855, %v3847
        %v5192 = vpack.c.b16 %v3856, %v3848
        %v5193 = vpack.c.b16 %v3865, %v3857
        %v5194 = vpack.c.b16 %v3866, %v3858
        %v5195 = vpack.c.b16 %v3867, %v3859
        %v5196 = vpack.c.b16 %v3868, %v3860
        %v5197 = vpack.c.b16 %v3869, %v3861
        %v5198 = vpack.c.b16 %v3870, %v3862
        %v5199 = vpack.c.b16 %v3871, %v3863
        %v5200 = vpack.c.b16 %v3872, %v3864
        %v5201 = vpack.c.b16 %v3881, %v3873
        %v5202 = vpack.c.b16 %v3882, %v3874
        %v5203 = vpack.c.b16 %v3883, %v3875
        %v5204 = vpack.c.b16 %v3884, %v3876
        %v5205 = vpack.c.b16 %v3885, %v3877
        %v5206 = vpack.c.b16 %v3886, %v3878
        %v5207 = vpack.c.b16 %v3887, %v3879
        %v5208 = vpack.c.b16 %v3888, %v3880
        %v5209 = vpack.c.b16 %v3897, %v3889
        %v5210 = vpack.c.b16 %v3898, %v3890
        %v5211 = vpack.c.b16 %v3899, %v3891
        %v5212 = vpack.c.b16 %v3900, %v3892
        %v5213 = vpack.c.b16 %v3901, %v3893
        %v5214 = vpack.c.b16 %v3902, %v3894
        %v5215 = vpack.c.b16 %v3903, %v3895
        %v5216 = vpack.c.b16 %v3904, %v3896
        %v5217 = vpack.c.b16 %v3913, %v3905
        %v5218 = vpack.c.b16 %v3914, %v3906
        %v5219 = vpack.c.b16 %v3915, %v3907
        %v5220 = vpack.c.b16 %v3916, %v3908
        %v5221 = vpack.c.b16 %v3917, %v3909
        %v5222 = vpack.c.b16 %v3918, %v3910
        %v5223 = vpack.c.b16 %v3919, %v3911
        %v5224 = vpack.c.b16 %v3920, %v3912
        %v5225 = vpack.c.b16 %v3929, %v3921
        %v5226 = vpack.c.b16 %v3930, %v3922
        %v5227 = vpack.c.b16 %v3931, %v3923
        %v5228 = vpack.c.b16 %v3932, %v3924
        %v5229 = vpack.c.b16 %v3933, %v3925
        %v5230 = vpack.c.b16 %v3934, %v3926
        %v5231 = vpack.c.b16 %v3935, %v3927
        %v5232 = vpack.c.b16 %v3936, %v3928
        %v5233 = vpack.c.b16 %v3945, %v3937
        %v5234 = vpack.c.b16 %v3946, %v3938
        %v5235 = vpack.c.b16 %v3947, %v3939
        %v5236 = vpack.c.b16 %v3948, %v3940
        %v5237 = vpack.c.b16 %v3949, %v3941
        %v5238 = vpack.c.b16 %v3950, %v3942
        %v5239 = vpack.c.b16 %v3951, %v3943
        %v5240 = vpack.c.b16 %v3952, %v3944
        %v5241 = vpack.c.b16 %v3961, %v3953
        %v5242 = vpack.c.b16 %v3962, %v3954
        %v5243 = vpack.c.b16 %v3963, %v3955
        %v5244 = vpack.c.b16 %v3964, %v3956
        %v5245 = vpack.c.b16 %v3965, %v3957
        %v5246 = vpack.c.b16 %v3966, %v3958
        %v5247 = vpack.c.b16 %v3967, %v3959
        %v5248 = vpack.c.b16 %v3968, %v3960
        %v5249 = vpack.c.b16 %v3977, %v3969
        %v5250 = vpack.c.b16 %v3978, %v3970
        %v5251 = vpack.c.b16 %v3979, %v3971
        %v5252 = vpack.c.b16 %v3980, %v3972
        %v5253 = vpack.c.b16 %v3981, %v3973
        %v5254 = vpack.c.b16 %v3982, %v3974
        %v5255 = vpack.c.b16 %v3983, %v3975
        %v5256 = vpack.c.b16 %v3984, %v3976
        %v5257 = vpack.c.b16 %v3993, %v3985
        %v5258 = vpack.c.b16 %v3994, %v3986
        %v5259 = vpack.c.b16 %v3995, %v3987
        %v5260 = vpack.c.b16 %v3996, %v3988
        %v5261 = vpack.c.b16 %v3997, %v3989
        %v5262 = vpack.c.b16 %v3998, %v3990
        %v5263 = vpack.c.b16 %v3999, %v3991
        %v5264 = vpack.c.b16 %v4000, %v3992
        %v5265 = vpack.c.b16 %v4009, %v4001
        %v5266 = vpack.c.b16 %v4010, %v4002
        %v5267 = vpack.c.b16 %v4011, %v4003
        %v5268 = vpack.c.b16 %v4012, %v4004
        %v5269 = vpack.c.b16 %v4013, %v4005
        %v5270 = vpack.c.b16 %v4014, %v4006
        %v5271 = vpack.c.b16 %v4015, %v4007
        %v5272 = vpack.c.b16 %v4016, %v4008
        %v5273 = vpack.c.b16 %v4025, %v4017
        %v5274 = vpack.c.b16 %v4026, %v4018
        %v5275 = vpack.c.b16 %v4027, %v4019
        %v5276 = vpack.c.b16 %v4028, %v4020
        %v5277 = vpack.c.b16 %v4029, %v4021
        %v5278 = vpack.c.b16 %v4030, %v4022
        %v5279 = vpack.c.b16 %v4031, %v4023
        %v5280 = vpack.c.b16 %v4032, %v4024
        %v5281 = vpack.c.b16 %v4041, %v4033
        %v5282 = vpack.c.b16 %v4042, %v4034
        %v5283 = vpack.c.b16 %v4043, %v4035
        %v5284 = vpack.c.b16 %v4044, %v4036
        %v5285 = vpack.c.b16 %v4045, %v4037
        %v5286 = vpack.c.b16 %v4046, %v4038
        %v5287 = vpack.c.b16 %v4047, %v4039
        %v5288 = vpack.c.b16 %v4048, %v4040
        %v5289 = vpack.c.b16 %v4057, %v4049
        %v5290 = vpack.c.b16 %v4058, %v4050
        %v5291 = vpack.c.b16 %v4059, %v4051
        %v5292 = vpack.c.b16 %v4060, %v4052
        %v5293 = vpack.c.b16 %v4061, %v4053
        %v5294 = vpack.c.b16 %v4062, %v4054
        %v5295 = vpack.c.b16 %v4063, %v4055
        %v5296 = vpack.c.b16 %v4064, %v4056
        %v5297 = vpack.c.b16 %v4073, %v4065
        %v5298 = vpack.c.b16 %v4074, %v4066
        %v5299 = vpack.c.b16 %v4075, %v4067
        %v5300 = vpack.c.b16 %v4076, %v4068
        %v5301 = vpack.c.b16 %v4077, %v4069
        %v5302 = vpack.c.b16 %v4078, %v4070
        %v5303 = vpack.c.b16 %v4079, %v4071
        %v5304 = vpack.c.b16 %v4080, %v4072
        %v5305 = vpack.c.b16 %v4089, %v4081
        %v5306 = vpack.c.b16 %v4090, %v4082
        %v5307 = vpack.c.b16 %v4091, %v4083
        %v5308 = vpack.c.b16 %v4092, %v4084
        %v5309 = vpack.c.b16 %v4093, %v4085
        %v5310 = vpack.c.b16 %v4094, %v4086
        %v5311 = vpack.c.b16 %v4095, %v4087
        %v5312 = vpack.c.b16 %v4096, %v4088
        %v5313 = vpack.c.b16 %v4105, %v4097
        %v5314 = vpack.c.b16 %v4106, %v4098
        %v5315 = vpack.c.b16 %v4107, %v4099
        %v5316 = vpack.c.b16 %v4108, %v4100
        %v5317 = vpack.c.b16 %v4109, %v4101
        %v5318 = vpack.c.b16 %v4110, %v4102
        %v5319 = vpack.c.b16 %v4111, %v4103
        %v5320 = vpack.c.b16 %v4112, %v4104
        %v5321 = vpack.c.b16 %v4121, %v4113
        %v5322 = vpack.c.b16 %v4122, %v4114
        %v5323 = vpack.c.b16 %v4123, %v4115
        %v5324 = vpack.c.b16 %v4124, %v4116
        %v5325 = vpack.c.b16 %v4125, %v4117
        %v5326 = vpack.c.b16 %v4126, %v4118
        %v5327 = vpack.c.b16 %v4127, %v4119
        %v5328 = vpack.c.b16 %v4128, %v4120
        %v5329 = vpack.c.b16 %v4137, %v4129
        %v5330 = vpack.c.b16 %v4138, %v4130
        %v5331 = vpack.c.b16 %v4139, %v4131
        %v5332 = vpack.c.b16 %v4140, %v4132
        %v5333 = vpack.c.b16 %v4141, %v4133
        %v5334 = vpack.c.b16 %v4142, %v4134
        %v5335 = vpack.c.b16 %v4143, %v4135
        %v5336 = vpack.c.b16 %v4144, %v4136
        %v5337 = vpack.c.b16 %v4153, %v4145
        %v5338 = vpack.c.b16 %v4154, %v4146
        %v5339 = vpack.c.b16 %v4155, %v4147
        %v5340 = vpack.c.b16 %v4156, %v4148
        %v5341 = vpack.c.b16 %v4157, %v4149
        %v5342 = vpack.c.b16 %v4158, %v4150
        %v5343 = vpack.c.b16 %v4159, %v4151
        %v5344 = vpack.c.b16 %v4160, %v4152
        %v5345 = vpack.c.b16 %v4169, %v4161
        %v5346 = vpack.c.b16 %v4170, %v4162
        %v5347 = vpack.c.b16 %v4171, %v4163
        %v5348 = vpack.c.b16 %v4172, %v4164
        %v5349 = vpack.c.b16 %v4173, %v4165
        %v5350 = vpack.c.b16 %v4174, %v4166
        %v5351 = vpack.c.b16 %v4175, %v4167
        %v5352 = vpack.c.b16 %v4176, %v4168
        %v5353 = vpack.c.b16 %v4185, %v4177
        %v5354 = vpack.c.b16 %v4186, %v4178
        %v5355 = vpack.c.b16 %v4187, %v4179
        %v5356 = vpack.c.b16 %v4188, %v4180
        %v5357 = vpack.c.b16 %v4189, %v4181
        %v5358 = vpack.c.b16 %v4190, %v4182
        %v5359 = vpack.c.b16 %v4191, %v4183
        %v5360 = vpack.c.b16 %v4192, %v4184
        %v5361 = vpack.c.b16 %v4201, %v4193
        %v5362 = vpack.c.b16 %v4202, %v4194
        %v5363 = vpack.c.b16 %v4203, %v4195
        %v5364 = vpack.c.b16 %v4204, %v4196
        %v5365 = vpack.c.b16 %v4205, %v4197
        %v5366 = vpack.c.b16 %v4206, %v4198
        %v5367 = vpack.c.b16 %v4207, %v4199
        %v5368 = vpack.c.b16 %v4208, %v4200
        %v5369 = vpack.c.b16 %v4217, %v4209
        %v5370 = vpack.c.b16 %v4218, %v4210
        %v5371 = vpack.c.b16 %v4219, %v4211
        %v5372 = vpack.c.b16 %v4220, %v4212
        %v5373 = vpack.c.b16 %v4221, %v4213
        %v5374 = vpack.c.b16 %v4222, %v4214
        %v5375 = vpack.c.b16 %v4223, %v4215
        %v5376 = vpack.c.b16 %v4224, %v4216
        %v5377 = vpack.c.b16 %v4233, %v4225
        %v5378 = vpack.c.b16 %v4234, %v4226
        %v5379 = vpack.c.b16 %v4235, %v4227
        %v5380 = vpack.c.b16 %v4236, %v4228
        %v5381 = vpack.c.b16 %v4237, %v4229
        %v5382 = vpack.c.b16 %v4238, %v4230
        %v5383 = vpack.c.b16 %v4239, %v4231
        %v5384 = vpack.c.b16 %v4240, %v4232
        %v5385 = vpack.c.b16 %v4249, %v4241
        %v5386 = vpack.c.b16 %v4250, %v4242
        %v5387 = vpack.c.b16 %v4251, %v4243
        %v5388 = vpack.c.b16 %v4252, %v4244
        %v5389 = vpack.c.b16 %v4253, %v4245
        %v5390 = vpack.c.b16 %v4254, %v4246
        %v5391 = vpack.c.b16 %v4255, %v4247
        %v5392 = vpack.c.b16 %v4256, %v4248
        %v5393 = vpack.c.b16 %v4265, %v4257
        %v5394 = vpack.c.b16 %v4266, %v4258
        %v5395 = vpack.c.b16 %v4267, %v4259
        %v5396 = vpack.c.b16 %v4268, %v4260
        %v5397 = vpack.c.b16 %v4269, %v4261
        %v5398 = vpack.c.b16 %v4270, %v4262
        %v5399 = vpack.c.b16 %v4271, %v4263
        %v5400 = vpack.c.b16 %v4272, %v4264
        %v5401 = vpack.c.b16 %v4281, %v4273
        %v5402 = vpack.c.b16 %v4282, %v4274
        %v5403 = vpack.c.b16 %v4283, %v4275
        %v5404 = vpack.c.b16 %v4284, %v4276
        %v5405 = vpack.c.b16 %v4285, %v4277
        %v5406 = vpack.c.b16 %v4286, %v4278
        %v5407 = vpack.c.b16 %v4287, %v4279
        %v5408 = vpack.c.b16 %v4288, %v4280
        %v5409 = vpack.c.b16 %v4297, %v4289
        %v5410 = vpack.c.b16 %v4298, %v4290
        %v5411 = vpack.c.b16 %v4299, %v4291
        %v5412 = vpack.c.b16 %v4300, %v4292
        %v5413 = vpack.c.b16 %v4301, %v4293
        %v5414 = vpack.c.b16 %v4302, %v4294
        %v5415 = vpack.c.b16 %v4303, %v4295
        %v5416 = vpack.c.b16 %v4304, %v4296
        %v5417 = vpack.c.b16 %v4313, %v4305
        %v5418 = vpack.c.b16 %v4314, %v4306
        %v5419 = vpack.c.b16 %v4315, %v4307
        %v5420 = vpack.c.b16 %v4316, %v4308
        %v5421 = vpack.c.b16 %v4317, %v4309
        %v5422 = vpack.c.b16 %v4318, %v4310
        %v5423 = vpack.c.b16 %v4319, %v4311
        %v5424 = vpack.c.b16 %v4320, %v4312
        %v5425 = vpack.c.b16 %v4329, %v4321
        %v5426 = vpack.c.b16 %v4330, %v4322
        %v5427 = vpack.c.b16 %v4331, %v4323
        %v5428 = vpack.c.b16 %v4332, %v4324
        %v5429 = vpack.c.b16 %v4333, %v4325
        %v5430 = vpack.c.b16 %v4334, %v4326
        %v5431 = vpack.c.b16 %v4335, %v4327
        %v5432 = vpack.c.b16 %v4336, %v4328
        %v5433 = vpack.c.b16 %v4345, %v4337
        %v5434 = vpack.c.b16 %v4346, %v4338
        %v5435 = vpack.c.b16 %v4347, %v4339
        %v5436 = vpack.c.b16 %v4348, %v4340
        %v5437 = vpack.c.b16 %v4349, %v4341
        %v5438 = vpack.c.b16 %v4350, %v4342
        %v5439 = vpack.c.b16 %v4351, %v4343
        %v5440 = vpack.c.b16 %v4352, %v4344
        %v5441 = vpack.c.b16 %v4361, %v4353
        %v5442 = vpack.c.b16 %v4362, %v4354
        %v5443 = vpack.c.b16 %v4363, %v4355
        %v5444 = vpack.c.b16 %v4364, %v4356
        %v5445 = vpack.c.b16 %v4365, %v4357
        %v5446 = vpack.c.b16 %v4366, %v4358
        %v5447 = vpack.c.b16 %v4367, %v4359
        %v5448 = vpack.c.b16 %v4368, %v4360
        %v5449 = vpack.c.b16 %v4377, %v4369
        %v5450 = vpack.c.b16 %v4378, %v4370
        %v5451 = vpack.c.b16 %v4379, %v4371
        %v5452 = vpack.c.b16 %v4380, %v4372
        %v5453 = vpack.c.b16 %v4381, %v4373
        %v5454 = vpack.c.b16 %v4382, %v4374
        %v5455 = vpack.c.b16 %v4383, %v4375
        %v5456 = vpack.c.b16 %v4384, %v4376
        %v5457 = vpack.c.b16 %v4393, %v4385
        %v5458 = vpack.c.b16 %v4394, %v4386
        %v5459 = vpack.c.b16 %v4395, %v4387
        %v5460 = vpack.c.b16 %v4396, %v4388
        %v5461 = vpack.c.b16 %v4397, %v4389
        %v5462 = vpack.c.b16 %v4398, %v4390
        %v5463 = vpack.c.b16 %v4399, %v4391
        %v5464 = vpack.c.b16 %v4400, %v4392
        %v5465 = vpack.c.b16 %v4409, %v4401
        %v5466 = vpack.c.b16 %v4410, %v4402
        %v5467 = vpack.c.b16 %v4411, %v4403
        %v5468 = vpack.c.b16 %v4412, %v4404
        %v5469 = vpack.c.b16 %v4413, %v4405
        %v5470 = vpack.c.b16 %v4414, %v4406
        %v5471 = vpack.c.b16 %v4415, %v4407
        %v5472 = vpack.c.b16 %v4416, %v4408
        %v5473 = vpack.c.b16 %v4425, %v4417
        %v5474 = vpack.c.b16 %v4426, %v4418
        %v5475 = vpack.c.b16 %v4427, %v4419
        %v5476 = vpack.c.b16 %v4428, %v4420
        %v5477 = vpack.c.b16 %v4429, %v4421
        %v5478 = vpack.c.b16 %v4430, %v4422
        %v5479 = vpack.c.b16 %v4431, %v4423
        %v5480 = vpack.c.b16 %v4432, %v4424
        %v5481 = vpack.c.b16 %v4441, %v4433
        %v5482 = vpack.c.b16 %v4442, %v4434
        %v5483 = vpack.c.b16 %v4443, %v4435
        %v5484 = vpack.c.b16 %v4444, %v4436
        %v5485 = vpack.c.b16 %v4445, %v4437
        %v5486 = vpack.c.b16 %v4446, %v4438
        %v5487 = vpack.c.b16 %v4447, %v4439
        %v5488 = vpack.c.b16 %v4448, %v4440
        %v5489 = vpack.c.b16 %v4457, %v4449
        %v5490 = vpack.c.b16 %v4458, %v4450
        %v5491 = vpack.c.b16 %v4459, %v4451
        %v5492 = vpack.c.b16 %v4460, %v4452
        %v5493 = vpack.c.b16 %v4461, %v4453
        %v5494 = vpack.c.b16 %v4462, %v4454
        %v5495 = vpack.c.b16 %v4463, %v4455
        %v5496 = vpack.c.b16 %v4464, %v4456
        %v5497 = vpack.c.b16 %v4473, %v4465
        %v5498 = vpack.c.b16 %v4474, %v4466
        %v5499 = vpack.c.b16 %v4475, %v4467
        %v5500 = vpack.c.b16 %v4476, %v4468
        %v5501 = vpack.c.b16 %v4477, %v4469
        %v5502 = vpack.c.b16 %v4478, %v4470
        %v5503 = vpack.c.b16 %v4479, %v4471
        %v5504 = vpack.c.b16 %v4480, %v4472
        %6529 = vmatprep.subr.bf16.mxu0 %v4482
        %6530 = vmatpush1.bf16.xpose.msra.mxu0 %v4481
        %6531 = vmatprep.subr.bf16.mxu0 %v4490
        %6532 = vmatpush1.bf16.xpose.msra.mxu0 %v4489
        %6533 = vmatprep.subr.bf16.mxu0 %v4498
        %6534 = vmatpush1.bf16.xpose.msra.mxu0 %v4497
        %6535 = vmatprep.subr.bf16.mxu0 %v4506
        %6536 = vmatpush1.bf16.xpose.msra.mxu0 %v4505
        %6537 = vmatprep.subr.bf16.mxu0 %v4514
        %6538 = vmatpush1.bf16.xpose.msra.mxu0 %v4513
        %6539 = vmatprep.subr.bf16.mxu0 %v4522
        %6540 = vmatpush1.bf16.xpose.msra.mxu0 %v4521
        %6541 = vmatprep.subr.bf16.mxu0 %v4530
        %6542 = vmatpush1.bf16.xpose.msra.mxu0 %v4529
        %6543 = vmatprep.subr.bf16.mxu0 %v4538
        %6544 = vmatpush1.bf16.xpose.msra.mxu0 %v4537
        %6545 = vmatprep.subr.bf16.mxu0 %v4546
        %6546 = vmatpush1.bf16.xpose.msra.mxu0 %v4545
        %6547 = vmatprep.subr.bf16.mxu0 %v4554
        %6548 = vmatpush1.bf16.xpose.msra.mxu0 %v4553
        %6549 = vmatprep.subr.bf16.mxu0 %v4562
        %6550 = vmatpush1.bf16.xpose.msra.mxu0 %v4561
        %6551 = vmatprep.subr.bf16.mxu0 %v4570
        %6552 = vmatpush1.bf16.xpose.msra.mxu0 %v4569
        %6553 = vmatprep.subr.bf16.mxu0 %v4578
        %6554 = vmatpush1.bf16.xpose.msra.mxu0 %v4577
        %6555 = vmatprep.subr.bf16.mxu0 %v4586
        %6556 = vmatpush1.bf16.xpose.msra.mxu0 %v4585
        %6557 = vmatprep.subr.bf16.mxu0 %v4594
        %6558 = vmatpush1.bf16.xpose.msra.mxu0 %v4593
        %6559 = vmatprep.subr.bf16.mxu0 %v4602
        %6560 = vmatpush1.bf16.xpose.msra.mxu0 %v4601
        %6561 = vmatprep.mubr.bf16.mxu0 %v1394
        %6562 = vmatmul.mubr.bf16.gmra.mrb[0].mxu0 %v1393
        %v6563 = vpop.f32.mrb[0].mxu0
        %v6564 = vadd.f32 %v1304, %v6563
        %v6565 = vpop.f32.mrb[0].mxu0
        %v6566 = vadd.f32 %v1308, %v6565
        %v6567 = vpop.f32.mrb[0].mxu0
        %v6568 = vpop.f32.mrb[0].mxu0
        %6569 = vdwg.mxu0
        %6570 = vmatprep.subr.bf16.mxu0 %v4484
        %6571 = vmatpush1.bf16.xpose.msra.mxu0 %v4483
        %6572 = vmatprep.subr.bf16.mxu0 %v4492
        %6573 = vmatpush1.bf16.xpose.msra.mxu0 %v4491
        %6574 = vmatprep.subr.bf16.mxu0 %v4500
        %6575 = vmatpush1.bf16.xpose.msra.mxu0 %v4499
        %6576 = vmatprep.subr.bf16.mxu0 %v4508
        %6577 = vmatpush1.bf16.xpose.msra.mxu0 %v4507
        %6578 = vmatprep.subr.bf16.mxu0 %v4516
        %6579 = vmatpush1.bf16.xpose.msra.mxu0 %v4515
        %6580 = vmatprep.subr.bf16.mxu0 %v4524
        %6581 = vmatpush1.bf16.xpose.msra.mxu0 %v4523
        %6582 = vmatprep.subr.bf16.mxu0 %v4532
        %6583 = vmatpush1.bf16.xpose.msra.mxu0 %v4531
        %6584 = vmatprep.subr.bf16.mxu0 %v4540
        %6585 = vmatpush1.bf16.xpose.msra.mxu0 %v4539
        %6586 = vmatprep.subr.bf16.mxu0 %v4548
        %6587 = vmatpush1.bf16.xpose.msra.mxu0 %v4547
        %6588 = vmatprep.subr.bf16.mxu0 %v4556
        %6589 = vmatpush1.bf16.xpose.msra.mxu0 %v4555
        %6590 = vmatprep.subr.bf16.mxu0 %v4564
        %6591 = vmatpush1.bf16.xpose.msra.mxu0 %v4563
        %6592 = vmatprep.subr.bf16.mxu0 %v4572
        %6593 = vmatpush1.bf16.xpose.msra.mxu0 %v4571
        %6594 = vmatprep.subr.bf16.mxu0 %v4580
        %6595 = vmatpush1.bf16.xpose.msra.mxu0 %v4579
        %6596 = vmatprep.subr.bf16.mxu0 %v4588
        %6597 = vmatpush1.bf16.xpose.msra.mxu0 %v4587
        %6598 = vmatprep.subr.bf16.mxu0 %v4596
        %6599 = vmatpush1.bf16.xpose.msra.mxu0 %v4595
        %6600 = vmatprep.subr.bf16.mxu0 %v4604
        %6601 = vmatpush1.bf16.xpose.msra.mxu0 %v4603
        %6602 = vmatprep.mubr.bf16.mxu0 %v1396
        %6603 = vmatmul.mubr.bf16.gmra.mrb[0].mxu0 %v1395
        %v6604 = vpop.f32.mrb[0].mxu0
        %v6605 = vadd.f32 %v6564, %v6604
        %v6606 = vpop.f32.mrb[0].mxu0
        %v6607 = vadd.f32 %v6566, %v6606
        %v6608 = vpop.f32.mrb[0].mxu0
        %v6609 = vpop.f32.mrb[0].mxu0
        %6610 = vdwg.mxu0
        %6611 = vmatprep.subr.bf16.mxu0 %v4486
        %6612 = vmatpush1.bf16.xpose.msra.mxu0 %v4485
        %6613 = vmatprep.subr.bf16.mxu0 %v4494
        %6614 = vmatpush1.bf16.xpose.msra.mxu0 %v4493
        %6615 = vmatprep.subr.bf16.mxu0 %v4502
        %6616 = vmatpush1.bf16.xpose.msra.mxu0 %v4501
        %6617 = vmatprep.subr.bf16.mxu0 %v4510
        %6618 = vmatpush1.bf16.xpose.msra.mxu0 %v4509
        %6619 = vmatprep.subr.bf16.mxu0 %v4518
        %6620 = vmatpush1.bf16.xpose.msra.mxu0 %v4517
        %6621 = vmatprep.subr.bf16.mxu0 %v4526
        %6622 = vmatpush1.bf16.xpose.msra.mxu0 %v4525
        %6623 = vmatprep.subr.bf16.mxu0 %v4534
        %6624 = vmatpush1.bf16.xpose.msra.mxu0 %v4533
        %6625 = vmatprep.subr.bf16.mxu0 %v4542
        %6626 = vmatpush1.bf16.xpose.msra.mxu0 %v4541
        %6627 = vmatprep.subr.bf16.mxu0 %v4550
        %6628 = vmatpush1.bf16.xpose.msra.mxu0 %v4549
        %6629 = vmatprep.subr.bf16.mxu0 %v4558
        %6630 = vmatpush1.bf16.xpose.msra.mxu0 %v4557
        %6631 = vmatprep.subr.bf16.mxu0 %v4566
        %6632 = vmatpush1.bf16.xpose.msra.mxu0 %v4565
        %6633 = vmatprep.subr.bf16.mxu0 %v4574
        %6634 = vmatpush1.bf16.xpose.msra.mxu0 %v4573
        %6635 = vmatprep.subr.bf16.mxu0 %v4582
        %6636 = vmatpush1.bf16.xpose.msra.mxu0 %v4581
        %6637 = vmatprep.subr.bf16.mxu0 %v4590
        %6638 = vmatpush1.bf16.xpose.msra.mxu0 %v4589
        %6639 = vmatprep.subr.bf16.mxu0 %v4598
        %6640 = vmatpush1.bf16.xpose.msra.mxu0 %v4597
        %6641 = vmatprep.subr.bf16.mxu0 %v4606
        %6642 = vmatpush1.bf16.xpose.msra.mxu0 %v4605
        %6643 = vmatprep.mubr.bf16.mxu0 %v1398
        %6644 = vmatmul.mubr.bf16.gmra.mrb[0].mxu0 %v1397
        %v6645 = vpop.f32.mrb[0].mxu0
        %v6646 = vadd.f32 %v6605, %v6645
        %v6647 = vpop.f32.mrb[0].mxu0
        %v6648 = vadd.f32 %v6607, %v6647
        %v6649 = vpop.f32.mrb[0].mxu0
        %v6650 = vpop.f32.mrb[0].mxu0
        %6651 = vdwg.mxu0
        %6652 = vmatprep.subr.bf16.mxu0 %v4488
        %6653 = vmatpush1.bf16.xpose.msra.mxu0 %v4487
        %6654 = vmatprep.subr.bf16.mxu0 %v4496
        %6655 = vmatpush1.bf16.xpose.msra.mxu0 %v4495
        %6656 = vmatprep.subr.bf16.mxu0 %v4504
        %6657 = vmatpush1.bf16.xpose.msra.mxu0 %v4503
        %6658 = vmatprep.subr.bf16.mxu0 %v4512
        %6659 = vmatpush1.bf16.xpose.msra.mxu0 %v4511
        %6660 = vmatprep.subr.bf16.mxu0 %v4520
        %6661 = vmatpush1.bf16.xpose.msra.mxu0 %v4519
        %6662 = vmatprep.subr.bf16.mxu0 %v4528
        %6663 = vmatpush1.bf16.xpose.msra.mxu0 %v4527
        %6664 = vmatprep.subr.bf16.mxu0 %v4536
        %6665 = vmatpush1.bf16.xpose.msra.mxu0 %v4535
        %6666 = vmatprep.subr.bf16.mxu0 %v4544
        %6667 = vmatpush1.bf16.xpose.msra.mxu0 %v4543
        %6668 = vmatprep.subr.bf16.mxu0 %v4552
        %6669 = vmatpush1.bf16.xpose.msra.mxu0 %v4551
        %6670 = vmatprep.subr.bf16.mxu0 %v4560
        %6671 = vmatpush1.bf16.xpose.msra.mxu0 %v4559
        %6672 = vmatprep.subr.bf16.mxu0 %v4568
        %6673 = vmatpush1.bf16.xpose.msra.mxu0 %v4567
        %6674 = vmatprep.subr.bf16.mxu0 %v4576
        %6675 = vmatpush1.bf16.xpose.msra.mxu0 %v4575
        %6676 = vmatprep.subr.bf16.mxu0 %v4584
        %6677 = vmatpush1.bf16.xpose.msra.mxu0 %v4583
        %6678 = vmatprep.subr.bf16.mxu0 %v4592
        %6679 = vmatpush1.bf16.xpose.msra.mxu0 %v4591
        %6680 = vmatprep.subr.bf16.mxu0 %v4600
        %6681 = vmatpush1.bf16.xpose.msra.mxu0 %v4599
        %6682 = vmatprep.subr.bf16.mxu0 %v4608
        %6683 = vmatpush1.bf16.xpose.msra.mxu0 %v4607
        %6684 = vmatprep.mubr.bf16.mxu0 %v1400
        %6685 = vmatmul.mubr.bf16.gmra.mrb[0].mxu0 %v1399
        %v6686 = vpop.f32.mrb[0].mxu0
        %v6687 = vadd.f32 %v6646, %v6686
        %v6688 = vpop.f32.mrb[0].mxu0
        %v6689 = vadd.f32 %v6648, %v6688
        %v6690 = vpop.f32.mrb[0].mxu0
        %v6691 = vpop.f32.mrb[0].mxu0
        %6692 = vdwg.mxu0
        %6693 = vmatprep.subr.bf16.mxu0 %v4610
        %6694 = vmatpush1.bf16.xpose.msra.mxu0 %v4609
        %6695 = vmatprep.subr.bf16.mxu0 %v4618
        %6696 = vmatpush1.bf16.xpose.msra.mxu0 %v4617
        %6697 = vmatprep.subr.bf16.mxu0 %v4626
        %6698 = vmatpush1.bf16.xpose.msra.mxu0 %v4625
        %6699 = vmatprep.subr.bf16.mxu0 %v4634
        %6700 = vmatpush1.bf16.xpose.msra.mxu0 %v4633
        %6701 = vmatprep.subr.bf16.mxu0 %v4642
        %6702 = vmatpush1.bf16.xpose.msra.mxu0 %v4641
        %6703 = vmatprep.subr.bf16.mxu0 %v4650
        %6704 = vmatpush1.bf16.xpose.msra.mxu0 %v4649
        %6705 = vmatprep.subr.bf16.mxu0 %v4658
        %6706 = vmatpush1.bf16.xpose.msra.mxu0 %v4657
        %6707 = vmatprep.subr.bf16.mxu0 %v4666
        %6708 = vmatpush1.bf16.xpose.msra.mxu0 %v4665
        %6709 = vmatprep.subr.bf16.mxu0 %v4674
        %6710 = vmatpush1.bf16.xpose.msra.mxu0 %v4673
        %6711 = vmatprep.subr.bf16.mxu0 %v4682
        %6712 = vmatpush1.bf16.xpose.msra.mxu0 %v4681
        %6713 = vmatprep.subr.bf16.mxu0 %v4690
        %6714 = vmatpush1.bf16.xpose.msra.mxu0 %v4689
        %6715 = vmatprep.subr.bf16.mxu0 %v4698
        %6716 = vmatpush1.bf16.xpose.msra.mxu0 %v4697
        %6717 = vmatprep.subr.bf16.mxu0 %v4706
        %6718 = vmatpush1.bf16.xpose.msra.mxu0 %v4705
        %6719 = vmatprep.subr.bf16.mxu0 %v4714
        %6720 = vmatpush1.bf16.xpose.msra.mxu0 %v4713
        %6721 = vmatprep.subr.bf16.mxu0 %v4722
        %6722 = vmatpush1.bf16.xpose.msra.mxu0 %v4721
        %6723 = vmatprep.subr.bf16.mxu0 %v4730
        %6724 = vmatpush1.bf16.xpose.msra.mxu0 %v4729
        %6725 = vmatprep.mubr.bf16.mxu0 %v1394
        %6726 = vmatmul.mubr.bf16.gmra.mrb[0].mxu0 %v1393
        %v6727 = vpop.f32.mrb[0].mxu0
        %v6728 = vadd.f32 %v1312, %v6727
        %v6729 = vpop.f32.mrb[0].mxu0
        %v6730 = vadd.f32 %v1316, %v6729
        %v6731 = vpop.f32.mrb[0].mxu0
        %v6732 = vpop.f32.mrb[0].mxu0
        %6733 = vdwg.mxu0
        %6734 = vmatprep.subr.bf16.mxu0 %v4612
        %6735 = vmatpush1.bf16.xpose.msra.mxu0 %v4611
        %6736 = vmatprep.subr.bf16.mxu0 %v4620
        %6737 = vmatpush1.bf16.xpose.msra.mxu0 %v4619
        %6738 = vmatprep.subr.bf16.mxu0 %v4628
        %6739 = vmatpush1.bf16.xpose.msra.mxu0 %v4627
        %6740 = vmatprep.subr.bf16.mxu0 %v4636
        %6741 = vmatpush1.bf16.xpose.msra.mxu0 %v4635
        %6742 = vmatprep.subr.bf16.mxu0 %v4644
        %6743 = vmatpush1.bf16.xpose.msra.mxu0 %v4643
        %6744 = vmatprep.subr.bf16.mxu0 %v4652
        %6745 = vmatpush1.bf16.xpose.msra.mxu0 %v4651
        %6746 = vmatprep.subr.bf16.mxu0 %v4660
        %6747 = vmatpush1.bf16.xpose.msra.mxu0 %v4659
        %6748 = vmatprep.subr.bf16.mxu0 %v4668
        %6749 = vmatpush1.bf16.xpose.msra.mxu0 %v4667
        %6750 = vmatprep.subr.bf16.mxu0 %v4676
        %6751 = vmatpush1.bf16.xpose.msra.mxu0 %v4675
        %6752 = vmatprep.subr.bf16.mxu0 %v4684
        %6753 = vmatpush1.bf16.xpose.msra.mxu0 %v4683
        %6754 = vmatprep.subr.bf16.mxu0 %v4692
        %6755 = vmatpush1.bf16.xpose.msra.mxu0 %v4691
        %6756 = vmatprep.subr.bf16.mxu0 %v4700
        %6757 = vmatpush1.bf16.xpose.msra.mxu0 %v4699
        %6758 = vmatprep.subr.bf16.mxu0 %v4708
        %6759 = vmatpush1.bf16.xpose.msra.mxu0 %v4707
        %6760 = vmatprep.subr.bf16.mxu0 %v4716
        %6761 = vmatpush1.bf16.xpose.msra.mxu0 %v4715
        %6762 = vmatprep.subr.bf16.mxu0 %v4724
        %6763 = vmatpush1.bf16.xpose.msra.mxu0 %v4723
        %6764 = vmatprep.subr.bf16.mxu0 %v4732
        %6765 = vmatpush1.bf16.xpose.msra.mxu0 %v4731
        %6766 = vmatprep.mubr.bf16.mxu0 %v1396
        %6767 = vmatmul.mubr.bf16.gmra.mrb[0].mxu0 %v1395
        %v6768 = vpop.f32.mrb[0].mxu0
        %v6769 = vadd.f32 %v6728, %v6768
        %v6770 = vpop.f32.mrb[0].mxu0
        %v6771 = vadd.f32 %v6730, %v6770
        %v6772 = vpop.f32.mrb[0].mxu0
        %v6773 = vpop.f32.mrb[0].mxu0
        %6774 = vdwg.mxu0
        %6775 = vmatprep.subr.bf16.mxu0 %v4614
        %6776 = vmatpush1.bf16.xpose.msra.mxu0 %v4613
        %6777 = vmatprep.subr.bf16.mxu0 %v4622
        %6778 = vmatpush1.bf16.xpose.msra.mxu0 %v4621
        %6779 = vmatprep.subr.bf16.mxu0 %v4630
        %6780 = vmatpush1.bf16.xpose.msra.mxu0 %v4629
        %6781 = vmatprep.subr.bf16.mxu0 %v4638
        %6782 = vmatpush1.bf16.xpose.msra.mxu0 %v4637
        %6783 = vmatprep.subr.bf16.mxu0 %v4646
        %6784 = vmatpush1.bf16.xpose.msra.mxu0 %v4645
        %6785 = vmatprep.subr.bf16.mxu0 %v4654
        %6786 = vmatpush1.bf16.xpose.msra.mxu0 %v4653
        %6787 = vmatprep.subr.bf16.mxu0 %v4662
        %6788 = vmatpush1.bf16.xpose.msra.mxu0 %v4661
        %6789 = vmatprep.subr.bf16.mxu0 %v4670
        %6790 = vmatpush1.bf16.xpose.msra.mxu0 %v4669
        %6791 = vmatprep.subr.bf16.mxu0 %v4678
        %6792 = vmatpush1.bf16.xpose.msra.mxu0 %v4677
        %6793 = vmatprep.subr.bf16.mxu0 %v4686
        %6794 = vmatpush1.bf16.xpose.msra.mxu0 %v4685
        %6795 = vmatprep.subr.bf16.mxu0 %v4694
        %6796 = vmatpush1.bf16.xpose.msra.mxu0 %v4693
        %6797 = vmatprep.subr.bf16.mxu0 %v4702
        %6798 = vmatpush1.bf16.xpose.msra.mxu0 %v4701
        %6799 = vmatprep.subr.bf16.mxu0 %v4710
        %6800 = vmatpush1.bf16.xpose.msra.mxu0 %v4709
        %6801 = vmatprep.subr.bf16.mxu0 %v4718
        %6802 = vmatpush1.bf16.xpose.msra.mxu0 %v4717
        %6803 = vmatprep.subr.bf16.mxu0 %v4726
        %6804 = vmatpush1.bf16.xpose.msra.mxu0 %v4725
        %6805 = vmatprep.subr.bf16.mxu0 %v4734
        %6806 = vmatpush1.bf16.xpose.msra.mxu0 %v4733
        %6807 = vmatprep.mubr.bf16.mxu0 %v1398
        %6808 = vmatmul.mubr.bf16.gmra.mrb[0].mxu0 %v1397
        %v6809 = vpop.f32.mrb[0].mxu0
        %v6810 = vadd.f32 %v6769, %v6809
        %v6811 = vpop.f32.mrb[0].mxu0
        %v6812 = vadd.f32 %v6771, %v6811
        %v6813 = vpop.f32.mrb[0].mxu0
        %v6814 = vpop.f32.mrb[0].mxu0
        %6815 = vdwg.mxu0
        %6816 = vmatprep.subr.bf16.mxu0 %v4616
        %6817 = vmatpush1.bf16.xpose.msra.mxu0 %v4615
        %6818 = vmatprep.subr.bf16.mxu0 %v4624
        %6819 = vmatpush1.bf16.xpose.msra.mxu0 %v4623
        %6820 = vmatprep.subr.bf16.mxu0 %v4632
        %6821 = vmatpush1.bf16.xpose.msra.mxu0 %v4631
        %6822 = vmatprep.subr.bf16.mxu0 %v4640
        %6823 = vmatpush1.bf16.xpose.msra.mxu0 %v4639
        %6824 = vmatprep.subr.bf16.mxu0 %v4648
        %6825 = vmatpush1.bf16.xpose.msra.mxu0 %v4647
        %6826 = vmatprep.subr.bf16.mxu0 %v4656
        %6827 = vmatpush1.bf16.xpose.msra.mxu0 %v4655
        %6828 = vmatprep.subr.bf16.mxu0 %v4664
        %6829 = vmatpush1.bf16.xpose.msra.mxu0 %v4663
        %6830 = vmatprep.subr.bf16.mxu0 %v4672
        %6831 = vmatpush1.bf16.xpose.msra.mxu0 %v4671
        %6832 = vmatprep.subr.bf16.mxu0 %v4680
        %6833 = vmatpush1.bf16.xpose.msra.mxu0 %v4679
        %6834 = vmatprep.subr.bf16.mxu0 %v4688
        %6835 = vmatpush1.bf16.xpose.msra.mxu0 %v4687
        %6836 = vmatprep.subr.bf16.mxu0 %v4696
        %6837 = vmatpush1.bf16.xpose.msra.mxu0 %v4695
        %6838 = vmatprep.subr.bf16.mxu0 %v4704
        %6839 = vmatpush1.bf16.xpose.msra.mxu0 %v4703
        %6840 = vmatprep.subr.bf16.mxu0 %v4712
        %6841 = vmatpush1.bf16.xpose.msra.mxu0 %v4711
        %6842 = vmatprep.subr.bf16.mxu0 %v4720
        %6843 = vmatpush1.bf16.xpose.msra.mxu0 %v4719
        %6844 = vmatprep.subr.bf16.mxu0 %v4728
        %6845 = vmatpush1.bf16.xpose.msra.mxu0 %v4727
        %6846 = vmatprep.subr.bf16.mxu0 %v4736
        %6847 = vmatpush1.bf16.xpose.msra.mxu0 %v4735
        %6848 = vmatprep.mubr.bf16.mxu0 %v1400
        %6849 = vmatmul.mubr.bf16.gmra.mrb[0].mxu0 %v1399
        %v6850 = vpop.f32.mrb[0].mxu0
        %v6851 = vadd.f32 %v6810, %v6850
        %v6852 = vpop.f32.mrb[0].mxu0
        %v6853 = vadd.f32 %v6812, %v6852
        %v6854 = vpop.f32.mrb[0].mxu0
        %v6855 = vpop.f32.mrb[0].mxu0
        %6856 = vdwg.mxu0
        %6857 = vmatprep.subr.bf16.mxu0 %v4738
        %6858 = vmatpush1.bf16.xpose.msra.mxu0 %v4737
        %6859 = vmatprep.subr.bf16.mxu0 %v4746
        %6860 = vmatpush1.bf16.xpose.msra.mxu0 %v4745
        %6861 = vmatprep.subr.bf16.mxu0 %v4754
        %6862 = vmatpush1.bf16.xpose.msra.mxu0 %v4753
        %6863 = vmatprep.subr.bf16.mxu0 %v4762
        %6864 = vmatpush1.bf16.xpose.msra.mxu0 %v4761
        %6865 = vmatprep.subr.bf16.mxu0 %v4770
        %6866 = vmatpush1.bf16.xpose.msra.mxu0 %v4769
        %6867 = vmatprep.subr.bf16.mxu0 %v4778
        %6868 = vmatpush1.bf16.xpose.msra.mxu0 %v4777
        %6869 = vmatprep.subr.bf16.mxu0 %v4786
        %6870 = vmatpush1.bf16.xpose.msra.mxu0 %v4785
        %6871 = vmatprep.subr.bf16.mxu0 %v4794
        %6872 = vmatpush1.bf16.xpose.msra.mxu0 %v4793
        %6873 = vmatprep.subr.bf16.mxu0 %v4802
        %6874 = vmatpush1.bf16.xpose.msra.mxu0 %v4801
        %6875 = vmatprep.subr.bf16.mxu0 %v4810
        %6876 = vmatpush1.bf16.xpose.msra.mxu0 %v4809
        %6877 = vmatprep.subr.bf16.mxu0 %v4818
        %6878 = vmatpush1.bf16.xpose.msra.mxu0 %v4817
        %6879 = vmatprep.subr.bf16.mxu0 %v4826
        %6880 = vmatpush1.bf16.xpose.msra.mxu0 %v4825
        %6881 = vmatprep.subr.bf16.mxu0 %v4834
        %6882 = vmatpush1.bf16.xpose.msra.mxu0 %v4833
        %6883 = vmatprep.subr.bf16.mxu0 %v4842
        %6884 = vmatpush1.bf16.xpose.msra.mxu0 %v4841
        %6885 = vmatprep.subr.bf16.mxu0 %v4850
        %6886 = vmatpush1.bf16.xpose.msra.mxu0 %v4849
        %6887 = vmatprep.subr.bf16.mxu0 %v4858
        %6888 = vmatpush1.bf16.xpose.msra.mxu0 %v4857
        %6889 = vmatprep.mubr.bf16.mxu0 %v1394
        %6890 = vmatmul.mubr.bf16.gmra.mrb[0].mxu0 %v1393
        %v6891 = vpop.f32.mrb[0].mxu0
        %v6892 = vadd.f32 %v1320, %v6891
        %v6893 = vpop.f32.mrb[0].mxu0
        %v6894 = vadd.f32 %v1324, %v6893
        %v6895 = vpop.f32.mrb[0].mxu0
        %v6896 = vpop.f32.mrb[0].mxu0
        %6897 = vdwg.mxu0
        %6898 = vmatprep.subr.bf16.mxu0 %v4740
        %6899 = vmatpush1.bf16.xpose.msra.mxu0 %v4739
        %6900 = vmatprep.subr.bf16.mxu0 %v4748
        %6901 = vmatpush1.bf16.xpose.msra.mxu0 %v4747
        %6902 = vmatprep.subr.bf16.mxu0 %v4756
        %6903 = vmatpush1.bf16.xpose.msra.mxu0 %v4755
        %6904 = vmatprep.subr.bf16.mxu0 %v4764
        %6905 = vmatpush1.bf16.xpose.msra.mxu0 %v4763
        %6906 = vmatprep.subr.bf16.mxu0 %v4772
        %6907 = vmatpush1.bf16.xpose.msra.mxu0 %v4771
        %6908 = vmatprep.subr.bf16.mxu0 %v4780
        %6909 = vmatpush1.bf16.xpose.msra.mxu0 %v4779
        %6910 = vmatprep.subr.bf16.mxu0 %v4788
        %6911 = vmatpush1.bf16.xpose.msra.mxu0 %v4787
        %6912 = vmatprep.subr.bf16.mxu0 %v4796
        %6913 = vmatpush1.bf16.xpose.msra.mxu0 %v4795
        %6914 = vmatprep.subr.bf16.mxu0 %v4804
        %6915 = vmatpush1.bf16.xpose.msra.mxu0 %v4803
        %6916 = vmatprep.subr.bf16.mxu0 %v4812
        %6917 = vmatpush1.bf16.xpose.msra.mxu0 %v4811
        %6918 = vmatprep.subr.bf16.mxu0 %v4820
        %6919 = vmatpush1.bf16.xpose.msra.mxu0 %v4819
        %6920 = vmatprep.subr.bf16.mxu0 %v4828
        %6921 = vmatpush1.bf16.xpose.msra.mxu0 %v4827
        %6922 = vmatprep.subr.bf16.mxu0 %v4836
        %6923 = vmatpush1.bf16.xpose.msra.mxu0 %v4835
        %6924 = vmatprep.subr.bf16.mxu0 %v4844
        %6925 = vmatpush1.bf16.xpose.msra.mxu0 %v4843
        %6926 = vmatprep.subr.bf16.mxu0 %v4852
        %6927 = vmatpush1.bf16.xpose.msra.mxu0 %v4851
        %6928 = vmatprep.subr.bf16.mxu0 %v4860
        %6929 = vmatpush1.bf16.xpose.msra.mxu0 %v4859
        %6930 = vmatprep.mubr.bf16.mxu0 %v1396
        %6931 = vmatmul.mubr.bf16.gmra.mrb[0].mxu0 %v1395
        %v6932 = vpop.f32.mrb[0].mxu0
        %v6933 = vadd.f32 %v6892, %v6932
        %v6934 = vpop.f32.mrb[0].mxu0
        %v6935 = vadd.f32 %v6894, %v6934
        %v6936 = vpop.f32.mrb[0].mxu0
        %v6937 = vpop.f32.mrb[0].mxu0
        %6938 = vdwg.mxu0
        %6939 = vmatprep.subr.bf16.mxu0 %v4742
        %6940 = vmatpush1.bf16.xpose.msra.mxu0 %v4741
        %6941 = vmatprep.subr.bf16.mxu0 %v4750
        %6942 = vmatpush1.bf16.xpose.msra.mxu0 %v4749
        %6943 = vmatprep.subr.bf16.mxu0 %v4758
        %6944 = vmatpush1.bf16.xpose.msra.mxu0 %v4757
        %6945 = vmatprep.subr.bf16.mxu0 %v4766
        %6946 = vmatpush1.bf16.xpose.msra.mxu0 %v4765
        %6947 = vmatprep.subr.bf16.mxu0 %v4774
        %6948 = vmatpush1.bf16.xpose.msra.mxu0 %v4773
        %6949 = vmatprep.subr.bf16.mxu0 %v4782
        %6950 = vmatpush1.bf16.xpose.msra.mxu0 %v4781
        %6951 = vmatprep.subr.bf16.mxu0 %v4790
        %6952 = vmatpush1.bf16.xpose.msra.mxu0 %v4789
        %6953 = vmatprep.subr.bf16.mxu0 %v4798
        %6954 = vmatpush1.bf16.xpose.msra.mxu0 %v4797
        %6955 = vmatprep.subr.bf16.mxu0 %v4806
        %6956 = vmatpush1.bf16.xpose.msra.mxu0 %v4805
        %6957 = vmatprep.subr.bf16.mxu0 %v4814
        %6958 = vmatpush1.bf16.xpose.msra.mxu0 %v4813
        %6959 = vmatprep.subr.bf16.mxu0 %v4822
        %6960 = vmatpush1.bf16.xpose.msra.mxu0 %v4821
        %6961 = vmatprep.subr.bf16.mxu0 %v4830
        %6962 = vmatpush1.bf16.xpose.msra.mxu0 %v4829
        %6963 = vmatprep.subr.bf16.mxu0 %v4838
        %6964 = vmatpush1.bf16.xpose.msra.mxu0 %v4837
        %6965 = vmatprep.subr.bf16.mxu0 %v4846
        %6966 = vmatpush1.bf16.xpose.msra.mxu0 %v4845
        %6967 = vmatprep.subr.bf16.mxu0 %v4854
        %6968 = vmatpush1.bf16.xpose.msra.mxu0 %v4853
        %6969 = vmatprep.subr.bf16.mxu0 %v4862
        %6970 = vmatpush1.bf16.xpose.msra.mxu0 %v4861
        %6971 = vmatprep.mubr.bf16.mxu0 %v1398
        %6972 = vmatmul.mubr.bf16.gmra.mrb[0].mxu0 %v1397
        %v6973 = vpop.f32.mrb[0].mxu0
        %v6974 = vadd.f32 %v6933, %v6973
        %v6975 = vpop.f32.mrb[0].mxu0
        %v6976 = vadd.f32 %v6935, %v6975
        %v6977 = vpop.f32.mrb[0].mxu0
        %v6978 = vpop.f32.mrb[0].mxu0
        %6979 = vdwg.mxu0
        %6980 = vmatprep.subr.bf16.mxu0 %v4744
        %6981 = vmatpush1.bf16.xpose.msra.mxu0 %v4743
        %6982 = vmatprep.subr.bf16.mxu0 %v4752
        %6983 = vmatpush1.bf16.xpose.msra.mxu0 %v4751
        %6984 = vmatprep.subr.bf16.mxu0 %v4760
        %6985 = vmatpush1.bf16.xpose.msra.mxu0 %v4759
        %6986 = vmatprep.subr.bf16.mxu0 %v4768
        %6987 = vmatpush1.bf16.xpose.msra.mxu0 %v4767
        %6988 = vmatprep.subr.bf16.mxu0 %v4776
        %6989 = vmatpush1.bf16.xpose.msra.mxu0 %v4775
        %6990 = vmatprep.subr.bf16.mxu0 %v4784
        %6991 = vmatpush1.bf16.xpose.msra.mxu0 %v4783
        %6992 = vmatprep.subr.bf16.mxu0 %v4792
        %6993 = vmatpush1.bf16.xpose.msra.mxu0 %v4791
        %6994 = vmatprep.subr.bf16.mxu0 %v4800
        %6995 = vmatpush1.bf16.xpose.msra.mxu0 %v4799
        %6996 = vmatprep.subr.bf16.mxu0 %v4808
        %6997 = vmatpush1.bf16.xpose.msra.mxu0 %v4807
        %6998 = vmatprep.subr.bf16.mxu0 %v4816
        %6999 = vmatpush1.bf16.xpose.msra.mxu0 %v4815
        %7000 = vmatprep.subr.bf16.mxu0 %v4824
        %7001 = vmatpush1.bf16.xpose.msra.mxu0 %v4823
        %7002 = vmatprep.subr.bf16.mxu0 %v4832
        %7003 = vmatpush1.bf16.xpose.msra.mxu0 %v4831
        %7004 = vmatprep.subr.bf16.mxu0 %v4840
        %7005 = vmatpush1.bf16.xpose.msra.mxu0 %v4839
        %7006 = vmatprep.subr.bf16.mxu0 %v4848
        %7007 = vmatpush1.bf16.xpose.msra.mxu0 %v4847
        %7008 = vmatprep.subr.bf16.mxu0 %v4856
        %7009 = vmatpush1.bf16.xpose.msra.mxu0 %v4855
        %7010 = vmatprep.subr.bf16.mxu0 %v4864
        %7011 = vmatpush1.bf16.xpose.msra.mxu0 %v4863
        %7012 = vmatprep.mubr.bf16.mxu0 %v1400
        %7013 = vmatmul.mubr.bf16.gmra.mrb[0].mxu0 %v1399
        %v7014 = vpop.f32.mrb[0].mxu0
        %v7015 = vadd.f32 %v6974, %v7014
        %v7016 = vpop.f32.mrb[0].mxu0
        %v7017 = vadd.f32 %v6976, %v7016
        %v7018 = vpop.f32.mrb[0].mxu0
        %v7019 = vpop.f32.mrb[0].mxu0
        %7020 = vdwg.mxu0
        %7021 = vmatprep.subr.bf16.mxu0 %v4866
        %7022 = vmatpush1.bf16.xpose.msra.mxu0 %v4865
        %7023 = vmatprep.subr.bf16.mxu0 %v4874
        %7024 = vmatpush1.bf16.xpose.msra.mxu0 %v4873
        %7025 = vmatprep.subr.bf16.mxu0 %v4882
        %7026 = vmatpush1.bf16.xpose.msra.mxu0 %v4881
        %7027 = vmatprep.subr.bf16.mxu0 %v4890
        %7028 = vmatpush1.bf16.xpose.msra.mxu0 %v4889
        %7029 = vmatprep.subr.bf16.mxu0 %v4898
        %7030 = vmatpush1.bf16.xpose.msra.mxu0 %v4897
        %7031 = vmatprep.subr.bf16.mxu0 %v4906
        %7032 = vmatpush1.bf16.xpose.msra.mxu0 %v4905
        %7033 = vmatprep.subr.bf16.mxu0 %v4914
        %7034 = vmatpush1.bf16.xpose.msra.mxu0 %v4913
        %7035 = vmatprep.subr.bf16.mxu0 %v4922
        %7036 = vmatpush1.bf16.xpose.msra.mxu0 %v4921
        %7037 = vmatprep.subr.bf16.mxu0 %v4930
        %7038 = vmatpush1.bf16.xpose.msra.mxu0 %v4929
        %7039 = vmatprep.subr.bf16.mxu0 %v4938
        %7040 = vmatpush1.bf16.xpose.msra.mxu0 %v4937
        %7041 = vmatprep.subr.bf16.mxu0 %v4946
        %7042 = vmatpush1.bf16.xpose.msra.mxu0 %v4945
        %7043 = vmatprep.subr.bf16.mxu0 %v4954
        %7044 = vmatpush1.bf16.xpose.msra.mxu0 %v4953
        %7045 = vmatprep.subr.bf16.mxu0 %v4962
        %7046 = vmatpush1.bf16.xpose.msra.mxu0 %v4961
        %7047 = vmatprep.subr.bf16.mxu0 %v4970
        %7048 = vmatpush1.bf16.xpose.msra.mxu0 %v4969
        %7049 = vmatprep.subr.bf16.mxu0 %v4978
        %7050 = vmatpush1.bf16.xpose.msra.mxu0 %v4977
        %7051 = vmatprep.subr.bf16.mxu0 %v4986
        %7052 = vmatpush1.bf16.xpose.msra.mxu0 %v4985
        %7053 = vmatprep.mubr.bf16.mxu0 %v1394
        %7054 = vmatmul.mubr.bf16.gmra.mrb[0].mxu0 %v1393
        %v7055 = vpop.f32.mrb[0].mxu0
        %v7056 = vadd.f32 %v1328, %v7055
        %v7057 = vpop.f32.mrb[0].mxu0
        %v7058 = vadd.f32 %v1332, %v7057
        %v7059 = vpop.f32.mrb[0].mxu0
        %v7060 = vpop.f32.mrb[0].mxu0
        %7061 = vdwg.mxu0
        %7062 = vmatprep.subr.bf16.mxu0 %v4868
        %7063 = vmatpush1.bf16.xpose.msra.mxu0 %v4867
        %7064 = vmatprep.subr.bf16.mxu0 %v4876
        %7065 = vmatpush1.bf16.xpose.msra.mxu0 %v4875
        %7066 = vmatprep.subr.bf16.mxu0 %v4884
        %7067 = vmatpush1.bf16.xpose.msra.mxu0 %v4883
        %7068 = vmatprep.subr.bf16.mxu0 %v4892
        %7069 = vmatpush1.bf16.xpose.msra.mxu0 %v4891
        %7070 = vmatprep.subr.bf16.mxu0 %v4900
        %7071 = vmatpush1.bf16.xpose.msra.mxu0 %v4899
        %7072 = vmatprep.subr.bf16.mxu0 %v4908
        %7073 = vmatpush1.bf16.xpose.msra.mxu0 %v4907
        %7074 = vmatprep.subr.bf16.mxu0 %v4916
        %7075 = vmatpush1.bf16.xpose.msra.mxu0 %v4915
        %7076 = vmatprep.subr.bf16.mxu0 %v4924
        %7077 = vmatpush1.bf16.xpose.msra.mxu0 %v4923
        %7078 = vmatprep.subr.bf16.mxu0 %v4932
        %7079 = vmatpush1.bf16.xpose.msra.mxu0 %v4931
        %7080 = vmatprep.subr.bf16.mxu0 %v4940
        %7081 = vmatpush1.bf16.xpose.msra.mxu0 %v4939
        %7082 = vmatprep.subr.bf16.mxu0 %v4948
        %7083 = vmatpush1.bf16.xpose.msra.mxu0 %v4947
        %7084 = vmatprep.subr.bf16.mxu0 %v4956
        %7085 = vmatpush1.bf16.xpose.msra.mxu0 %v4955
        %7086 = vmatprep.subr.bf16.mxu0 %v4964
        %7087 = vmatpush1.bf16.xpose.msra.mxu0 %v4963
        %7088 = vmatprep.subr.bf16.mxu0 %v4972
        %7089 = vmatpush1.bf16.xpose.msra.mxu0 %v4971
        %7090 = vmatprep.subr.bf16.mxu0 %v4980
        %7091 = vmatpush1.bf16.xpose.msra.mxu0 %v4979
        %7092 = vmatprep.subr.bf16.mxu0 %v4988
        %7093 = vmatpush1.bf16.xpose.msra.mxu0 %v4987
        %7094 = vmatprep.mubr.bf16.mxu0 %v1396
        %7095 = vmatmul.mubr.bf16.gmra.mrb[0].mxu0 %v1395
        %v7096 = vpop.f32.mrb[0].mxu0
        %v7097 = vadd.f32 %v7056, %v7096
        %v7098 = vpop.f32.mrb[0].mxu0
        %v7099 = vadd.f32 %v7058, %v7098
        %v7100 = vpop.f32.mrb[0].mxu0
        %v7101 = vpop.f32.mrb[0].mxu0
        %7102 = vdwg.mxu0
        %7103 = vmatprep.subr.bf16.mxu0 %v4870
        %7104 = vmatpush1.bf16.xpose.msra.mxu0 %v4869
        %7105 = vmatprep.subr.bf16.mxu0 %v4878
        %7106 = vmatpush1.bf16.xpose.msra.mxu0 %v4877
        %7107 = vmatprep.subr.bf16.mxu0 %v4886
        %7108 = vmatpush1.bf16.xpose.msra.mxu0 %v4885
        %7109 = vmatprep.subr.bf16.mxu0 %v4894
        %7110 = vmatpush1.bf16.xpose.msra.mxu0 %v4893
        %7111 = vmatprep.subr.bf16.mxu0 %v4902
        %7112 = vmatpush1.bf16.xpose.msra.mxu0 %v4901
        %7113 = vmatprep.subr.bf16.mxu0 %v4910
        %7114 = vmatpush1.bf16.xpose.msra.mxu0 %v4909
        %7115 = vmatprep.subr.bf16.mxu0 %v4918
        %7116 = vmatpush1.bf16.xpose.msra.mxu0 %v4917
        %7117 = vmatprep.subr.bf16.mxu0 %v4926
        %7118 = vmatpush1.bf16.xpose.msra.mxu0 %v4925
        %7119 = vmatprep.subr.bf16.mxu0 %v4934
        %7120 = vmatpush1.bf16.xpose.msra.mxu0 %v4933
        %7121 = vmatprep.subr.bf16.mxu0 %v4942
        %7122 = vmatpush1.bf16.xpose.msra.mxu0 %v4941
        %7123 = vmatprep.subr.bf16.mxu0 %v4950
        %7124 = vmatpush1.bf16.xpose.msra.mxu0 %v4949
        %7125 = vmatprep.subr.bf16.mxu0 %v4958
        %7126 = vmatpush1.bf16.xpose.msra.mxu0 %v4957
        %7127 = vmatprep.subr.bf16.mxu0 %v4966
        %7128 = vmatpush1.bf16.xpose.msra.mxu0 %v4965
        %7129 = vmatprep.subr.bf16.mxu0 %v4974
        %7130 = vmatpush1.bf16.xpose.msra.mxu0 %v4973
        %7131 = vmatprep.subr.bf16.mxu0 %v4982
        %7132 = vmatpush1.bf16.xpose.msra.mxu0 %v4981
        %7133 = vmatprep.subr.bf16.mxu0 %v4990
        %7134 = vmatpush1.bf16.xpose.msra.mxu0 %v4989
        %7135 = vmatprep.mubr.bf16.mxu0 %v1398
        %7136 = vmatmul.mubr.bf16.gmra.mrb[0].mxu0 %v1397
        %v7137 = vpop.f32.mrb[0].mxu0
        %v7138 = vadd.f32 %v7097, %v7137
        %v7139 = vpop.f32.mrb[0].mxu0
        %v7140 = vadd.f32 %v7099, %v7139
        %v7141 = vpop.f32.mrb[0].mxu0
        %v7142 = vpop.f32.mrb[0].mxu0
        %7143 = vdwg.mxu0
        %7144 = vmatprep.subr.bf16.mxu0 %v4872
        %7145 = vmatpush1.bf16.xpose.msra.mxu0 %v4871
        %7146 = vmatprep.subr.bf16.mxu0 %v4880
        %7147 = vmatpush1.bf16.xpose.msra.mxu0 %v4879
        %7148 = vmatprep.subr.bf16.mxu0 %v4888
        %7149 = vmatpush1.bf16.xpose.msra.mxu0 %v4887
        %7150 = vmatprep.subr.bf16.mxu0 %v4896
        %7151 = vmatpush1.bf16.xpose.msra.mxu0 %v4895
        %7152 = vmatprep.subr.bf16.mxu0 %v4904
        %7153 = vmatpush1.bf16.xpose.msra.mxu0 %v4903
        %7154 = vmatprep.subr.bf16.mxu0 %v4912
        %7155 = vmatpush1.bf16.xpose.msra.mxu0 %v4911
        %7156 = vmatprep.subr.bf16.mxu0 %v4920
        %7157 = vmatpush1.bf16.xpose.msra.mxu0 %v4919
        %7158 = vmatprep.subr.bf16.mxu0 %v4928
        %7159 = vmatpush1.bf16.xpose.msra.mxu0 %v4927
        %7160 = vmatprep.subr.bf16.mxu0 %v4936
        %7161 = vmatpush1.bf16.xpose.msra.mxu0 %v4935
        %7162 = vmatprep.subr.bf16.mxu0 %v4944
        %7163 = vmatpush1.bf16.xpose.msra.mxu0 %v4943
        %7164 = vmatprep.subr.bf16.mxu0 %v4952
        %7165 = vmatpush1.bf16.xpose.msra.mxu0 %v4951
        %7166 = vmatprep.subr.bf16.mxu0 %v4960
        %7167 = vmatpush1.bf16.xpose.msra.mxu0 %v4959
        %7168 = vmatprep.subr.bf16.mxu0 %v4968
        %7169 = vmatpush1.bf16.xpose.msra.mxu0 %v4967
        %7170 = vmatprep.subr.bf16.mxu0 %v4976
        %7171 = vmatpush1.bf16.xpose.msra.mxu0 %v4975
        %7172 = vmatprep.subr.bf16.mxu0 %v4984
        %7173 = vmatpush1.bf16.xpose.msra.mxu0 %v4983
        %7174 = vmatprep.subr.bf16.mxu0 %v4992
        %7175 = vmatpush1.bf16.xpose.msra.mxu0 %v4991
        %7176 = vmatprep.mubr.bf16.mxu0 %v1400
        %7177 = vmatmul.mubr.bf16.gmra.mrb[0].mxu0 %v1399
        %v7178 = vpop.f32.mrb[0].mxu0
        %v7179 = vadd.f32 %v7138, %v7178
        %v7180 = vpop.f32.mrb[0].mxu0
        %v7181 = vadd.f32 %v7140, %v7180
        %v7182 = vpop.f32.mrb[0].mxu0
        %v7183 = vpop.f32.mrb[0].mxu0
        %7184 = vdwg.mxu0
        %7185 = vmatprep.subr.bf16.mxu0 %v4994
        %7186 = vmatpush1.bf16.xpose.msra.mxu0 %v4993
        %7187 = vmatprep.subr.bf16.mxu0 %v5002
        %7188 = vmatpush1.bf16.xpose.msra.mxu0 %v5001
        %7189 = vmatprep.subr.bf16.mxu0 %v5010
        %7190 = vmatpush1.bf16.xpose.msra.mxu0 %v5009
        %7191 = vmatprep.subr.bf16.mxu0 %v5018
        %7192 = vmatpush1.bf16.xpose.msra.mxu0 %v5017
        %7193 = vmatprep.subr.bf16.mxu0 %v5026
        %7194 = vmatpush1.bf16.xpose.msra.mxu0 %v5025
        %7195 = vmatprep.subr.bf16.mxu0 %v5034
        %7196 = vmatpush1.bf16.xpose.msra.mxu0 %v5033
        %7197 = vmatprep.subr.bf16.mxu0 %v5042
        %7198 = vmatpush1.bf16.xpose.msra.mxu0 %v5041
        %7199 = vmatprep.subr.bf16.mxu0 %v5050
        %7200 = vmatpush1.bf16.xpose.msra.mxu0 %v5049
        %7201 = vmatprep.subr.bf16.mxu0 %v5058
        %7202 = vmatpush1.bf16.xpose.msra.mxu0 %v5057
        %7203 = vmatprep.subr.bf16.mxu0 %v5066
        %7204 = vmatpush1.bf16.xpose.msra.mxu0 %v5065
        %7205 = vmatprep.subr.bf16.mxu0 %v5074
        %7206 = vmatpush1.bf16.xpose.msra.mxu0 %v5073
        %7207 = vmatprep.subr.bf16.mxu0 %v5082
        %7208 = vmatpush1.bf16.xpose.msra.mxu0 %v5081
        %7209 = vmatprep.subr.bf16.mxu0 %v5090
        %7210 = vmatpush1.bf16.xpose.msra.mxu0 %v5089
        %7211 = vmatprep.subr.bf16.mxu0 %v5098
        %7212 = vmatpush1.bf16.xpose.msra.mxu0 %v5097
        %7213 = vmatprep.subr.bf16.mxu0 %v5106
        %7214 = vmatpush1.bf16.xpose.msra.mxu0 %v5105
        %7215 = vmatprep.subr.bf16.mxu0 %v5114
        %7216 = vmatpush1.bf16.xpose.msra.mxu0 %v5113
        %7217 = vmatprep.mubr.bf16.mxu0 %v1394
        %7218 = vmatmul.mubr.bf16.gmra.mrb[0].mxu0 %v1393
        %v7219 = vpop.f32.mrb[0].mxu0
        %v7220 = vadd.f32 %v1336, %v7219
        %v7221 = vpop.f32.mrb[0].mxu0
        %v7222 = vadd.f32 %v1340, %v7221
        %v7223 = vpop.f32.mrb[0].mxu0
        %v7224 = vpop.f32.mrb[0].mxu0
        %7225 = vdwg.mxu0
        %7226 = vmatprep.subr.bf16.mxu0 %v4996
        %7227 = vmatpush1.bf16.xpose.msra.mxu0 %v4995
        %7228 = vmatprep.subr.bf16.mxu0 %v5004
        %7229 = vmatpush1.bf16.xpose.msra.mxu0 %v5003
        %7230 = vmatprep.subr.bf16.mxu0 %v5012
        %7231 = vmatpush1.bf16.xpose.msra.mxu0 %v5011
        %7232 = vmatprep.subr.bf16.mxu0 %v5020
        %7233 = vmatpush1.bf16.xpose.msra.mxu0 %v5019
        %7234 = vmatprep.subr.bf16.mxu0 %v5028
        %7235 = vmatpush1.bf16.xpose.msra.mxu0 %v5027
        %7236 = vmatprep.subr.bf16.mxu0 %v5036
        %7237 = vmatpush1.bf16.xpose.msra.mxu0 %v5035
        %7238 = vmatprep.subr.bf16.mxu0 %v5044
        %7239 = vmatpush1.bf16.xpose.msra.mxu0 %v5043
        %7240 = vmatprep.subr.bf16.mxu0 %v5052
        %7241 = vmatpush1.bf16.xpose.msra.mxu0 %v5051
        %7242 = vmatprep.subr.bf16.mxu0 %v5060
        %7243 = vmatpush1.bf16.xpose.msra.mxu0 %v5059
        %7244 = vmatprep.subr.bf16.mxu0 %v5068
        %7245 = vmatpush1.bf16.xpose.msra.mxu0 %v5067
        %7246 = vmatprep.subr.bf16.mxu0 %v5076
        %7247 = vmatpush1.bf16.xpose.msra.mxu0 %v5075
        %7248 = vmatprep.subr.bf16.mxu0 %v5084
        %7249 = vmatpush1.bf16.xpose.msra.mxu0 %v5083
        %7250 = vmatprep.subr.bf16.mxu0 %v5092
        %7251 = vmatpush1.bf16.xpose.msra.mxu0 %v5091
        %7252 = vmatprep.subr.bf16.mxu0 %v5100
        %7253 = vmatpush1.bf16.xpose.msra.mxu0 %v5099
        %7254 = vmatprep.subr.bf16.mxu0 %v5108
        %7255 = vmatpush1.bf16.xpose.msra.mxu0 %v5107
        %7256 = vmatprep.subr.bf16.mxu0 %v5116
        %7257 = vmatpush1.bf16.xpose.msra.mxu0 %v5115
        %7258 = vmatprep.mubr.bf16.mxu0 %v1396
        %7259 = vmatmul.mubr.bf16.gmra.mrb[0].mxu0 %v1395
        %v7260 = vpop.f32.mrb[0].mxu0
        %v7261 = vadd.f32 %v7220, %v7260
        %v7262 = vpop.f32.mrb[0].mxu0
        %v7263 = vadd.f32 %v7222, %v7262
        %v7264 = vpop.f32.mrb[0].mxu0
        %v7265 = vpop.f32.mrb[0].mxu0
        %7266 = vdwg.mxu0
        %7267 = vmatprep.subr.bf16.mxu0 %v4998
        %7268 = vmatpush1.bf16.xpose.msra.mxu0 %v4997
        %7269 = vmatprep.subr.bf16.mxu0 %v5006
        %7270 = vmatpush1.bf16.xpose.msra.mxu0 %v5005
        %7271 = vmatprep.subr.bf16.mxu0 %v5014
        %7272 = vmatpush1.bf16.xpose.msra.mxu0 %v5013
        %7273 = vmatprep.subr.bf16.mxu0 %v5022
        %7274 = vmatpush1.bf16.xpose.msra.mxu0 %v5021
        %7275 = vmatprep.subr.bf16.mxu0 %v5030
        %7276 = vmatpush1.bf16.xpose.msra.mxu0 %v5029
        %7277 = vmatprep.subr.bf16.mxu0 %v5038
        %7278 = vmatpush1.bf16.xpose.msra.mxu0 %v5037
        %7279 = vmatprep.subr.bf16.mxu0 %v5046
        %7280 = vmatpush1.bf16.xpose.msra.mxu0 %v5045
        %7281 = vmatprep.subr.bf16.mxu0 %v5054
        %7282 = vmatpush1.bf16.xpose.msra.mxu0 %v5053
        %7283 = vmatprep.subr.bf16.mxu0 %v5062
        %7284 = vmatpush1.bf16.xpose.msra.mxu0 %v5061
        %7285 = vmatprep.subr.bf16.mxu0 %v5070
        %7286 = vmatpush1.bf16.xpose.msra.mxu0 %v5069
        %7287 = vmatprep.subr.bf16.mxu0 %v5078
        %7288 = vmatpush1.bf16.xpose.msra.mxu0 %v5077
        %7289 = vmatprep.subr.bf16.mxu0 %v5086
        %7290 = vmatpush1.bf16.xpose.msra.mxu0 %v5085
        %7291 = vmatprep.subr.bf16.mxu0 %v5094
        %7292 = vmatpush1.bf16.xpose.msra.mxu0 %v5093
        %7293 = vmatprep.subr.bf16.mxu0 %v5102
        %7294 = vmatpush1.bf16.xpose.msra.mxu0 %v5101
        %7295 = vmatprep.subr.bf16.mxu0 %v5110
        %7296 = vmatpush1.bf16.xpose.msra.mxu0 %v5109
        %7297 = vmatprep.subr.bf16.mxu0 %v5118
        %7298 = vmatpush1.bf16.xpose.msra.mxu0 %v5117
        %7299 = vmatprep.mubr.bf16.mxu0 %v1398
        %7300 = vmatmul.mubr.bf16.gmra.mrb[0].mxu0 %v1397
        %v7301 = vpop.f32.mrb[0].mxu0
        %v7302 = vadd.f32 %v7261, %v7301
        %v7303 = vpop.f32.mrb[0].mxu0
        %v7304 = vadd.f32 %v7263, %v7303
        %v7305 = vpop.f32.mrb[0].mxu0
        %v7306 = vpop.f32.mrb[0].mxu0
        %7307 = vdwg.mxu0
        %7308 = vmatprep.subr.bf16.mxu0 %v5000
        %7309 = vmatpush1.bf16.xpose.msra.mxu0 %v4999
        %7310 = vmatprep.subr.bf16.mxu0 %v5008
        %7311 = vmatpush1.bf16.xpose.msra.mxu0 %v5007
        %7312 = vmatprep.subr.bf16.mxu0 %v5016
        %7313 = vmatpush1.bf16.xpose.msra.mxu0 %v5015
        %7314 = vmatprep.subr.bf16.mxu0 %v5024
        %7315 = vmatpush1.bf16.xpose.msra.mxu0 %v5023
        %7316 = vmatprep.subr.bf16.mxu0 %v5032
        %7317 = vmatpush1.bf16.xpose.msra.mxu0 %v5031
        %7318 = vmatprep.subr.bf16.mxu0 %v5040
        %7319 = vmatpush1.bf16.xpose.msra.mxu0 %v5039
        %7320 = vmatprep.subr.bf16.mxu0 %v5048
        %7321 = vmatpush1.bf16.xpose.msra.mxu0 %v5047
        %7322 = vmatprep.subr.bf16.mxu0 %v5056
        %7323 = vmatpush1.bf16.xpose.msra.mxu0 %v5055
        %7324 = vmatprep.subr.bf16.mxu0 %v5064
        %7325 = vmatpush1.bf16.xpose.msra.mxu0 %v5063
        %7326 = vmatprep.subr.bf16.mxu0 %v5072
        %7327 = vmatpush1.bf16.xpose.msra.mxu0 %v5071
        %7328 = vmatprep.subr.bf16.mxu0 %v5080
        %7329 = vmatpush1.bf16.xpose.msra.mxu0 %v5079
        %7330 = vmatprep.subr.bf16.mxu0 %v5088
        %7331 = vmatpush1.bf16.xpose.msra.mxu0 %v5087
        %7332 = vmatprep.subr.bf16.mxu0 %v5096
        %7333 = vmatpush1.bf16.xpose.msra.mxu0 %v5095
        %7334 = vmatprep.subr.bf16.mxu0 %v5104
        %7335 = vmatpush1.bf16.xpose.msra.mxu0 %v5103
        %7336 = vmatprep.subr.bf16.mxu0 %v5112
        %7337 = vmatpush1.bf16.xpose.msra.mxu0 %v5111
        %7338 = vmatprep.subr.bf16.mxu0 %v5120
        %7339 = vmatpush1.bf16.xpose.msra.mxu0 %v5119
        %7340 = vmatprep.mubr.bf16.mxu0 %v1400
        %7341 = vmatmul.mubr.bf16.gmra.mrb[0].mxu0 %v1399
        %v7342 = vpop.f32.mrb[0].mxu0
        %v7343 = vadd.f32 %v7302, %v7342
        %v7344 = vpop.f32.mrb[0].mxu0
        %v7345 = vadd.f32 %v7304, %v7344
        %v7346 = vpop.f32.mrb[0].mxu0
        %v7347 = vpop.f32.mrb[0].mxu0
        %7348 = vdwg.mxu0
        %7349 = vmatprep.subr.bf16.mxu0 %v5122
        %7350 = vmatpush1.bf16.xpose.msra.mxu0 %v5121
        %7351 = vmatprep.subr.bf16.mxu0 %v5130
        %7352 = vmatpush1.bf16.xpose.msra.mxu0 %v5129
        %7353 = vmatprep.subr.bf16.mxu0 %v5138
        %7354 = vmatpush1.bf16.xpose.msra.mxu0 %v5137
        %7355 = vmatprep.subr.bf16.mxu0 %v5146
        %7356 = vmatpush1.bf16.xpose.msra.mxu0 %v5145
        %7357 = vmatprep.subr.bf16.mxu0 %v5154
        %7358 = vmatpush1.bf16.xpose.msra.mxu0 %v5153
        %7359 = vmatprep.subr.bf16.mxu0 %v5162
        %7360 = vmatpush1.bf16.xpose.msra.mxu0 %v5161
        %7361 = vmatprep.subr.bf16.mxu0 %v5170
        %7362 = vmatpush1.bf16.xpose.msra.mxu0 %v5169
        %7363 = vmatprep.subr.bf16.mxu0 %v5178
        %7364 = vmatpush1.bf16.xpose.msra.mxu0 %v5177
        %7365 = vmatprep.subr.bf16.mxu0 %v5186
        %7366 = vmatpush1.bf16.xpose.msra.mxu0 %v5185
        %7367 = vmatprep.subr.bf16.mxu0 %v5194
        %7368 = vmatpush1.bf16.xpose.msra.mxu0 %v5193
        %7369 = vmatprep.subr.bf16.mxu0 %v5202
        %7370 = vmatpush1.bf16.xpose.msra.mxu0 %v5201
        %7371 = vmatprep.subr.bf16.mxu0 %v5210
        %7372 = vmatpush1.bf16.xpose.msra.mxu0 %v5209
        %7373 = vmatprep.subr.bf16.mxu0 %v5218
        %7374 = vmatpush1.bf16.xpose.msra.mxu0 %v5217
        %7375 = vmatprep.subr.bf16.mxu0 %v5226
        %7376 = vmatpush1.bf16.xpose.msra.mxu0 %v5225
        %7377 = vmatprep.subr.bf16.mxu0 %v5234
        %7378 = vmatpush1.bf16.xpose.msra.mxu0 %v5233
        %7379 = vmatprep.subr.bf16.mxu0 %v5242
        %7380 = vmatpush1.bf16.xpose.msra.mxu0 %v5241
        %7381 = vmatprep.mubr.bf16.mxu0 %v1394
        %7382 = vmatmul.mubr.bf16.gmra.mrb[0].mxu0 %v1393
        %v7383 = vpop.f32.mrb[0].mxu0
        %v7384 = vadd.f32 %v1344, %v7383
        %v7385 = vpop.f32.mrb[0].mxu0
        %v7386 = vadd.f32 %v1348, %v7385
        %v7387 = vpop.f32.mrb[0].mxu0
        %v7388 = vpop.f32.mrb[0].mxu0
        %7389 = vdwg.mxu0
        %7390 = vmatprep.subr.bf16.mxu0 %v5124
        %7391 = vmatpush1.bf16.xpose.msra.mxu0 %v5123
        %7392 = vmatprep.subr.bf16.mxu0 %v5132
        %7393 = vmatpush1.bf16.xpose.msra.mxu0 %v5131
        %7394 = vmatprep.subr.bf16.mxu0 %v5140
        %7395 = vmatpush1.bf16.xpose.msra.mxu0 %v5139
        %7396 = vmatprep.subr.bf16.mxu0 %v5148
        %7397 = vmatpush1.bf16.xpose.msra.mxu0 %v5147
        %7398 = vmatprep.subr.bf16.mxu0 %v5156
        %7399 = vmatpush1.bf16.xpose.msra.mxu0 %v5155
        %7400 = vmatprep.subr.bf16.mxu0 %v5164
        %7401 = vmatpush1.bf16.xpose.msra.mxu0 %v5163
        %7402 = vmatprep.subr.bf16.mxu0 %v5172
        %7403 = vmatpush1.bf16.xpose.msra.mxu0 %v5171
        %7404 = vmatprep.subr.bf16.mxu0 %v5180
        %7405 = vmatpush1.bf16.xpose.msra.mxu0 %v5179
        %7406 = vmatprep.subr.bf16.mxu0 %v5188
        %7407 = vmatpush1.bf16.xpose.msra.mxu0 %v5187
        %7408 = vmatprep.subr.bf16.mxu0 %v5196
        %7409 = vmatpush1.bf16.xpose.msra.mxu0 %v5195
        %7410 = vmatprep.subr.bf16.mxu0 %v5204
        %7411 = vmatpush1.bf16.xpose.msra.mxu0 %v5203
        %7412 = vmatprep.subr.bf16.mxu0 %v5212
        %7413 = vmatpush1.bf16.xpose.msra.mxu0 %v5211
        %7414 = vmatprep.subr.bf16.mxu0 %v5220
        %7415 = vmatpush1.bf16.xpose.msra.mxu0 %v5219
        %7416 = vmatprep.subr.bf16.mxu0 %v5228
        %7417 = vmatpush1.bf16.xpose.msra.mxu0 %v5227
        %7418 = vmatprep.subr.bf16.mxu0 %v5236
        %7419 = vmatpush1.bf16.xpose.msra.mxu0 %v5235
        %7420 = vmatprep.subr.bf16.mxu0 %v5244
        %7421 = vmatpush1.bf16.xpose.msra.mxu0 %v5243
        %7422 = vmatprep.mubr.bf16.mxu0 %v1396
        %7423 = vmatmul.mubr.bf16.gmra.mrb[0].mxu0 %v1395
        %v7424 = vpop.f32.mrb[0].mxu0
        %v7425 = vadd.f32 %v7384, %v7424
        %v7426 = vpop.f32.mrb[0].mxu0
        %v7427 = vadd.f32 %v7386, %v7426
        %v7428 = vpop.f32.mrb[0].mxu0
        %v7429 = vpop.f32.mrb[0].mxu0
        %7430 = vdwg.mxu0
        %7431 = vmatprep.subr.bf16.mxu0 %v5126
        %7432 = vmatpush1.bf16.xpose.msra.mxu0 %v5125
        %7433 = vmatprep.subr.bf16.mxu0 %v5134
        %7434 = vmatpush1.bf16.xpose.msra.mxu0 %v5133
        %7435 = vmatprep.subr.bf16.mxu0 %v5142
        %7436 = vmatpush1.bf16.xpose.msra.mxu0 %v5141
        %7437 = vmatprep.subr.bf16.mxu0 %v5150
        %7438 = vmatpush1.bf16.xpose.msra.mxu0 %v5149
        %7439 = vmatprep.subr.bf16.mxu0 %v5158
        %7440 = vmatpush1.bf16.xpose.msra.mxu0 %v5157
        %7441 = vmatprep.subr.bf16.mxu0 %v5166
        %7442 = vmatpush1.bf16.xpose.msra.mxu0 %v5165
        %7443 = vmatprep.subr.bf16.mxu0 %v5174
        %7444 = vmatpush1.bf16.xpose.msra.mxu0 %v5173
        %7445 = vmatprep.subr.bf16.mxu0 %v5182
        %7446 = vmatpush1.bf16.xpose.msra.mxu0 %v5181
        %7447 = vmatprep.subr.bf16.mxu0 %v5190
        %7448 = vmatpush1.bf16.xpose.msra.mxu0 %v5189
        %7449 = vmatprep.subr.bf16.mxu0 %v5198
        %7450 = vmatpush1.bf16.xpose.msra.mxu0 %v5197
        %7451 = vmatprep.subr.bf16.mxu0 %v5206
        %7452 = vmatpush1.bf16.xpose.msra.mxu0 %v5205
        %7453 = vmatprep.subr.bf16.mxu0 %v5214
        %7454 = vmatpush1.bf16.xpose.msra.mxu0 %v5213
        %7455 = vmatprep.subr.bf16.mxu0 %v5222
        %7456 = vmatpush1.bf16.xpose.msra.mxu0 %v5221
        %7457 = vmatprep.subr.bf16.mxu0 %v5230
        %7458 = vmatpush1.bf16.xpose.msra.mxu0 %v5229
        %7459 = vmatprep.subr.bf16.mxu0 %v5238
        %7460 = vmatpush1.bf16.xpose.msra.mxu0 %v5237
        %7461 = vmatprep.subr.bf16.mxu0 %v5246
        %7462 = vmatpush1.bf16.xpose.msra.mxu0 %v5245
        %7463 = vmatprep.mubr.bf16.mxu0 %v1398
        %7464 = vmatmul.mubr.bf16.gmra.mrb[0].mxu0 %v1397
        %v7465 = vpop.f32.mrb[0].mxu0
        %v7466 = vadd.f32 %v7425, %v7465
        %v7467 = vpop.f32.mrb[0].mxu0
        %v7468 = vadd.f32 %v7427, %v7467
        %v7469 = vpop.f32.mrb[0].mxu0
        %v7470 = vpop.f32.mrb[0].mxu0
        %7471 = vdwg.mxu0
        %7472 = vmatprep.subr.bf16.mxu0 %v5128
        %7473 = vmatpush1.bf16.xpose.msra.mxu0 %v5127
        %7474 = vmatprep.subr.bf16.mxu0 %v5136
        %7475 = vmatpush1.bf16.xpose.msra.mxu0 %v5135
        %7476 = vmatprep.subr.bf16.mxu0 %v5144
        %7477 = vmatpush1.bf16.xpose.msra.mxu0 %v5143
        %7478 = vmatprep.subr.bf16.mxu0 %v5152
        %7479 = vmatpush1.bf16.xpose.msra.mxu0 %v5151
        %7480 = vmatprep.subr.bf16.mxu0 %v5160
        %7481 = vmatpush1.bf16.xpose.msra.mxu0 %v5159
        %7482 = vmatprep.subr.bf16.mxu0 %v5168
        %7483 = vmatpush1.bf16.xpose.msra.mxu0 %v5167
        %7484 = vmatprep.subr.bf16.mxu0 %v5176
        %7485 = vmatpush1.bf16.xpose.msra.mxu0 %v5175
        %7486 = vmatprep.subr.bf16.mxu0 %v5184
        %7487 = vmatpush1.bf16.xpose.msra.mxu0 %v5183
        %7488 = vmatprep.subr.bf16.mxu0 %v5192
        %7489 = vmatpush1.bf16.xpose.msra.mxu0 %v5191
        %7490 = vmatprep.subr.bf16.mxu0 %v5200
        %7491 = vmatpush1.bf16.xpose.msra.mxu0 %v5199
        %7492 = vmatprep.subr.bf16.mxu0 %v5208
        %7493 = vmatpush1.bf16.xpose.msra.mxu0 %v5207
        %7494 = vmatprep.subr.bf16.mxu0 %v5216
        %7495 = vmatpush1.bf16.xpose.msra.mxu0 %v5215
        %7496 = vmatprep.subr.bf16.mxu0 %v5224
        %7497 = vmatpush1.bf16.xpose.msra.mxu0 %v5223
        %7498 = vmatprep.subr.bf16.mxu0 %v5232
        %7499 = vmatpush1.bf16.xpose.msra.mxu0 %v5231
        %7500 = vmatprep.subr.bf16.mxu0 %v5240
        %7501 = vmatpush1.bf16.xpose.msra.mxu0 %v5239
        %7502 = vmatprep.subr.bf16.mxu0 %v5248
        %7503 = vmatpush1.bf16.xpose.msra.mxu0 %v5247
        %7504 = vmatprep.mubr.bf16.mxu0 %v1400
        %7505 = vmatmul.mubr.bf16.gmra.mrb[0].mxu0 %v1399
        %v7506 = vpop.f32.mrb[0].mxu0
        %v7507 = vadd.f32 %v7466, %v7506
        %v7508 = vpop.f32.mrb[0].mxu0
        %v7509 = vadd.f32 %v7468, %v7508
        %v7510 = vpop.f32.mrb[0].mxu0
        %v7511 = vpop.f32.mrb[0].mxu0
        %7512 = vdwg.mxu0
        %7513 = vmatprep.subr.bf16.mxu0 %v5250
        %7514 = vmatpush1.bf16.xpose.msra.mxu0 %v5249
        %7515 = vmatprep.subr.bf16.mxu0 %v5258
        %7516 = vmatpush1.bf16.xpose.msra.mxu0 %v5257
        %7517 = vmatprep.subr.bf16.mxu0 %v5266
        %7518 = vmatpush1.bf16.xpose.msra.mxu0 %v5265
        %7519 = vmatprep.subr.bf16.mxu0 %v5274
        %7520 = vmatpush1.bf16.xpose.msra.mxu0 %v5273
        %7521 = vmatprep.subr.bf16.mxu0 %v5282
        %7522 = vmatpush1.bf16.xpose.msra.mxu0 %v5281
        %7523 = vmatprep.subr.bf16.mxu0 %v5290
        %7524 = vmatpush1.bf16.xpose.msra.mxu0 %v5289
        %7525 = vmatprep.subr.bf16.mxu0 %v5298
        %7526 = vmatpush1.bf16.xpose.msra.mxu0 %v5297
        %7527 = vmatprep.subr.bf16.mxu0 %v5306
        %7528 = vmatpush1.bf16.xpose.msra.mxu0 %v5305
        %7529 = vmatprep.subr.bf16.mxu0 %v5314
        %7530 = vmatpush1.bf16.xpose.msra.mxu0 %v5313
        %7531 = vmatprep.subr.bf16.mxu0 %v5322
        %7532 = vmatpush1.bf16.xpose.msra.mxu0 %v5321
        %7533 = vmatprep.subr.bf16.mxu0 %v5330
        %7534 = vmatpush1.bf16.xpose.msra.mxu0 %v5329
        %7535 = vmatprep.subr.bf16.mxu0 %v5338
        %7536 = vmatpush1.bf16.xpose.msra.mxu0 %v5337
        %7537 = vmatprep.subr.bf16.mxu0 %v5346
        %7538 = vmatpush1.bf16.xpose.msra.mxu0 %v5345
        %7539 = vmatprep.subr.bf16.mxu0 %v5354
        %7540 = vmatpush1.bf16.xpose.msra.mxu0 %v5353
        %7541 = vmatprep.subr.bf16.mxu0 %v5362
        %7542 = vmatpush1.bf16.xpose.msra.mxu0 %v5361
        %7543 = vmatprep.subr.bf16.mxu0 %v5370
        %7544 = vmatpush1.bf16.xpose.msra.mxu0 %v5369
        %7545 = vmatprep.mubr.bf16.mxu0 %v1394
        %7546 = vmatmul.mubr.bf16.gmra.mrb[0].mxu0 %v1393
        %v7547 = vpop.f32.mrb[0].mxu0
        %v7548 = vadd.f32 %v1352, %v7547
        %v7549 = vpop.f32.mrb[0].mxu0
        %v7550 = vadd.f32 %v1356, %v7549
        %v7551 = vpop.f32.mrb[0].mxu0
        %v7552 = vpop.f32.mrb[0].mxu0
        %7553 = vdwg.mxu0
        %7554 = vmatprep.subr.bf16.mxu0 %v5252
        %7555 = vmatpush1.bf16.xpose.msra.mxu0 %v5251
        %7556 = vmatprep.subr.bf16.mxu0 %v5260
        %7557 = vmatpush1.bf16.xpose.msra.mxu0 %v5259
        %7558 = vmatprep.subr.bf16.mxu0 %v5268
        %7559 = vmatpush1.bf16.xpose.msra.mxu0 %v5267
        %7560 = vmatprep.subr.bf16.mxu0 %v5276
        %7561 = vmatpush1.bf16.xpose.msra.mxu0 %v5275
        %7562 = vmatprep.subr.bf16.mxu0 %v5284
        %7563 = vmatpush1.bf16.xpose.msra.mxu0 %v5283
        %7564 = vmatprep.subr.bf16.mxu0 %v5292
        %7565 = vmatpush1.bf16.xpose.msra.mxu0 %v5291
        %7566 = vmatprep.subr.bf16.mxu0 %v5300
        %7567 = vmatpush1.bf16.xpose.msra.mxu0 %v5299
        %7568 = vmatprep.subr.bf16.mxu0 %v5308
        %7569 = vmatpush1.bf16.xpose.msra.mxu0 %v5307
        %7570 = vmatprep.subr.bf16.mxu0 %v5316
        %7571 = vmatpush1.bf16.xpose.msra.mxu0 %v5315
        %7572 = vmatprep.subr.bf16.mxu0 %v5324
        %7573 = vmatpush1.bf16.xpose.msra.mxu0 %v5323
        %7574 = vmatprep.subr.bf16.mxu0 %v5332
        %7575 = vmatpush1.bf16.xpose.msra.mxu0 %v5331
        %7576 = vmatprep.subr.bf16.mxu0 %v5340
        %7577 = vmatpush1.bf16.xpose.msra.mxu0 %v5339
        %7578 = vmatprep.subr.bf16.mxu0 %v5348
        %7579 = vmatpush1.bf16.xpose.msra.mxu0 %v5347
        %7580 = vmatprep.subr.bf16.mxu0 %v5356
        %7581 = vmatpush1.bf16.xpose.msra.mxu0 %v5355
        %7582 = vmatprep.subr.bf16.mxu0 %v5364
        %7583 = vmatpush1.bf16.xpose.msra.mxu0 %v5363
        %7584 = vmatprep.subr.bf16.mxu0 %v5372
        %7585 = vmatpush1.bf16.xpose.msra.mxu0 %v5371
        %7586 = vmatprep.mubr.bf16.mxu0 %v1396
        %7587 = vmatmul.mubr.bf16.gmra.mrb[0].mxu0 %v1395
        %v7588 = vpop.f32.mrb[0].mxu0
        %v7589 = vadd.f32 %v7548, %v7588
        %v7590 = vpop.f32.mrb[0].mxu0
        %v7591 = vadd.f32 %v7550, %v7590
        %v7592 = vpop.f32.mrb[0].mxu0
        %v7593 = vpop.f32.mrb[0].mxu0
        %7594 = vdwg.mxu0
        %7595 = vmatprep.subr.bf16.mxu0 %v5254
        %7596 = vmatpush1.bf16.xpose.msra.mxu0 %v5253
        %7597 = vmatprep.subr.bf16.mxu0 %v5262
        %7598 = vmatpush1.bf16.xpose.msra.mxu0 %v5261
        %7599 = vmatprep.subr.bf16.mxu0 %v5270
        %7600 = vmatpush1.bf16.xpose.msra.mxu0 %v5269
        %7601 = vmatprep.subr.bf16.mxu0 %v5278
        %7602 = vmatpush1.bf16.xpose.msra.mxu0 %v5277
        %7603 = vmatprep.subr.bf16.mxu0 %v5286
        %7604 = vmatpush1.bf16.xpose.msra.mxu0 %v5285
        %7605 = vmatprep.subr.bf16.mxu0 %v5294
        %7606 = vmatpush1.bf16.xpose.msra.mxu0 %v5293
        %7607 = vmatprep.subr.bf16.mxu0 %v5302
        %7608 = vmatpush1.bf16.xpose.msra.mxu0 %v5301
        %7609 = vmatprep.subr.bf16.mxu0 %v5310
        %7610 = vmatpush1.bf16.xpose.msra.mxu0 %v5309
        %7611 = vmatprep.subr.bf16.mxu0 %v5318
        %7612 = vmatpush1.bf16.xpose.msra.mxu0 %v5317
        %7613 = vmatprep.subr.bf16.mxu0 %v5326
        %7614 = vmatpush1.bf16.xpose.msra.mxu0 %v5325
        %7615 = vmatprep.subr.bf16.mxu0 %v5334
        %7616 = vmatpush1.bf16.xpose.msra.mxu0 %v5333
        %7617 = vmatprep.subr.bf16.mxu0 %v5342
        %7618 = vmatpush1.bf16.xpose.msra.mxu0 %v5341
        %7619 = vmatprep.subr.bf16.mxu0 %v5350
        %7620 = vmatpush1.bf16.xpose.msra.mxu0 %v5349
        %7621 = vmatprep.subr.bf16.mxu0 %v5358
        %7622 = vmatpush1.bf16.xpose.msra.mxu0 %v5357
        %7623 = vmatprep.subr.bf16.mxu0 %v5366
        %7624 = vmatpush1.bf16.xpose.msra.mxu0 %v5365
        %7625 = vmatprep.subr.bf16.mxu0 %v5374
        %7626 = vmatpush1.bf16.xpose.msra.mxu0 %v5373
        %7627 = vmatprep.mubr.bf16.mxu0 %v1398
        %7628 = vmatmul.mubr.bf16.gmra.mrb[0].mxu0 %v1397
        %v7629 = vpop.f32.mrb[0].mxu0
        %v7630 = vadd.f32 %v7589, %v7629
        %v7631 = vpop.f32.mrb[0].mxu0
        %v7632 = vadd.f32 %v7591, %v7631
        %v7633 = vpop.f32.mrb[0].mxu0
        %v7634 = vpop.f32.mrb[0].mxu0
        %7635 = vdwg.mxu0
        %7636 = vmatprep.subr.bf16.mxu0 %v5256
        %7637 = vmatpush1.bf16.xpose.msra.mxu0 %v5255
        %7638 = vmatprep.subr.bf16.mxu0 %v5264
        %7639 = vmatpush1.bf16.xpose.msra.mxu0 %v5263
        %7640 = vmatprep.subr.bf16.mxu0 %v5272
        %7641 = vmatpush1.bf16.xpose.msra.mxu0 %v5271
        %7642 = vmatprep.subr.bf16.mxu0 %v5280
        %7643 = vmatpush1.bf16.xpose.msra.mxu0 %v5279
        %7644 = vmatprep.subr.bf16.mxu0 %v5288
        %7645 = vmatpush1.bf16.xpose.msra.mxu0 %v5287
        %7646 = vmatprep.subr.bf16.mxu0 %v5296
        %7647 = vmatpush1.bf16.xpose.msra.mxu0 %v5295
        %7648 = vmatprep.subr.bf16.mxu0 %v5304
        %7649 = vmatpush1.bf16.xpose.msra.mxu0 %v5303
        %7650 = vmatprep.subr.bf16.mxu0 %v5312
        %7651 = vmatpush1.bf16.xpose.msra.mxu0 %v5311
        %7652 = vmatprep.subr.bf16.mxu0 %v5320
        %7653 = vmatpush1.bf16.xpose.msra.mxu0 %v5319
        %7654 = vmatprep.subr.bf16.mxu0 %v5328
        %7655 = vmatpush1.bf16.xpose.msra.mxu0 %v5327
        %7656 = vmatprep.subr.bf16.mxu0 %v5336
        %7657 = vmatpush1.bf16.xpose.msra.mxu0 %v5335
        %7658 = vmatprep.subr.bf16.mxu0 %v5344
        %7659 = vmatpush1.bf16.xpose.msra.mxu0 %v5343
        %7660 = vmatprep.subr.bf16.mxu0 %v5352
        %7661 = vmatpush1.bf16.xpose.msra.mxu0 %v5351
        %7662 = vmatprep.subr.bf16.mxu0 %v5360
        %7663 = vmatpush1.bf16.xpose.msra.mxu0 %v5359
        %7664 = vmatprep.subr.bf16.mxu0 %v5368
        %7665 = vmatpush1.bf16.xpose.msra.mxu0 %v5367
        %7666 = vmatprep.subr.bf16.mxu0 %v5376
        %7667 = vmatpush1.bf16.xpose.msra.mxu0 %v5375
        %7668 = vmatprep.mubr.bf16.mxu0 %v1400
        %7669 = vmatmul.mubr.bf16.gmra.mrb[0].mxu0 %v1399
        %v7670 = vpop.f32.mrb[0].mxu0
        %v7671 = vadd.f32 %v7630, %v7670
        %v7672 = vpop.f32.mrb[0].mxu0
        %v7673 = vadd.f32 %v7632, %v7672
        %v7674 = vpop.f32.mrb[0].mxu0
        %v7675 = vpop.f32.mrb[0].mxu0
        %7676 = vdwg.mxu0
        %7677 = vmatprep.subr.bf16.mxu0 %v5378
        %7678 = vmatpush1.bf16.xpose.msra.mxu0 %v5377
        %7679 = vmatprep.subr.bf16.mxu0 %v5386
        %7680 = vmatpush1.bf16.xpose.msra.mxu0 %v5385
        %7681 = vmatprep.subr.bf16.mxu0 %v5394
        %7682 = vmatpush1.bf16.xpose.msra.mxu0 %v5393
        %7683 = vmatprep.subr.bf16.mxu0 %v5402
        %7684 = vmatpush1.bf16.xpose.msra.mxu0 %v5401
        %7685 = vmatprep.subr.bf16.mxu0 %v5410
        %7686 = vmatpush1.bf16.xpose.msra.mxu0 %v5409
        %7687 = vmatprep.subr.bf16.mxu0 %v5418
        %7688 = vmatpush1.bf16.xpose.msra.mxu0 %v5417
        %7689 = vmatprep.subr.bf16.mxu0 %v5426
        %7690 = vmatpush1.bf16.xpose.msra.mxu0 %v5425
        %7691 = vmatprep.subr.bf16.mxu0 %v5434
        %7692 = vmatpush1.bf16.xpose.msra.mxu0 %v5433
        %7693 = vmatprep.subr.bf16.mxu0 %v5442
        %7694 = vmatpush1.bf16.xpose.msra.mxu0 %v5441
        %7695 = vmatprep.subr.bf16.mxu0 %v5450
        %7696 = vmatpush1.bf16.xpose.msra.mxu0 %v5449
        %7697 = vmatprep.subr.bf16.mxu0 %v5458
        %7698 = vmatpush1.bf16.xpose.msra.mxu0 %v5457
        %7699 = vmatprep.subr.bf16.mxu0 %v5466
        %7700 = vmatpush1.bf16.xpose.msra.mxu0 %v5465
        %7701 = vmatprep.subr.bf16.mxu0 %v5474
        %7702 = vmatpush1.bf16.xpose.msra.mxu0 %v5473
        %7703 = vmatprep.subr.bf16.mxu0 %v5482
        %7704 = vmatpush1.bf16.xpose.msra.mxu0 %v5481
        %7705 = vmatprep.subr.bf16.mxu0 %v5490
        %7706 = vmatpush1.bf16.xpose.msra.mxu0 %v5489
        %7707 = vmatprep.subr.bf16.mxu0 %v5498
        %7708 = vmatpush1.bf16.xpose.msra.mxu0 %v5497
        %7709 = vmatprep.mubr.bf16.mxu0 %v1394
        %7710 = vmatmul.mubr.bf16.gmra.mrb[0].mxu0 %v1393
        %v7711 = vpop.f32.mrb[0].mxu0
        %v7712 = vadd.f32 %v1360, %v7711
        %v7713 = vpop.f32.mrb[0].mxu0
        %v7714 = vadd.f32 %v1364, %v7713
        %v7715 = vpop.f32.mrb[0].mxu0
        %v7716 = vpop.f32.mrb[0].mxu0
        %7717 = vdwg.mxu0
        %7718 = vmatprep.subr.bf16.mxu0 %v5380
        %7719 = vmatpush1.bf16.xpose.msra.mxu0 %v5379
        %7720 = vmatprep.subr.bf16.mxu0 %v5388
        %7721 = vmatpush1.bf16.xpose.msra.mxu0 %v5387
        %7722 = vmatprep.subr.bf16.mxu0 %v5396
        %7723 = vmatpush1.bf16.xpose.msra.mxu0 %v5395
        %7724 = vmatprep.subr.bf16.mxu0 %v5404
        %7725 = vmatpush1.bf16.xpose.msra.mxu0 %v5403
        %7726 = vmatprep.subr.bf16.mxu0 %v5412
        %7727 = vmatpush1.bf16.xpose.msra.mxu0 %v5411
        %7728 = vmatprep.subr.bf16.mxu0 %v5420
        %7729 = vmatpush1.bf16.xpose.msra.mxu0 %v5419
        %7730 = vmatprep.subr.bf16.mxu0 %v5428
        %7731 = vmatpush1.bf16.xpose.msra.mxu0 %v5427
        %7732 = vmatprep.subr.bf16.mxu0 %v5436
        %7733 = vmatpush1.bf16.xpose.msra.mxu0 %v5435
        %7734 = vmatprep.subr.bf16.mxu0 %v5444
        %7735 = vmatpush1.bf16.xpose.msra.mxu0 %v5443
        %7736 = vmatprep.subr.bf16.mxu0 %v5452
        %7737 = vmatpush1.bf16.xpose.msra.mxu0 %v5451
        %7738 = vmatprep.subr.bf16.mxu0 %v5460
        %7739 = vmatpush1.bf16.xpose.msra.mxu0 %v5459
        %7740 = vmatprep.subr.bf16.mxu0 %v5468
        %7741 = vmatpush1.bf16.xpose.msra.mxu0 %v5467
        %7742 = vmatprep.subr.bf16.mxu0 %v5476
        %7743 = vmatpush1.bf16.xpose.msra.mxu0 %v5475
        %7744 = vmatprep.subr.bf16.mxu0 %v5484
        %7745 = vmatpush1.bf16.xpose.msra.mxu0 %v5483
        %7746 = vmatprep.subr.bf16.mxu0 %v5492
        %7747 = vmatpush1.bf16.xpose.msra.mxu0 %v5491
        %7748 = vmatprep.subr.bf16.mxu0 %v5500
        %7749 = vmatpush1.bf16.xpose.msra.mxu0 %v5499
        %7750 = vmatprep.mubr.bf16.mxu0 %v1396
        %7751 = vmatmul.mubr.bf16.gmra.mrb[0].mxu0 %v1395
        %v7752 = vpop.f32.mrb[0].mxu0
        %v7753 = vadd.f32 %v7712, %v7752
        %v7754 = vpop.f32.mrb[0].mxu0
        %v7755 = vadd.f32 %v7714, %v7754
        %v7756 = vpop.f32.mrb[0].mxu0
        %v7757 = vpop.f32.mrb[0].mxu0
        %7758 = vdwg.mxu0
        %7759 = vmatprep.subr.bf16.mxu0 %v5382
        %7760 = vmatpush1.bf16.xpose.msra.mxu0 %v5381
        %7761 = vmatprep.subr.bf16.mxu0 %v5390
        %7762 = vmatpush1.bf16.xpose.msra.mxu0 %v5389
        %7763 = vmatprep.subr.bf16.mxu0 %v5398
        %7764 = vmatpush1.bf16.xpose.msra.mxu0 %v5397
        %7765 = vmatprep.subr.bf16.mxu0 %v5406
        %7766 = vmatpush1.bf16.xpose.msra.mxu0 %v5405
        %7767 = vmatprep.subr.bf16.mxu0 %v5414
        %7768 = vmatpush1.bf16.xpose.msra.mxu0 %v5413
        %7769 = vmatprep.subr.bf16.mxu0 %v5422
        %7770 = vmatpush1.bf16.xpose.msra.mxu0 %v5421
        %7771 = vmatprep.subr.bf16.mxu0 %v5430
        %7772 = vmatpush1.bf16.xpose.msra.mxu0 %v5429
        %7773 = vmatprep.subr.bf16.mxu0 %v5438
        %7774 = vmatpush1.bf16.xpose.msra.mxu0 %v5437
        %7775 = vmatprep.subr.bf16.mxu0 %v5446
        %7776 = vmatpush1.bf16.xpose.msra.mxu0 %v5445
        %7777 = vmatprep.subr.bf16.mxu0 %v5454
        %7778 = vmatpush1.bf16.xpose.msra.mxu0 %v5453
        %7779 = vmatprep.subr.bf16.mxu0 %v5462
        %7780 = vmatpush1.bf16.xpose.msra.mxu0 %v5461
        %7781 = vmatprep.subr.bf16.mxu0 %v5470
        %7782 = vmatpush1.bf16.xpose.msra.mxu0 %v5469
        %7783 = vmatprep.subr.bf16.mxu0 %v5478
        %7784 = vmatpush1.bf16.xpose.msra.mxu0 %v5477
        %7785 = vmatprep.subr.bf16.mxu0 %v5486
        %7786 = vmatpush1.bf16.xpose.msra.mxu0 %v5485
        %7787 = vmatprep.subr.bf16.mxu0 %v5494
        %7788 = vmatpush1.bf16.xpose.msra.mxu0 %v5493
        %7789 = vmatprep.subr.bf16.mxu0 %v5502
        %7790 = vmatpush1.bf16.xpose.msra.mxu0 %v5501
        %7791 = vmatprep.mubr.bf16.mxu0 %v1398
        %7792 = vmatmul.mubr.bf16.gmra.mrb[0].mxu0 %v1397
        %v7793 = vpop.f32.mrb[0].mxu0
        %v7794 = vadd.f32 %v7753, %v7793
        %v7795 = vpop.f32.mrb[0].mxu0
        %v7796 = vadd.f32 %v7755, %v7795
        %v7797 = vpop.f32.mrb[0].mxu0
        %v7798 = vpop.f32.mrb[0].mxu0
        %7799 = vdwg.mxu0
        %7800 = vmatprep.subr.bf16.mxu0 %v5384
        %7801 = vmatpush1.bf16.xpose.msra.mxu0 %v5383
        %7802 = vmatprep.subr.bf16.mxu0 %v5392
        %7803 = vmatpush1.bf16.xpose.msra.mxu0 %v5391
        %7804 = vmatprep.subr.bf16.mxu0 %v5400
        %7805 = vmatpush1.bf16.xpose.msra.mxu0 %v5399
        %7806 = vmatprep.subr.bf16.mxu0 %v5408
        %7807 = vmatpush1.bf16.xpose.msra.mxu0 %v5407
        %7808 = vmatprep.subr.bf16.mxu0 %v5416
        %7809 = vmatpush1.bf16.xpose.msra.mxu0 %v5415
        %7810 = vmatprep.subr.bf16.mxu0 %v5424
        %7811 = vmatpush1.bf16.xpose.msra.mxu0 %v5423
        %7812 = vmatprep.subr.bf16.mxu0 %v5432
        %7813 = vmatpush1.bf16.xpose.msra.mxu0 %v5431
        %7814 = vmatprep.subr.bf16.mxu0 %v5440
        %7815 = vmatpush1.bf16.xpose.msra.mxu0 %v5439
        %7816 = vmatprep.subr.bf16.mxu0 %v5448
        %7817 = vmatpush1.bf16.xpose.msra.mxu0 %v5447
        %7818 = vmatprep.subr.bf16.mxu0 %v5456
        %7819 = vmatpush1.bf16.xpose.msra.mxu0 %v5455
        %7820 = vmatprep.subr.bf16.mxu0 %v5464
        %7821 = vmatpush1.bf16.xpose.msra.mxu0 %v5463
        %7822 = vmatprep.subr.bf16.mxu0 %v5472
        %7823 = vmatpush1.bf16.xpose.msra.mxu0 %v5471
        %7824 = vmatprep.subr.bf16.mxu0 %v5480
        %7825 = vmatpush1.bf16.xpose.msra.mxu0 %v5479
        %7826 = vmatprep.subr.bf16.mxu0 %v5488
        %7827 = vmatpush1.bf16.xpose.msra.mxu0 %v5487
        %7828 = vmatprep.subr.bf16.mxu0 %v5496
        %7829 = vmatpush1.bf16.xpose.msra.mxu0 %v5495
        %7830 = vmatprep.subr.bf16.mxu0 %v5504
        %7831 = vmatpush1.bf16.xpose.msra.mxu0 %v5503
        %7832 = vmatprep.mubr.bf16.mxu0 %v1400
        %7833 = vmatmul.mubr.bf16.gmra.mrb[0].mxu0 %v1399
        %v7834 = vpop.f32.mrb[0].mxu0
        %v7835 = vadd.f32 %v7794, %v7834
        %v7836 = vpop.f32.mrb[0].mxu0
        %v7837 = vadd.f32 %v7796, %v7836
        %v7838 = vpop.f32.mrb[0].mxu0
        %v7839 = vpop.f32.mrb[0].mxu0
        %7840 = vdwg.mxu0
        %v7841 = vand.u32 2147483647, %v6687
        %v7842 = vand.u32 2147483647, %v6689
        %v7843 = vand.u32 2147483647, %v6851
        %v7844 = vand.u32 2147483647, %v6853
        %v7845 = vand.u32 2147483647, %v7015
        %v7846 = vand.u32 2147483647, %v7017
        %v7847 = vand.u32 2147483647, %v7179
        %v7848 = vand.u32 2147483647, %v7181
        %v7849 = vand.u32 2147483647, %v7343
        %v7850 = vand.u32 2147483647, %v7345
        %v7851 = vand.u32 2147483647, %v7507
        %v7852 = vand.u32 2147483647, %v7509
        %v7853 = vand.u32 2147483647, %v7671
        %v7854 = vand.u32 2147483647, %v7673
        %v7855 = vand.u32 2147483647, %v7835
        %v7856 = vand.u32 2147483647, %v7837
        %v7857 = vadd.f32 %v7841, 1.0
        %v7858 = vadd.f32 %v7842, 1.0
        %v7859 = vadd.f32 %v7843, 1.0
        %v7860 = vadd.f32 %v7844, 1.0
        %v7861 = vadd.f32 %v7845, 1.0
        %v7862 = vadd.f32 %v7846, 1.0
        %v7863 = vadd.f32 %v7847, 1.0
        %v7864 = vadd.f32 %v7848, 1.0
        %v7865 = vadd.f32 %v7849, 1.0
        %v7866 = vadd.f32 %v7850, 1.0
        %v7867 = vadd.f32 %v7851, 1.0
        %v7868 = vadd.f32 %v7852, 1.0
        %v7869 = vadd.f32 %v7853, 1.0
        %v7870 = vadd.f32 %v7854, 1.0
        %v7871 = vadd.f32 %v7855, 1.0
        %v7872 = vadd.f32 %v7856, 1.0
        %v7873 = vrcp.pop %v7857
        %v7874 = vrcp.pop %v7858
        %v7875 = vrcp.pop %v7859
        %v7876 = vrcp.pop %v7860
        %v7877 = vrcp.pop %v7861
        %v7878 = vrcp.pop %v7862
        %v7879 = vrcp.pop %v7863
        %v7880 = vrcp.pop %v7864
        %v7881 = vrcp.pop %v7865
        %v7882 = vrcp.pop %v7866
        %v7883 = vrcp.pop %v7867
        %v7884 = vrcp.pop %v7868
        %v7885 = vrcp.pop %v7869
        %v7886 = vrcp.pop %v7870
        %v7887 = vrcp.pop %v7871
        %v7888 = vrcp.pop %v7872
        %v7891 = vlaneseq
        %v7892 = vshrl.u32 %v7891, 7
        %v7893 = vsub.s32 0, %v7892
        %v7894 = vrot.slane %v269, %v7893
        %v7895 = vlaneseq
        %v7896 = vshrl.u32 %v7895, 7
        %v7897 = vsub.s32 1, %v7896
        %v7898 = vrot.slane %v269, %v7897
        %v7899 = vlaneseq
        %v7900 = vshrl.u32 %v7899, 7
        %v7901 = vsub.s32 2, %v7900
        %v7902 = vrot.slane %v269, %v7901
        %v7903 = vlaneseq
        %v7904 = vshrl.u32 %v7903, 7
        %v7905 = vsub.s32 3, %v7904
        %v7906 = vrot.slane %v269, %v7905
        %v7907 = vlaneseq
        %v7908 = vshrl.u32 %v7907, 7
        %v7909 = vsub.s32 4, %v7908
        %v7910 = vrot.slane %v269, %v7909
        %v7911 = vlaneseq
        %v7912 = vshrl.u32 %v7911, 7
        %v7913 = vsub.s32 5, %v7912
        %v7914 = vrot.slane %v269, %v7913
        %v7915 = vlaneseq
        %v7916 = vshrl.u32 %v7915, 7
        %v7917 = vsub.s32 6, %v7916
        %v7918 = vrot.slane %v269, %v7917
        %v7919 = vlaneseq
        %v7920 = vshrl.u32 %v7919, 7
        %v7921 = vsub.s32 7, %v7920
        %v7922 = vrot.slane %v269, %v7921
        %v7923 = vlaneseq
        %v7924 = vshrl.u32 %v7923, 7
        %v7925 = vsub.s32 0, %v7924
        %v7926 = vrot.slane %v270, %v7925
        %v7927 = vlaneseq
        %v7928 = vshrl.u32 %v7927, 7
        %v7929 = vsub.s32 1, %v7928
        %v7930 = vrot.slane %v270, %v7929
        %v7931 = vlaneseq
        %v7932 = vshrl.u32 %v7931, 7
        %v7933 = vsub.s32 2, %v7932
        %v7934 = vrot.slane %v270, %v7933
        %v7935 = vlaneseq
        %v7936 = vshrl.u32 %v7935, 7
        %v7937 = vsub.s32 3, %v7936
        %v7938 = vrot.slane %v270, %v7937
        %v7939 = vlaneseq
        %v7940 = vshrl.u32 %v7939, 7
        %v7941 = vsub.s32 4, %v7940
        %v7942 = vrot.slane %v270, %v7941
        %v7943 = vlaneseq
        %v7944 = vshrl.u32 %v7943, 7
        %v7945 = vsub.s32 5, %v7944
        %v7946 = vrot.slane %v270, %v7945
        %v7947 = vlaneseq
        %v7948 = vshrl.u32 %v7947, 7
        %v7949 = vsub.s32 6, %v7948
        %v7950 = vrot.slane %v270, %v7949
        %v7951 = vlaneseq
        %v7952 = vshrl.u32 %v7951, 7
        %v7953 = vsub.s32 7, %v7952
        %v7954 = vrot.slane %v270, %v7953
        %v7971 = vmul.f32 %v7894, %v7873
        %v7972 = vmul.f32 %v7898, %v7874
        %v7973 = vmul.f32 %v7902, %v7875
        %v7974 = vmul.f32 %v7906, %v7876
        %v7975 = vmul.f32 %v7910, %v7877
        %v7976 = vmul.f32 %v7914, %v7878
        %v7977 = vmul.f32 %v7918, %v7879
        %v7978 = vmul.f32 %v7922, %v7880
        %v7979 = vmul.f32 %v7926, %v7881
        %v7980 = vmul.f32 %v7930, %v7882
        %v7981 = vmul.f32 %v7934, %v7883
        %v7982 = vmul.f32 %v7938, %v7884
        %v7983 = vmul.f32 %v7942, %v7885
        %v7984 = vmul.f32 %v7946, %v7886
        %v7985 = vmul.f32 %v7950, %v7887
        %v7986 = vmul.f32 %v7954, %v7888
        %v7987 = vpack.c.bf16 %v7971, %v7971
        %v7988 = vpack.c.bf16 %v7972, %v7972
        %v7989 = vpack.c.bf16 %v7973, %v7973
        %v7990 = vpack.c.bf16 %v7974, %v7974
        %v7991 = vpack.c.bf16 %v7975, %v7975
        %v7992 = vpack.c.bf16 %v7976, %v7976
        %v7993 = vpack.c.bf16 %v7977, %v7977
        %v7994 = vpack.c.bf16 %v7978, %v7978
        %v7995 = vpack.c.bf16 %v7979, %v7979
        %v7996 = vpack.c.bf16 %v7980, %v7980
        %v7997 = vpack.c.bf16 %v7981, %v7981
        %v7998 = vpack.c.bf16 %v7982, %v7982
        %v7999 = vpack.c.bf16 %v7983, %v7983
        %v8000 = vpack.c.bf16 %v7984, %v7984
        %v8001 = vpack.c.bf16 %v7985, %v7985
        %v8002 = vpack.c.bf16 %v7986, %v7986
        %8003 = vmatprep.subr.bf16.mxu0 %v4482
        %8004 = vmatpush1.bf16.msra.mxu0 %v4481
        %8005 = vmatprep.subr.bf16.mxu0 %v4490
        %8006 = vmatpush1.bf16.msra.mxu0 %v4489
        %8007 = vmatprep.subr.bf16.mxu0 %v4498
        %8008 = vmatpush1.bf16.msra.mxu0 %v4497
        %8009 = vmatprep.subr.bf16.mxu0 %v4506
        %8010 = vmatpush1.bf16.msra.mxu0 %v4505
        %8011 = vmatprep.subr.bf16.mxu0 %v4514
        %8012 = vmatpush1.bf16.msra.mxu0 %v4513
        %8013 = vmatprep.subr.bf16.mxu0 %v4522
        %8014 = vmatpush1.bf16.msra.mxu0 %v4521
        %8015 = vmatprep.subr.bf16.mxu0 %v4530
        %8016 = vmatpush1.bf16.msra.mxu0 %v4529
        %8017 = vmatprep.subr.bf16.mxu0 %v4538
        %8018 = vmatpush1.bf16.msra.mxu0 %v4537
        %8019 = vmatprep.subr.bf16.mxu0 %v4546
        %8020 = vmatpush1.bf16.msra.mxu0 %v4545
        %8021 = vmatprep.subr.bf16.mxu0 %v4554
        %8022 = vmatpush1.bf16.msra.mxu0 %v4553
        %8023 = vmatprep.subr.bf16.mxu0 %v4562
        %8024 = vmatpush1.bf16.msra.mxu0 %v4561
        %8025 = vmatprep.subr.bf16.mxu0 %v4570
        %8026 = vmatpush1.bf16.msra.mxu0 %v4569
        %8027 = vmatprep.subr.bf16.mxu0 %v4578
        %8028 = vmatpush1.bf16.msra.mxu0 %v4577
        %8029 = vmatprep.subr.bf16.mxu0 %v4586
        %8030 = vmatpush1.bf16.msra.mxu0 %v4585
        %8031 = vmatprep.subr.bf16.mxu0 %v4594
        %8032 = vmatpush1.bf16.msra.mxu0 %v4593
        %8033 = vmatprep.subr.bf16.mxu0 %v4602
        %8034 = vmatpush1.bf16.msra.mxu0 %v4601
        %8035 = vmatprep.mubr.bf16.mxu0 %v7988
        %8036 = vmatmul.mubr.bf16.gmra.mrb[0].mxu0 %v7987
        %v8037 = vpop.f32.mrb[0].mxu0
        %v8038 = vadd.f32 0.0, %v8037
        %v8039 = vpop.f32.mrb[0].mxu0
        %v8040 = vadd.f32 0.0, %v8039
        %v8041 = vpop.f32.mrb[0].mxu0
        %v8042 = vpop.f32.mrb[0].mxu0
        %8043 = vdwg.mxu0
        %8044 = vmatprep.subr.bf16.mxu0 %v4610
        %8045 = vmatpush1.bf16.msra.mxu0 %v4609
        %8046 = vmatprep.subr.bf16.mxu0 %v4618
        %8047 = vmatpush1.bf16.msra.mxu0 %v4617
        %8048 = vmatprep.subr.bf16.mxu0 %v4626
        %8049 = vmatpush1.bf16.msra.mxu0 %v4625
        %8050 = vmatprep.subr.bf16.mxu0 %v4634
        %8051 = vmatpush1.bf16.msra.mxu0 %v4633
        %8052 = vmatprep.subr.bf16.mxu0 %v4642
        %8053 = vmatpush1.bf16.msra.mxu0 %v4641
        %8054 = vmatprep.subr.bf16.mxu0 %v4650
        %8055 = vmatpush1.bf16.msra.mxu0 %v4649
        %8056 = vmatprep.subr.bf16.mxu0 %v4658
        %8057 = vmatpush1.bf16.msra.mxu0 %v4657
        %8058 = vmatprep.subr.bf16.mxu0 %v4666
        %8059 = vmatpush1.bf16.msra.mxu0 %v4665
        %8060 = vmatprep.subr.bf16.mxu0 %v4674
        %8061 = vmatpush1.bf16.msra.mxu0 %v4673
        %8062 = vmatprep.subr.bf16.mxu0 %v4682
        %8063 = vmatpush1.bf16.msra.mxu0 %v4681
        %8064 = vmatprep.subr.bf16.mxu0 %v4690
        %8065 = vmatpush1.bf16.msra.mxu0 %v4689
        %8066 = vmatprep.subr.bf16.mxu0 %v4698
        %8067 = vmatpush1.bf16.msra.mxu0 %v4697
        %8068 = vmatprep.subr.bf16.mxu0 %v4706
        %8069 = vmatpush1.bf16.msra.mxu0 %v4705
        %8070 = vmatprep.subr.bf16.mxu0 %v4714
        %8071 = vmatpush1.bf16.msra.mxu0 %v4713
        %8072 = vmatprep.subr.bf16.mxu0 %v4722
        %8073 = vmatpush1.bf16.msra.mxu0 %v4721
        %8074 = vmatprep.subr.bf16.mxu0 %v4730
        %8075 = vmatpush1.bf16.msra.mxu0 %v4729
        %8076 = vmatprep.mubr.bf16.mxu0 %v7990
        %8077 = vmatmul.mubr.bf16.gmra.mrb[0].mxu0 %v7989
        %v8078 = vpop.f32.mrb[0].mxu0
        %v8079 = vadd.f32 %v8038, %v8078
        %v8080 = vpop.f32.mrb[0].mxu0
        %v8081 = vadd.f32 %v8040, %v8080
        %v8082 = vpop.f32.mrb[0].mxu0
        %v8083 = vpop.f32.mrb[0].mxu0
        %8084 = vdwg.mxu0
        %8085 = vmatprep.subr.bf16.mxu0 %v4738
        %8086 = vmatpush1.bf16.msra.mxu0 %v4737
        %8087 = vmatprep.subr.bf16.mxu0 %v4746
        %8088 = vmatpush1.bf16.msra.mxu0 %v4745
        %8089 = vmatprep.subr.bf16.mxu0 %v4754
        %8090 = vmatpush1.bf16.msra.mxu0 %v4753
        %8091 = vmatprep.subr.bf16.mxu0 %v4762
        %8092 = vmatpush1.bf16.msra.mxu0 %v4761
        %8093 = vmatprep.subr.bf16.mxu0 %v4770
        %8094 = vmatpush1.bf16.msra.mxu0 %v4769
        %8095 = vmatprep.subr.bf16.mxu0 %v4778
        %8096 = vmatpush1.bf16.msra.mxu0 %v4777
        %8097 = vmatprep.subr.bf16.mxu0 %v4786
        %8098 = vmatpush1.bf16.msra.mxu0 %v4785
        %8099 = vmatprep.subr.bf16.mxu0 %v4794
        %8100 = vmatpush1.bf16.msra.mxu0 %v4793
        %8101 = vmatprep.subr.bf16.mxu0 %v4802
        %8102 = vmatpush1.bf16.msra.mxu0 %v4801
        %8103 = vmatprep.subr.bf16.mxu0 %v4810
        %8104 = vmatpush1.bf16.msra.mxu0 %v4809
        %8105 = vmatprep.subr.bf16.mxu0 %v4818
        %8106 = vmatpush1.bf16.msra.mxu0 %v4817
        %8107 = vmatprep.subr.bf16.mxu0 %v4826
        %8108 = vmatpush1.bf16.msra.mxu0 %v4825
        %8109 = vmatprep.subr.bf16.mxu0 %v4834
        %8110 = vmatpush1.bf16.msra.mxu0 %v4833
        %8111 = vmatprep.subr.bf16.mxu0 %v4842
        %8112 = vmatpush1.bf16.msra.mxu0 %v4841
        %8113 = vmatprep.subr.bf16.mxu0 %v4850
        %8114 = vmatpush1.bf16.msra.mxu0 %v4849
        %8115 = vmatprep.subr.bf16.mxu0 %v4858
        %8116 = vmatpush1.bf16.msra.mxu0 %v4857
        %8117 = vmatprep.mubr.bf16.mxu0 %v7992
        %8118 = vmatmul.mubr.bf16.gmra.mrb[0].mxu0 %v7991
        %v8119 = vpop.f32.mrb[0].mxu0
        %v8120 = vadd.f32 %v8079, %v8119
        %v8121 = vpop.f32.mrb[0].mxu0
        %v8122 = vadd.f32 %v8081, %v8121
        %v8123 = vpop.f32.mrb[0].mxu0
        %v8124 = vpop.f32.mrb[0].mxu0
        %8125 = vdwg.mxu0
        %8126 = vmatprep.subr.bf16.mxu0 %v4866
        %8127 = vmatpush1.bf16.msra.mxu0 %v4865
        %8128 = vmatprep.subr.bf16.mxu0 %v4874
        %8129 = vmatpush1.bf16.msra.mxu0 %v4873
        %8130 = vmatprep.subr.bf16.mxu0 %v4882
        %8131 = vmatpush1.bf16.msra.mxu0 %v4881
        %8132 = vmatprep.subr.bf16.mxu0 %v4890
        %8133 = vmatpush1.bf16.msra.mxu0 %v4889
        %8134 = vmatprep.subr.bf16.mxu0 %v4898
        %8135 = vmatpush1.bf16.msra.mxu0 %v4897
        %8136 = vmatprep.subr.bf16.mxu0 %v4906
        %8137 = vmatpush1.bf16.msra.mxu0 %v4905
        %8138 = vmatprep.subr.bf16.mxu0 %v4914
        %8139 = vmatpush1.bf16.msra.mxu0 %v4913
        %8140 = vmatprep.subr.bf16.mxu0 %v4922
        %8141 = vmatpush1.bf16.msra.mxu0 %v4921
        %8142 = vmatprep.subr.bf16.mxu0 %v4930
        %8143 = vmatpush1.bf16.msra.mxu0 %v4929
        %8144 = vmatprep.subr.bf16.mxu0 %v4938
        %8145 = vmatpush1.bf16.msra.mxu0 %v4937
        %8146 = vmatprep.subr.bf16.mxu0 %v4946
        %8147 = vmatpush1.bf16.msra.mxu0 %v4945
        %8148 = vmatprep.subr.bf16.mxu0 %v4954
        %8149 = vmatpush1.bf16.msra.mxu0 %v4953
        %8150 = vmatprep.subr.bf16.mxu0 %v4962
        %8151 = vmatpush1.bf16.msra.mxu0 %v4961
        %8152 = vmatprep.subr.bf16.mxu0 %v4970
        %8153 = vmatpush1.bf16.msra.mxu0 %v4969
        %8154 = vmatprep.subr.bf16.mxu0 %v4978
        %8155 = vmatpush1.bf16.msra.mxu0 %v4977
        %8156 = vmatprep.subr.bf16.mxu0 %v4986
        %8157 = vmatpush1.bf16.msra.mxu0 %v4985
        %8158 = vmatprep.mubr.bf16.mxu0 %v7994
        %8159 = vmatmul.mubr.bf16.gmra.mrb[0].mxu0 %v7993
        %v8160 = vpop.f32.mrb[0].mxu0
        %v8161 = vadd.f32 %v8120, %v8160
        %v8162 = vpop.f32.mrb[0].mxu0
        %v8163 = vadd.f32 %v8122, %v8162
        %v8164 = vpop.f32.mrb[0].mxu0
        %v8165 = vpop.f32.mrb[0].mxu0
        %8166 = vdwg.mxu0
        %8167 = vmatprep.subr.bf16.mxu0 %v4994
        %8168 = vmatpush1.bf16.msra.mxu0 %v4993
        %8169 = vmatprep.subr.bf16.mxu0 %v5002
        %8170 = vmatpush1.bf16.msra.mxu0 %v5001
        %8171 = vmatprep.subr.bf16.mxu0 %v5010
        %8172 = vmatpush1.bf16.msra.mxu0 %v5009
        %8173 = vmatprep.subr.bf16.mxu0 %v5018
        %8174 = vmatpush1.bf16.msra.mxu0 %v5017
        %8175 = vmatprep.subr.bf16.mxu0 %v5026
        %8176 = vmatpush1.bf16.msra.mxu0 %v5025
        %8177 = vmatprep.subr.bf16.mxu0 %v5034
        %8178 = vmatpush1.bf16.msra.mxu0 %v5033
        %8179 = vmatprep.subr.bf16.mxu0 %v5042
        %8180 = vmatpush1.bf16.msra.mxu0 %v5041
        %8181 = vmatprep.subr.bf16.mxu0 %v5050
        %8182 = vmatpush1.bf16.msra.mxu0 %v5049
        %8183 = vmatprep.subr.bf16.mxu0 %v5058
        %8184 = vmatpush1.bf16.msra.mxu0 %v5057
        %8185 = vmatprep.subr.bf16.mxu0 %v5066
        %8186 = vmatpush1.bf16.msra.mxu0 %v5065
        %8187 = vmatprep.subr.bf16.mxu0 %v5074
        %8188 = vmatpush1.bf16.msra.mxu0 %v5073
        %8189 = vmatprep.subr.bf16.mxu0 %v5082
        %8190 = vmatpush1.bf16.msra.mxu0 %v5081
        %8191 = vmatprep.subr.bf16.mxu0 %v5090
        %8192 = vmatpush1.bf16.msra.mxu0 %v5089
        %8193 = vmatprep.subr.bf16.mxu0 %v5098
        %8194 = vmatpush1.bf16.msra.mxu0 %v5097
        %8195 = vmatprep.subr.bf16.mxu0 %v5106
        %8196 = vmatpush1.bf16.msra.mxu0 %v5105
        %8197 = vmatprep.subr.bf16.mxu0 %v5114
        %8198 = vmatpush1.bf16.msra.mxu0 %v5113
        %8199 = vmatprep.mubr.bf16.mxu0 %v7996
        %8200 = vmatmul.mubr.bf16.gmra.mrb[0].mxu0 %v7995
        %v8201 = vpop.f32.mrb[0].mxu0
        %v8202 = vadd.f32 %v8161, %v8201
        %v8203 = vpop.f32.mrb[0].mxu0
        %v8204 = vadd.f32 %v8163, %v8203
        %v8205 = vpop.f32.mrb[0].mxu0
        %v8206 = vpop.f32.mrb[0].mxu0
        %8207 = vdwg.mxu0
        %8208 = vmatprep.subr.bf16.mxu0 %v5122
        %8209 = vmatpush1.bf16.msra.mxu0 %v5121
        %8210 = vmatprep.subr.bf16.mxu0 %v5130
        %8211 = vmatpush1.bf16.msra.mxu0 %v5129
        %8212 = vmatprep.subr.bf16.mxu0 %v5138
        %8213 = vmatpush1.bf16.msra.mxu0 %v5137
        %8214 = vmatprep.subr.bf16.mxu0 %v5146
        %8215 = vmatpush1.bf16.msra.mxu0 %v5145
        %8216 = vmatprep.subr.bf16.mxu0 %v5154
        %8217 = vmatpush1.bf16.msra.mxu0 %v5153
        %8218 = vmatprep.subr.bf16.mxu0 %v5162
        %8219 = vmatpush1.bf16.msra.mxu0 %v5161
        %8220 = vmatprep.subr.bf16.mxu0 %v5170
        %8221 = vmatpush1.bf16.msra.mxu0 %v5169
        %8222 = vmatprep.subr.bf16.mxu0 %v5178
        %8223 = vmatpush1.bf16.msra.mxu0 %v5177
        %8224 = vmatprep.subr.bf16.mxu0 %v5186
        %8225 = vmatpush1.bf16.msra.mxu0 %v5185
        %8226 = vmatprep.subr.bf16.mxu0 %v5194
        %8227 = vmatpush1.bf16.msra.mxu0 %v5193
        %8228 = vmatprep.subr.bf16.mxu0 %v5202
        %8229 = vmatpush1.bf16.msra.mxu0 %v5201
        %8230 = vmatprep.subr.bf16.mxu0 %v5210
        %8231 = vmatpush1.bf16.msra.mxu0 %v5209
        %8232 = vmatprep.subr.bf16.mxu0 %v5218
        %8233 = vmatpush1.bf16.msra.mxu0 %v5217
        %8234 = vmatprep.subr.bf16.mxu0 %v5226
        %8235 = vmatpush1.bf16.msra.mxu0 %v5225
        %8236 = vmatprep.subr.bf16.mxu0 %v5234
        %8237 = vmatpush1.bf16.msra.mxu0 %v5233
        %8238 = vmatprep.subr.bf16.mxu0 %v5242
        %8239 = vmatpush1.bf16.msra.mxu0 %v5241
        %8240 = vmatprep.mubr.bf16.mxu0 %v7998
        %8241 = vmatmul.mubr.bf16.gmra.mrb[0].mxu0 %v7997
        %v8242 = vpop.f32.mrb[0].mxu0
        %v8243 = vadd.f32 %v8202, %v8242
        %v8244 = vpop.f32.mrb[0].mxu0
        %v8245 = vadd.f32 %v8204, %v8244
        %v8246 = vpop.f32.mrb[0].mxu0
        %v8247 = vpop.f32.mrb[0].mxu0
        %8248 = vdwg.mxu0
        %8249 = vmatprep.subr.bf16.mxu0 %v5250
        %8250 = vmatpush1.bf16.msra.mxu0 %v5249
        %8251 = vmatprep.subr.bf16.mxu0 %v5258
        %8252 = vmatpush1.bf16.msra.mxu0 %v5257
        %8253 = vmatprep.subr.bf16.mxu0 %v5266
        %8254 = vmatpush1.bf16.msra.mxu0 %v5265
        %8255 = vmatprep.subr.bf16.mxu0 %v5274
        %8256 = vmatpush1.bf16.msra.mxu0 %v5273
        %8257 = vmatprep.subr.bf16.mxu0 %v5282
        %8258 = vmatpush1.bf16.msra.mxu0 %v5281
        %8259 = vmatprep.subr.bf16.mxu0 %v5290
        %8260 = vmatpush1.bf16.msra.mxu0 %v5289
        %8261 = vmatprep.subr.bf16.mxu0 %v5298
        %8262 = vmatpush1.bf16.msra.mxu0 %v5297
        %8263 = vmatprep.subr.bf16.mxu0 %v5306
        %8264 = vmatpush1.bf16.msra.mxu0 %v5305
        %8265 = vmatprep.subr.bf16.mxu0 %v5314
        %8266 = vmatpush1.bf16.msra.mxu0 %v5313
        %8267 = vmatprep.subr.bf16.mxu0 %v5322
        %8268 = vmatpush1.bf16.msra.mxu0 %v5321
        %8269 = vmatprep.subr.bf16.mxu0 %v5330
        %8270 = vmatpush1.bf16.msra.mxu0 %v5329
        %8271 = vmatprep.subr.bf16.mxu0 %v5338
        %8272 = vmatpush1.bf16.msra.mxu0 %v5337
        %8273 = vmatprep.subr.bf16.mxu0 %v5346
        %8274 = vmatpush1.bf16.msra.mxu0 %v5345
        %8275 = vmatprep.subr.bf16.mxu0 %v5354
        %8276 = vmatpush1.bf16.msra.mxu0 %v5353
        %8277 = vmatprep.subr.bf16.mxu0 %v5362
        %8278 = vmatpush1.bf16.msra.mxu0 %v5361
        %8279 = vmatprep.subr.bf16.mxu0 %v5370
        %8280 = vmatpush1.bf16.msra.mxu0 %v5369
        %8281 = vmatprep.mubr.bf16.mxu0 %v8000
        %8282 = vmatmul.mubr.bf16.gmra.mrb[0].mxu0 %v7999
        %v8283 = vpop.f32.mrb[0].mxu0
        %v8284 = vadd.f32 %v8243, %v8283
        %v8285 = vpop.f32.mrb[0].mxu0
        %v8286 = vadd.f32 %v8245, %v8285
        %v8287 = vpop.f32.mrb[0].mxu0
        %v8288 = vpop.f32.mrb[0].mxu0
        %8289 = vdwg.mxu0
        %8290 = vmatprep.subr.bf16.mxu0 %v5378
        %8291 = vmatpush1.bf16.msra.mxu0 %v5377
        %8292 = vmatprep.subr.bf16.mxu0 %v5386
        %8293 = vmatpush1.bf16.msra.mxu0 %v5385
        %8294 = vmatprep.subr.bf16.mxu0 %v5394
        %8295 = vmatpush1.bf16.msra.mxu0 %v5393
        %8296 = vmatprep.subr.bf16.mxu0 %v5402
        %8297 = vmatpush1.bf16.msra.mxu0 %v5401
        %8298 = vmatprep.subr.bf16.mxu0 %v5410
        %8299 = vmatpush1.bf16.msra.mxu0 %v5409
        %8300 = vmatprep.subr.bf16.mxu0 %v5418
        %8301 = vmatpush1.bf16.msra.mxu0 %v5417
        %8302 = vmatprep.subr.bf16.mxu0 %v5426
        %8303 = vmatpush1.bf16.msra.mxu0 %v5425
        %8304 = vmatprep.subr.bf16.mxu0 %v5434
        %8305 = vmatpush1.bf16.msra.mxu0 %v5433
        %8306 = vmatprep.subr.bf16.mxu0 %v5442
        %8307 = vmatpush1.bf16.msra.mxu0 %v5441
        %8308 = vmatprep.subr.bf16.mxu0 %v5450
        %8309 = vmatpush1.bf16.msra.mxu0 %v5449
        %8310 = vmatprep.subr.bf16.mxu0 %v5458
        %8311 = vmatpush1.bf16.msra.mxu0 %v5457
        %8312 = vmatprep.subr.bf16.mxu0 %v5466
        %8313 = vmatpush1.bf16.msra.mxu0 %v5465
        %8314 = vmatprep.subr.bf16.mxu0 %v5474
        %8315 = vmatpush1.bf16.msra.mxu0 %v5473
        %8316 = vmatprep.subr.bf16.mxu0 %v5482
        %8317 = vmatpush1.bf16.msra.mxu0 %v5481
        %8318 = vmatprep.subr.bf16.mxu0 %v5490
        %8319 = vmatpush1.bf16.msra.mxu0 %v5489
        %8320 = vmatprep.subr.bf16.mxu0 %v5498
        %8321 = vmatpush1.bf16.msra.mxu0 %v5497
        %8322 = vmatprep.mubr.bf16.mxu0 %v8002
        %8323 = vmatmul.mubr.bf16.gmra.mrb[0].mxu0 %v8001
        %v8324 = vpop.f32.mrb[0].mxu0
        %v8325 = vadd.f32 %v8284, %v8324
        %v8326 = vpop.f32.mrb[0].mxu0
        %v8327 = vadd.f32 %v8286, %v8326
        %v8328 = vpop.f32.mrb[0].mxu0
        %v8329 = vpop.f32.mrb[0].mxu0
        %8330 = vdwg.mxu0
        %8331 = vmatprep.subr.bf16.mxu0 %v4484
        %8332 = vmatpush1.bf16.msra.mxu0 %v4483
        %8333 = vmatprep.subr.bf16.mxu0 %v4492
        %8334 = vmatpush1.bf16.msra.mxu0 %v4491
        %8335 = vmatprep.subr.bf16.mxu0 %v4500
        %8336 = vmatpush1.bf16.msra.mxu0 %v4499
        %8337 = vmatprep.subr.bf16.mxu0 %v4508
        %8338 = vmatpush1.bf16.msra.mxu0 %v4507
        %8339 = vmatprep.subr.bf16.mxu0 %v4516
        %8340 = vmatpush1.bf16.msra.mxu0 %v4515
        %8341 = vmatprep.subr.bf16.mxu0 %v4524
        %8342 = vmatpush1.bf16.msra.mxu0 %v4523
        %8343 = vmatprep.subr.bf16.mxu0 %v4532
        %8344 = vmatpush1.bf16.msra.mxu0 %v4531
        %8345 = vmatprep.subr.bf16.mxu0 %v4540
        %8346 = vmatpush1.bf16.msra.mxu0 %v4539
        %8347 = vmatprep.subr.bf16.mxu0 %v4548
        %8348 = vmatpush1.bf16.msra.mxu0 %v4547
        %8349 = vmatprep.subr.bf16.mxu0 %v4556
        %8350 = vmatpush1.bf16.msra.mxu0 %v4555
        %8351 = vmatprep.subr.bf16.mxu0 %v4564
        %8352 = vmatpush1.bf16.msra.mxu0 %v4563
        %8353 = vmatprep.subr.bf16.mxu0 %v4572
        %8354 = vmatpush1.bf16.msra.mxu0 %v4571
        %8355 = vmatprep.subr.bf16.mxu0 %v4580
        %8356 = vmatpush1.bf16.msra.mxu0 %v4579
        %8357 = vmatprep.subr.bf16.mxu0 %v4588
        %8358 = vmatpush1.bf16.msra.mxu0 %v4587
        %8359 = vmatprep.subr.bf16.mxu0 %v4596
        %8360 = vmatpush1.bf16.msra.mxu0 %v4595
        %8361 = vmatprep.subr.bf16.mxu0 %v4604
        %8362 = vmatpush1.bf16.msra.mxu0 %v4603
        %8363 = vmatprep.mubr.bf16.mxu0 %v7988
        %8364 = vmatmul.mubr.bf16.gmra.mrb[0].mxu0 %v7987
        %v8365 = vpop.f32.mrb[0].mxu0
        %v8366 = vadd.f32 0.0, %v8365
        %v8367 = vpop.f32.mrb[0].mxu0
        %v8368 = vadd.f32 0.0, %v8367
        %v8369 = vpop.f32.mrb[0].mxu0
        %v8370 = vpop.f32.mrb[0].mxu0
        %8371 = vdwg.mxu0
        %8372 = vmatprep.subr.bf16.mxu0 %v4612
        %8373 = vmatpush1.bf16.msra.mxu0 %v4611
        %8374 = vmatprep.subr.bf16.mxu0 %v4620
        %8375 = vmatpush1.bf16.msra.mxu0 %v4619
        %8376 = vmatprep.subr.bf16.mxu0 %v4628
        %8377 = vmatpush1.bf16.msra.mxu0 %v4627
        %8378 = vmatprep.subr.bf16.mxu0 %v4636
        %8379 = vmatpush1.bf16.msra.mxu0 %v4635
        %8380 = vmatprep.subr.bf16.mxu0 %v4644
        %8381 = vmatpush1.bf16.msra.mxu0 %v4643
        %8382 = vmatprep.subr.bf16.mxu0 %v4652
        %8383 = vmatpush1.bf16.msra.mxu0 %v4651
        %8384 = vmatprep.subr.bf16.mxu0 %v4660
        %8385 = vmatpush1.bf16.msra.mxu0 %v4659
        %8386 = vmatprep.subr.bf16.mxu0 %v4668
        %8387 = vmatpush1.bf16.msra.mxu0 %v4667
        %8388 = vmatprep.subr.bf16.mxu0 %v4676
        %8389 = vmatpush1.bf16.msra.mxu0 %v4675
        %8390 = vmatprep.subr.bf16.mxu0 %v4684
        %8391 = vmatpush1.bf16.msra.mxu0 %v4683
        %8392 = vmatprep.subr.bf16.mxu0 %v4692
        %8393 = vmatpush1.bf16.msra.mxu0 %v4691
        %8394 = vmatprep.subr.bf16.mxu0 %v4700
        %8395 = vmatpush1.bf16.msra.mxu0 %v4699
        %8396 = vmatprep.subr.bf16.mxu0 %v4708
        %8397 = vmatpush1.bf16.msra.mxu0 %v4707
        %8398 = vmatprep.subr.bf16.mxu0 %v4716
        %8399 = vmatpush1.bf16.msra.mxu0 %v4715
        %8400 = vmatprep.subr.bf16.mxu0 %v4724
        %8401 = vmatpush1.bf16.msra.mxu0 %v4723
        %8402 = vmatprep.subr.bf16.mxu0 %v4732
        %8403 = vmatpush1.bf16.msra.mxu0 %v4731
        %8404 = vmatprep.mubr.bf16.mxu0 %v7990
        %8405 = vmatmul.mubr.bf16.gmra.mrb[0].mxu0 %v7989
        %v8406 = vpop.f32.mrb[0].mxu0
        %v8407 = vadd.f32 %v8366, %v8406
        %v8408 = vpop.f32.mrb[0].mxu0
        %v8409 = vadd.f32 %v8368, %v8408
        %v8410 = vpop.f32.mrb[0].mxu0
        %v8411 = vpop.f32.mrb[0].mxu0
        %8412 = vdwg.mxu0
        %8413 = vmatprep.subr.bf16.mxu0 %v4740
        %8414 = vmatpush1.bf16.msra.mxu0 %v4739
        %8415 = vmatprep.subr.bf16.mxu0 %v4748
        %8416 = vmatpush1.bf16.msra.mxu0 %v4747
        %8417 = vmatprep.subr.bf16.mxu0 %v4756
        %8418 = vmatpush1.bf16.msra.mxu0 %v4755
        %8419 = vmatprep.subr.bf16.mxu0 %v4764
        %8420 = vmatpush1.bf16.msra.mxu0 %v4763
        %8421 = vmatprep.subr.bf16.mxu0 %v4772
        %8422 = vmatpush1.bf16.msra.mxu0 %v4771
        %8423 = vmatprep.subr.bf16.mxu0 %v4780
        %8424 = vmatpush1.bf16.msra.mxu0 %v4779
        %8425 = vmatprep.subr.bf16.mxu0 %v4788
        %8426 = vmatpush1.bf16.msra.mxu0 %v4787
        %8427 = vmatprep.subr.bf16.mxu0 %v4796
        %8428 = vmatpush1.bf16.msra.mxu0 %v4795
        %8429 = vmatprep.subr.bf16.mxu0 %v4804
        %8430 = vmatpush1.bf16.msra.mxu0 %v4803
        %8431 = vmatprep.subr.bf16.mxu0 %v4812
        %8432 = vmatpush1.bf16.msra.mxu0 %v4811
        %8433 = vmatprep.subr.bf16.mxu0 %v4820
        %8434 = vmatpush1.bf16.msra.mxu0 %v4819
        %8435 = vmatprep.subr.bf16.mxu0 %v4828
        %8436 = vmatpush1.bf16.msra.mxu0 %v4827
        %8437 = vmatprep.subr.bf16.mxu0 %v4836
        %8438 = vmatpush1.bf16.msra.mxu0 %v4835
        %8439 = vmatprep.subr.bf16.mxu0 %v4844
        %8440 = vmatpush1.bf16.msra.mxu0 %v4843
        %8441 = vmatprep.subr.bf16.mxu0 %v4852
        %8442 = vmatpush1.bf16.msra.mxu0 %v4851
        %8443 = vmatprep.subr.bf16.mxu0 %v4860
        %8444 = vmatpush1.bf16.msra.mxu0 %v4859
        %8445 = vmatprep.mubr.bf16.mxu0 %v7992
        %8446 = vmatmul.mubr.bf16.gmra.mrb[0].mxu0 %v7991
        %v8447 = vpop.f32.mrb[0].mxu0
        %v8448 = vadd.f32 %v8407, %v8447
        %v8449 = vpop.f32.mrb[0].mxu0
        %v8450 = vadd.f32 %v8409, %v8449
        %v8451 = vpop.f32.mrb[0].mxu0
        %v8452 = vpop.f32.mrb[0].mxu0
        %8453 = vdwg.mxu0
        %8454 = vmatprep.subr.bf16.mxu0 %v4868
        %8455 = vmatpush1.bf16.msra.mxu0 %v4867
        %8456 = vmatprep.subr.bf16.mxu0 %v4876
        %8457 = vmatpush1.bf16.msra.mxu0 %v4875
        %8458 = vmatprep.subr.bf16.mxu0 %v4884
        %8459 = vmatpush1.bf16.msra.mxu0 %v4883
        %8460 = vmatprep.subr.bf16.mxu0 %v4892
        %8461 = vmatpush1.bf16.msra.mxu0 %v4891
        %8462 = vmatprep.subr.bf16.mxu0 %v4900
        %8463 = vmatpush1.bf16.msra.mxu0 %v4899
        %8464 = vmatprep.subr.bf16.mxu0 %v4908
        %8465 = vmatpush1.bf16.msra.mxu0 %v4907
        %8466 = vmatprep.subr.bf16.mxu0 %v4916
        %8467 = vmatpush1.bf16.msra.mxu0 %v4915
        %8468 = vmatprep.subr.bf16.mxu0 %v4924
        %8469 = vmatpush1.bf16.msra.mxu0 %v4923
        %8470 = vmatprep.subr.bf16.mxu0 %v4932
        %8471 = vmatpush1.bf16.msra.mxu0 %v4931
        %8472 = vmatprep.subr.bf16.mxu0 %v4940
        %8473 = vmatpush1.bf16.msra.mxu0 %v4939
        %8474 = vmatprep.subr.bf16.mxu0 %v4948
        %8475 = vmatpush1.bf16.msra.mxu0 %v4947
        %8476 = vmatprep.subr.bf16.mxu0 %v4956
        %8477 = vmatpush1.bf16.msra.mxu0 %v4955
        %8478 = vmatprep.subr.bf16.mxu0 %v4964
        %8479 = vmatpush1.bf16.msra.mxu0 %v4963
        %8480 = vmatprep.subr.bf16.mxu0 %v4972
        %8481 = vmatpush1.bf16.msra.mxu0 %v4971
        %8482 = vmatprep.subr.bf16.mxu0 %v4980
        %8483 = vmatpush1.bf16.msra.mxu0 %v4979
        %8484 = vmatprep.subr.bf16.mxu0 %v4988
        %8485 = vmatpush1.bf16.msra.mxu0 %v4987
        %8486 = vmatprep.mubr.bf16.mxu0 %v7994
        %8487 = vmatmul.mubr.bf16.gmra.mrb[0].mxu0 %v7993
        %v8488 = vpop.f32.mrb[0].mxu0
        %v8489 = vadd.f32 %v8448, %v8488
        %v8490 = vpop.f32.mrb[0].mxu0
        %v8491 = vadd.f32 %v8450, %v8490
        %v8492 = vpop.f32.mrb[0].mxu0
        %v8493 = vpop.f32.mrb[0].mxu0
        %8494 = vdwg.mxu0
        %8495 = vmatprep.subr.bf16.mxu0 %v4996
        %8496 = vmatpush1.bf16.msra.mxu0 %v4995
        %8497 = vmatprep.subr.bf16.mxu0 %v5004
        %8498 = vmatpush1.bf16.msra.mxu0 %v5003
        %8499 = vmatprep.subr.bf16.mxu0 %v5012
        %8500 = vmatpush1.bf16.msra.mxu0 %v5011
        %8501 = vmatprep.subr.bf16.mxu0 %v5020
        %8502 = vmatpush1.bf16.msra.mxu0 %v5019
        %8503 = vmatprep.subr.bf16.mxu0 %v5028
        %8504 = vmatpush1.bf16.msra.mxu0 %v5027
        %8505 = vmatprep.subr.bf16.mxu0 %v5036
        %8506 = vmatpush1.bf16.msra.mxu0 %v5035
        %8507 = vmatprep.subr.bf16.mxu0 %v5044
        %8508 = vmatpush1.bf16.msra.mxu0 %v5043
        %8509 = vmatprep.subr.bf16.mxu0 %v5052
        %8510 = vmatpush1.bf16.msra.mxu0 %v5051
        %8511 = vmatprep.subr.bf16.mxu0 %v5060
        %8512 = vmatpush1.bf16.msra.mxu0 %v5059
        %8513 = vmatprep.subr.bf16.mxu0 %v5068
        %8514 = vmatpush1.bf16.msra.mxu0 %v5067
        %8515 = vmatprep.subr.bf16.mxu0 %v5076
        %8516 = vmatpush1.bf16.msra.mxu0 %v5075
        %8517 = vmatprep.subr.bf16.mxu0 %v5084
        %8518 = vmatpush1.bf16.msra.mxu0 %v5083
        %8519 = vmatprep.subr.bf16.mxu0 %v5092
        %8520 = vmatpush1.bf16.msra.mxu0 %v5091
        %8521 = vmatprep.subr.bf16.mxu0 %v5100
        %8522 = vmatpush1.bf16.msra.mxu0 %v5099
        %8523 = vmatprep.subr.bf16.mxu0 %v5108
        %8524 = vmatpush1.bf16.msra.mxu0 %v5107
        %8525 = vmatprep.subr.bf16.mxu0 %v5116
        %8526 = vmatpush1.bf16.msra.mxu0 %v5115
        %8527 = vmatprep.mubr.bf16.mxu0 %v7996
        %8528 = vmatmul.mubr.bf16.gmra.mrb[0].mxu0 %v7995
        %v8529 = vpop.f32.mrb[0].mxu0
        %v8530 = vadd.f32 %v8489, %v8529
        %v8531 = vpop.f32.mrb[0].mxu0
        %v8532 = vadd.f32 %v8491, %v8531
        %v8533 = vpop.f32.mrb[0].mxu0
        %v8534 = vpop.f32.mrb[0].mxu0
        %8535 = vdwg.mxu0
        %8536 = vmatprep.subr.bf16.mxu0 %v5124
        %8537 = vmatpush1.bf16.msra.mxu0 %v5123
        %8538 = vmatprep.subr.bf16.mxu0 %v5132
        %8539 = vmatpush1.bf16.msra.mxu0 %v5131
        %8540 = vmatprep.subr.bf16.mxu0 %v5140
        %8541 = vmatpush1.bf16.msra.mxu0 %v5139
        %8542 = vmatprep.subr.bf16.mxu0 %v5148
        %8543 = vmatpush1.bf16.msra.mxu0 %v5147
        %8544 = vmatprep.subr.bf16.mxu0 %v5156
        %8545 = vmatpush1.bf16.msra.mxu0 %v5155
        %8546 = vmatprep.subr.bf16.mxu0 %v5164
        %8547 = vmatpush1.bf16.msra.mxu0 %v5163
        %8548 = vmatprep.subr.bf16.mxu0 %v5172
        %8549 = vmatpush1.bf16.msra.mxu0 %v5171
        %8550 = vmatprep.subr.bf16.mxu0 %v5180
        %8551 = vmatpush1.bf16.msra.mxu0 %v5179
        %8552 = vmatprep.subr.bf16.mxu0 %v5188
        %8553 = vmatpush1.bf16.msra.mxu0 %v5187
        %8554 = vmatprep.subr.bf16.mxu0 %v5196
        %8555 = vmatpush1.bf16.msra.mxu0 %v5195
        %8556 = vmatprep.subr.bf16.mxu0 %v5204
        %8557 = vmatpush1.bf16.msra.mxu0 %v5203
        %8558 = vmatprep.subr.bf16.mxu0 %v5212
        %8559 = vmatpush1.bf16.msra.mxu0 %v5211
        %8560 = vmatprep.subr.bf16.mxu0 %v5220
        %8561 = vmatpush1.bf16.msra.mxu0 %v5219
        %8562 = vmatprep.subr.bf16.mxu0 %v5228
        %8563 = vmatpush1.bf16.msra.mxu0 %v5227
        %8564 = vmatprep.subr.bf16.mxu0 %v5236
        %8565 = vmatpush1.bf16.msra.mxu0 %v5235
        %8566 = vmatprep.subr.bf16.mxu0 %v5244
        %8567 = vmatpush1.bf16.msra.mxu0 %v5243
        %8568 = vmatprep.mubr.bf16.mxu0 %v7998
        %8569 = vmatmul.mubr.bf16.gmra.mrb[0].mxu0 %v7997
        %v8570 = vpop.f32.mrb[0].mxu0
        %v8571 = vadd.f32 %v8530, %v8570
        %v8572 = vpop.f32.mrb[0].mxu0
        %v8573 = vadd.f32 %v8532, %v8572
        %v8574 = vpop.f32.mrb[0].mxu0
        %v8575 = vpop.f32.mrb[0].mxu0
        %8576 = vdwg.mxu0
        %8577 = vmatprep.subr.bf16.mxu0 %v5252
        %8578 = vmatpush1.bf16.msra.mxu0 %v5251
        %8579 = vmatprep.subr.bf16.mxu0 %v5260
        %8580 = vmatpush1.bf16.msra.mxu0 %v5259
        %8581 = vmatprep.subr.bf16.mxu0 %v5268
        %8582 = vmatpush1.bf16.msra.mxu0 %v5267
        %8583 = vmatprep.subr.bf16.mxu0 %v5276
        %8584 = vmatpush1.bf16.msra.mxu0 %v5275
        %8585 = vmatprep.subr.bf16.mxu0 %v5284
        %8586 = vmatpush1.bf16.msra.mxu0 %v5283
        %8587 = vmatprep.subr.bf16.mxu0 %v5292
        %8588 = vmatpush1.bf16.msra.mxu0 %v5291
        %8589 = vmatprep.subr.bf16.mxu0 %v5300
        %8590 = vmatpush1.bf16.msra.mxu0 %v5299
        %8591 = vmatprep.subr.bf16.mxu0 %v5308
        %8592 = vmatpush1.bf16.msra.mxu0 %v5307
        %8593 = vmatprep.subr.bf16.mxu0 %v5316
        %8594 = vmatpush1.bf16.msra.mxu0 %v5315
        %8595 = vmatprep.subr.bf16.mxu0 %v5324
        %8596 = vmatpush1.bf16.msra.mxu0 %v5323
        %8597 = vmatprep.subr.bf16.mxu0 %v5332
        %8598 = vmatpush1.bf16.msra.mxu0 %v5331
        %8599 = vmatprep.subr.bf16.mxu0 %v5340
        %8600 = vmatpush1.bf16.msra.mxu0 %v5339
        %8601 = vmatprep.subr.bf16.mxu0 %v5348
        %8602 = vmatpush1.bf16.msra.mxu0 %v5347
        %8603 = vmatprep.subr.bf16.mxu0 %v5356
        %8604 = vmatpush1.bf16.msra.mxu0 %v5355
        %8605 = vmatprep.subr.bf16.mxu0 %v5364
        %8606 = vmatpush1.bf16.msra.mxu0 %v5363
        %8607 = vmatprep.subr.bf16.mxu0 %v5372
        %8608 = vmatpush1.bf16.msra.mxu0 %v5371
        %8609 = vmatprep.mubr.bf16.mxu0 %v8000
        %8610 = vmatmul.mubr.bf16.gmra.mrb[0].mxu0 %v7999
        %v8611 = vpop.f32.mrb[0].mxu0
        %v8612 = vadd.f32 %v8571, %v8611
        %v8613 = vpop.f32.mrb[0].mxu0
        %v8614 = vadd.f32 %v8573, %v8613
        %v8615 = vpop.f32.mrb[0].mxu0
        %v8616 = vpop.f32.mrb[0].mxu0
        %8617 = vdwg.mxu0
        %8618 = vmatprep.subr.bf16.mxu0 %v5380
        %8619 = vmatpush1.bf16.msra.mxu0 %v5379
        %8620 = vmatprep.subr.bf16.mxu0 %v5388
        %8621 = vmatpush1.bf16.msra.mxu0 %v5387
        %8622 = vmatprep.subr.bf16.mxu0 %v5396
        %8623 = vmatpush1.bf16.msra.mxu0 %v5395
        %8624 = vmatprep.subr.bf16.mxu0 %v5404
        %8625 = vmatpush1.bf16.msra.mxu0 %v5403
        %8626 = vmatprep.subr.bf16.mxu0 %v5412
        %8627 = vmatpush1.bf16.msra.mxu0 %v5411
        %8628 = vmatprep.subr.bf16.mxu0 %v5420
        %8629 = vmatpush1.bf16.msra.mxu0 %v5419
        %8630 = vmatprep.subr.bf16.mxu0 %v5428
        %8631 = vmatpush1.bf16.msra.mxu0 %v5427
        %8632 = vmatprep.subr.bf16.mxu0 %v5436
        %8633 = vmatpush1.bf16.msra.mxu0 %v5435
        %8634 = vmatprep.subr.bf16.mxu0 %v5444
        %8635 = vmatpush1.bf16.msra.mxu0 %v5443
        %8636 = vmatprep.subr.bf16.mxu0 %v5452
        %8637 = vmatpush1.bf16.msra.mxu0 %v5451
        %8638 = vmatprep.subr.bf16.mxu0 %v5460
        %8639 = vmatpush1.bf16.msra.mxu0 %v5459
        %8640 = vmatprep.subr.bf16.mxu0 %v5468
        %8641 = vmatpush1.bf16.msra.mxu0 %v5467
        %8642 = vmatprep.subr.bf16.mxu0 %v5476
        %8643 = vmatpush1.bf16.msra.mxu0 %v5475
        %8644 = vmatprep.subr.bf16.mxu0 %v5484
        %8645 = vmatpush1.bf16.msra.mxu0 %v5483
        %8646 = vmatprep.subr.bf16.mxu0 %v5492
        %8647 = vmatpush1.bf16.msra.mxu0 %v5491
        %8648 = vmatprep.subr.bf16.mxu0 %v5500
        %8649 = vmatpush1.bf16.msra.mxu0 %v5499
        %8650 = vmatprep.mubr.bf16.mxu0 %v8002
        %8651 = vmatmul.mubr.bf16.gmra.mrb[0].mxu0 %v8001
        %v8652 = vpop.f32.mrb[0].mxu0
        %v8653 = vadd.f32 %v8612, %v8652
        %v8654 = vpop.f32.mrb[0].mxu0
        %v8655 = vadd.f32 %v8614, %v8654
        %v8656 = vpop.f32.mrb[0].mxu0
        %v8657 = vpop.f32.mrb[0].mxu0
        %8658 = vdwg.mxu0
        %8659 = vmatprep.subr.bf16.mxu0 %v4486
        %8660 = vmatpush1.bf16.msra.mxu0 %v4485
        %8661 = vmatprep.subr.bf16.mxu0 %v4494
        %8662 = vmatpush1.bf16.msra.mxu0 %v4493
        %8663 = vmatprep.subr.bf16.mxu0 %v4502
        %8664 = vmatpush1.bf16.msra.mxu0 %v4501
        %8665 = vmatprep.subr.bf16.mxu0 %v4510
        %8666 = vmatpush1.bf16.msra.mxu0 %v4509
        %8667 = vmatprep.subr.bf16.mxu0 %v4518
        %8668 = vmatpush1.bf16.msra.mxu0 %v4517
        %8669 = vmatprep.subr.bf16.mxu0 %v4526
        %8670 = vmatpush1.bf16.msra.mxu0 %v4525
        %8671 = vmatprep.subr.bf16.mxu0 %v4534
        %8672 = vmatpush1.bf16.msra.mxu0 %v4533
        %8673 = vmatprep.subr.bf16.mxu0 %v4542
        %8674 = vmatpush1.bf16.msra.mxu0 %v4541
        %8675 = vmatprep.subr.bf16.mxu0 %v4550
        %8676 = vmatpush1.bf16.msra.mxu0 %v4549
        %8677 = vmatprep.subr.bf16.mxu0 %v4558
        %8678 = vmatpush1.bf16.msra.mxu0 %v4557
        %8679 = vmatprep.subr.bf16.mxu0 %v4566
        %8680 = vmatpush1.bf16.msra.mxu0 %v4565
        %8681 = vmatprep.subr.bf16.mxu0 %v4574
        %8682 = vmatpush1.bf16.msra.mxu0 %v4573
        %8683 = vmatprep.subr.bf16.mxu0 %v4582
        %8684 = vmatpush1.bf16.msra.mxu0 %v4581
        %8685 = vmatprep.subr.bf16.mxu0 %v4590
        %8686 = vmatpush1.bf16.msra.mxu0 %v4589
        %8687 = vmatprep.subr.bf16.mxu0 %v4598
        %8688 = vmatpush1.bf16.msra.mxu0 %v4597
        %8689 = vmatprep.subr.bf16.mxu0 %v4606
        %8690 = vmatpush1.bf16.msra.mxu0 %v4605
        %8691 = vmatprep.mubr.bf16.mxu0 %v7988
        %8692 = vmatmul.mubr.bf16.gmra.mrb[0].mxu0 %v7987
        %v8693 = vpop.f32.mrb[0].mxu0
        %v8694 = vadd.f32 0.0, %v8693
        %v8695 = vpop.f32.mrb[0].mxu0
        %v8696 = vadd.f32 0.0, %v8695
        %v8697 = vpop.f32.mrb[0].mxu0
        %v8698 = vpop.f32.mrb[0].mxu0
        %8699 = vdwg.mxu0
        %8700 = vmatprep.subr.bf16.mxu0 %v4614
        %8701 = vmatpush1.bf16.msra.mxu0 %v4613
        %8702 = vmatprep.subr.bf16.mxu0 %v4622
        %8703 = vmatpush1.bf16.msra.mxu0 %v4621
        %8704 = vmatprep.subr.bf16.mxu0 %v4630
        %8705 = vmatpush1.bf16.msra.mxu0 %v4629
        %8706 = vmatprep.subr.bf16.mxu0 %v4638
        %8707 = vmatpush1.bf16.msra.mxu0 %v4637
        %8708 = vmatprep.subr.bf16.mxu0 %v4646
        %8709 = vmatpush1.bf16.msra.mxu0 %v4645
        %8710 = vmatprep.subr.bf16.mxu0 %v4654
        %8711 = vmatpush1.bf16.msra.mxu0 %v4653
        %8712 = vmatprep.subr.bf16.mxu0 %v4662
        %8713 = vmatpush1.bf16.msra.mxu0 %v4661
        %8714 = vmatprep.subr.bf16.mxu0 %v4670
        %8715 = vmatpush1.bf16.msra.mxu0 %v4669
        %8716 = vmatprep.subr.bf16.mxu0 %v4678
        %8717 = vmatpush1.bf16.msra.mxu0 %v4677
        %8718 = vmatprep.subr.bf16.mxu0 %v4686
        %8719 = vmatpush1.bf16.msra.mxu0 %v4685
        %8720 = vmatprep.subr.bf16.mxu0 %v4694
        %8721 = vmatpush1.bf16.msra.mxu0 %v4693
        %8722 = vmatprep.subr.bf16.mxu0 %v4702
        %8723 = vmatpush1.bf16.msra.mxu0 %v4701
        %8724 = vmatprep.subr.bf16.mxu0 %v4710
        %8725 = vmatpush1.bf16.msra.mxu0 %v4709
        %8726 = vmatprep.subr.bf16.mxu0 %v4718
        %8727 = vmatpush1.bf16.msra.mxu0 %v4717
        %8728 = vmatprep.subr.bf16.mxu0 %v4726
        %8729 = vmatpush1.bf16.msra.mxu0 %v4725
        %8730 = vmatprep.subr.bf16.mxu0 %v4734
        %8731 = vmatpush1.bf16.msra.mxu0 %v4733
        %8732 = vmatprep.mubr.bf16.mxu0 %v7990
        %8733 = vmatmul.mubr.bf16.gmra.mrb[0].mxu0 %v7989
        %v8734 = vpop.f32.mrb[0].mxu0
        %v8735 = vadd.f32 %v8694, %v8734
        %v8736 = vpop.f32.mrb[0].mxu0
        %v8737 = vadd.f32 %v8696, %v8736
        %v8738 = vpop.f32.mrb[0].mxu0
        %v8739 = vpop.f32.mrb[0].mxu0
        %8740 = vdwg.mxu0
        %8741 = vmatprep.subr.bf16.mxu0 %v4742
        %8742 = vmatpush1.bf16.msra.mxu0 %v4741
        %8743 = vmatprep.subr.bf16.mxu0 %v4750
        %8744 = vmatpush1.bf16.msra.mxu0 %v4749
        %8745 = vmatprep.subr.bf16.mxu0 %v4758
        %8746 = vmatpush1.bf16.msra.mxu0 %v4757
        %8747 = vmatprep.subr.bf16.mxu0 %v4766
        %8748 = vmatpush1.bf16.msra.mxu0 %v4765
        %8749 = vmatprep.subr.bf16.mxu0 %v4774
        %8750 = vmatpush1.bf16.msra.mxu0 %v4773
        %8751 = vmatprep.subr.bf16.mxu0 %v4782
        %8752 = vmatpush1.bf16.msra.mxu0 %v4781
        %8753 = vmatprep.subr.bf16.mxu0 %v4790
        %8754 = vmatpush1.bf16.msra.mxu0 %v4789
        %8755 = vmatprep.subr.bf16.mxu0 %v4798
        %8756 = vmatpush1.bf16.msra.mxu0 %v4797
        %8757 = vmatprep.subr.bf16.mxu0 %v4806
        %8758 = vmatpush1.bf16.msra.mxu0 %v4805
        %8759 = vmatprep.subr.bf16.mxu0 %v4814
        %8760 = vmatpush1.bf16.msra.mxu0 %v4813
        %8761 = vmatprep.subr.bf16.mxu0 %v4822
        %8762 = vmatpush1.bf16.msra.mxu0 %v4821
        %8763 = vmatprep.subr.bf16.mxu0 %v4830
        %8764 = vmatpush1.bf16.msra.mxu0 %v4829
        %8765 = vmatprep.subr.bf16.mxu0 %v4838
        %8766 = vmatpush1.bf16.msra.mxu0 %v4837
        %8767 = vmatprep.subr.bf16.mxu0 %v4846
        %8768 = vmatpush1.bf16.msra.mxu0 %v4845
        %8769 = vmatprep.subr.bf16.mxu0 %v4854
        %8770 = vmatpush1.bf16.msra.mxu0 %v4853
        %8771 = vmatprep.subr.bf16.mxu0 %v4862
        %8772 = vmatpush1.bf16.msra.mxu0 %v4861
        %8773 = vmatprep.mubr.bf16.mxu0 %v7992
        %8774 = vmatmul.mubr.bf16.gmra.mrb[0].mxu0 %v7991
        %v8775 = vpop.f32.mrb[0].mxu0
        %v8776 = vadd.f32 %v8735, %v8775
        %v8777 = vpop.f32.mrb[0].mxu0
        %v8778 = vadd.f32 %v8737, %v8777
        %v8779 = vpop.f32.mrb[0].mxu0
        %v8780 = vpop.f32.mrb[0].mxu0
        %8781 = vdwg.mxu0
        %8782 = vmatprep.subr.bf16.mxu0 %v4870
        %8783 = vmatpush1.bf16.msra.mxu0 %v4869
        %8784 = vmatprep.subr.bf16.mxu0 %v4878
        %8785 = vmatpush1.bf16.msra.mxu0 %v4877
        %8786 = vmatprep.subr.bf16.mxu0 %v4886
        %8787 = vmatpush1.bf16.msra.mxu0 %v4885
        %8788 = vmatprep.subr.bf16.mxu0 %v4894
        %8789 = vmatpush1.bf16.msra.mxu0 %v4893
        %8790 = vmatprep.subr.bf16.mxu0 %v4902
        %8791 = vmatpush1.bf16.msra.mxu0 %v4901
        %8792 = vmatprep.subr.bf16.mxu0 %v4910
        %8793 = vmatpush1.bf16.msra.mxu0 %v4909
        %8794 = vmatprep.subr.bf16.mxu0 %v4918
        %8795 = vmatpush1.bf16.msra.mxu0 %v4917
        %8796 = vmatprep.subr.bf16.mxu0 %v4926
        %8797 = vmatpush1.bf16.msra.mxu0 %v4925
        %8798 = vmatprep.subr.bf16.mxu0 %v4934
        %8799 = vmatpush1.bf16.msra.mxu0 %v4933
        %8800 = vmatprep.subr.bf16.mxu0 %v4942
        %8801 = vmatpush1.bf16.msra.mxu0 %v4941
        %8802 = vmatprep.subr.bf16.mxu0 %v4950
        %8803 = vmatpush1.bf16.msra.mxu0 %v4949
        %8804 = vmatprep.subr.bf16.mxu0 %v4958
        %8805 = vmatpush1.bf16.msra.mxu0 %v4957
        %8806 = vmatprep.subr.bf16.mxu0 %v4966
        %8807 = vmatpush1.bf16.msra.mxu0 %v4965
        %8808 = vmatprep.subr.bf16.mxu0 %v4974
        %8809 = vmatpush1.bf16.msra.mxu0 %v4973
        %8810 = vmatprep.subr.bf16.mxu0 %v4982
        %8811 = vmatpush1.bf16.msra.mxu0 %v4981
        %8812 = vmatprep.subr.bf16.mxu0 %v4990
        %8813 = vmatpush1.bf16.msra.mxu0 %v4989
        %8814 = vmatprep.mubr.bf16.mxu0 %v7994
        %8815 = vmatmul.mubr.bf16.gmra.mrb[0].mxu0 %v7993
        %v8816 = vpop.f32.mrb[0].mxu0
        %v8817 = vadd.f32 %v8776, %v8816
        %v8818 = vpop.f32.mrb[0].mxu0
        %v8819 = vadd.f32 %v8778, %v8818
        %v8820 = vpop.f32.mrb[0].mxu0
        %v8821 = vpop.f32.mrb[0].mxu0
        %8822 = vdwg.mxu0
        %8823 = vmatprep.subr.bf16.mxu0 %v4998
        %8824 = vmatpush1.bf16.msra.mxu0 %v4997
        %8825 = vmatprep.subr.bf16.mxu0 %v5006
        %8826 = vmatpush1.bf16.msra.mxu0 %v5005
        %8827 = vmatprep.subr.bf16.mxu0 %v5014
        %8828 = vmatpush1.bf16.msra.mxu0 %v5013
        %8829 = vmatprep.subr.bf16.mxu0 %v5022
        %8830 = vmatpush1.bf16.msra.mxu0 %v5021
        %8831 = vmatprep.subr.bf16.mxu0 %v5030
        %8832 = vmatpush1.bf16.msra.mxu0 %v5029
        %8833 = vmatprep.subr.bf16.mxu0 %v5038
        %8834 = vmatpush1.bf16.msra.mxu0 %v5037
        %8835 = vmatprep.subr.bf16.mxu0 %v5046
        %8836 = vmatpush1.bf16.msra.mxu0 %v5045
        %8837 = vmatprep.subr.bf16.mxu0 %v5054
        %8838 = vmatpush1.bf16.msra.mxu0 %v5053
        %8839 = vmatprep.subr.bf16.mxu0 %v5062
        %8840 = vmatpush1.bf16.msra.mxu0 %v5061
        %8841 = vmatprep.subr.bf16.mxu0 %v5070
        %8842 = vmatpush1.bf16.msra.mxu0 %v5069
        %8843 = vmatprep.subr.bf16.mxu0 %v5078
        %8844 = vmatpush1.bf16.msra.mxu0 %v5077
        %8845 = vmatprep.subr.bf16.mxu0 %v5086
        %8846 = vmatpush1.bf16.msra.mxu0 %v5085
        %8847 = vmatprep.subr.bf16.mxu0 %v5094
        %8848 = vmatpush1.bf16.msra.mxu0 %v5093
        %8849 = vmatprep.subr.bf16.mxu0 %v5102
        %8850 = vmatpush1.bf16.msra.mxu0 %v5101
        %8851 = vmatprep.subr.bf16.mxu0 %v5110
        %8852 = vmatpush1.bf16.msra.mxu0 %v5109
        %8853 = vmatprep.subr.bf16.mxu0 %v5118
        %8854 = vmatpush1.bf16.msra.mxu0 %v5117
        %8855 = vmatprep.mubr.bf16.mxu0 %v7996
        %8856 = vmatmul.mubr.bf16.gmra.mrb[0].mxu0 %v7995
        %v8857 = vpop.f32.mrb[0].mxu0
        %v8858 = vadd.f32 %v8817, %v8857
        %v8859 = vpop.f32.mrb[0].mxu0
        %v8860 = vadd.f32 %v8819, %v8859
        %v8861 = vpop.f32.mrb[0].mxu0
        %v8862 = vpop.f32.mrb[0].mxu0
        %8863 = vdwg.mxu0
        %8864 = vmatprep.subr.bf16.mxu0 %v5126
        %8865 = vmatpush1.bf16.msra.mxu0 %v5125
        %8866 = vmatprep.subr.bf16.mxu0 %v5134
        %8867 = vmatpush1.bf16.msra.mxu0 %v5133
        %8868 = vmatprep.subr.bf16.mxu0 %v5142
        %8869 = vmatpush1.bf16.msra.mxu0 %v5141
        %8870 = vmatprep.subr.bf16.mxu0 %v5150
        %8871 = vmatpush1.bf16.msra.mxu0 %v5149
        %8872 = vmatprep.subr.bf16.mxu0 %v5158
        %8873 = vmatpush1.bf16.msra.mxu0 %v5157
        %8874 = vmatprep.subr.bf16.mxu0 %v5166
        %8875 = vmatpush1.bf16.msra.mxu0 %v5165
        %8876 = vmatprep.subr.bf16.mxu0 %v5174
        %8877 = vmatpush1.bf16.msra.mxu0 %v5173
        %8878 = vmatprep.subr.bf16.mxu0 %v5182
        %8879 = vmatpush1.bf16.msra.mxu0 %v5181
        %8880 = vmatprep.subr.bf16.mxu0 %v5190
        %8881 = vmatpush1.bf16.msra.mxu0 %v5189
        %8882 = vmatprep.subr.bf16.mxu0 %v5198
        %8883 = vmatpush1.bf16.msra.mxu0 %v5197
        %8884 = vmatprep.subr.bf16.mxu0 %v5206
        %8885 = vmatpush1.bf16.msra.mxu0 %v5205
        %8886 = vmatprep.subr.bf16.mxu0 %v5214
        %8887 = vmatpush1.bf16.msra.mxu0 %v5213
        %8888 = vmatprep.subr.bf16.mxu0 %v5222
        %8889 = vmatpush1.bf16.msra.mxu0 %v5221
        %8890 = vmatprep.subr.bf16.mxu0 %v5230
        %8891 = vmatpush1.bf16.msra.mxu0 %v5229
        %8892 = vmatprep.subr.bf16.mxu0 %v5238
        %8893 = vmatpush1.bf16.msra.mxu0 %v5237
        %8894 = vmatprep.subr.bf16.mxu0 %v5246
        %8895 = vmatpush1.bf16.msra.mxu0 %v5245
        %8896 = vmatprep.mubr.bf16.mxu0 %v7998
        %8897 = vmatmul.mubr.bf16.gmra.mrb[0].mxu0 %v7997
        %v8898 = vpop.f32.mrb[0].mxu0
        %v8899 = vadd.f32 %v8858, %v8898
        %v8900 = vpop.f32.mrb[0].mxu0
        %v8901 = vadd.f32 %v8860, %v8900
        %v8902 = vpop.f32.mrb[0].mxu0
        %v8903 = vpop.f32.mrb[0].mxu0
        %8904 = vdwg.mxu0
        %8905 = vmatprep.subr.bf16.mxu0 %v5254
        %8906 = vmatpush1.bf16.msra.mxu0 %v5253
        %8907 = vmatprep.subr.bf16.mxu0 %v5262
        %8908 = vmatpush1.bf16.msra.mxu0 %v5261
        %8909 = vmatprep.subr.bf16.mxu0 %v5270
        %8910 = vmatpush1.bf16.msra.mxu0 %v5269
        %8911 = vmatprep.subr.bf16.mxu0 %v5278
        %8912 = vmatpush1.bf16.msra.mxu0 %v5277
        %8913 = vmatprep.subr.bf16.mxu0 %v5286
        %8914 = vmatpush1.bf16.msra.mxu0 %v5285
        %8915 = vmatprep.subr.bf16.mxu0 %v5294
        %8916 = vmatpush1.bf16.msra.mxu0 %v5293
        %8917 = vmatprep.subr.bf16.mxu0 %v5302
        %8918 = vmatpush1.bf16.msra.mxu0 %v5301
        %8919 = vmatprep.subr.bf16.mxu0 %v5310
        %8920 = vmatpush1.bf16.msra.mxu0 %v5309
        %8921 = vmatprep.subr.bf16.mxu0 %v5318
        %8922 = vmatpush1.bf16.msra.mxu0 %v5317
        %8923 = vmatprep.subr.bf16.mxu0 %v5326
        %8924 = vmatpush1.bf16.msra.mxu0 %v5325
        %8925 = vmatprep.subr.bf16.mxu0 %v5334
        %8926 = vmatpush1.bf16.msra.mxu0 %v5333
        %8927 = vmatprep.subr.bf16.mxu0 %v5342
        %8928 = vmatpush1.bf16.msra.mxu0 %v5341
        %8929 = vmatprep.subr.bf16.mxu0 %v5350
        %8930 = vmatpush1.bf16.msra.mxu0 %v5349
        %8931 = vmatprep.subr.bf16.mxu0 %v5358
        %8932 = vmatpush1.bf16.msra.mxu0 %v5357
        %8933 = vmatprep.subr.bf16.mxu0 %v5366
        %8934 = vmatpush1.bf16.msra.mxu0 %v5365
        %8935 = vmatprep.subr.bf16.mxu0 %v5374
        %8936 = vmatpush1.bf16.msra.mxu0 %v5373
        %8937 = vmatprep.mubr.bf16.mxu0 %v8000
        %8938 = vmatmul.mubr.bf16.gmra.mrb[0].mxu0 %v7999
        %v8939 = vpop.f32.mrb[0].mxu0
        %v8940 = vadd.f32 %v8899, %v8939
        %v8941 = vpop.f32.mrb[0].mxu0
        %v8942 = vadd.f32 %v8901, %v8941
        %v8943 = vpop.f32.mrb[0].mxu0
        %v8944 = vpop.f32.mrb[0].mxu0
        %8945 = vdwg.mxu0
        %8946 = vmatprep.subr.bf16.mxu0 %v5382
        %8947 = vmatpush1.bf16.msra.mxu0 %v5381
        %8948 = vmatprep.subr.bf16.mxu0 %v5390
        %8949 = vmatpush1.bf16.msra.mxu0 %v5389
        %8950 = vmatprep.subr.bf16.mxu0 %v5398
        %8951 = vmatpush1.bf16.msra.mxu0 %v5397
        %8952 = vmatprep.subr.bf16.mxu0 %v5406
        %8953 = vmatpush1.bf16.msra.mxu0 %v5405
        %8954 = vmatprep.subr.bf16.mxu0 %v5414
        %8955 = vmatpush1.bf16.msra.mxu0 %v5413
        %8956 = vmatprep.subr.bf16.mxu0 %v5422
        %8957 = vmatpush1.bf16.msra.mxu0 %v5421
        %8958 = vmatprep.subr.bf16.mxu0 %v5430
        %8959 = vmatpush1.bf16.msra.mxu0 %v5429
        %8960 = vmatprep.subr.bf16.mxu0 %v5438
        %8961 = vmatpush1.bf16.msra.mxu0 %v5437
        %8962 = vmatprep.subr.bf16.mxu0 %v5446
        %8963 = vmatpush1.bf16.msra.mxu0 %v5445
        %8964 = vmatprep.subr.bf16.mxu0 %v5454
        %8965 = vmatpush1.bf16.msra.mxu0 %v5453
        %8966 = vmatprep.subr.bf16.mxu0 %v5462
        %8967 = vmatpush1.bf16.msra.mxu0 %v5461
        %8968 = vmatprep.subr.bf16.mxu0 %v5470
        %8969 = vmatpush1.bf16.msra.mxu0 %v5469
        %8970 = vmatprep.subr.bf16.mxu0 %v5478
        %8971 = vmatpush1.bf16.msra.mxu0 %v5477
        %8972 = vmatprep.subr.bf16.mxu0 %v5486
        %8973 = vmatpush1.bf16.msra.mxu0 %v5485
        %8974 = vmatprep.subr.bf16.mxu0 %v5494
        %8975 = vmatpush1.bf16.msra.mxu0 %v5493
        %8976 = vmatprep.subr.bf16.mxu0 %v5502
        %8977 = vmatpush1.bf16.msra.mxu0 %v5501
        %8978 = vmatprep.mubr.bf16.mxu0 %v8002
        %8979 = vmatmul.mubr.bf16.gmra.mrb[0].mxu0 %v8001
        %v8980 = vpop.f32.mrb[0].mxu0
        %v8981 = vadd.f32 %v8940, %v8980
        %v8982 = vpop.f32.mrb[0].mxu0
        %v8983 = vadd.f32 %v8942, %v8982
        %v8984 = vpop.f32.mrb[0].mxu0
        %v8985 = vpop.f32.mrb[0].mxu0
        %8986 = vdwg.mxu0
        %8987 = vmatprep.subr.bf16.mxu0 %v4488
        %8988 = vmatpush1.bf16.msra.mxu0 %v4487
        %8989 = vmatprep.subr.bf16.mxu0 %v4496
        %8990 = vmatpush1.bf16.msra.mxu0 %v4495
        %8991 = vmatprep.subr.bf16.mxu0 %v4504
        %8992 = vmatpush1.bf16.msra.mxu0 %v4503
        %8993 = vmatprep.subr.bf16.mxu0 %v4512
        %8994 = vmatpush1.bf16.msra.mxu0 %v4511
        %8995 = vmatprep.subr.bf16.mxu0 %v4520
        %8996 = vmatpush1.bf16.msra.mxu0 %v4519
        %8997 = vmatprep.subr.bf16.mxu0 %v4528
        %8998 = vmatpush1.bf16.msra.mxu0 %v4527
        %8999 = vmatprep.subr.bf16.mxu0 %v4536
        %9000 = vmatpush1.bf16.msra.mxu0 %v4535
        %9001 = vmatprep.subr.bf16.mxu0 %v4544
        %9002 = vmatpush1.bf16.msra.mxu0 %v4543
        %9003 = vmatprep.subr.bf16.mxu0 %v4552
        %9004 = vmatpush1.bf16.msra.mxu0 %v4551
        %9005 = vmatprep.subr.bf16.mxu0 %v4560
        %9006 = vmatpush1.bf16.msra.mxu0 %v4559
        %9007 = vmatprep.subr.bf16.mxu0 %v4568
        %9008 = vmatpush1.bf16.msra.mxu0 %v4567
        %9009 = vmatprep.subr.bf16.mxu0 %v4576
        %9010 = vmatpush1.bf16.msra.mxu0 %v4575
        %9011 = vmatprep.subr.bf16.mxu0 %v4584
        %9012 = vmatpush1.bf16.msra.mxu0 %v4583
        %9013 = vmatprep.subr.bf16.mxu0 %v4592
        %9014 = vmatpush1.bf16.msra.mxu0 %v4591
        %9015 = vmatprep.subr.bf16.mxu0 %v4600
        %9016 = vmatpush1.bf16.msra.mxu0 %v4599
        %9017 = vmatprep.subr.bf16.mxu0 %v4608
        %9018 = vmatpush1.bf16.msra.mxu0 %v4607
        %9019 = vmatprep.mubr.bf16.mxu0 %v7988
        %9020 = vmatmul.mubr.bf16.gmra.mrb[0].mxu0 %v7987
        %v9021 = vpop.f32.mrb[0].mxu0
        %v9022 = vadd.f32 0.0, %v9021
        %v9023 = vpop.f32.mrb[0].mxu0
        %v9024 = vadd.f32 0.0, %v9023
        %v9025 = vpop.f32.mrb[0].mxu0
        %v9026 = vpop.f32.mrb[0].mxu0
        %9027 = vdwg.mxu0
        %9028 = vmatprep.subr.bf16.mxu0 %v4616
        %9029 = vmatpush1.bf16.msra.mxu0 %v4615
        %9030 = vmatprep.subr.bf16.mxu0 %v4624
        %9031 = vmatpush1.bf16.msra.mxu0 %v4623
        %9032 = vmatprep.subr.bf16.mxu0 %v4632
        %9033 = vmatpush1.bf16.msra.mxu0 %v4631
        %9034 = vmatprep.subr.bf16.mxu0 %v4640
        %9035 = vmatpush1.bf16.msra.mxu0 %v4639
        %9036 = vmatprep.subr.bf16.mxu0 %v4648
        %9037 = vmatpush1.bf16.msra.mxu0 %v4647
        %9038 = vmatprep.subr.bf16.mxu0 %v4656
        %9039 = vmatpush1.bf16.msra.mxu0 %v4655
        %9040 = vmatprep.subr.bf16.mxu0 %v4664
        %9041 = vmatpush1.bf16.msra.mxu0 %v4663
        %9042 = vmatprep.subr.bf16.mxu0 %v4672
        %9043 = vmatpush1.bf16.msra.mxu0 %v4671
        %9044 = vmatprep.subr.bf16.mxu0 %v4680
        %9045 = vmatpush1.bf16.msra.mxu0 %v4679
        %9046 = vmatprep.subr.bf16.mxu0 %v4688
        %9047 = vmatpush1.bf16.msra.mxu0 %v4687
        %9048 = vmatprep.subr.bf16.mxu0 %v4696
        %9049 = vmatpush1.bf16.msra.mxu0 %v4695
        %9050 = vmatprep.subr.bf16.mxu0 %v4704
        %9051 = vmatpush1.bf16.msra.mxu0 %v4703
        %9052 = vmatprep.subr.bf16.mxu0 %v4712
        %9053 = vmatpush1.bf16.msra.mxu0 %v4711
        %9054 = vmatprep.subr.bf16.mxu0 %v4720
        %9055 = vmatpush1.bf16.msra.mxu0 %v4719
        %9056 = vmatprep.subr.bf16.mxu0 %v4728
        %9057 = vmatpush1.bf16.msra.mxu0 %v4727
        %9058 = vmatprep.subr.bf16.mxu0 %v4736
        %9059 = vmatpush1.bf16.msra.mxu0 %v4735
        %9060 = vmatprep.mubr.bf16.mxu0 %v7990
        %9061 = vmatmul.mubr.bf16.gmra.mrb[0].mxu0 %v7989
        %v9062 = vpop.f32.mrb[0].mxu0
        %v9063 = vadd.f32 %v9022, %v9062
        %v9064 = vpop.f32.mrb[0].mxu0
        %v9065 = vadd.f32 %v9024, %v9064
        %v9066 = vpop.f32.mrb[0].mxu0
        %v9067 = vpop.f32.mrb[0].mxu0
        %9068 = vdwg.mxu0
        %9069 = vmatprep.subr.bf16.mxu0 %v4744
        %9070 = vmatpush1.bf16.msra.mxu0 %v4743
        %9071 = vmatprep.subr.bf16.mxu0 %v4752
        %9072 = vmatpush1.bf16.msra.mxu0 %v4751
        %9073 = vmatprep.subr.bf16.mxu0 %v4760
        %9074 = vmatpush1.bf16.msra.mxu0 %v4759
        %9075 = vmatprep.subr.bf16.mxu0 %v4768
        %9076 = vmatpush1.bf16.msra.mxu0 %v4767
        %9077 = vmatprep.subr.bf16.mxu0 %v4776
        %9078 = vmatpush1.bf16.msra.mxu0 %v4775
        %9079 = vmatprep.subr.bf16.mxu0 %v4784
        %9080 = vmatpush1.bf16.msra.mxu0 %v4783
        %9081 = vmatprep.subr.bf16.mxu0 %v4792
        %9082 = vmatpush1.bf16.msra.mxu0 %v4791
        %9083 = vmatprep.subr.bf16.mxu0 %v4800
        %9084 = vmatpush1.bf16.msra.mxu0 %v4799
        %9085 = vmatprep.subr.bf16.mxu0 %v4808
        %9086 = vmatpush1.bf16.msra.mxu0 %v4807
        %9087 = vmatprep.subr.bf16.mxu0 %v4816
        %9088 = vmatpush1.bf16.msra.mxu0 %v4815
        %9089 = vmatprep.subr.bf16.mxu0 %v4824
        %9090 = vmatpush1.bf16.msra.mxu0 %v4823
        %9091 = vmatprep.subr.bf16.mxu0 %v4832
        %9092 = vmatpush1.bf16.msra.mxu0 %v4831
        %9093 = vmatprep.subr.bf16.mxu0 %v4840
        %9094 = vmatpush1.bf16.msra.mxu0 %v4839
        %9095 = vmatprep.subr.bf16.mxu0 %v4848
        %9096 = vmatpush1.bf16.msra.mxu0 %v4847
        %9097 = vmatprep.subr.bf16.mxu0 %v4856
        %9098 = vmatpush1.bf16.msra.mxu0 %v4855
        %9099 = vmatprep.subr.bf16.mxu0 %v4864
        %9100 = vmatpush1.bf16.msra.mxu0 %v4863
        %9101 = vmatprep.mubr.bf16.mxu0 %v7992
        %9102 = vmatmul.mubr.bf16.gmra.mrb[0].mxu0 %v7991
        %v9103 = vpop.f32.mrb[0].mxu0
        %v9104 = vadd.f32 %v9063, %v9103
        %v9105 = vpop.f32.mrb[0].mxu0
        %v9106 = vadd.f32 %v9065, %v9105
        %v9107 = vpop.f32.mrb[0].mxu0
        %v9108 = vpop.f32.mrb[0].mxu0
        %9109 = vdwg.mxu0
        %9110 = vmatprep.subr.bf16.mxu0 %v4872
        %9111 = vmatpush1.bf16.msra.mxu0 %v4871
        %9112 = vmatprep.subr.bf16.mxu0 %v4880
        %9113 = vmatpush1.bf16.msra.mxu0 %v4879
        %9114 = vmatprep.subr.bf16.mxu0 %v4888
        %9115 = vmatpush1.bf16.msra.mxu0 %v4887
        %9116 = vmatprep.subr.bf16.mxu0 %v4896
        %9117 = vmatpush1.bf16.msra.mxu0 %v4895
        %9118 = vmatprep.subr.bf16.mxu0 %v4904
        %9119 = vmatpush1.bf16.msra.mxu0 %v4903
        %9120 = vmatprep.subr.bf16.mxu0 %v4912
        %9121 = vmatpush1.bf16.msra.mxu0 %v4911
        %9122 = vmatprep.subr.bf16.mxu0 %v4920
        %9123 = vmatpush1.bf16.msra.mxu0 %v4919
        %9124 = vmatprep.subr.bf16.mxu0 %v4928
        %9125 = vmatpush1.bf16.msra.mxu0 %v4927
        %9126 = vmatprep.subr.bf16.mxu0 %v4936
        %9127 = vmatpush1.bf16.msra.mxu0 %v4935
        %9128 = vmatprep.subr.bf16.mxu0 %v4944
        %9129 = vmatpush1.bf16.msra.mxu0 %v4943
        %9130 = vmatprep.subr.bf16.mxu0 %v4952
        %9131 = vmatpush1.bf16.msra.mxu0 %v4951
        %9132 = vmatprep.subr.bf16.mxu0 %v4960
        %9133 = vmatpush1.bf16.msra.mxu0 %v4959
        %9134 = vmatprep.subr.bf16.mxu0 %v4968
        %9135 = vmatpush1.bf16.msra.mxu0 %v4967
        %9136 = vmatprep.subr.bf16.mxu0 %v4976
        %9137 = vmatpush1.bf16.msra.mxu0 %v4975
        %9138 = vmatprep.subr.bf16.mxu0 %v4984
        %9139 = vmatpush1.bf16.msra.mxu0 %v4983
        %9140 = vmatprep.subr.bf16.mxu0 %v4992
        %9141 = vmatpush1.bf16.msra.mxu0 %v4991
        %9142 = vmatprep.mubr.bf16.mxu0 %v7994
        %9143 = vmatmul.mubr.bf16.gmra.mrb[0].mxu0 %v7993
        %v9144 = vpop.f32.mrb[0].mxu0
        %v9145 = vadd.f32 %v9104, %v9144
        %v9146 = vpop.f32.mrb[0].mxu0
        %v9147 = vadd.f32 %v9106, %v9146
        %v9148 = vpop.f32.mrb[0].mxu0
        %v9149 = vpop.f32.mrb[0].mxu0
        %9150 = vdwg.mxu0
        %9151 = vmatprep.subr.bf16.mxu0 %v5000
        %9152 = vmatpush1.bf16.msra.mxu0 %v4999
        %9153 = vmatprep.subr.bf16.mxu0 %v5008
        %9154 = vmatpush1.bf16.msra.mxu0 %v5007
        %9155 = vmatprep.subr.bf16.mxu0 %v5016
        %9156 = vmatpush1.bf16.msra.mxu0 %v5015
        %9157 = vmatprep.subr.bf16.mxu0 %v5024
        %9158 = vmatpush1.bf16.msra.mxu0 %v5023
        %9159 = vmatprep.subr.bf16.mxu0 %v5032
        %9160 = vmatpush1.bf16.msra.mxu0 %v5031
        %9161 = vmatprep.subr.bf16.mxu0 %v5040
        %9162 = vmatpush1.bf16.msra.mxu0 %v5039
        %9163 = vmatprep.subr.bf16.mxu0 %v5048
        %9164 = vmatpush1.bf16.msra.mxu0 %v5047
        %9165 = vmatprep.subr.bf16.mxu0 %v5056
        %9166 = vmatpush1.bf16.msra.mxu0 %v5055
        %9167 = vmatprep.subr.bf16.mxu0 %v5064
        %9168 = vmatpush1.bf16.msra.mxu0 %v5063
        %9169 = vmatprep.subr.bf16.mxu0 %v5072
        %9170 = vmatpush1.bf16.msra.mxu0 %v5071
        %9171 = vmatprep.subr.bf16.mxu0 %v5080
        %9172 = vmatpush1.bf16.msra.mxu0 %v5079
        %9173 = vmatprep.subr.bf16.mxu0 %v5088
        %9174 = vmatpush1.bf16.msra.mxu0 %v5087
        %9175 = vmatprep.subr.bf16.mxu0 %v5096
        %9176 = vmatpush1.bf16.msra.mxu0 %v5095
        %9177 = vmatprep.subr.bf16.mxu0 %v5104
        %9178 = vmatpush1.bf16.msra.mxu0 %v5103
        %9179 = vmatprep.subr.bf16.mxu0 %v5112
        %9180 = vmatpush1.bf16.msra.mxu0 %v5111
        %9181 = vmatprep.subr.bf16.mxu0 %v5120
        %9182 = vmatpush1.bf16.msra.mxu0 %v5119
        %9183 = vmatprep.mubr.bf16.mxu0 %v7996
        %9184 = vmatmul.mubr.bf16.gmra.mrb[0].mxu0 %v7995
        %v9185 = vpop.f32.mrb[0].mxu0
        %v9186 = vadd.f32 %v9145, %v9185
        %v9187 = vpop.f32.mrb[0].mxu0
        %v9188 = vadd.f32 %v9147, %v9187
        %v9189 = vpop.f32.mrb[0].mxu0
        %v9190 = vpop.f32.mrb[0].mxu0
        %9191 = vdwg.mxu0
        %9192 = vmatprep.subr.bf16.mxu0 %v5128
        %9193 = vmatpush1.bf16.msra.mxu0 %v5127
        %9194 = vmatprep.subr.bf16.mxu0 %v5136
        %9195 = vmatpush1.bf16.msra.mxu0 %v5135
        %9196 = vmatprep.subr.bf16.mxu0 %v5144
        %9197 = vmatpush1.bf16.msra.mxu0 %v5143
        %9198 = vmatprep.subr.bf16.mxu0 %v5152
        %9199 = vmatpush1.bf16.msra.mxu0 %v5151
        %9200 = vmatprep.subr.bf16.mxu0 %v5160
        %9201 = vmatpush1.bf16.msra.mxu0 %v5159
        %9202 = vmatprep.subr.bf16.mxu0 %v5168
        %9203 = vmatpush1.bf16.msra.mxu0 %v5167
        %9204 = vmatprep.subr.bf16.mxu0 %v5176
        %9205 = vmatpush1.bf16.msra.mxu0 %v5175
        %9206 = vmatprep.subr.bf16.mxu0 %v5184
        %9207 = vmatpush1.bf16.msra.mxu0 %v5183
        %9208 = vmatprep.subr.bf16.mxu0 %v5192
        %9209 = vmatpush1.bf16.msra.mxu0 %v5191
        %9210 = vmatprep.subr.bf16.mxu0 %v5200
        %9211 = vmatpush1.bf16.msra.mxu0 %v5199
        %9212 = vmatprep.subr.bf16.mxu0 %v5208
        %9213 = vmatpush1.bf16.msra.mxu0 %v5207
        %9214 = vmatprep.subr.bf16.mxu0 %v5216
        %9215 = vmatpush1.bf16.msra.mxu0 %v5215
        %9216 = vmatprep.subr.bf16.mxu0 %v5224
        %9217 = vmatpush1.bf16.msra.mxu0 %v5223
        %9218 = vmatprep.subr.bf16.mxu0 %v5232
        %9219 = vmatpush1.bf16.msra.mxu0 %v5231
        %9220 = vmatprep.subr.bf16.mxu0 %v5240
        %9221 = vmatpush1.bf16.msra.mxu0 %v5239
        %9222 = vmatprep.subr.bf16.mxu0 %v5248
        %9223 = vmatpush1.bf16.msra.mxu0 %v5247
        %9224 = vmatprep.mubr.bf16.mxu0 %v7998
        %9225 = vmatmul.mubr.bf16.gmra.mrb[0].mxu0 %v7997
        %v9226 = vpop.f32.mrb[0].mxu0
        %v9227 = vadd.f32 %v9186, %v9226
        %v9228 = vpop.f32.mrb[0].mxu0
        %v9229 = vadd.f32 %v9188, %v9228
        %v9230 = vpop.f32.mrb[0].mxu0
        %v9231 = vpop.f32.mrb[0].mxu0
        %9232 = vdwg.mxu0
        %9233 = vmatprep.subr.bf16.mxu0 %v5256
        %9234 = vmatpush1.bf16.msra.mxu0 %v5255
        %9235 = vmatprep.subr.bf16.mxu0 %v5264
        %9236 = vmatpush1.bf16.msra.mxu0 %v5263
        %9237 = vmatprep.subr.bf16.mxu0 %v5272
        %9238 = vmatpush1.bf16.msra.mxu0 %v5271
        %9239 = vmatprep.subr.bf16.mxu0 %v5280
        %9240 = vmatpush1.bf16.msra.mxu0 %v5279
        %9241 = vmatprep.subr.bf16.mxu0 %v5288
        %9242 = vmatpush1.bf16.msra.mxu0 %v5287
        %9243 = vmatprep.subr.bf16.mxu0 %v5296
        %9244 = vmatpush1.bf16.msra.mxu0 %v5295
        %9245 = vmatprep.subr.bf16.mxu0 %v5304
        %9246 = vmatpush1.bf16.msra.mxu0 %v5303
        %9247 = vmatprep.subr.bf16.mxu0 %v5312
        %9248 = vmatpush1.bf16.msra.mxu0 %v5311
        %9249 = vmatprep.subr.bf16.mxu0 %v5320
        %9250 = vmatpush1.bf16.msra.mxu0 %v5319
        %9251 = vmatprep.subr.bf16.mxu0 %v5328
        %9252 = vmatpush1.bf16.msra.mxu0 %v5327
        %9253 = vmatprep.subr.bf16.mxu0 %v5336
        %9254 = vmatpush1.bf16.msra.mxu0 %v5335
        %9255 = vmatprep.subr.bf16.mxu0 %v5344
        %9256 = vmatpush1.bf16.msra.mxu0 %v5343
        %9257 = vmatprep.subr.bf16.mxu0 %v5352
        %9258 = vmatpush1.bf16.msra.mxu0 %v5351
        %9259 = vmatprep.subr.bf16.mxu0 %v5360
        %9260 = vmatpush1.bf16.msra.mxu0 %v5359
        %9261 = vmatprep.subr.bf16.mxu0 %v5368
        %9262 = vmatpush1.bf16.msra.mxu0 %v5367
        %9263 = vmatprep.subr.bf16.mxu0 %v5376
        %9264 = vmatpush1.bf16.msra.mxu0 %v5375
        %9265 = vmatprep.mubr.bf16.mxu0 %v8000
        %9266 = vmatmul.mubr.bf16.gmra.mrb[0].mxu0 %v7999
        %v9267 = vpop.f32.mrb[0].mxu0
        %v9268 = vadd.f32 %v9227, %v9267
        %v9269 = vpop.f32.mrb[0].mxu0
        %v9270 = vadd.f32 %v9229, %v9269
        %v9271 = vpop.f32.mrb[0].mxu0
        %v9272 = vpop.f32.mrb[0].mxu0
        %9273 = vdwg.mxu0
        %9274 = vmatprep.subr.bf16.mxu0 %v5384
        %9275 = vmatpush1.bf16.msra.mxu0 %v5383
        %9276 = vmatprep.subr.bf16.mxu0 %v5392
        %9277 = vmatpush1.bf16.msra.mxu0 %v5391
        %9278 = vmatprep.subr.bf16.mxu0 %v5400
        %9279 = vmatpush1.bf16.msra.mxu0 %v5399
        %9280 = vmatprep.subr.bf16.mxu0 %v5408
        %9281 = vmatpush1.bf16.msra.mxu0 %v5407
        %9282 = vmatprep.subr.bf16.mxu0 %v5416
        %9283 = vmatpush1.bf16.msra.mxu0 %v5415
        %9284 = vmatprep.subr.bf16.mxu0 %v5424
        %9285 = vmatpush1.bf16.msra.mxu0 %v5423
        %9286 = vmatprep.subr.bf16.mxu0 %v5432
        %9287 = vmatpush1.bf16.msra.mxu0 %v5431
        %9288 = vmatprep.subr.bf16.mxu0 %v5440
        %9289 = vmatpush1.bf16.msra.mxu0 %v5439
        %9290 = vmatprep.subr.bf16.mxu0 %v5448
        %9291 = vmatpush1.bf16.msra.mxu0 %v5447
        %9292 = vmatprep.subr.bf16.mxu0 %v5456
        %9293 = vmatpush1.bf16.msra.mxu0 %v5455
        %9294 = vmatprep.subr.bf16.mxu0 %v5464
        %9295 = vmatpush1.bf16.msra.mxu0 %v5463
        %9296 = vmatprep.subr.bf16.mxu0 %v5472
        %9297 = vmatpush1.bf16.msra.mxu0 %v5471
        %9298 = vmatprep.subr.bf16.mxu0 %v5480
        %9299 = vmatpush1.bf16.msra.mxu0 %v5479
        %9300 = vmatprep.subr.bf16.mxu0 %v5488
        %9301 = vmatpush1.bf16.msra.mxu0 %v5487
        %9302 = vmatprep.subr.bf16.mxu0 %v5496
        %9303 = vmatpush1.bf16.msra.mxu0 %v5495
        %9304 = vmatprep.subr.bf16.mxu0 %v5504
        %9305 = vmatpush1.bf16.msra.mxu0 %v5503
        %9306 = vmatprep.mubr.bf16.mxu0 %v8002
        %9307 = vmatmul.mubr.bf16.gmra.mrb[0].mxu0 %v8001
        %v9308 = vpop.f32.mrb[0].mxu0
        %v9309 = vadd.f32 %v9268, %v9308
        %v9310 = vpop.f32.mrb[0].mxu0
        %v9311 = vadd.f32 %v9270, %v9310
        %v9312 = vpop.f32.mrb[0].mxu0
        %v9313 = vpop.f32.mrb[0].mxu0
        %9314 = vdwg.mxu0
        %p9315 = scmp.eq.s32.totalorder %s24, 0
        // Predicated region
        $region49: #{neural_hamiltonian_flow.1} parent=35 // pred_check
          %p9316 = pneg %p9315
        $region50: #{neural_hamiltonian_flow.1} parent=35 // pred_check_branch
          %9318 = sbr.rel (%p9316) target = $region52
        $region51: #{neural_hamiltonian_flow.1} parent=35 // pred_region
          %9319 = vst [vmem:[#allocation2] sm:$0xff] %v8325
          %9320 = vst [vmem:[#allocation2 + $0x8] sm:$0xff] %v8327
          %9321 = vst [vmem:[#allocation2 + $0x10] sm:$0xff] %v8653
          %9322 = vst [vmem:[#allocation2 + $0x18] sm:$0xff] %v8655
          %9323 = vst [vmem:[#allocation2 + $0x20] sm:$0xff] %v8981
          %9324 = vst [vmem:[#allocation2 + $0x28] sm:$0xff] %v8983
          %9325 = vst [vmem:[#allocation2 + $0x30] sm:$0xff] %v9309
          %9326 = vst [vmem:[#allocation2 + $0x38] sm:$0xff] %v9311
        $region52: #{neural_hamiltonian_flow.1} parent=35 // pred_fallthru
          _
        %p9327 = scmp.gt.s32.totalorder %s24, 0
        // Predicated region
        $region53: #{neural_hamiltonian_flow.1} parent=35 // pred_check
          %p9328 = pneg %p9327
        $region54: #{neural_hamiltonian_flow.1} parent=35 // pred_check_branch
          %9330 = sbr.rel (%p9328) target = $region56
        $region55: #{neural_hamiltonian_flow.1} parent=35 // pred_region
          %v9331 = vld [vmem:[#allocation2] sm:$0xff]
          %v9332 = vld [vmem:[#allocation2 + $0x8] sm:$0xff]
          %v9333 = vld [vmem:[#allocation2 + $0x10] sm:$0xff]
          %v9334 = vld [vmem:[#allocation2 + $0x18] sm:$0xff]
          %v9335 = vld [vmem:[#allocation2 + $0x20] sm:$0xff]
          %v9336 = vld [vmem:[#allocation2 + $0x28] sm:$0xff]
          %v9337 = vld [vmem:[#allocation2 + $0x30] sm:$0xff]
          %v9338 = vld [vmem:[#allocation2 + $0x38] sm:$0xff]
          %v9339 = vadd.f32 %v9331, %v8325
          %v9340 = vadd.f32 %v9332, %v8327
          %v9341 = vadd.f32 %v9333, %v8653
          %v9342 = vadd.f32 %v9334, %v8655
          %v9343 = vadd.f32 %v9335, %v8981
          %v9344 = vadd.f32 %v9336, %v8983
          %v9345 = vadd.f32 %v9337, %v9309
          %v9346 = vadd.f32 %v9338, %v9311
          %9347 = vst [vmem:[#allocation2] sm:$0xff] %v9339
          %9348 = vst [vmem:[#allocation2 + $0x8] sm:$0xff] %v9340
          %9349 = vst [vmem:[#allocation2 + $0x10] sm:$0xff] %v9341
          %9350 = vst [vmem:[#allocation2 + $0x18] sm:$0xff] %v9342
          %9351 = vst [vmem:[#allocation2 + $0x20] sm:$0xff] %v9343
          %9352 = vst [vmem:[#allocation2 + $0x28] sm:$0xff] %v9344
          %9353 = vst [vmem:[#allocation2 + $0x30] sm:$0xff] %v9345
          %9354 = vst [vmem:[#allocation2 + $0x38] sm:$0xff] %v9346
        $region56: #{neural_hamiltonian_flow.1} parent=35 // pred_fallthru
          _
        // Predicated region
        $region57: #{neural_hamiltonian_flow.1} parent=35 // pred_check
          %p9355 = pneg %p9315
        $region58: #{neural_hamiltonian_flow.1} parent=35 // pred_check_branch
          %9357 = sbr.rel (%p9355) target = $region60
        $region59: #{neural_hamiltonian_flow.1} parent=35 // pred_region
          %v9358 = vld [vmem:[#allocation2] sm:$0xff]
          %v9359 = vld [vmem:[#allocation2 + $0x8] sm:$0xff]
          %v9360 = vld [vmem:[#allocation2 + $0x10] sm:$0xff]
          %v9361 = vld [vmem:[#allocation2 + $0x18] sm:$0xff]
          %v9362 = vld [vmem:[#allocation2 + $0x20] sm:$0xff]
          %v9363 = vld [vmem:[#allocation2 + $0x28] sm:$0xff]
          %v9364 = vld [vmem:[#allocation2 + $0x30] sm:$0xff]
          %v9365 = vld [vmem:[#allocation2 + $0x38] sm:$0xff]
          %v9366 = vrot.slane %v9358, 7
          %v9367 = vrot.slane %v9359, 7
          %v9368 = vrot.slane %v9360, 7
          %v9369 = vrot.slane %v9361, 7
          %v9370 = vrot.slane %v9362, 7
          %v9371 = vrot.slane %v9363, 7
          %v9372 = vrot.slane %v9364, 7
          %v9373 = vrot.slane %v9365, 7
          %9374 = vst [vmem:[%s260] sm:$0xff] %v9366
          %9375 = vst [vmem:[%s260 + $0x8] sm:$0xff] %v9367
          %9376 = vst [vmem:[%s260 + $0x10] sm:$0xff] %v9368
          %9377 = vst [vmem:[%s260 + $0x18] sm:$0xff] %v9369
          %9378 = vst [vmem:[%s260 + $0x20] sm:$0xff] %v9370
          %9379 = vst [vmem:[%s260 + $0x28] sm:$0xff] %v9371
          %9380 = vst [vmem:[%s260 + $0x30] sm:$0xff] %v9372
          %9381 = vst [vmem:[%s260 + $0x38] sm:$0xff] %v9373
        $region60: #{neural_hamiltonian_flow.1} parent=35 // pred_fallthru
          _
        %p9382 = scmp.lt.s32.totalorder %s23, 1
        %s9383 = scalar_select %p9382, %s23, 1
        %s9384 = smul.addr %s9383, 8
        %s9385 = smul.addr %s9384, 8
        %s9386 = scalar_lea.vmem %s4, %s9385
        // Predicated region
        $region61: #{neural_hamiltonian_flow.1} parent=35 // pred_check
          %p9387 = pneg %p140
        $region62: #{neural_hamiltonian_flow.1} parent=35 // pred_check_branch
          %9389 = sbr.rel (%p9387) target = $region64
        $region63: #{neural_hamiltonian_flow.1} parent=35 // pred_region
          _
        $region64: #{neural_hamiltonian_flow.1} parent=35 // pred_fallthru
          _
      $region36: #{neural_hamiltonian_flow.1} parent=5 // pred_fallthru
        _
      %p9390 = scmp.le.s32.totalorder 2, %s14
      // Predicated region
      $region65: #{neural_hamiltonian_flow.1} parent=5 // pred_check
        %p9391 = pneg %p9390
      $region66: #{neural_hamiltonian_flow.1} parent=5 // pred_check_branch
        %9393 = sbr.rel (%p9391) target = $region68
      $region67: #{neural_hamiltonian_flow.1} parent=5 // pred_region
        %s9394 = ssub.s32 %s14, 2
        // Predicated region
        $region69: #{neural_hamiltonian_flow.1} parent=67 // pred_check
          %p9395 = pneg %p146
        $region70: #{neural_hamiltonian_flow.1} parent=67 // pred_check_branch
          %9397 = sbr.rel (%p9395) target = $region72
        $region71: #{neural_hamiltonian_flow.1} parent=67 // pred_region
          %p9398 = scmp.lt.s32.totalorder %s25, 1
          %s9399 = scalar_select %p9398, %s25, 1
          %s9400 = smul.addr %s9399, 8
          %s9401 = smul.addr %s9400, 8
          %s9402 = scalar_lea.vmem %s4, %s9401
        $region72: #{neural_hamiltonian_flow.1} parent=67 // pred_fallthru
          _
      $region68: #{neural_hamiltonian_flow.1} parent=5 // pred_fallthru
        _
    $region6: #{neural_hamiltonian_flow.1} parent=1 // loop_footer
      %s18 = sadd.s32 1, %s14
    $region7: #{neural_hamiltonian_flow.1} parent=1 // loop_footer_branch
      %13 = sbr.rel target = $region3
    $region8: #{neural_hamiltonian_flow.1} parent=1 // loop_exit
      _
    %9403 = vsyncpa [#allocation4], 1
    %s9404 = scalar_lea.sflag [#allocation4], 1
    %9405 = vsyncpa %s9404, 1
    %9406 = vsyncpa [#allocation6], 1

</llo_original>
